<compile_context>
chip_gen: v5e
topology: v5e:2x2
jax: 0.10.0
libtpu: 0.0.40
codegen_flags: <defaults>
</compile_context>

<pallas_src>
import functools

import jax
import jax.numpy as jnp
from jax.experimental import pallas as pl
from jax.experimental.pallas import tpu as pltpu

LANE = 128


def _round_up(x, m):
    return (x + m - 1) // m * m


# ---------------------------------------------------------------------------
# Conv 3x3 (stride 1, pad 1) + bias + ReLU, optional fused 2x2 max-pool.
# One grid step per batch element ("parallel" -> uses both TCs on v7x).
# ---------------------------------------------------------------------------
def _conv3x3_kernel(x_ref, w_ref, b_ref, o_ref, *, H, W, pool):
    # x_ref: (H+2, W+2, Cin) bf16   w_ref: (9, Cin, Cout) bf16
    # b_ref: (1, Cout) f32          o_ref: (Ho, Wo, Cout) bf16
    cout = w_ref.shape[-1]
    acc = jnp.zeros((H * W, cout), jnp.float32)
    # 9 shifted-view taps, accumulated on the MXU (no im2col in HBM).
    for t in range(9):
        dy, dx = t // 3, t % 3
        lhs = x_ref[dy:dy + H, dx:dx + W, :].reshape(H * W, -1)
        acc = acc + jnp.dot(lhs, w_ref[t], preferred_element_type=jnp.float32)
    # fp32 bias + ReLU epilogue (kept fp32 for v5e's non-bf16 VPU).
    acc = jnp.maximum(acc + b_ref[...], 0.0)
    if pool:
        y = acc.reshape(H // 2, 2, W, cout)
        y = jnp.max(y, axis=1)                     # pool over H pairs
        y = y.reshape(H // 2, W // 2, 2, cout)
        y = jnp.max(y, axis=2)                     # pool over W pairs
    else:
        y = acc.reshape(H, W, cout)
    o_ref[...] = y.astype(o_ref.dtype)


def conv3x3_relu_pool(x_nhwc, w, b, *, pool):
    """x: (N,H,W,Cin) bf16, w: (9,Cin,Cout_pad) bf16, b: (1,Cout_pad) f32."""
    N, H, W, Cin = x_nhwc.shape
    Cout = w.shape[-1]
    Ho, Wo = (H // 2, W // 2) if pool else (H, W)
    xp = jnp.pad(x_nhwc, ((0, 0), (1, 1), (1, 1), (0, 0)))
    kern = functools.partial(_conv3x3_kernel, H=H, W=W, pool=pool)
    return pl.pallas_call(
        kern,
        out_shape=jax.ShapeDtypeStruct((N, Ho, Wo, Cout), x_nhwc.dtype),
        grid=(N,),
        in_specs=[
            pl.BlockSpec((None, H + 2, W + 2, Cin), lambda n: (n, 0, 0, 0)),
            pl.BlockSpec((9, Cin, Cout), lambda n: (0, 0, 0)),
            pl.BlockSpec((1, Cout), lambda n: (0, 0)),
        ],
        out_specs=pl.BlockSpec((None, Ho, Wo, Cout), lambda n: (n, 0, 0, 0)),
        compiler_params=pltpu.CompilerParams(
            dimension_semantics=("parallel",),
            vmem_limit_bytes=32 * 1024 * 1024,
        ),
    )(xp, w, b)


# ---------------------------------------------------------------------------
# Fused classifier: Linear -> ReLU -> Linear -> ReLU -> Linear in one kernel.
# All weights (~1 MiB bf16) and the (N,512) intermediates stay in VMEM.
# ---------------------------------------------------------------------------
def _classifier_kernel(x_ref, w1_ref, b1_ref, w2_ref, b2_ref, w3_ref, b3_ref,
                       o_ref):
    h = jnp.dot(x_ref[...], w1_ref[...], preferred_element_type=jnp.float32)
    h = jnp.maximum(h + b1_ref[...], 0.0).astype(x_ref.dtype)
    h = jnp.dot(h, w2_ref[...], preferred_element_type=jnp.float32)
    h = jnp.maximum(h + b2_ref[...], 0.0).astype(x_ref.dtype)
    h = jnp.dot(h, w3_ref[...], preferred_element_type=jnp.float32)
    o_ref[...] = (h + b3_ref[...]).astype(o_ref.dtype)


def classifier(x, fc_params):
    (w1, b1), (w2, b2), (w3, b3) = fc_params
    M = x.shape[0]
    Npad = w3.shape[-1]  # padded to 128 lanes; real logits sliced off outside
    return pl.pallas_call(
        _classifier_kernel,
        out_shape=jax.ShapeDtypeStruct((M, Npad), jnp.float32),
        in_specs=[pl.BlockSpec(memory_space=pltpu.MemorySpace.VMEM)] * 7,
        out_specs=pl.BlockSpec(memory_space=pltpu.MemorySpace.VMEM),
    )(x, w1, b1, w2, b2, w3, b3)


# ---------------------------------------------------------------------------
# VGG config / params / forward
# ---------------------------------------------------------------------------
CFG = [8, "M", 16, "M"]          # conv channels, 'M' = 2x2 max-pool
NUM_CLASSES = 10


def plan_from_cfg(cfg):
    """Static layer plan: tuple of (cout, pool_after_this_conv)."""
    plan = []
    for v in cfg:
        if v == "M":
            cout, _ = plan[-1]
            plan[-1] = (cout, True)
        else:
            plan.append((int(v), False))
    return tuple(plan)


def init_params(key, in_ch, spatial, plan):
    conv_params = []
    c, c_pad = in_ch, _round_up(max(in_ch, 8), 8)
    hw = spatial
    for cout, pool in plan:
        cout_pad = _round_up(cout, LANE)
        key, kw, kb = jax.random.split(key, 3)
        fan_in = 9 * c
        w = jax.random.normal(kw, (3, 3, c, cout), jnp.float32) * (1.0 / fan_in) ** 0.5
        w = jnp.pad(w, ((0, 0), (0, 0), (0, c_pad - c), (0, cout_pad - cout)))
        w = w.reshape(9, c_pad, cout_pad).astype(jnp.bfloat16)
        bias = jax.random.normal(kb, (cout,), jnp.float32) * 0.01
        bias = jnp.pad(bias, (0, cout_pad - cout)).reshape(1, cout_pad)
        conv_params.append((w, bias))
        c, c_pad = cout, cout_pad
        if pool:
            hw //= 2
    last_channel = c * hw * hw
    fc_params = []
    dims = [(last_channel, 512), (512, 512), (512, NUM_CLASSES)]
    for i, (din, dout) in enumerate(dims):
        key, kw, kb = jax.random.split(key, 3)
        dout_pad = _round_up(dout, LANE) if i == len(dims) - 1 else dout
        w = jax.random.normal(kw, (din, dout), jnp.float32) * (1.0 / din) ** 0.5
        w = jnp.pad(w, ((0, 0), (0, dout_pad - dout))).astype(jnp.bfloat16)
        bias = jax.random.normal(kb, (dout,), jnp.float32) * 0.01
        bias = jnp.pad(bias, (0, dout_pad - dout)).reshape(1, dout_pad)
        fc_params.append((w, bias))
    return tuple(conv_params), tuple(fc_params)


def make_vgg_forward(plan):
    """`plan` is static (closed over) so jit only sees array pytrees."""

    def forward(x_nchw, conv_params, fc_params):
        # NCHW -> NHWC (channels-last -> 128-lane dim), bf16 for the MXU.
        x = jnp.transpose(x_nchw, (0, 2, 3, 1)).astype(jnp.bfloat16)
        cin_pad = conv_params[0][0].shape[1]
        if cin_pad > x.shape[-1]:
            x = jnp.pad(x, ((0, 0), (0, 0), (0, 0), (0, cin_pad - x.shape[-1])))
        for (w, b), (_, pool) in zip(conv_params, plan):
            x = conv3x3_relu_pool(x, w, b, pool=pool)
        # Drop channel padding, back to NCHW, flatten like torch `.view(N,-1)`.
        last_cout = plan[-1][0]
        n = x.shape[0]
        x = x[..., :last_cout]
        x = jnp.transpose(x, (0, 3, 1, 2)).reshape(n, -1).astype(jnp.bfloat16)
        out = classifier(x, fc_params)
        return out[:, :NUM_CLASSES]

    return forward


if __name__ == "__main__":
    key = jax.random.PRNGKey(0)
    key, kx = jax.random.split(key)
    # Small NCHW input consistent with the PyTorch module's conv front-end.
    x = jax.random.normal(kx, (2, 4, 16, 16), jnp.float32)

    plan = plan_from_cfg(CFG)
    conv_params, fc_params = init_params(key, in_ch=4, spatial=16, plan=plan)

    forward = jax.jit(make_vgg_forward(plan))
    out = forward(x, conv_params, fc_params)
    out = jax.block_until_ready(out)

    assert out.shape == (2, NUM_CLASSES), out.shape
    assert bool(jnp.all(jnp.isfinite(out)))
    print("KERNEL_OK")
</pallas_src>

<mosaic_0001>
module attributes {stable_mosaic.version = 11 : i64} {
  func.func @_conv3x3_kernel(%arg0: i32, %arg1: memref<1x18x18x8xbf16, #tpu.memory_space<vmem>>, %arg2: memref<9x8x128xbf16, #tpu.memory_space<vmem>>, %arg3: memref<1x128xf32, #tpu.memory_space<vmem>>, %arg4: memref<1x8x8x128xbf16, #tpu.memory_space<vmem>>) attributes {dimension_semantics = [#tpu.dimension_semantics<parallel>], iteration_bounds = array<i64: 2>, scalar_prefetch = 0 : i64, scratch_operands = 0 : i64, tpu.core_type = #tpu.core_type<tc>, window_params = [{transform_indices = @transform_0, window_bounds = array<i64: 1, 18, 18, 8>}, {pipeline_mode = #tpu.pipeline_mode<synchronous>, transform_indices = @transform_1, window_bounds = array<i64: 9, 8, 128>}, {pipeline_mode = #tpu.pipeline_mode<synchronous>, transform_indices = @transform_2, window_bounds = array<i64: 1, 128>}, {transform_indices = @transform_3, window_bounds = array<i64: 1, 8, 8, 128>}]} {
    %cst = arith.constant 0.000000e+00 : f32
    %0 = vector.broadcast %cst : f32 to vector<256x128xf32>
    %c0 = arith.constant 0 : index
    %c0_0 = arith.constant 0 : index
    %c0_1 = arith.constant 0 : index
    %c0_2 = arith.constant 0 : index
    %1 = vector.load %arg1[%c0, %c0_0, %c0_1, %c0_2] : memref<1x18x18x8xbf16, #tpu.memory_space<vmem>>, vector<1x16x16x8xbf16>
    %2 = vector.shape_cast %1 : vector<1x16x16x8xbf16> to vector<16x16x8xbf16>
    %3 = vector.shape_cast %2 : vector<16x16x8xbf16> to vector<256x8xbf16>
    %c0_3 = arith.constant 0 : index
    %c0_4 = arith.constant 0 : index
    %c0_5 = arith.constant 0 : index
    %4 = vector.load %arg2[%c0_3, %c0_4, %c0_5] : memref<9x8x128xbf16, #tpu.memory_space<vmem>>, vector<1x8x128xbf16>
    %5 = vector.shape_cast %4 : vector<1x8x128xbf16> to vector<8x128xbf16>
    %cst_6 = arith.constant dense<0.000000e+00> : vector<256x128xf32>
    %6 = tpu.matmul %3, %5, %cst_6 {dimension_numbers = #tpu.dot_dimension_numbers<[1], [0], [0], [1], [0, 0, 1, 1], [], []>} : vector<256x8xbf16>, vector<8x128xbf16>, vector<256x128xf32> -> vector<256x128xf32>
    %7 = arith.addf %0, %6 : vector<256x128xf32>
    %c0_7 = arith.constant 0 : index
    %c0_8 = arith.constant 0 : index
    %c1 = arith.constant 1 : index
    %c0_9 = arith.constant 0 : index
    %8 = vector.load %arg1[%c0_7, %c0_8, %c1, %c0_9] : memref<1x18x18x8xbf16, #tpu.memory_space<vmem>>, vector<1x16x16x8xbf16>
    %9 = vector.shape_cast %8 : vector<1x16x16x8xbf16> to vector<16x16x8xbf16>
    %10 = vector.shape_cast %9 : vector<16x16x8xbf16> to vector<256x8xbf16>
    %c1_10 = arith.constant 1 : index
    %c0_11 = arith.constant 0 : index
    %c0_12 = arith.constant 0 : index
    %11 = vector.load %arg2[%c1_10, %c0_11, %c0_12] : memref<9x8x128xbf16, #tpu.memory_space<vmem>>, vector<1x8x128xbf16>
    %12 = vector.shape_cast %11 : vector<1x8x128xbf16> to vector<8x128xbf16>
    %cst_13 = arith.constant dense<0.000000e+00> : vector<256x128xf32>
    %13 = tpu.matmul %10, %12, %cst_13 {dimension_numbers = #tpu.dot_dimension_numbers<[1], [0], [0], [1], [0, 0, 1, 1], [], []>} : vector<256x8xbf16>, vector<8x128xbf16>, vector<256x128xf32> -> vector<256x128xf32>
    %14 = arith.addf %7, %13 : vector<256x128xf32>
    %c0_14 = arith.constant 0 : index
    %c0_15 = arith.constant 0 : index
    %c2 = arith.constant 2 : index
    %c0_16 = arith.constant 0 : index
    %15 = vector.load %arg1[%c0_14, %c0_15, %c2, %c0_16] : memref<1x18x18x8xbf16, #tpu.memory_space<vmem>>, vector<1x16x16x8xbf16>
    %16 = vector.shape_cast %15 : vector<1x16x16x8xbf16> to vector<16x16x8xbf16>
    %17 = vector.shape_cast %16 : vector<16x16x8xbf16> to vector<256x8xbf16>
    %c2_17 = arith.constant 2 : index
    %c0_18 = arith.constant 0 : index
    %c0_19 = arith.constant 0 : index
    %18 = vector.load %arg2[%c2_17, %c0_18, %c0_19] : memref<9x8x128xbf16, #tpu.memory_space<vmem>>, vector<1x8x128xbf16>
    %19 = vector.shape_cast %18 : vector<1x8x128xbf16> to vector<8x128xbf16>
    %cst_20 = arith.constant dense<0.000000e+00> : vector<256x128xf32>
    %20 = tpu.matmul %17, %19, %cst_20 {dimension_numbers = #tpu.dot_dimension_numbers<[1], [0], [0], [1], [0, 0, 1, 1], [], []>} : vector<256x8xbf16>, vector<8x128xbf16>, vector<256x128xf32> -> vector<256x128xf32>
    %21 = arith.addf %14, %20 : vector<256x128xf32>
    %c0_21 = arith.constant 0 : index
    %c1_22 = arith.constant 1 : index
    %c0_23 = arith.constant 0 : index
    %c0_24 = arith.constant 0 : index
    %22 = vector.load %arg1[%c0_21, %c1_22, %c0_23, %c0_24] : memref<1x18x18x8xbf16, #tpu.memory_space<vmem>>, vector<1x16x16x8xbf16>
    %23 = vector.shape_cast %22 : vector<1x16x16x8xbf16> to vector<16x16x8xbf16>
    %24 = vector.shape_cast %23 : vector<16x16x8xbf16> to vector<256x8xbf16>
    %c3 = arith.constant 3 : index
    %c0_25 = arith.constant 0 : index
    %c0_26 = arith.constant 0 : index
    %25 = vector.load %arg2[%c3, %c0_25, %c0_26] : memref<9x8x128xbf16, #tpu.memory_space<vmem>>, vector<1x8x128xbf16>
    %26 = vector.shape_cast %25 : vector<1x8x128xbf16> to vector<8x128xbf16>
    %cst_27 = arith.constant dense<0.000000e+00> : vector<256x128xf32>
    %27 = tpu.matmul %24, %26, %cst_27 {dimension_numbers = #tpu.dot_dimension_numbers<[1], [0], [0], [1], [0, 0, 1, 1], [], []>} : vector<256x8xbf16>, vector<8x128xbf16>, vector<256x128xf32> -> vector<256x128xf32>
    %28 = arith.addf %21, %27 : vector<256x128xf32>
    %c0_28 = arith.constant 0 : index
    %c1_29 = arith.constant 1 : index
    %c1_30 = arith.constant 1 : index
    %c0_31 = arith.constant 0 : index
    %29 = vector.load %arg1[%c0_28, %c1_29, %c1_30, %c0_31] : memref<1x18x18x8xbf16, #tpu.memory_space<vmem>>, vector<1x16x16x8xbf16>
    %30 = vector.shape_cast %29 : vector<1x16x16x8xbf16> to vector<16x16x8xbf16>
    %31 = vector.shape_cast %30 : vector<16x16x8xbf16> to vector<256x8xbf16>
    %c4 = arith.constant 4 : index
    %c0_32 = arith.constant 0 : index
    %c0_33 = arith.constant 0 : index
    %32 = vector.load %arg2[%c4, %c0_32, %c0_33] : memref<9x8x128xbf16, #tpu.memory_space<vmem>>, vector<1x8x128xbf16>
    %33 = vector.shape_cast %32 : vector<1x8x128xbf16> to vector<8x128xbf16>
    %cst_34 = arith.constant dense<0.000000e+00> : vector<256x128xf32>
    %34 = tpu.matmul %31, %33, %cst_34 {dimension_numbers = #tpu.dot_dimension_numbers<[1], [0], [0], [1], [0, 0, 1, 1], [], []>} : vector<256x8xbf16>, vector<8x128xbf16>, vector<256x128xf32> -> vector<256x128xf32>
    %35 = arith.addf %28, %34 : vector<256x128xf32>
    %c0_35 = arith.constant 0 : index
    %c1_36 = arith.constant 1 : index
    %c2_37 = arith.constant 2 : index
    %c0_38 = arith.constant 0 : index
    %36 = vector.load %arg1[%c0_35, %c1_36, %c2_37, %c0_38] : memref<1x18x18x8xbf16, #tpu.memory_space<vmem>>, vector<1x16x16x8xbf16>
    %37 = vector.shape_cast %36 : vector<1x16x16x8xbf16> to vector<16x16x8xbf16>
    %38 = vector.shape_cast %37 : vector<16x16x8xbf16> to vector<256x8xbf16>
    %c5 = arith.constant 5 : index
    %c0_39 = arith.constant 0 : index
    %c0_40 = arith.constant 0 : index
    %39 = vector.load %arg2[%c5, %c0_39, %c0_40] : memref<9x8x128xbf16, #tpu.memory_space<vmem>>, vector<1x8x128xbf16>
    %40 = vector.shape_cast %39 : vector<1x8x128xbf16> to vector<8x128xbf16>
    %cst_41 = arith.constant dense<0.000000e+00> : vector<256x128xf32>
    %41 = tpu.matmul %38, %40, %cst_41 {dimension_numbers = #tpu.dot_dimension_numbers<[1], [0], [0], [1], [0, 0, 1, 1], [], []>} : vector<256x8xbf16>, vector<8x128xbf16>, vector<256x128xf32> -> vector<256x128xf32>
    %42 = arith.addf %35, %41 : vector<256x128xf32>
    %c0_42 = arith.constant 0 : index
    %c2_43 = arith.constant 2 : index
    %c0_44 = arith.constant 0 : index
    %c0_45 = arith.constant 0 : index
    %43 = vector.load %arg1[%c0_42, %c2_43, %c0_44, %c0_45] : memref<1x18x18x8xbf16, #tpu.memory_space<vmem>>, vector<1x16x16x8xbf16>
    %44 = vector.shape_cast %43 : vector<1x16x16x8xbf16> to vector<16x16x8xbf16>
    %45 = vector.shape_cast %44 : vector<16x16x8xbf16> to vector<256x8xbf16>
    %c6 = arith.constant 6 : index
    %c0_46 = arith.constant 0 : index
    %c0_47 = arith.constant 0 : index
    %46 = vector.load %arg2[%c6, %c0_46, %c0_47] : memref<9x8x128xbf16, #tpu.memory_space<vmem>>, vector<1x8x128xbf16>
    %47 = vector.shape_cast %46 : vector<1x8x128xbf16> to vector<8x128xbf16>
    %cst_48 = arith.constant dense<0.000000e+00> : vector<256x128xf32>
    %48 = tpu.matmul %45, %47, %cst_48 {dimension_numbers = #tpu.dot_dimension_numbers<[1], [0], [0], [1], [0, 0, 1, 1], [], []>} : vector<256x8xbf16>, vector<8x128xbf16>, vector<256x128xf32> -> vector<256x128xf32>
    %49 = arith.addf %42, %48 : vector<256x128xf32>
    %c0_49 = arith.constant 0 : index
    %c2_50 = arith.constant 2 : index
    %c1_51 = arith.constant 1 : index
    %c0_52 = arith.constant 0 : index
    %50 = vector.load %arg1[%c0_49, %c2_50, %c1_51, %c0_52] : memref<1x18x18x8xbf16, #tpu.memory_space<vmem>>, vector<1x16x16x8xbf16>
    %51 = vector.shape_cast %50 : vector<1x16x16x8xbf16> to vector<16x16x8xbf16>
    %52 = vector.shape_cast %51 : vector<16x16x8xbf16> to vector<256x8xbf16>
    %c7 = arith.constant 7 : index
    %c0_53 = arith.constant 0 : index
    %c0_54 = arith.constant 0 : index
    %53 = vector.load %arg2[%c7, %c0_53, %c0_54] : memref<9x8x128xbf16, #tpu.memory_space<vmem>>, vector<1x8x128xbf16>
    %54 = vector.shape_cast %53 : vector<1x8x128xbf16> to vector<8x128xbf16>
    %cst_55 = arith.constant dense<0.000000e+00> : vector<256x128xf32>
    %55 = tpu.matmul %52, %54, %cst_55 {dimension_numbers = #tpu.dot_dimension_numbers<[1], [0], [0], [1], [0, 0, 1, 1], [], []>} : vector<256x8xbf16>, vector<8x128xbf16>, vector<256x128xf32> -> vector<256x128xf32>
    %56 = arith.addf %49, %55 : vector<256x128xf32>
    %c0_56 = arith.constant 0 : index
    %c2_57 = arith.constant 2 : index
    %c2_58 = arith.constant 2 : index
    %c0_59 = arith.constant 0 : index
    %57 = vector.load %arg1[%c0_56, %c2_57, %c2_58, %c0_59] : memref<1x18x18x8xbf16, #tpu.memory_space<vmem>>, vector<1x16x16x8xbf16>
    %58 = vector.shape_cast %57 : vector<1x16x16x8xbf16> to vector<16x16x8xbf16>
    %59 = vector.shape_cast %58 : vector<16x16x8xbf16> to vector<256x8xbf16>
    %c8 = arith.constant 8 : index
    %c0_60 = arith.constant 0 : index
    %c0_61 = arith.constant 0 : index
    %60 = vector.load %arg2[%c8, %c0_60, %c0_61] : memref<9x8x128xbf16, #tpu.memory_space<vmem>>, vector<1x8x128xbf16>
    %61 = vector.shape_cast %60 : vector<1x8x128xbf16> to vector<8x128xbf16>
    %cst_62 = arith.constant dense<0.000000e+00> : vector<256x128xf32>
    %62 = tpu.matmul %59, %61, %cst_62 {dimension_numbers = #tpu.dot_dimension_numbers<[1], [0], [0], [1], [0, 0, 1, 1], [], []>} : vector<256x8xbf16>, vector<8x128xbf16>, vector<256x128xf32> -> vector<256x128xf32>
    %63 = arith.addf %56, %62 : vector<256x128xf32>
    %c0_63 = arith.constant 0 : index
    %c0_64 = arith.constant 0 : index
    %64 = vector.load %arg3[%c0_63, %c0_64] : memref<1x128xf32, #tpu.memory_space<vmem>>, vector<1x128xf32>
    %65 = vector.broadcast %64 : vector<1x128xf32> to vector<256x128xf32>
    %66 = arith.addf %63, %65 : vector<256x128xf32>
    %cst_65 = arith.constant 0.000000e+00 : f32
    %67 = vector.broadcast %cst_65 : f32 to vector<256x128xf32>
    %68 = arith.maximumf %66, %67 : vector<256x128xf32>
    %69 = vector.shape_cast %68 : vector<256x128xf32> to vector<8x2x16x128xf32>
    %cst_66 = arith.constant dense<0xFF800000> : vector<8x16x128xf32>
    %70 = vector.multi_reduction <maximumf>, %69, %cst_66 [1] : vector<8x2x16x128xf32> to vector<8x16x128xf32>
    %71 = vector.shape_cast %70 : vector<8x16x128xf32> to vector<8x8x2x128xf32>
    %cst_67 = arith.constant dense<0xFF800000> : vector<8x8x128xf32>
    %72 = vector.multi_reduction <maximumf>, %71, %cst_67 [2] : vector<8x8x2x128xf32> to vector<8x8x128xf32>
    %73 = arith.truncf %72 : vector<8x8x128xf32> to vector<8x8x128xbf16>
    %c0_68 = arith.constant 0 : index
    %c0_69 = arith.constant 0 : index
    %c0_70 = arith.constant 0 : index
    %c0_71 = arith.constant 0 : index
    %74 = vector.load %arg4[%c0_68, %c0_69, %c0_70, %c0_71] : memref<1x8x8x128xbf16, #tpu.memory_space<vmem>>, vector<1x8x8x128xbf16>
    %75 = vector.shape_cast %74 : vector<1x8x8x128xbf16> to vector<8x8x128xbf16>
    %76 = vector.shape_cast %73 : vector<8x8x128xbf16> to vector<1x8x8x128xbf16>
    tpu.vector_store %arg4[%c0_68, %c0_69, %c0_70, %c0_71], %76 {strides = array<i32>} : memref<1x8x8x128xbf16, #tpu.memory_space<vmem>>, vector<1x8x8x128xbf16>,
    return
  }
  func.func @transform_0(%arg0: i32) -> (i32, i32, i32, i32) {
    %c0_i32 = arith.constant 0 : i32
    %c0_i32_0 = arith.constant 0 : i32
    %c0_i32_1 = arith.constant 0 : i32
    %c0_i32_2 = arith.constant 0 : i32
    return %arg0, %c0_i32, %c0_i32_0, %c0_i32_1 : i32, i32, i32, i32
  }
  func.func @transform_1(%arg0: i32) -> (i32, i32, i32) {
    %c0_i32 = arith.constant 0 : i32
    %c0_i32_0 = arith.constant 0 : i32
    %c0_i32_1 = arith.constant 0 : i32
    %c0_i32_2 = arith.constant 0 : i32
    return %c0_i32, %c0_i32_0, %c0_i32_1 : i32, i32, i32
  }
  func.func @transform_2(%arg0: i32) -> (i32, i32) {
    %c0_i32 = arith.constant 0 : i32
    %c0_i32_0 = arith.constant 0 : i32
    %c0_i32_1 = arith.constant 0 : i32
    return %c0_i32, %c0_i32_0 : i32, i32
  }
  func.func @transform_3(%arg0: i32) -> (i32, i32, i32, i32) {
    %c0_i32 = arith.constant 0 : i32
    %c0_i32_0 = arith.constant 0 : i32
    %c0_i32_1 = arith.constant 0 : i32
    %c0_i32_2 = arith.constant 0 : i32
    return %arg0, %c0_i32, %c0_i32_0, %c0_i32_1 : i32, i32, i32, i32
  }
}

module attributes {stable_mosaic.version = 11 : i64} {
  func.func @_conv3x3_kernel(%arg0: i32, %arg1: memref<1x10x10x128xbf16, #tpu.memory_space<vmem>>, %arg2: memref<9x128x128xbf16, #tpu.memory_space<vmem>>, %arg3: memref<1x128xf32, #tpu.memory_space<vmem>>, %arg4: memref<1x4x4x128xbf16, #tpu.memory_space<vmem>>) attributes {dimension_semantics = [#tpu.dimension_semantics<parallel>], iteration_bounds = array<i64: 2>, scalar_prefetch = 0 : i64, scratch_operands = 0 : i64, tpu.core_type = #tpu.core_type<tc>, window_params = [{transform_indices = @transform_0, window_bounds = array<i64: 1, 10, 10, 128>}, {pipeline_mode = #tpu.pipeline_mode<synchronous>, transform_indices = @transform_1, window_bounds = array<i64: 9, 128, 128>}, {pipeline_mode = #tpu.pipeline_mode<synchronous>, transform_indices = @transform_2, window_bounds = array<i64: 1, 128>}, {transform_indices = @transform_3, window_bounds = array<i64: 1, 4, 4, 128>}]} {
    %cst = arith.constant 0.000000e+00 : f32
    %0 = vector.broadcast %cst : f32 to vector<64x128xf32>
    %c0 = arith.constant 0 : index
    %c0_0 = arith.constant 0 : index
    %c0_1 = arith.constant 0 : index
    %c0_2 = arith.constant 0 : index
    %1 = vector.load %arg1[%c0, %c0_0, %c0_1, %c0_2] : memref<1x10x10x128xbf16, #tpu.memory_space<vmem>>, vector<1x8x8x128xbf16>
    %2 = vector.shape_cast %1 : vector<1x8x8x128xbf16> to vector<8x8x128xbf16>
    %3 = vector.shape_cast %2 : vector<8x8x128xbf16> to vector<64x128xbf16>
    %c0_3 = arith.constant 0 : index
    %c0_4 = arith.constant 0 : index
    %c0_5 = arith.constant 0 : index
    %4 = vector.load %arg2[%c0_3, %c0_4, %c0_5] : memref<9x128x128xbf16, #tpu.memory_space<vmem>>, vector<1x128x128xbf16>
    %5 = vector.shape_cast %4 : vector<1x128x128xbf16> to vector<128x128xbf16>
    %cst_6 = arith.constant dense<0.000000e+00> : vector<64x128xf32>
    %6 = tpu.matmul %3, %5, %cst_6 {dimension_numbers = #tpu.dot_dimension_numbers<[1], [0], [0], [1], [0, 0, 1, 1], [], []>} : vector<64x128xbf16>, vector<128x128xbf16>, vector<64x128xf32> -> vector<64x128xf32>
    %7 = arith.addf %0, %6 : vector<64x128xf32>
    %c0_7 = arith.constant 0 : index
    %c0_8 = arith.constant 0 : index
    %c1 = arith.constant 1 : index
    %c0_9 = arith.constant 0 : index
    %8 = vector.load %arg1[%c0_7, %c0_8, %c1, %c0_9] : memref<1x10x10x128xbf16, #tpu.memory_space<vmem>>, vector<1x8x8x128xbf16>
    %9 = vector.shape_cast %8 : vector<1x8x8x128xbf16> to vector<8x8x128xbf16>
    %10 = vector.shape_cast %9 : vector<8x8x128xbf16> to vector<64x128xbf16>
    %c1_10 = arith.constant 1 : index
    %c0_11 = arith.constant 0 : index
    %c0_12 = arith.constant 0 : index
    %11 = vector.load %arg2[%c1_10, %c0_11, %c0_12] : memref<9x128x128xbf16, #tpu.memory_space<vmem>>, vector<1x128x128xbf16>
    %12 = vector.shape_cast %11 : vector<1x128x128xbf16> to vector<128x128xbf16>
    %cst_13 = arith.constant dense<0.000000e+00> : vector<64x128xf32>
    %13 = tpu.matmul %10, %12, %cst_13 {dimension_numbers = #tpu.dot_dimension_numbers<[1], [0], [0], [1], [0, 0, 1, 1], [], []>} : vector<64x128xbf16>, vector<128x128xbf16>, vector<64x128xf32> -> vector<64x128xf32>
    %14 = arith.addf %7, %13 : vector<64x128xf32>
    %c0_14 = arith.constant 0 : index
    %c0_15 = arith.constant 0 : index
    %c2 = arith.constant 2 : index
    %c0_16 = arith.constant 0 : index
    %15 = vector.load %arg1[%c0_14, %c0_15, %c2, %c0_16] : memref<1x10x10x128xbf16, #tpu.memory_space<vmem>>, vector<1x8x8x128xbf16>
    %16 = vector.shape_cast %15 : vector<1x8x8x128xbf16> to vector<8x8x128xbf16>
    %17 = vector.shape_cast %16 : vector<8x8x128xbf16> to vector<64x128xbf16>
    %c2_17 = arith.constant 2 : index
    %c0_18 = arith.constant 0 : index
    %c0_19 = arith.constant 0 : index
    %18 = vector.load %arg2[%c2_17, %c0_18, %c0_19] : memref<9x128x128xbf16, #tpu.memory_space<vmem>>, vector<1x128x128xbf16>
    %19 = vector.shape_cast %18 : vector<1x128x128xbf16> to vector<128x128xbf16>
    %cst_20 = arith.constant dense<0.000000e+00> : vector<64x128xf32>
    %20 = tpu.matmul %17, %19, %cst_20 {dimension_numbers = #tpu.dot_dimension_numbers<[1], [0], [0], [1], [0, 0, 1, 1], [], []>} : vector<64x128xbf16>, vector<128x128xbf16>, vector<64x128xf32> -> vector<64x128xf32>
    %21 = arith.addf %14, %20 : vector<64x128xf32>
    %c0_21 = arith.constant 0 : index
    %c1_22 = arith.constant 1 : index
    %c0_23 = arith.constant 0 : index
    %c0_24 = arith.constant 0 : index
    %22 = vector.load %arg1[%c0_21, %c1_22, %c0_23, %c0_24] : memref<1x10x10x128xbf16, #tpu.memory_space<vmem>>, vector<1x8x8x128xbf16>
    %23 = vector.shape_cast %22 : vector<1x8x8x128xbf16> to vector<8x8x128xbf16>
    %24 = vector.shape_cast %23 : vector<8x8x128xbf16> to vector<64x128xbf16>
    %c3 = arith.constant 3 : index
    %c0_25 = arith.constant 0 : index
    %c0_26 = arith.constant 0 : index
    %25 = vector.load %arg2[%c3, %c0_25, %c0_26] : memref<9x128x128xbf16, #tpu.memory_space<vmem>>, vector<1x128x128xbf16>
    %26 = vector.shape_cast %25 : vector<1x128x128xbf16> to vector<128x128xbf16>
    %cst_27 = arith.constant dense<0.000000e+00> : vector<64x128xf32>
    %27 = tpu.matmul %24, %26, %cst_27 {dimension_numbers = #tpu.dot_dimension_numbers<[1], [0], [0], [1], [0, 0, 1, 1], [], []>} : vector<64x128xbf16>, vector<128x128xbf16>, vector<64x128xf32> -> vector<64x128xf32>
    %28 = arith.addf %21, %27 : vector<64x128xf32>
    %c0_28 = arith.constant 0 : index
    %c1_29 = arith.constant 1 : index
    %c1_30 = arith.constant 1 : index
    %c0_31 = arith.constant 0 : index
    %29 = vector.load %arg1[%c0_28, %c1_29, %c1_30, %c0_31] : memref<1x10x10x128xbf16, #tpu.memory_space<vmem>>, vector<1x8x8x128xbf16>
    %30 = vector.shape_cast %29 : vector<1x8x8x128xbf16> to vector<8x8x128xbf16>
    %31 = vector.shape_cast %30 : vector<8x8x128xbf16> to vector<64x128xbf16>
    %c4 = arith.constant 4 : index
    %c0_32 = arith.constant 0 : index
    %c0_33 = arith.constant 0 : index
    %32 = vector.load %arg2[%c4, %c0_32, %c0_33] : memref<9x128x128xbf16, #tpu.memory_space<vmem>>, vector<1x128x128xbf16>
    %33 = vector.shape_cast %32 : vector<1x128x128xbf16> to vector<128x128xbf16>
    %cst_34 = arith.constant dense<0.000000e+00> : vector<64x128xf32>
    %34 = tpu.matmul %31, %33, %cst_34 {dimension_numbers = #tpu.dot_dimension_numbers<[1], [0], [0], [1], [0, 0, 1, 1], [], []>} : vector<64x128xbf16>, vector<128x128xbf16>, vector<64x128xf32> -> vector<64x128xf32>
    %35 = arith.addf %28, %34 : vector<64x128xf32>
    %c0_35 = arith.constant 0 : index
    %c1_36 = arith.constant 1 : index
    %c2_37 = arith.constant 2 : index
    %c0_38 = arith.constant 0 : index
    %36 = vector.load %arg1[%c0_35, %c1_36, %c2_37, %c0_38] : memref<1x10x10x128xbf16, #tpu.memory_space<vmem>>, vector<1x8x8x128xbf16>
    %37 = vector.shape_cast %36 : vector<1x8x8x128xbf16> to vector<8x8x128xbf16>
    %38 = vector.shape_cast %37 : vector<8x8x128xbf16> to vector<64x128xbf16>
    %c5 = arith.constant 5 : index
    %c0_39 = arith.constant 0 : index
    %c0_40 = arith.constant 0 : index
    %39 = vector.load %arg2[%c5, %c0_39, %c0_40] : memref<9x128x128xbf16, #tpu.memory_space<vmem>>, vector<1x128x128xbf16>
    %40 = vector.shape_cast %39 : vector<1x128x128xbf16> to vector<128x128xbf16>
    %cst_41 = arith.constant dense<0.000000e+00> : vector<64x128xf32>
    %41 = tpu.matmul %38, %40, %cst_41 {dimension_numbers = #tpu.dot_dimension_numbers<[1], [0], [0], [1], [0, 0, 1, 1], [], []>} : vector<64x128xbf16>, vector<128x128xbf16>, vector<64x128xf32> -> vector<64x128xf32>
    %42 = arith.addf %35, %41 : vector<64x128xf32>
    %c0_42 = arith.constant 0 : index
    %c2_43 = arith.constant 2 : index
    %c0_44 = arith.constant 0 : index
    %c0_45 = arith.constant 0 : index
    %43 = vector.load %arg1[%c0_42, %c2_43, %c0_44, %c0_45] : memref<1x10x10x128xbf16, #tpu.memory_space<vmem>>, vector<1x8x8x128xbf16>
    %44 = vector.shape_cast %43 : vector<1x8x8x128xbf16> to vector<8x8x128xbf16>
    %45 = vector.shape_cast %44 : vector<8x8x128xbf16> to vector<64x128xbf16>
    %c6 = arith.constant 6 : index
    %c0_46 = arith.constant 0 : index
    %c0_47 = arith.constant 0 : index
    %46 = vector.load %arg2[%c6, %c0_46, %c0_47] : memref<9x128x128xbf16, #tpu.memory_space<vmem>>, vector<1x128x128xbf16>
    %47 = vector.shape_cast %46 : vector<1x128x128xbf16> to vector<128x128xbf16>
    %cst_48 = arith.constant dense<0.000000e+00> : vector<64x128xf32>
    %48 = tpu.matmul %45, %47, %cst_48 {dimension_numbers = #tpu.dot_dimension_numbers<[1], [0], [0], [1], [0, 0, 1, 1], [], []>} : vector<64x128xbf16>, vector<128x128xbf16>, vector<64x128xf32> -> vector<64x128xf32>
    %49 = arith.addf %42, %48 : vector<64x128xf32>
    %c0_49 = arith.constant 0 : index
    %c2_50 = arith.constant 2 : index
    %c1_51 = arith.constant 1 : index
    %c0_52 = arith.constant 0 : index
    %50 = vector.load %arg1[%c0_49, %c2_50, %c1_51, %c0_52] : memref<1x10x10x128xbf16, #tpu.memory_space<vmem>>, vector<1x8x8x128xbf16>
    %51 = vector.shape_cast %50 : vector<1x8x8x128xbf16> to vector<8x8x128xbf16>
    %52 = vector.shape_cast %51 : vector<8x8x128xbf16> to vector<64x128xbf16>
    %c7 = arith.constant 7 : index
    %c0_53 = arith.constant 0 : index
    %c0_54 = arith.constant 0 : index
    %53 = vector.load %arg2[%c7, %c0_53, %c0_54] : memref<9x128x128xbf16, #tpu.memory_space<vmem>>, vector<1x128x128xbf16>
    %54 = vector.shape_cast %53 : vector<1x128x128xbf16> to vector<128x128xbf16>
    %cst_55 = arith.constant dense<0.000000e+00> : vector<64x128xf32>
    %55 = tpu.matmul %52, %54, %cst_55 {dimension_numbers = #tpu.dot_dimension_numbers<[1], [0], [0], [1], [0, 0, 1, 1], [], []>} : vector<64x128xbf16>, vector<128x128xbf16>, vector<64x128xf32> -> vector<64x128xf32>
    %56 = arith.addf %49, %55 : vector<64x128xf32>
    %c0_56 = arith.constant 0 : index
    %c2_57 = arith.constant 2 : index
    %c2_58 = arith.constant 2 : index
    %c0_59 = arith.constant 0 : index
    %57 = vector.load %arg1[%c0_56, %c2_57, %c2_58, %c0_59] : memref<1x10x10x128xbf16, #tpu.memory_space<vmem>>, vector<1x8x8x128xbf16>
    %58 = vector.shape_cast %57 : vector<1x8x8x128xbf16> to vector<8x8x128xbf16>
    %59 = vector.shape_cast %58 : vector<8x8x128xbf16> to vector<64x128xbf16>
    %c8 = arith.constant 8 : index
    %c0_60 = arith.constant 0 : index
    %c0_61 = arith.constant 0 : index
    %60 = vector.load %arg2[%c8, %c0_60, %c0_61] : memref<9x128x128xbf16, #tpu.memory_space<vmem>>, vector<1x128x128xbf16>
    %61 = vector.shape_cast %60 : vector<1x128x128xbf16> to vector<128x128xbf16>
    %cst_62 = arith.constant dense<0.000000e+00> : vector<64x128xf32>
    %62 = tpu.matmul %59, %61, %cst_62 {dimension_numbers = #tpu.dot_dimension_numbers<[1], [0], [0], [1], [0, 0, 1, 1], [], []>} : vector<64x128xbf16>, vector<128x128xbf16>, vector<64x128xf32> -> vector<64x128xf32>
    %63 = arith.addf %56, %62 : vector<64x128xf32>
    %c0_63 = arith.constant 0 : index
    %c0_64 = arith.constant 0 : index
    %64 = vector.load %arg3[%c0_63, %c0_64] : memref<1x128xf32, #tpu.memory_space<vmem>>, vector<1x128xf32>
    %65 = vector.broadcast %64 : vector<1x128xf32> to vector<64x128xf32>
    %66 = arith.addf %63, %65 : vector<64x128xf32>
    %cst_65 = arith.constant 0.000000e+00 : f32
    %67 = vector.broadcast %cst_65 : f32 to vector<64x128xf32>
    %68 = arith.maximumf %66, %67 : vector<64x128xf32>
    %69 = vector.shape_cast %68 : vector<64x128xf32> to vector<4x2x8x128xf32>
    %cst_66 = arith.constant dense<0xFF800000> : vector<4x8x128xf32>
    %70 = vector.multi_reduction <maximumf>, %69, %cst_66 [1] : vector<4x2x8x128xf32> to vector<4x8x128xf32>
    %71 = vector.shape_cast %70 : vector<4x8x128xf32> to vector<4x4x2x128xf32>
    %cst_67 = arith.constant dense<0xFF800000> : vector<4x4x128xf32>
    %72 = vector.multi_reduction <maximumf>, %71, %cst_67 [2] : vector<4x4x2x128xf32> to vector<4x4x128xf32>
    %73 = arith.truncf %72 : vector<4x4x128xf32> to vector<4x4x128xbf16>
    %c0_68 = arith.constant 0 : index
    %c0_69 = arith.constant 0 : index
    %c0_70 = arith.constant 0 : index
    %c0_71 = arith.constant 0 : index
    %74 = vector.load %arg4[%c0_68, %c0_69, %c0_70, %c0_71] : memref<1x4x4x128xbf16, #tpu.memory_space<vmem>>, vector<1x4x4x128xbf16>
    %75 = vector.shape_cast %74 : vector<1x4x4x128xbf16> to vector<4x4x128xbf16>
    %76 = vector.shape_cast %73 : vector<4x4x128xbf16> to vector<1x4x4x128xbf16>
    tpu.vector_store %arg4[%c0_68, %c0_69, %c0_70, %c0_71], %76 {strides = array<i32>} : memref<1x4x4x128xbf16, #tpu.memory_space<vmem>>, vector<1x4x4x128xbf16>,
    return
  }
  func.func @transform_0(%arg0: i32) -> (i32, i32, i32, i32) {
    %c0_i32 = arith.constant 0 : i32
    %c0_i32_0 = arith.constant 0 : i32
    %c0_i32_1 = arith.constant 0 : i32
    %c0_i32_2 = arith.constant 0 : i32
    return %arg0, %c0_i32, %c0_i32_0, %c0_i32_1 : i32, i32, i32, i32
  }
  func.func @transform_1(%arg0: i32) -> (i32, i32, i32) {
    %c0_i32 = arith.constant 0 : i32
    %c0_i32_0 = arith.constant 0 : i32
    %c0_i32_1 = arith.constant 0 : i32
    %c0_i32_2 = arith.constant 0 : i32
    return %c0_i32, %c0_i32_0, %c0_i32_1 : i32, i32, i32
  }
  func.func @transform_2(%arg0: i32) -> (i32, i32) {
    %c0_i32 = arith.constant 0 : i32
    %c0_i32_0 = arith.constant 0 : i32
    %c0_i32_1 = arith.constant 0 : i32
    return %c0_i32, %c0_i32_0 : i32, i32
  }
  func.func @transform_3(%arg0: i32) -> (i32, i32, i32, i32) {
    %c0_i32 = arith.constant 0 : i32
    %c0_i32_0 = arith.constant 0 : i32
    %c0_i32_1 = arith.constant 0 : i32
    %c0_i32_2 = arith.constant 0 : i32
    return %arg0, %c0_i32, %c0_i32_0, %c0_i32_1 : i32, i32, i32, i32
  }
}

module attributes {stable_mosaic.version = 11 : i64} {
  func.func @_classifier_kernel(%arg0: memref<2x256xbf16, #tpu.memory_space<vmem>>, %arg1: memref<256x512xbf16, #tpu.memory_space<vmem>>, %arg2: memref<1x512xf32, #tpu.memory_space<vmem>>, %arg3: memref<512x512xbf16, #tpu.memory_space<vmem>>, %arg4: memref<1x512xf32, #tpu.memory_space<vmem>>, %arg5: memref<512x128xbf16, #tpu.memory_space<vmem>>, %arg6: memref<1x128xf32, #tpu.memory_space<vmem>>, %arg7: memref<2x128xf32, #tpu.memory_space<vmem>>) attributes {dimension_semantics = [], scalar_prefetch = 0 : i64, scratch_operands = 0 : i64, tpu.core_type = #tpu.core_type<tc>} {
    %c0 = arith.constant 0 : index
    %c0_0 = arith.constant 0 : index
    %0 = vector.load %arg0[%c0, %c0_0] : memref<2x256xbf16, #tpu.memory_space<vmem>>, vector<2x256xbf16>
    %c0_1 = arith.constant 0 : index
    %c0_2 = arith.constant 0 : index
    %1 = vector.load %arg1[%c0_1, %c0_2] : memref<256x512xbf16, #tpu.memory_space<vmem>>, vector<256x512xbf16>
    %cst = arith.constant dense<0.000000e+00> : vector<2x512xf32>
    %2 = tpu.matmul %0, %1, %cst {dimension_numbers = #tpu.dot_dimension_numbers<[1], [0], [0], [1], [0, 0, 1, 1], [], []>} : vector<2x256xbf16>, vector<256x512xbf16>, vector<2x512xf32> -> vector<2x512xf32>
    %c0_3 = arith.constant 0 : index
    %c0_4 = arith.constant 0 : index
    %3 = vector.load %arg2[%c0_3, %c0_4] : memref<1x512xf32, #tpu.memory_space<vmem>>, vector<1x512xf32>
    %4 = vector.broadcast %3 : vector<1x512xf32> to vector<2x512xf32>
    %5 = arith.addf %2, %4 : vector<2x512xf32>
    %cst_5 = arith.constant 0.000000e+00 : f32
    %6 = vector.broadcast %cst_5 : f32 to vector<2x512xf32>
    %7 = arith.maximumf %5, %6 : vector<2x512xf32>
    %8 = arith.truncf %7 : vector<2x512xf32> to vector<2x512xbf16>
    %c0_6 = arith.constant 0 : index
    %c0_7 = arith.constant 0 : index
    %9 = vector.load %arg3[%c0_6, %c0_7] : memref<512x512xbf16, #tpu.memory_space<vmem>>, vector<512x512xbf16>
    %cst_8 = arith.constant dense<0.000000e+00> : vector<2x512xf32>
    %10 = tpu.matmul %8, %9, %cst_8 {dimension_numbers = #tpu.dot_dimension_numbers<[1], [0], [0], [1], [0, 0, 1, 1], [], []>} : vector<2x512xbf16>, vector<512x512xbf16>, vector<2x512xf32> -> vector<2x512xf32>
    %c0_9 = arith.constant 0 : index
    %c0_10 = arith.constant 0 : index
    %11 = vector.load %arg4[%c0_9, %c0_10] : memref<1x512xf32, #tpu.memory_space<vmem>>, vector<1x512xf32>
    %12 = vector.broadcast %11 : vector<1x512xf32> to vector<2x512xf32>
    %13 = arith.addf %10, %12 : vector<2x512xf32>
    %cst_11 = arith.constant 0.000000e+00 : f32
    %14 = vector.broadcast %cst_11 : f32 to vector<2x512xf32>
    %15 = arith.maximumf %13, %14 : vector<2x512xf32>
    %16 = arith.truncf %15 : vector<2x512xf32> to vector<2x512xbf16>
    %c0_12 = arith.constant 0 : index
    %c0_13 = arith.constant 0 : index
    %17 = vector.load %arg5[%c0_12, %c0_13] : memref<512x128xbf16, #tpu.memory_space<vmem>>, vector<512x128xbf16>
    %cst_14 = arith.constant dense<0.000000e+00> : vector<2x128xf32>
    %18 = tpu.matmul %16, %17, %cst_14 {dimension_numbers = #tpu.dot_dimension_numbers<[1], [0], [0], [1], [0, 0, 1, 1], [], []>} : vector<2x512xbf16>, vector<512x128xbf16>, vector<2x128xf32> -> vector<2x128xf32>
    %c0_15 = arith.constant 0 : index
    %c0_16 = arith.constant 0 : index
    %19 = vector.load %arg6[%c0_15, %c0_16] : memref<1x128xf32, #tpu.memory_space<vmem>>, vector<1x128xf32>
    %20 = vector.broadcast %19 : vector<1x128xf32> to vector<2x128xf32>
    %21 = arith.addf %18, %20 : vector<2x128xf32>
    %c0_17 = arith.constant 0 : index
    %c0_18 = arith.constant 0 : index
    %22 = vector.load %arg7[%c0_17, %c0_18] : memref<2x128xf32, #tpu.memory_space<vmem>>, vector<2x128xf32>
    tpu.vector_store %arg7[%c0_17, %c0_18], %21 {strides = array<i32>} : memref<2x128xf32, #tpu.memory_space<vmem>>, vector<2x128xf32>,
    return
  }
}

</mosaic_0001>

<llo_original>
// kernel: forward.4
$region0: #{forward.4}
  #allocation0 [shape = 'u32[]', space=smem, size = 0x4, offset = 0x4, fixed_abs, tag = 'smem constant byte address 0x4 - core index']
  #allocation1 [shape = 'u32[72,128]{1,0:T(1,128)}', space=vmem, size = 0x9000, scoped, tag = 'internal scratch']
  %s0 = inlined_call_operand.vmem [shape: bf16[2,10,10,128], index: 0, kind: input, shape index: {}]
  %s1 = inlined_call_operand.hbm [shape: bf16[9,128,128], index: 1, kind: input, shape index: {}]
  %s2 = inlined_call_operand.vmem [shape: f32[1,128], index: 2, kind: input, shape index: {}]
  %s3 = inlined_call_operand.vmem [shape: bf16[2,4,4,128], index: 3, kind: output, shape index: {}]
  %s4 = sld [smem:[#allocation0]]
  $region49: #{forward.4} parent=0
    _
  %s6 = ssub.s32 1, %s4
  %s7 = scalar_select 0, %s6, %s4
  $region1: #{forward.4} parent=0
    #allocation2 [shape = 'u8[294912]{0}', space=vmem, size = 0x48000, scoped, tag = 'input window, operand 1, single buffered']
    #allocation3 [shape = 's32[2]{0}', space=sflag, size = 0x8, scoped, tag = 'scoped memory for forward.4']
    %8 = vsyncpa [#allocation3], 0
    loop: start=0, step=1, limit=4
    $region2: #{forward.4} parent=1 // loop_pre_header
      _
    $region3: #{forward.4} parent=1 // loop_header
      %s10 = sphi 0, %s14
      %p11 = scmp.ge.s32.totalorder %s10, 4
      %s20 = sphi 0, %s22
      %s23 = sphi 0, %s20
      %s24 = sphi 0, %s23
      %s40 = sphi 0, %s24
      %s44 = sphi 0, %s44
      %s46 = sphi 0, %s44
      %s47 = sphi 0, %s46
      %s61 = sphi 0, %s47
      %s65 = sphi 0, %s65
      %s67 = sphi 0, %s65
      %s68 = sphi 0, %s67
      %s82 = sphi 0, %s68
      %s88 = sphi 0, %s90
      %s91 = sphi 0, %s88
      %s92 = sphi 0, %s91
      %s108 = sphi 0, %s92
    $region4: #{forward.4} parent=1 // loop_header_branch
      %13 = sbr.rel (%p11) target = $region8
    $region5: #{forward.4} parent=1 // loop_body
      %s15 = ssub.s32 %s10, 1
      %s16 = ssub.s32 %s10, 2
      %s17 = sadd.s32 %s10, 1
      %s18 = ssub.s32 %s10, %s17
      %p19 = scmp.eq.s32.totalorder %s18, 0
      %s21 = sadd.s32 %s20, 1
      %s22 = scalar_select %p19, %s20, %s21
      %p25 = pneg %p19
      %p26 = scmp.eq.s32.totalorder %s10, 1
      %p27 = por %p25, %p26
      %p28 = scmp.ne.s32.totalorder %s20, %s23
      %p29 = scmp.eq.s32.totalorder %s10, 0
      %p30 = por %p28, %p29
      %p31 = scmp.ne.s32.totalorder %s20, %s23
      %p32 = scmp.eq.s32.totalorder %s15, 1
      %p33 = por %p31, %p32
      %p34 = scmp.ne.s32.totalorder %s23, %s24
      %p35 = scmp.eq.s32.totalorder %s15, 0
      %p36 = por %p34, %p35
      %p37 = scmp.ne.s32.totalorder %s23, %s24
      %p38 = scmp.eq.s32.totalorder %s16, 1
      %p39 = por %p37, %p38
      %p41 = scmp.ne.s32.totalorder %s24, %s40
      %p42 = scmp.eq.s32.totalorder %s16, 0
      %p43 = por %p41, %p42
      %s45 = sadd.s32 %s44, 1
      %p48 = scmp.eq.s32.totalorder %s10, 1
      %p49 = scmp.ne.s32.totalorder %s44, %s46
      %p50 = scmp.eq.s32.totalorder %s10, 0
      %p51 = por %p49, %p50
      %p52 = scmp.ne.s32.totalorder %s44, %s46
      %p53 = scmp.eq.s32.totalorder %s15, 1
      %p54 = por %p52, %p53
      %p55 = scmp.ne.s32.totalorder %s46, %s47
      %p56 = scmp.eq.s32.totalorder %s15, 0
      %p57 = por %p55, %p56
      %p58 = scmp.ne.s32.totalorder %s46, %s47
      %p59 = scmp.eq.s32.totalorder %s16, 1
      %p60 = por %p58, %p59
      %p62 = scmp.ne.s32.totalorder %s47, %s61
      %p63 = scmp.eq.s32.totalorder %s16, 0
      %p64 = por %p62, %p63
      %s66 = sadd.s32 %s65, 1
      %p69 = scmp.eq.s32.totalorder %s10, 1
      %p70 = scmp.ne.s32.totalorder %s65, %s67
      %p71 = scmp.eq.s32.totalorder %s10, 0
      %p72 = por %p70, %p71
      %p73 = scmp.ne.s32.totalorder %s65, %s67
      %p74 = scmp.eq.s32.totalorder %s15, 1
      %p75 = por %p73, %p74
      %p76 = scmp.ne.s32.totalorder %s67, %s68
      %p77 = scmp.eq.s32.totalorder %s15, 0
      %p78 = por %p76, %p77
      %p79 = scmp.ne.s32.totalorder %s67, %s68
      %p80 = scmp.eq.s32.totalorder %s16, 1
      %p81 = por %p79, %p80
      %p83 = scmp.ne.s32.totalorder %s68, %s82
      %p84 = scmp.eq.s32.totalorder %s16, 0
      %p85 = por %p83, %p84
      %s86 = ssub.s32 %s10, %s17
      %p87 = scmp.eq.s32.totalorder %s86, 0
      %s89 = sadd.s32 %s88, 1
      %s90 = scalar_select %p87, %s88, %s89
      %p93 = pneg %p87
      %p94 = scmp.eq.s32.totalorder %s10, 1
      %p95 = por %p93, %p94
      %p96 = scmp.ne.s32.totalorder %s88, %s91
      %p97 = scmp.eq.s32.totalorder %s10, 0
      %p98 = por %p96, %p97
      %p99 = scmp.ne.s32.totalorder %s88, %s91
      %p100 = scmp.eq.s32.totalorder %s15, 1
      %p101 = por %p99, %p100
      %p102 = scmp.ne.s32.totalorder %s91, %s92
      %p103 = scmp.eq.s32.totalorder %s15, 0
      %p104 = por %p102, %p103
      %p105 = scmp.ne.s32.totalorder %s91, %s92
      %p106 = scmp.eq.s32.totalorder %s16, 1
      %p107 = por %p105, %p106
      %p109 = scmp.ne.s32.totalorder %s92, %s108
      %p110 = scmp.eq.s32.totalorder %s16, 0
      %p111 = por %p109, %p110
      %p112 = scmp.le.s32.totalorder 1, %s10
      %p113 = scmp.lt.s32.totalorder %s10, 3
      %p114 = pnand %p112, %p113
      %p115 = pneg %p114
      // Predicated region
      $region9: #{forward.4} parent=5 // pred_check
        _
      $region10: #{forward.4} parent=5 // pred_check_branch
        %117 = sbr.rel (%p114) target = $region12
      $region11: #{forward.4} parent=5 // pred_region
        %s118 = ssub.s32 %s10, 1
        // Predicated region
        $region13: #{forward.4} parent=11 // pred_check
          %p119 = pneg %p57
        $region14: #{forward.4} parent=11 // pred_check_branch
          %121 = sbr.rel (%p119) target = $region16
        $region15: #{forward.4} parent=11 // pred_region
          %123 = vsyncadd [#allocation3], 0
          %s124 = sshll.u32 %s1, 4
          %s125 = int_to_ptr.hbm [resolvable:$true] %s124
          %s126 = sshll.u32 [#allocation2], 4
          %s127 = int_to_ptr.vmem [resolvable:$true] %s126
          %132 = dma.hbm_to_vmem [thread:$0]  %s125, 9216, %s127, [#allocation3], 64, 64, 4
        $region16: #{forward.4} parent=11 // pred_fallthru
          _
        // Predicated region
        $region17: #{forward.4} parent=11 // pred_check
          %p133 = pneg %p78
        $region18: #{forward.4} parent=11 // pred_check_branch
          %135 = sbr.rel (%p133) target = $region20
        $region19: #{forward.4} parent=11 // pred_region
          _
        $region20: #{forward.4} parent=11 // pred_fallthru
          _
      $region12: #{forward.4} parent=5 // pred_fallthru
        _
      %p136 = scmp.lt.s32.totalorder %s10, 2
      // Predicated region
      $region21: #{forward.4} parent=5 // pred_check
        %p137 = pneg %p136
      $region22: #{forward.4} parent=5 // pred_check_branch
        %139 = sbr.rel (%p137) target = $region24
      $region23: #{forward.4} parent=5 // pred_region
        // Predicated region
        $region25: #{forward.4} parent=23 // pred_check
          %p140 = pneg %p30
        $region26: #{forward.4} parent=23 // pred_check_branch
          %142 = sbr.rel (%p140) target = $region28
        $region27: #{forward.4} parent=23 // pred_region
          %p143 = scmp.lt.s32.totalorder %s10, 1
          %s144 = scalar_select %p143, %s10, 1
          %s145 = smul.addr %s144, 20
          %s146 = smul.addr %s145, 4
          %s147 = scalar_lea.vmem %s0, %s146
        $region28: #{forward.4} parent=23 // pred_fallthru
          _
      $region24: #{forward.4} parent=5 // pred_fallthru
        _
      %p148 = scmp.le.s32.totalorder 1, %s10
      %p149 = scmp.lt.s32.totalorder %s10, 3
      %p150 = pnand %p148, %p149
      %p151 = pneg %p150
      // Predicated region
      $region29: #{forward.4} parent=5 // pred_check
        _
      $region30: #{forward.4} parent=5 // pred_check_branch
        %153 = sbr.rel (%p150) target = $region32
      $region31: #{forward.4} parent=5 // pred_region
        %s154 = ssub.s32 %s10, 1
        // Predicated region
        $region33: #{forward.4} parent=31 // pred_check
          %p155 = pneg %p57
        $region34: #{forward.4} parent=31 // pred_check_branch
          %157 = sbr.rel (%p155) target = $region36
        $region35: #{forward.4} parent=31 // pred_region
          %159 = dma.done [#allocation3], 9216
        $region36: #{forward.4} parent=31 // pred_fallthru
          _
        %p160 = scmp.lt.s32.totalorder %s15, 1
        %s161 = scalar_select %p160, %s15, 1
        %s162 = smul.addr %s161, 20
        %s163 = smul.addr %s162, 4
        %s164 = scalar_lea.vmem %s0, %s163
        %p165 = pneg %p36
        %p166 = pneg %p33
        %p167 = pneg %p57
        %p168 = pneg %p54
        %p169 = pneg %p78
        %p170 = pneg %p75
        %p171 = pneg %p104
        %p172 = pneg %p101
        %p173 = scmp.lt.s32.totalorder %s15, 1
        %s174 = scalar_select %p173, %s15, 1
        %s175 = smul.addr %s174, 4
        %s176 = smul.addr %s175, 2
        %s177 = scalar_lea.vmem %s3, %s176
        %p178 = scmp.lt.s32.totalorder %s15, 1
        %s179 = scalar_select %p178, %s15, 1
        %s180 = smul.addr %s179, 20
        %s181 = smul.addr %s180, 4
        %s182 = scalar_lea.vmem %s0, %s181
        %p183 = scmp.lt.s32.totalorder %s15, 1
        %s184 = scalar_select %p183, %s15, 1
        %s185 = smul.addr %s184, 4
        %s186 = smul.addr %s185, 2
        %s187 = scalar_lea.vmem %s3, %s186
        %v188 = vld [vmem:[%s182] sm:$0xf]
        %v189 = vld [vmem:[%s182 + $0x8] sm:$0xf]
        %v190 = vld [vmem:[%s182 + $0x10] sm:$0xf]
        %v191 = vld [vmem:[%s182 + $0x18] sm:$0xf]
        %v192 = vld [vmem:[%s182 + $0x20] sm:$0xf]
        %v193 = vld [vmem:[%s182 + $0x28] sm:$0xf]
        %v194 = vld [vmem:[%s182 + $0x30] sm:$0xf]
        %v195 = vld [vmem:[%s182 + $0x38] sm:$0xf]
        %v196 = vld [vmem:[#allocation2] sm:$0xf]
        %v197 = vld [vmem:[#allocation2 + $0x4] sm:$0xf]
        %v198 = vld [vmem:[#allocation2 + $0x8] sm:$0xf]
        %v199 = vld [vmem:[#allocation2 + $0xc] sm:$0xf]
        %v200 = vld [vmem:[#allocation2 + $0x10] sm:$0xf]
        %v201 = vld [vmem:[#allocation2 + $0x14] sm:$0xf]
        %v202 = vld [vmem:[#allocation2 + $0x18] sm:$0xf]
        %v203 = vld [vmem:[#allocation2 + $0x1c] sm:$0xf]
        %v204 = vld [vmem:[#allocation2 + $0x20] sm:$0xf]
        %v205 = vld [vmem:[#allocation2 + $0x24] sm:$0xf]
        %v206 = vld [vmem:[#allocation2 + $0x28] sm:$0xf]
        %v207 = vld [vmem:[#allocation2 + $0x2c] sm:$0xf]
        %v208 = vld [vmem:[#allocation2 + $0x30] sm:$0xf]
        %v209 = vld [vmem:[#allocation2 + $0x34] sm:$0xf]
        %v210 = vld [vmem:[#allocation2 + $0x38] sm:$0xf]
        %v211 = vld [vmem:[#allocation2 + $0x3c] sm:$0xf]
        %v212 = vld [vmem:[%s182 + $0x4] sm:$0x1]
        %v213 = vld [vmem:[%s182 + $0xc] sm:$0x1]
        %v214 = vld [vmem:[%s182 + $0x14] sm:$0x1]
        %v215 = vld [vmem:[%s182 + $0x1c] sm:$0x1]
        %v216 = vld [vmem:[%s182 + $0x24] sm:$0x1]
        %v217 = vld [vmem:[%s182 + $0x2c] sm:$0x1]
        %v218 = vld [vmem:[%s182 + $0x34] sm:$0x1]
        %v219 = vld [vmem:[%s182 + $0x3c] sm:$0x1]
        %vm220 = vsmask.f32 3328
        %vm221 = vsmask.f32 7440
        %vm222 = vmor %vm220, %vm221
        %v224 = vshrl.u32 %v188, 16
        %v226 = vrot.slane %v224, 4
        %v227 = vshll.u32 %v188, 16
        %v229 = vrot.slane %v227, 5
        %v230 = vor.u32 %v226, %v229
        %v231 = vrot.slane %v230, 4
        %v233 = vshll.u32 %v212, 16
        %v235 = vrot.slane %v233, 5
        %v236 = vsel %vm222, %v231, %v235
        %v238 = vshrl.u32 %v189, 16
        %v240 = vrot.slane %v238, 4
        %v241 = vshll.u32 %v189, 16
        %v243 = vrot.slane %v241, 5
        %v244 = vor.u32 %v240, %v243
        %v245 = vrot.slane %v244, 4
        %v247 = vshll.u32 %v213, 16
        %v249 = vrot.slane %v247, 5
        %v250 = vsel %vm222, %v245, %v249
        %v252 = vshrl.u32 %v190, 16
        %v254 = vrot.slane %v252, 4
        %v255 = vshll.u32 %v190, 16
        %v257 = vrot.slane %v255, 5
        %v258 = vor.u32 %v254, %v257
        %v259 = vrot.slane %v258, 4
        %v261 = vshll.u32 %v214, 16
        %v263 = vrot.slane %v261, 5
        %v264 = vsel %vm222, %v259, %v263
        %v266 = vshrl.u32 %v191, 16
        %v268 = vrot.slane %v266, 4
        %v269 = vshll.u32 %v191, 16
        %v271 = vrot.slane %v269, 5
        %v272 = vor.u32 %v268, %v271
        %v273 = vrot.slane %v272, 4
        %v275 = vshll.u32 %v215, 16
        %v277 = vrot.slane %v275, 5
        %v278 = vsel %vm222, %v273, %v277
        %v280 = vshrl.u32 %v192, 16
        %v282 = vrot.slane %v280, 4
        %v283 = vshll.u32 %v192, 16
        %v285 = vrot.slane %v283, 5
        %v286 = vor.u32 %v282, %v285
        %v287 = vrot.slane %v286, 4
        %v289 = vshll.u32 %v216, 16
        %v291 = vrot.slane %v289, 5
        %v292 = vsel %vm222, %v287, %v291
        %v294 = vshrl.u32 %v193, 16
        %v296 = vrot.slane %v294, 4
        %v297 = vshll.u32 %v193, 16
        %v299 = vrot.slane %v297, 5
        %v300 = vor.u32 %v296, %v299
        %v301 = vrot.slane %v300, 4
        %v303 = vshll.u32 %v217, 16
        %v305 = vrot.slane %v303, 5
        %v306 = vsel %vm222, %v301, %v305
        %v308 = vshrl.u32 %v194, 16
        %v310 = vrot.slane %v308, 4
        %v311 = vshll.u32 %v194, 16
        %v313 = vrot.slane %v311, 5
        %v314 = vor.u32 %v310, %v313
        %v315 = vrot.slane %v314, 4
        %v317 = vshll.u32 %v218, 16
        %v319 = vrot.slane %v317, 5
        %v320 = vsel %vm222, %v315, %v319
        %v322 = vshrl.u32 %v195, 16
        %v324 = vrot.slane %v322, 4
        %v325 = vshll.u32 %v195, 16
        %v327 = vrot.slane %v325, 5
        %v328 = vor.u32 %v324, %v327
        %v329 = vrot.slane %v328, 4
        %v331 = vshll.u32 %v219, 16
        %v333 = vrot.slane %v331, 5
        %v334 = vsel %vm222, %v329, %v333
        %s335 = scalar_lea.vmem [#allocation2], 64
        %v336 = vld [vmem:[%s335] sm:$0xf]
        %v337 = vld [vmem:[%s335 + $0x4] sm:$0xf]
        %v338 = vld [vmem:[%s335 + $0x8] sm:$0xf]
        %v339 = vld [vmem:[%s335 + $0xc] sm:$0xf]
        %v340 = vld [vmem:[%s335 + $0x10] sm:$0xf]
        %v341 = vld [vmem:[%s335 + $0x14] sm:$0xf]
        %v342 = vld [vmem:[%s335 + $0x18] sm:$0xf]
        %v343 = vld [vmem:[%s335 + $0x1c] sm:$0xf]
        %v344 = vld [vmem:[%s335 + $0x20] sm:$0xf]
        %v345 = vld [vmem:[%s335 + $0x24] sm:$0xf]
        %v346 = vld [vmem:[%s335 + $0x28] sm:$0xf]
        %v347 = vld [vmem:[%s335 + $0x2c] sm:$0xf]
        %v348 = vld [vmem:[%s335 + $0x30] sm:$0xf]
        %v349 = vld [vmem:[%s335 + $0x34] sm:$0xf]
        %v350 = vld [vmem:[%s335 + $0x38] sm:$0xf]
        %v351 = vld [vmem:[%s335 + $0x3c] sm:$0xf]
        %v352 = vunpack.c.l.b16 %v236
        %v353 = vunpack.c.l.b16 %v250
        %v354 = vunpack.c.l.b16 %v264
        %v355 = vunpack.c.l.b16 %v278
        %v356 = vunpack.c.l.b16 %v292
        %v357 = vunpack.c.l.b16 %v306
        %v358 = vunpack.c.l.b16 %v320
        %v359 = vunpack.c.l.b16 %v334
        %v360 = vpack.c.b16 %v353, %v352
        %v361 = vpack.c.b16 %v355, %v354
        %v362 = vpack.c.b16 %v357, %v356
        %v363 = vpack.c.b16 %v359, %v358
        %v384 = vunpack.c.l.b16 %v336
        %v385 = vunpack.c.l.b16 %v337
        %v386 = vunpack.c.l.b16 %v338
        %v387 = vunpack.c.l.b16 %v339
        %v388 = vunpack.c.l.b16 %v340
        %v389 = vunpack.c.l.b16 %v341
        %v390 = vunpack.c.l.b16 %v342
        %v391 = vunpack.c.l.b16 %v343
        %v392 = vunpack.c.l.b16 %v344
        %v393 = vunpack.c.l.b16 %v345
        %v394 = vunpack.c.l.b16 %v346
        %v395 = vunpack.c.l.b16 %v347
        %v396 = vunpack.c.l.b16 %v348
        %v397 = vunpack.c.l.b16 %v349
        %v398 = vunpack.c.l.b16 %v350
        %v399 = vunpack.c.l.b16 %v351
        %v400 = vpack.c.b16 %v385, %v384
        %v401 = vpack.c.b16 %v387, %v386
        %v402 = vpack.c.b16 %v389, %v388
        %v403 = vpack.c.b16 %v391, %v390
        %v404 = vpack.c.b16 %v393, %v392
        %v405 = vpack.c.b16 %v395, %v394
        %v406 = vpack.c.b16 %v397, %v396
        %v407 = vpack.c.b16 %v399, %v398
        %416 = vmatpush.bf16.msra.mxu0 %v407
        %417 = vmatpush.bf16.msra.mxu0 %v406
        %418 = vmatpush.bf16.msra.mxu0 %v405
        %419 = vmatpush.bf16.msra.mxu0 %v404
        %420 = vmatpush.bf16.msra.mxu0 %v403
        %421 = vmatpush.bf16.msra.mxu0 %v402
        %422 = vmatpush.bf16.msra.mxu0 %v401
        %423 = vmatpush.bf16.msra.mxu0 %v400
        %424 = vmatmul.bf16.gmra.mxu0 %v360
        %v425 = vpop.f32.mrf.mxu0
        %v426 = vadd.f32 0.0, %v425
        %v427 = vpop.f32.mrf.mxu0
        %v428 = vadd.f32 0.0, %v427
        %429 = vmatmul.bf16.gmra.mxu0 %v361
        %v430 = vpop.f32.mrf.mxu0
        %v431 = vadd.f32 0.0, %v430
        %v432 = vpop.f32.mrf.mxu0
        %v433 = vadd.f32 0.0, %v432
        %434 = vmatmul.bf16.gmra.mxu0 %v362
        %v435 = vpop.f32.mrf.mxu0
        %v436 = vadd.f32 0.0, %v435
        %v437 = vpop.f32.mrf.mxu0
        %v438 = vadd.f32 0.0, %v437
        %439 = vmatmul.bf16.gmra.mxu0 %v363
        %v440 = vpop.f32.mrf.mxu0
        %v441 = vadd.f32 0.0, %v440
        %v442 = vpop.f32.mrf.mxu0
        %v443 = vadd.f32 0.0, %v442
        %444 = vdwg.mxu0
        %v453 = vunpack.c.l.b16 %v188
        %v454 = vunpack.c.l.b16 %v189
        %v455 = vunpack.c.l.b16 %v190
        %v456 = vunpack.c.l.b16 %v191
        %v457 = vunpack.c.l.b16 %v192
        %v458 = vunpack.c.l.b16 %v193
        %v459 = vunpack.c.l.b16 %v194
        %v460 = vunpack.c.l.b16 %v195
        %v461 = vpack.c.b16 %v454, %v453
        %v462 = vpack.c.b16 %v456, %v455
        %v463 = vpack.c.b16 %v458, %v457
        %v464 = vpack.c.b16 %v460, %v459
        %v485 = vunpack.c.l.b16 %v196
        %v486 = vunpack.c.l.b16 %v197
        %v487 = vunpack.c.l.b16 %v198
        %v488 = vunpack.c.l.b16 %v199
        %v489 = vunpack.c.l.b16 %v200
        %v490 = vunpack.c.l.b16 %v201
        %v491 = vunpack.c.l.b16 %v202
        %v492 = vunpack.c.l.b16 %v203
        %v493 = vunpack.c.l.b16 %v204
        %v494 = vunpack.c.l.b16 %v205
        %v495 = vunpack.c.l.b16 %v206
        %v496 = vunpack.c.l.b16 %v207
        %v497 = vunpack.c.l.b16 %v208
        %v498 = vunpack.c.l.b16 %v209
        %v499 = vunpack.c.l.b16 %v210
        %v500 = vunpack.c.l.b16 %v211
        %v501 = vpack.c.b16 %v486, %v485
        %v502 = vpack.c.b16 %v488, %v487
        %v503 = vpack.c.b16 %v490, %v489
        %v504 = vpack.c.b16 %v492, %v491
        %v505 = vpack.c.b16 %v494, %v493
        %v506 = vpack.c.b16 %v496, %v495
        %v507 = vpack.c.b16 %v498, %v497
        %v508 = vpack.c.b16 %v500, %v499
        %517 = vmatpush.bf16.msra.mxu0 %v508
        %518 = vmatpush.bf16.msra.mxu0 %v507
        %519 = vmatpush.bf16.msra.mxu0 %v506
        %520 = vmatpush.bf16.msra.mxu0 %v505
        %521 = vmatpush.bf16.msra.mxu0 %v504
        %522 = vmatpush.bf16.msra.mxu0 %v503
        %523 = vmatpush.bf16.msra.mxu0 %v502
        %524 = vmatpush.bf16.msra.mxu0 %v501
        %525 = vmatmul.bf16.gmra.mxu0 %v461
        %v526 = vpop.f32.mrf.mxu0
        %v527 = vadd.f32 %v426, %v526
        %v528 = vpop.f32.mrf.mxu0
        %v529 = vadd.f32 %v428, %v528
        %530 = vmatmul.bf16.gmra.mxu0 %v462
        %v531 = vpop.f32.mrf.mxu0
        %v532 = vadd.f32 %v431, %v531
        %v533 = vpop.f32.mrf.mxu0
        %v534 = vadd.f32 %v433, %v533
        %535 = vmatmul.bf16.gmra.mxu0 %v463
        %v536 = vpop.f32.mrf.mxu0
        %v537 = vadd.f32 %v436, %v536
        %v538 = vpop.f32.mrf.mxu0
        %v539 = vadd.f32 %v438, %v538
        %540 = vmatmul.bf16.gmra.mxu0 %v464
        %v541 = vpop.f32.mrf.mxu0
        %v542 = vadd.f32 %v441, %v541
        %v543 = vpop.f32.mrf.mxu0
        %v544 = vadd.f32 %v443, %v543
        %545 = vdwg.mxu0
        %v546 = vld [vmem:[%s182] sm:$0xe]
        %v547 = vld [vmem:[%s182 + $0x8] sm:$0xe]
        %v548 = vld [vmem:[%s182 + $0x10] sm:$0xe]
        %v549 = vld [vmem:[%s182 + $0x18] sm:$0xe]
        %v550 = vld [vmem:[%s182 + $0x20] sm:$0xe]
        %v551 = vld [vmem:[%s182 + $0x28] sm:$0xe]
        %v552 = vld [vmem:[%s182 + $0x30] sm:$0xe]
        %v553 = vld [vmem:[%s182 + $0x38] sm:$0xe]
        %vm570 = vcmask 1042432
        %vm571 = vcmask 1046532
        %vm572 = vmor %vm570, %vm571
        %v573 = vrot.slane %v546, 5
        %v574 = vrot.slane %v573, 4
        %v575 = vrot.slane %v212, 5
        %v576 = vsel %vm572, %v574, %v575
        %v577 = vrot.slane %v547, 5
        %v578 = vrot.slane %v577, 4
        %v579 = vrot.slane %v213, 5
        %v580 = vsel %vm572, %v578, %v579
        %v581 = vrot.slane %v548, 5
        %v582 = vrot.slane %v581, 4
        %v583 = vrot.slane %v214, 5
        %v584 = vsel %vm572, %v582, %v583
        %v585 = vrot.slane %v549, 5
        %v586 = vrot.slane %v585, 4
        %v587 = vrot.slane %v215, 5
        %v588 = vsel %vm572, %v586, %v587
        %v589 = vrot.slane %v550, 5
        %v590 = vrot.slane %v589, 4
        %v591 = vrot.slane %v216, 5
        %v592 = vsel %vm572, %v590, %v591
        %v593 = vrot.slane %v551, 5
        %v594 = vrot.slane %v593, 4
        %v595 = vrot.slane %v217, 5
        %v596 = vsel %vm572, %v594, %v595
        %v597 = vrot.slane %v552, 5
        %v598 = vrot.slane %v597, 4
        %v599 = vrot.slane %v218, 5
        %v600 = vsel %vm572, %v598, %v599
        %v601 = vrot.slane %v553, 5
        %v602 = vrot.slane %v601, 4
        %v603 = vrot.slane %v219, 5
        %v604 = vsel %vm572, %v602, %v603
        %s605 = scalar_lea.vmem [#allocation2], 128
        %v606 = vld [vmem:[%s605] sm:$0xf]
        %v607 = vld [vmem:[%s605 + $0x4] sm:$0xf]
        %v608 = vld [vmem:[%s605 + $0x8] sm:$0xf]
        %v609 = vld [vmem:[%s605 + $0xc] sm:$0xf]
        %v610 = vld [vmem:[%s605 + $0x10] sm:$0xf]
        %v611 = vld [vmem:[%s605 + $0x14] sm:$0xf]
        %v612 = vld [vmem:[%s605 + $0x18] sm:$0xf]
        %v613 = vld [vmem:[%s605 + $0x1c] sm:$0xf]
        %v614 = vld [vmem:[%s605 + $0x20] sm:$0xf]
        %v615 = vld [vmem:[%s605 + $0x24] sm:$0xf]
        %v616 = vld [vmem:[%s605 + $0x28] sm:$0xf]
        %v617 = vld [vmem:[%s605 + $0x2c] sm:$0xf]
        %v618 = vld [vmem:[%s605 + $0x30] sm:$0xf]
        %v619 = vld [vmem:[%s605 + $0x34] sm:$0xf]
        %v620 = vld [vmem:[%s605 + $0x38] sm:$0xf]
        %v621 = vld [vmem:[%s605 + $0x3c] sm:$0xf]
        %v622 = vunpack.c.l.b16 %v576
        %v623 = vunpack.c.l.b16 %v580
        %v624 = vunpack.c.l.b16 %v584
        %v625 = vunpack.c.l.b16 %v588
        %v626 = vunpack.c.l.b16 %v592
        %v627 = vunpack.c.l.b16 %v596
        %v628 = vunpack.c.l.b16 %v600
        %v629 = vunpack.c.l.b16 %v604
        %v630 = vpack.c.b16 %v623, %v622
        %v631 = vpack.c.b16 %v625, %v624
        %v632 = vpack.c.b16 %v627, %v626
        %v633 = vpack.c.b16 %v629, %v628
        %v654 = vunpack.c.l.b16 %v606
        %v655 = vunpack.c.l.b16 %v607
        %v656 = vunpack.c.l.b16 %v608
        %v657 = vunpack.c.l.b16 %v609
        %v658 = vunpack.c.l.b16 %v610
        %v659 = vunpack.c.l.b16 %v611
        %v660 = vunpack.c.l.b16 %v612
        %v661 = vunpack.c.l.b16 %v613
        %v662 = vunpack.c.l.b16 %v614
        %v663 = vunpack.c.l.b16 %v615
        %v664 = vunpack.c.l.b16 %v616
        %v665 = vunpack.c.l.b16 %v617
        %v666 = vunpack.c.l.b16 %v618
        %v667 = vunpack.c.l.b16 %v619
        %v668 = vunpack.c.l.b16 %v620
        %v669 = vunpack.c.l.b16 %v621
        %v670 = vpack.c.b16 %v655, %v654
        %v671 = vpack.c.b16 %v657, %v656
        %v672 = vpack.c.b16 %v659, %v658
        %v673 = vpack.c.b16 %v661, %v660
        %v674 = vpack.c.b16 %v663, %v662
        %v675 = vpack.c.b16 %v665, %v664
        %v676 = vpack.c.b16 %v667, %v666
        %v677 = vpack.c.b16 %v669, %v668
        %686 = vmatpush.bf16.msra.mxu0 %v677
        %687 = vmatpush.bf16.msra.mxu0 %v676
        %688 = vmatpush.bf16.msra.mxu0 %v675
        %689 = vmatpush.bf16.msra.mxu0 %v674
        %690 = vmatpush.bf16.msra.mxu0 %v673
        %691 = vmatpush.bf16.msra.mxu0 %v672
        %692 = vmatpush.bf16.msra.mxu0 %v671
        %693 = vmatpush.bf16.msra.mxu0 %v670
        %694 = vmatmul.bf16.gmra.mxu0 %v630
        %v695 = vpop.f32.mrf.mxu0
        %v696 = vadd.f32 0.0, %v695
        %v697 = vpop.f32.mrf.mxu0
        %v698 = vadd.f32 0.0, %v697
        %699 = vmatmul.bf16.gmra.mxu0 %v631
        %v700 = vpop.f32.mrf.mxu0
        %v701 = vadd.f32 0.0, %v700
        %v702 = vpop.f32.mrf.mxu0
        %v703 = vadd.f32 0.0, %v702
        %704 = vmatmul.bf16.gmra.mxu0 %v632
        %v705 = vpop.f32.mrf.mxu0
        %v706 = vadd.f32 0.0, %v705
        %v707 = vpop.f32.mrf.mxu0
        %v708 = vadd.f32 0.0, %v707
        %709 = vmatmul.bf16.gmra.mxu0 %v633
        %v710 = vpop.f32.mrf.mxu0
        %v711 = vadd.f32 0.0, %v710
        %v712 = vpop.f32.mrf.mxu0
        %v713 = vadd.f32 0.0, %v712
        %714 = vdwg.mxu0
        %v715 = vadd.f32 %v527, %v696
        %v716 = vadd.f32 %v529, %v698
        %v717 = vadd.f32 %v532, %v701
        %v718 = vadd.f32 %v534, %v703
        %v719 = vadd.f32 %v537, %v706
        %v720 = vadd.f32 %v539, %v708
        %v721 = vadd.f32 %v542, %v711
        %v722 = vadd.f32 %v544, %v713
        %s723 = scalar_lea.vmem %s182, 8
        %v724 = vld [vmem:[%s723] sm:$0xf]
        %v725 = vld [vmem:[%s723 + $0x8] sm:$0xf]
        %v726 = vld [vmem:[%s723 + $0x10] sm:$0xf]
        %v727 = vld [vmem:[%s723 + $0x18] sm:$0xf]
        %v728 = vld [vmem:[%s723 + $0x20] sm:$0xf]
        %v729 = vld [vmem:[%s723 + $0x28] sm:$0xf]
        %v730 = vld [vmem:[%s723 + $0x30] sm:$0xf]
        %v731 = vld [vmem:[%s723 + $0x38] sm:$0xf]
        %s732 = scalar_lea.vmem [#allocation2], 192
        %v733 = vld [vmem:[%s732] sm:$0xf]
        %v734 = vld [vmem:[%s732 + $0x4] sm:$0xf]
        %v735 = vld [vmem:[%s732 + $0x8] sm:$0xf]
        %v736 = vld [vmem:[%s732 + $0xc] sm:$0xf]
        %v737 = vld [vmem:[%s732 + $0x10] sm:$0xf]
        %v738 = vld [vmem:[%s732 + $0x14] sm:$0xf]
        %v739 = vld [vmem:[%s732 + $0x18] sm:$0xf]
        %v740 = vld [vmem:[%s732 + $0x1c] sm:$0xf]
        %v741 = vld [vmem:[%s732 + $0x20] sm:$0xf]
        %v742 = vld [vmem:[%s732 + $0x24] sm:$0xf]
        %v743 = vld [vmem:[%s732 + $0x28] sm:$0xf]
        %v744 = vld [vmem:[%s732 + $0x2c] sm:$0xf]
        %v745 = vld [vmem:[%s732 + $0x30] sm:$0xf]
        %v746 = vld [vmem:[%s732 + $0x34] sm:$0xf]
        %v747 = vld [vmem:[%s732 + $0x38] sm:$0xf]
        %v748 = vld [vmem:[%s732 + $0x3c] sm:$0xf]
        %v757 = vunpack.c.l.b16 %v724
        %v758 = vunpack.c.l.b16 %v725
        %v759 = vunpack.c.l.b16 %v726
        %v760 = vunpack.c.l.b16 %v727
        %v761 = vunpack.c.l.b16 %v728
        %v762 = vunpack.c.l.b16 %v729
        %v763 = vunpack.c.l.b16 %v730
        %v764 = vunpack.c.l.b16 %v731
        %v765 = vpack.c.b16 %v758, %v757
        %v766 = vpack.c.b16 %v760, %v759
        %v767 = vpack.c.b16 %v762, %v761
        %v768 = vpack.c.b16 %v764, %v763
        %v789 = vunpack.c.l.b16 %v733
        %v790 = vunpack.c.l.b16 %v734
        %v791 = vunpack.c.l.b16 %v735
        %v792 = vunpack.c.l.b16 %v736
        %v793 = vunpack.c.l.b16 %v737
        %v794 = vunpack.c.l.b16 %v738
        %v795 = vunpack.c.l.b16 %v739
        %v796 = vunpack.c.l.b16 %v740
        %v797 = vunpack.c.l.b16 %v741
        %v798 = vunpack.c.l.b16 %v742
        %v799 = vunpack.c.l.b16 %v743
        %v800 = vunpack.c.l.b16 %v744
        %v801 = vunpack.c.l.b16 %v745
        %v802 = vunpack.c.l.b16 %v746
        %v803 = vunpack.c.l.b16 %v747
        %v804 = vunpack.c.l.b16 %v748
        %v805 = vpack.c.b16 %v790, %v789
        %v806 = vpack.c.b16 %v792, %v791
        %v807 = vpack.c.b16 %v794, %v793
        %v808 = vpack.c.b16 %v796, %v795
        %v809 = vpack.c.b16 %v798, %v797
        %v810 = vpack.c.b16 %v800, %v799
        %v811 = vpack.c.b16 %v802, %v801
        %v812 = vpack.c.b16 %v804, %v803
        %821 = vmatpush.bf16.msra.mxu0 %v812
        %822 = vmatpush.bf16.msra.mxu0 %v811
        %823 = vmatpush.bf16.msra.mxu0 %v810
        %824 = vmatpush.bf16.msra.mxu0 %v809
        %825 = vmatpush.bf16.msra.mxu0 %v808
        %826 = vmatpush.bf16.msra.mxu0 %v807
        %827 = vmatpush.bf16.msra.mxu0 %v806
        %828 = vmatpush.bf16.msra.mxu0 %v805
        %829 = vmatmul.bf16.gmra.mxu0 %v765
        %v830 = vpop.f32.mrf.mxu0
        %v831 = vadd.f32 0.0, %v830
        %v832 = vpop.f32.mrf.mxu0
        %v833 = vadd.f32 0.0, %v832
        %834 = vmatmul.bf16.gmra.mxu0 %v766
        %v835 = vpop.f32.mrf.mxu0
        %v836 = vadd.f32 0.0, %v835
        %v837 = vpop.f32.mrf.mxu0
        %v838 = vadd.f32 0.0, %v837
        %839 = vmatmul.bf16.gmra.mxu0 %v767
        %v840 = vpop.f32.mrf.mxu0
        %v841 = vadd.f32 0.0, %v840
        %v842 = vpop.f32.mrf.mxu0
        %v843 = vadd.f32 0.0, %v842
        %844 = vmatmul.bf16.gmra.mxu0 %v768
        %v845 = vpop.f32.mrf.mxu0
        %v846 = vadd.f32 0.0, %v845
        %v847 = vpop.f32.mrf.mxu0
        %v848 = vadd.f32 0.0, %v847
        %849 = vdwg.mxu0
        %v850 = vadd.f32 %v715, %v831
        %v851 = vadd.f32 %v716, %v833
        %v852 = vadd.f32 %v717, %v836
        %v853 = vadd.f32 %v718, %v838
        %v854 = vadd.f32 %v719, %v841
        %v855 = vadd.f32 %v720, %v843
        %v856 = vadd.f32 %v721, %v846
        %v857 = vadd.f32 %v722, %v848
        %v858 = vld [vmem:[%s723] sm:$0xf]
        %v859 = vld [vmem:[%s723 + $0x4] sm:$0x1]
        %v860 = vld [vmem:[%s723 + $0x8] sm:$0xf]
        %v861 = vld [vmem:[%s723 + $0xc] sm:$0x1]
        %v862 = vld [vmem:[%s723 + $0x10] sm:$0xf]
        %v863 = vld [vmem:[%s723 + $0x14] sm:$0x1]
        %v864 = vld [vmem:[%s723 + $0x18] sm:$0xf]
        %v865 = vld [vmem:[%s723 + $0x1c] sm:$0x1]
        %v866 = vld [vmem:[%s723 + $0x20] sm:$0xf]
        %v867 = vld [vmem:[%s723 + $0x24] sm:$0x1]
        %v868 = vld [vmem:[%s723 + $0x28] sm:$0xf]
        %v869 = vld [vmem:[%s723 + $0x2c] sm:$0x1]
        %v870 = vld [vmem:[%s723 + $0x30] sm:$0xf]
        %v871 = vld [vmem:[%s723 + $0x34] sm:$0x1]
        %v872 = vld [vmem:[%s723 + $0x38] sm:$0xf]
        %v873 = vld [vmem:[%s723 + $0x3c] sm:$0x1]
        %v875 = vshrl.u32 %v858, 16
        %v877 = vrot.slane %v875, 4
        %v878 = vshll.u32 %v858, 16
        %v880 = vrot.slane %v878, 5
        %v881 = vor.u32 %v877, %v880
        %v882 = vrot.slane %v881, 4
        %v884 = vshll.u32 %v859, 16
        %v886 = vrot.slane %v884, 5
        %v887 = vsel %vm222, %v882, %v886
        %v889 = vshrl.u32 %v860, 16
        %v891 = vrot.slane %v889, 4
        %v892 = vshll.u32 %v860, 16
        %v894 = vrot.slane %v892, 5
        %v895 = vor.u32 %v891, %v894
        %v896 = vrot.slane %v895, 4
        %v898 = vshll.u32 %v861, 16
        %v900 = vrot.slane %v898, 5
        %v901 = vsel %vm222, %v896, %v900
        %v903 = vshrl.u32 %v862, 16
        %v905 = vrot.slane %v903, 4
        %v906 = vshll.u32 %v862, 16
        %v908 = vrot.slane %v906, 5
        %v909 = vor.u32 %v905, %v908
        %v910 = vrot.slane %v909, 4
        %v912 = vshll.u32 %v863, 16
        %v914 = vrot.slane %v912, 5
        %v915 = vsel %vm222, %v910, %v914
        %v917 = vshrl.u32 %v864, 16
        %v919 = vrot.slane %v917, 4
        %v920 = vshll.u32 %v864, 16
        %v922 = vrot.slane %v920, 5
        %v923 = vor.u32 %v919, %v922
        %v924 = vrot.slane %v923, 4
        %v926 = vshll.u32 %v865, 16
        %v928 = vrot.slane %v926, 5
        %v929 = vsel %vm222, %v924, %v928
        %v931 = vshrl.u32 %v866, 16
        %v933 = vrot.slane %v931, 4
        %v934 = vshll.u32 %v866, 16
        %v936 = vrot.slane %v934, 5
        %v937 = vor.u32 %v933, %v936
        %v938 = vrot.slane %v937, 4
        %v940 = vshll.u32 %v867, 16
        %v942 = vrot.slane %v940, 5
        %v943 = vsel %vm222, %v938, %v942
        %v945 = vshrl.u32 %v868, 16
        %v947 = vrot.slane %v945, 4
        %v948 = vshll.u32 %v868, 16
        %v950 = vrot.slane %v948, 5
        %v951 = vor.u32 %v947, %v950
        %v952 = vrot.slane %v951, 4
        %v954 = vshll.u32 %v869, 16
        %v956 = vrot.slane %v954, 5
        %v957 = vsel %vm222, %v952, %v956
        %v959 = vshrl.u32 %v870, 16
        %v961 = vrot.slane %v959, 4
        %v962 = vshll.u32 %v870, 16
        %v964 = vrot.slane %v962, 5
        %v965 = vor.u32 %v961, %v964
        %v966 = vrot.slane %v965, 4
        %v968 = vshll.u32 %v871, 16
        %v970 = vrot.slane %v968, 5
        %v971 = vsel %vm222, %v966, %v970
        %v973 = vshrl.u32 %v872, 16
        %v975 = vrot.slane %v973, 4
        %v976 = vshll.u32 %v872, 16
        %v978 = vrot.slane %v976, 5
        %v979 = vor.u32 %v975, %v978
        %v980 = vrot.slane %v979, 4
        %v982 = vshll.u32 %v873, 16
        %v984 = vrot.slane %v982, 5
        %v985 = vsel %vm222, %v980, %v984
        %s986 = scalar_lea.vmem [#allocation2], 256
        %v987 = vld [vmem:[%s986] sm:$0xf]
        %v988 = vld [vmem:[%s986 + $0x4] sm:$0xf]
        %v989 = vld [vmem:[%s986 + $0x8] sm:$0xf]
        %v990 = vld [vmem:[%s986 + $0xc] sm:$0xf]
        %v991 = vld [vmem:[%s986 + $0x10] sm:$0xf]
        %v992 = vld [vmem:[%s986 + $0x14] sm:$0xf]
        %v993 = vld [vmem:[%s986 + $0x18] sm:$0xf]
        %v994 = vld [vmem:[%s986 + $0x1c] sm:$0xf]
        %v995 = vld [vmem:[%s986 + $0x20] sm:$0xf]
        %v996 = vld [vmem:[%s986 + $0x24] sm:$0xf]
        %v997 = vld [vmem:[%s986 + $0x28] sm:$0xf]
        %v998 = vld [vmem:[%s986 + $0x2c] sm:$0xf]
        %v999 = vld [vmem:[%s986 + $0x30] sm:$0xf]
        %v1000 = vld [vmem:[%s986 + $0x34] sm:$0xf]
        %v1001 = vld [vmem:[%s986 + $0x38] sm:$0xf]
        %v1002 = vld [vmem:[%s986 + $0x3c] sm:$0xf]
        %v1003 = vunpack.c.l.b16 %v887
        %v1004 = vunpack.c.l.b16 %v901
        %v1005 = vunpack.c.l.b16 %v915
        %v1006 = vunpack.c.l.b16 %v929
        %v1007 = vunpack.c.l.b16 %v943
        %v1008 = vunpack.c.l.b16 %v957
        %v1009 = vunpack.c.l.b16 %v971
        %v1010 = vunpack.c.l.b16 %v985
        %v1011 = vpack.c.b16 %v1004, %v1003
        %v1012 = vpack.c.b16 %v1006, %v1005
        %v1013 = vpack.c.b16 %v1008, %v1007
        %v1014 = vpack.c.b16 %v1010, %v1009
        %v1035 = vunpack.c.l.b16 %v987
        %v1036 = vunpack.c.l.b16 %v988
        %v1037 = vunpack.c.l.b16 %v989
        %v1038 = vunpack.c.l.b16 %v990
        %v1039 = vunpack.c.l.b16 %v991
        %v1040 = vunpack.c.l.b16 %v992
        %v1041 = vunpack.c.l.b16 %v993
        %v1042 = vunpack.c.l.b16 %v994
        %v1043 = vunpack.c.l.b16 %v995
        %v1044 = vunpack.c.l.b16 %v996
        %v1045 = vunpack.c.l.b16 %v997
        %v1046 = vunpack.c.l.b16 %v998
        %v1047 = vunpack.c.l.b16 %v999
        %v1048 = vunpack.c.l.b16 %v1000
        %v1049 = vunpack.c.l.b16 %v1001
        %v1050 = vunpack.c.l.b16 %v1002
        %v1051 = vpack.c.b16 %v1036, %v1035
        %v1052 = vpack.c.b16 %v1038, %v1037
        %v1053 = vpack.c.b16 %v1040, %v1039
        %v1054 = vpack.c.b16 %v1042, %v1041
        %v1055 = vpack.c.b16 %v1044, %v1043
        %v1056 = vpack.c.b16 %v1046, %v1045
        %v1057 = vpack.c.b16 %v1048, %v1047
        %v1058 = vpack.c.b16 %v1050, %v1049
        %1067 = vmatpush.bf16.msra.mxu0 %v1058
        %1068 = vmatpush.bf16.msra.mxu0 %v1057
        %1069 = vmatpush.bf16.msra.mxu0 %v1056
        %1070 = vmatpush.bf16.msra.mxu0 %v1055
        %1071 = vmatpush.bf16.msra.mxu0 %v1054
        %1072 = vmatpush.bf16.msra.mxu0 %v1053
        %1073 = vmatpush.bf16.msra.mxu0 %v1052
        %1074 = vmatpush.bf16.msra.mxu0 %v1051
        %1075 = vmatmul.bf16.gmra.mxu0 %v1011
        %v1076 = vpop.f32.mrf.mxu0
        %v1077 = vadd.f32 0.0, %v1076
        %v1078 = vpop.f32.mrf.mxu0
        %v1079 = vadd.f32 0.0, %v1078
        %1080 = vmatmul.bf16.gmra.mxu0 %v1012
        %v1081 = vpop.f32.mrf.mxu0
        %v1082 = vadd.f32 0.0, %v1081
        %v1083 = vpop.f32.mrf.mxu0
        %v1084 = vadd.f32 0.0, %v1083
        %1085 = vmatmul.bf16.gmra.mxu0 %v1013
        %v1086 = vpop.f32.mrf.mxu0
        %v1087 = vadd.f32 0.0, %v1086
        %v1088 = vpop.f32.mrf.mxu0
        %v1089 = vadd.f32 0.0, %v1088
        %1090 = vmatmul.bf16.gmra.mxu0 %v1014
        %v1091 = vpop.f32.mrf.mxu0
        %v1092 = vadd.f32 0.0, %v1091
        %v1093 = vpop.f32.mrf.mxu0
        %v1094 = vadd.f32 0.0, %v1093
        %1095 = vdwg.mxu0
        %v1096 = vadd.f32 %v850, %v1077
        %v1097 = vadd.f32 %v851, %v1079
        %v1098 = vadd.f32 %v852, %v1082
        %v1099 = vadd.f32 %v853, %v1084
        %v1100 = vadd.f32 %v854, %v1087
        %v1101 = vadd.f32 %v855, %v1089
        %v1102 = vadd.f32 %v856, %v1092
        %v1103 = vadd.f32 %v857, %v1094
        %v1104 = vld [vmem:[%s723] sm:$0xe]
        %v1105 = vld [vmem:[%s723 + $0x8] sm:$0xe]
        %v1106 = vld [vmem:[%s723 + $0x10] sm:$0xe]
        %v1107 = vld [vmem:[%s723 + $0x18] sm:$0xe]
        %v1108 = vld [vmem:[%s723 + $0x20] sm:$0xe]
        %v1109 = vld [vmem:[%s723 + $0x28] sm:$0xe]
        %v1110 = vld [vmem:[%s723 + $0x30] sm:$0xe]
        %v1111 = vld [vmem:[%s723 + $0x38] sm:$0xe]
        %v1128 = vrot.slane %v1104, 5
        %v1129 = vrot.slane %v1128, 4
        %v1130 = vrot.slane %v859, 5
        %v1131 = vsel %vm572, %v1129, %v1130
        %v1132 = vrot.slane %v1105, 5
        %v1133 = vrot.slane %v1132, 4
        %v1134 = vrot.slane %v861, 5
        %v1135 = vsel %vm572, %v1133, %v1134
        %v1136 = vrot.slane %v1106, 5
        %v1137 = vrot.slane %v1136, 4
        %v1138 = vrot.slane %v863, 5
        %v1139 = vsel %vm572, %v1137, %v1138
        %v1140 = vrot.slane %v1107, 5
        %v1141 = vrot.slane %v1140, 4
        %v1142 = vrot.slane %v865, 5
        %v1143 = vsel %vm572, %v1141, %v1142
        %v1144 = vrot.slane %v1108, 5
        %v1145 = vrot.slane %v1144, 4
        %v1146 = vrot.slane %v867, 5
        %v1147 = vsel %vm572, %v1145, %v1146
        %v1148 = vrot.slane %v1109, 5
        %v1149 = vrot.slane %v1148, 4
        %v1150 = vrot.slane %v869, 5
        %v1151 = vsel %vm572, %v1149, %v1150
        %v1152 = vrot.slane %v1110, 5
        %v1153 = vrot.slane %v1152, 4
        %v1154 = vrot.slane %v871, 5
        %v1155 = vsel %vm572, %v1153, %v1154
        %v1156 = vrot.slane %v1111, 5
        %v1157 = vrot.slane %v1156, 4
        %v1158 = vrot.slane %v873, 5
        %v1159 = vsel %vm572, %v1157, %v1158
        %s1160 = scalar_lea.vmem [#allocation2], 320
        %v1161 = vld [vmem:[%s1160] sm:$0xf]
        %v1162 = vld [vmem:[%s1160 + $0x4] sm:$0xf]
        %v1163 = vld [vmem:[%s1160 + $0x8] sm:$0xf]
        %v1164 = vld [vmem:[%s1160 + $0xc] sm:$0xf]
        %v1165 = vld [vmem:[%s1160 + $0x10] sm:$0xf]
        %v1166 = vld [vmem:[%s1160 + $0x14] sm:$0xf]
        %v1167 = vld [vmem:[%s1160 + $0x18] sm:$0xf]
        %v1168 = vld [vmem:[%s1160 + $0x1c] sm:$0xf]
        %v1169 = vld [vmem:[%s1160 + $0x20] sm:$0xf]
        %v1170 = vld [vmem:[%s1160 + $0x24] sm:$0xf]
        %v1171 = vld [vmem:[%s1160 + $0x28] sm:$0xf]
        %v1172 = vld [vmem:[%s1160 + $0x2c] sm:$0xf]
        %v1173 = vld [vmem:[%s1160 + $0x30] sm:$0xf]
        %v1174 = vld [vmem:[%s1160 + $0x34] sm:$0xf]
        %v1175 = vld [vmem:[%s1160 + $0x38] sm:$0xf]
        %v1176 = vld [vmem:[%s1160 + $0x3c] sm:$0xf]
        %v1177 = vunpack.c.l.b16 %v1131
        %v1178 = vunpack.c.l.b16 %v1135
        %v1179 = vunpack.c.l.b16 %v1139
        %v1180 = vunpack.c.l.b16 %v1143
        %v1181 = vunpack.c.l.b16 %v1147
        %v1182 = vunpack.c.l.b16 %v1151
        %v1183 = vunpack.c.l.b16 %v1155
        %v1184 = vunpack.c.l.b16 %v1159
        %v1185 = vpack.c.b16 %v1178, %v1177
        %v1186 = vpack.c.b16 %v1180, %v1179
        %v1187 = vpack.c.b16 %v1182, %v1181
        %v1188 = vpack.c.b16 %v1184, %v1183
        %v1209 = vunpack.c.l.b16 %v1161
        %v1210 = vunpack.c.l.b16 %v1162
        %v1211 = vunpack.c.l.b16 %v1163
        %v1212 = vunpack.c.l.b16 %v1164
        %v1213 = vunpack.c.l.b16 %v1165
        %v1214 = vunpack.c.l.b16 %v1166
        %v1215 = vunpack.c.l.b16 %v1167
        %v1216 = vunpack.c.l.b16 %v1168
        %v1217 = vunpack.c.l.b16 %v1169
        %v1218 = vunpack.c.l.b16 %v1170
        %v1219 = vunpack.c.l.b16 %v1171
        %v1220 = vunpack.c.l.b16 %v1172
        %v1221 = vunpack.c.l.b16 %v1173
        %v1222 = vunpack.c.l.b16 %v1174
        %v1223 = vunpack.c.l.b16 %v1175
        %v1224 = vunpack.c.l.b16 %v1176
        %v1225 = vpack.c.b16 %v1210, %v1209
        %v1226 = vpack.c.b16 %v1212, %v1211
        %v1227 = vpack.c.b16 %v1214, %v1213
        %v1228 = vpack.c.b16 %v1216, %v1215
        %v1229 = vpack.c.b16 %v1218, %v1217
        %v1230 = vpack.c.b16 %v1220, %v1219
        %v1231 = vpack.c.b16 %v1222, %v1221
        %v1232 = vpack.c.b16 %v1224, %v1223
        %1241 = vmatpush.bf16.msra.mxu0 %v1232
        %1242 = vmatpush.bf16.msra.mxu0 %v1231
        %1243 = vmatpush.bf16.msra.mxu0 %v1230
        %1244 = vmatpush.bf16.msra.mxu0 %v1229
        %1245 = vmatpush.bf16.msra.mxu0 %v1228
        %1246 = vmatpush.bf16.msra.mxu0 %v1227
        %1247 = vmatpush.bf16.msra.mxu0 %v1226
        %1248 = vmatpush.bf16.msra.mxu0 %v1225
        %1249 = vmatmul.bf16.gmra.mxu0 %v1185
        %v1250 = vpop.f32.mrf.mxu0
        %v1251 = vadd.f32 0.0, %v1250
        %v1252 = vpop.f32.mrf.mxu0
        %v1253 = vadd.f32 0.0, %v1252
        %1254 = vmatmul.bf16.gmra.mxu0 %v1186
        %v1255 = vpop.f32.mrf.mxu0
        %v1256 = vadd.f32 0.0, %v1255
        %v1257 = vpop.f32.mrf.mxu0
        %v1258 = vadd.f32 0.0, %v1257
        %1259 = vmatmul.bf16.gmra.mxu0 %v1187
        %v1260 = vpop.f32.mrf.mxu0
        %v1261 = vadd.f32 0.0, %v1260
        %v1262 = vpop.f32.mrf.mxu0
        %v1263 = vadd.f32 0.0, %v1262
        %1264 = vmatmul.bf16.gmra.mxu0 %v1188
        %v1265 = vpop.f32.mrf.mxu0
        %v1266 = vadd.f32 0.0, %v1265
        %v1267 = vpop.f32.mrf.mxu0
        %v1268 = vadd.f32 0.0, %v1267
        %1269 = vdwg.mxu0
        %v1270 = vadd.f32 %v1096, %v1251
        %v1271 = vadd.f32 %v1097, %v1253
        %v1272 = vadd.f32 %v1098, %v1256
        %v1273 = vadd.f32 %v1099, %v1258
        %v1274 = vadd.f32 %v1100, %v1261
        %v1275 = vadd.f32 %v1101, %v1263
        %v1276 = vadd.f32 %v1102, %v1266
        %v1277 = vadd.f32 %v1103, %v1268
        %s1278 = scalar_lea.vmem %s182, 16
        %v1279 = vld [vmem:[%s1278] sm:$0xf]
        %v1280 = vld [vmem:[%s1278 + $0x8] sm:$0xf]
        %v1281 = vld [vmem:[%s1278 + $0x10] sm:$0xf]
        %v1282 = vld [vmem:[%s1278 + $0x18] sm:$0xf]
        %v1283 = vld [vmem:[%s1278 + $0x20] sm:$0xf]
        %v1284 = vld [vmem:[%s1278 + $0x28] sm:$0xf]
        %v1285 = vld [vmem:[%s1278 + $0x30] sm:$0xf]
        %v1286 = vld [vmem:[%s1278 + $0x38] sm:$0xf]
        %s1287 = scalar_lea.vmem [#allocation2], 384
        %v1288 = vld [vmem:[%s1287] sm:$0xf]
        %v1289 = vld [vmem:[%s1287 + $0x4] sm:$0xf]
        %v1290 = vld [vmem:[%s1287 + $0x8] sm:$0xf]
        %v1291 = vld [vmem:[%s1287 + $0xc] sm:$0xf]
        %v1292 = vld [vmem:[%s1287 + $0x10] sm:$0xf]
        %v1293 = vld [vmem:[%s1287 + $0x14] sm:$0xf]
        %v1294 = vld [vmem:[%s1287 + $0x18] sm:$0xf]
        %v1295 = vld [vmem:[%s1287 + $0x1c] sm:$0xf]
        %v1296 = vld [vmem:[%s1287 + $0x20] sm:$0xf]
        %v1297 = vld [vmem:[%s1287 + $0x24] sm:$0xf]
        %v1298 = vld [vmem:[%s1287 + $0x28] sm:$0xf]
        %v1299 = vld [vmem:[%s1287 + $0x2c] sm:$0xf]
        %v1300 = vld [vmem:[%s1287 + $0x30] sm:$0xf]
        %v1301 = vld [vmem:[%s1287 + $0x34] sm:$0xf]
        %v1302 = vld [vmem:[%s1287 + $0x38] sm:$0xf]
        %v1303 = vld [vmem:[%s1287 + $0x3c] sm:$0xf]
        %v1312 = vunpack.c.l.b16 %v1279
        %v1313 = vunpack.c.l.b16 %v1280
        %v1314 = vunpack.c.l.b16 %v1281
        %v1315 = vunpack.c.l.b16 %v1282
        %v1316 = vunpack.c.l.b16 %v1283
        %v1317 = vunpack.c.l.b16 %v1284
        %v1318 = vunpack.c.l.b16 %v1285
        %v1319 = vunpack.c.l.b16 %v1286
        %v1320 = vpack.c.b16 %v1313, %v1312
        %v1321 = vpack.c.b16 %v1315, %v1314
        %v1322 = vpack.c.b16 %v1317, %v1316
        %v1323 = vpack.c.b16 %v1319, %v1318
        %v1344 = vunpack.c.l.b16 %v1288
        %v1345 = vunpack.c.l.b16 %v1289
        %v1346 = vunpack.c.l.b16 %v1290
        %v1347 = vunpack.c.l.b16 %v1291
        %v1348 = vunpack.c.l.b16 %v1292
        %v1349 = vunpack.c.l.b16 %v1293
        %v1350 = vunpack.c.l.b16 %v1294
        %v1351 = vunpack.c.l.b16 %v1295
        %v1352 = vunpack.c.l.b16 %v1296
        %v1353 = vunpack.c.l.b16 %v1297
        %v1354 = vunpack.c.l.b16 %v1298
        %v1355 = vunpack.c.l.b16 %v1299
        %v1356 = vunpack.c.l.b16 %v1300
        %v1357 = vunpack.c.l.b16 %v1301
        %v1358 = vunpack.c.l.b16 %v1302
        %v1359 = vunpack.c.l.b16 %v1303
        %v1360 = vpack.c.b16 %v1345, %v1344
        %v1361 = vpack.c.b16 %v1347, %v1346
        %v1362 = vpack.c.b16 %v1349, %v1348
        %v1363 = vpack.c.b16 %v1351, %v1350
        %v1364 = vpack.c.b16 %v1353, %v1352
        %v1365 = vpack.c.b16 %v1355, %v1354
        %v1366 = vpack.c.b16 %v1357, %v1356
        %v1367 = vpack.c.b16 %v1359, %v1358
        %1376 = vmatpush.bf16.msra.mxu0 %v1367
        %1377 = vmatpush.bf16.msra.mxu0 %v1366
        %1378 = vmatpush.bf16.msra.mxu0 %v1365
        %1379 = vmatpush.bf16.msra.mxu0 %v1364
        %1380 = vmatpush.bf16.msra.mxu0 %v1363
        %1381 = vmatpush.bf16.msra.mxu0 %v1362
        %1382 = vmatpush.bf16.msra.mxu0 %v1361
        %1383 = vmatpush.bf16.msra.mxu0 %v1360
        %1384 = vmatmul.bf16.gmra.mxu0 %v1320
        %v1385 = vpop.f32.mrf.mxu0
        %v1386 = vadd.f32 0.0, %v1385
        %v1387 = vpop.f32.mrf.mxu0
        %v1388 = vadd.f32 0.0, %v1387
        %1389 = vmatmul.bf16.gmra.mxu0 %v1321
        %v1390 = vpop.f32.mrf.mxu0
        %v1391 = vadd.f32 0.0, %v1390
        %v1392 = vpop.f32.mrf.mxu0
        %v1393 = vadd.f32 0.0, %v1392
        %1394 = vmatmul.bf16.gmra.mxu0 %v1322
        %v1395 = vpop.f32.mrf.mxu0
        %v1396 = vadd.f32 0.0, %v1395
        %v1397 = vpop.f32.mrf.mxu0
        %v1398 = vadd.f32 0.0, %v1397
        %1399 = vmatmul.bf16.gmra.mxu0 %v1323
        %v1400 = vpop.f32.mrf.mxu0
        %v1401 = vadd.f32 0.0, %v1400
        %v1402 = vpop.f32.mrf.mxu0
        %v1403 = vadd.f32 0.0, %v1402
        %1404 = vdwg.mxu0
        %v1405 = vadd.f32 %v1270, %v1386
        %v1406 = vadd.f32 %v1271, %v1388
        %v1407 = vadd.f32 %v1272, %v1391
        %v1408 = vadd.f32 %v1273, %v1393
        %v1409 = vadd.f32 %v1274, %v1396
        %v1410 = vadd.f32 %v1275, %v1398
        %v1411 = vadd.f32 %v1276, %v1401
        %v1412 = vadd.f32 %v1277, %v1403
        %v1413 = vld [vmem:[%s1278] sm:$0xf]
        %v1414 = vld [vmem:[%s1278 + $0x4] sm:$0x1]
        %v1415 = vld [vmem:[%s1278 + $0x8] sm:$0xf]
        %v1416 = vld [vmem:[%s1278 + $0xc] sm:$0x1]
        %v1417 = vld [vmem:[%s1278 + $0x10] sm:$0xf]
        %v1418 = vld [vmem:[%s1278 + $0x14] sm:$0x1]
        %v1419 = vld [vmem:[%s1278 + $0x18] sm:$0xf]
        %v1420 = vld [vmem:[%s1278 + $0x1c] sm:$0x1]
        %v1421 = vld [vmem:[%s1278 + $0x20] sm:$0xf]
        %v1422 = vld [vmem:[%s1278 + $0x24] sm:$0x1]
        %v1423 = vld [vmem:[%s1278 + $0x28] sm:$0xf]
        %v1424 = vld [vmem:[%s1278 + $0x2c] sm:$0x1]
        %v1425 = vld [vmem:[%s1278 + $0x30] sm:$0xf]
        %v1426 = vld [vmem:[%s1278 + $0x34] sm:$0x1]
        %v1427 = vld [vmem:[%s1278 + $0x38] sm:$0xf]
        %v1428 = vld [vmem:[%s1278 + $0x3c] sm:$0x1]
        %v1430 = vshrl.u32 %v1413, 16
        %v1432 = vrot.slane %v1430, 4
        %v1433 = vshll.u32 %v1413, 16
        %v1435 = vrot.slane %v1433, 5
        %v1436 = vor.u32 %v1432, %v1435
        %v1437 = vrot.slane %v1436, 4
        %v1439 = vshll.u32 %v1414, 16
        %v1441 = vrot.slane %v1439, 5
        %v1442 = vsel %vm222, %v1437, %v1441
        %v1444 = vshrl.u32 %v1415, 16
        %v1446 = vrot.slane %v1444, 4
        %v1447 = vshll.u32 %v1415, 16
        %v1449 = vrot.slane %v1447, 5
        %v1450 = vor.u32 %v1446, %v1449
        %v1451 = vrot.slane %v1450, 4
        %v1453 = vshll.u32 %v1416, 16
        %v1455 = vrot.slane %v1453, 5
        %v1456 = vsel %vm222, %v1451, %v1455
        %v1458 = vshrl.u32 %v1417, 16
        %v1460 = vrot.slane %v1458, 4
        %v1461 = vshll.u32 %v1417, 16
        %v1463 = vrot.slane %v1461, 5
        %v1464 = vor.u32 %v1460, %v1463
        %v1465 = vrot.slane %v1464, 4
        %v1467 = vshll.u32 %v1418, 16
        %v1469 = vrot.slane %v1467, 5
        %v1470 = vsel %vm222, %v1465, %v1469
        %v1472 = vshrl.u32 %v1419, 16
        %v1474 = vrot.slane %v1472, 4
        %v1475 = vshll.u32 %v1419, 16
        %v1477 = vrot.slane %v1475, 5
        %v1478 = vor.u32 %v1474, %v1477
        %v1479 = vrot.slane %v1478, 4
        %v1481 = vshll.u32 %v1420, 16
        %v1483 = vrot.slane %v1481, 5
        %v1484 = vsel %vm222, %v1479, %v1483
        %v1486 = vshrl.u32 %v1421, 16
        %v1488 = vrot.slane %v1486, 4
        %v1489 = vshll.u32 %v1421, 16
        %v1491 = vrot.slane %v1489, 5
        %v1492 = vor.u32 %v1488, %v1491
        %v1493 = vrot.slane %v1492, 4
        %v1495 = vshll.u32 %v1422, 16
        %v1497 = vrot.slane %v1495, 5
        %v1498 = vsel %vm222, %v1493, %v1497
        %v1500 = vshrl.u32 %v1423, 16
        %v1502 = vrot.slane %v1500, 4
        %v1503 = vshll.u32 %v1423, 16
        %v1505 = vrot.slane %v1503, 5
        %v1506 = vor.u32 %v1502, %v1505
        %v1507 = vrot.slane %v1506, 4
        %v1509 = vshll.u32 %v1424, 16
        %v1511 = vrot.slane %v1509, 5
        %v1512 = vsel %vm222, %v1507, %v1511
        %v1514 = vshrl.u32 %v1425, 16
        %v1516 = vrot.slane %v1514, 4
        %v1517 = vshll.u32 %v1425, 16
        %v1519 = vrot.slane %v1517, 5
        %v1520 = vor.u32 %v1516, %v1519
        %v1521 = vrot.slane %v1520, 4
        %v1523 = vshll.u32 %v1426, 16
        %v1525 = vrot.slane %v1523, 5
        %v1526 = vsel %vm222, %v1521, %v1525
        %v1528 = vshrl.u32 %v1427, 16
        %v1530 = vrot.slane %v1528, 4
        %v1531 = vshll.u32 %v1427, 16
        %v1533 = vrot.slane %v1531, 5
        %v1534 = vor.u32 %v1530, %v1533
        %v1535 = vrot.slane %v1534, 4
        %v1537 = vshll.u32 %v1428, 16
        %v1539 = vrot.slane %v1537, 5
        %v1540 = vsel %vm222, %v1535, %v1539
        %s1541 = scalar_lea.vmem [#allocation2], 448
        %v1542 = vld [vmem:[%s1541] sm:$0xf]
        %v1543 = vld [vmem:[%s1541 + $0x4] sm:$0xf]
        %v1544 = vld [vmem:[%s1541 + $0x8] sm:$0xf]
        %v1545 = vld [vmem:[%s1541 + $0xc] sm:$0xf]
        %v1546 = vld [vmem:[%s1541 + $0x10] sm:$0xf]
        %v1547 = vld [vmem:[%s1541 + $0x14] sm:$0xf]
        %v1548 = vld [vmem:[%s1541 + $0x18] sm:$0xf]
        %v1549 = vld [vmem:[%s1541 + $0x1c] sm:$0xf]
        %v1550 = vld [vmem:[%s1541 + $0x20] sm:$0xf]
        %v1551 = vld [vmem:[%s1541 + $0x24] sm:$0xf]
        %v1552 = vld [vmem:[%s1541 + $0x28] sm:$0xf]
        %v1553 = vld [vmem:[%s1541 + $0x2c] sm:$0xf]
        %v1554 = vld [vmem:[%s1541 + $0x30] sm:$0xf]
        %v1555 = vld [vmem:[%s1541 + $0x34] sm:$0xf]
        %v1556 = vld [vmem:[%s1541 + $0x38] sm:$0xf]
        %v1557 = vld [vmem:[%s1541 + $0x3c] sm:$0xf]
        %v1558 = vunpack.c.l.b16 %v1442
        %v1559 = vunpack.c.l.b16 %v1456
        %v1560 = vunpack.c.l.b16 %v1470
        %v1561 = vunpack.c.l.b16 %v1484
        %v1562 = vunpack.c.l.b16 %v1498
        %v1563 = vunpack.c.l.b16 %v1512
        %v1564 = vunpack.c.l.b16 %v1526
        %v1565 = vunpack.c.l.b16 %v1540
        %v1566 = vpack.c.b16 %v1559, %v1558
        %v1567 = vpack.c.b16 %v1561, %v1560
        %v1568 = vpack.c.b16 %v1563, %v1562
        %v1569 = vpack.c.b16 %v1565, %v1564
        %v1590 = vunpack.c.l.b16 %v1542
        %v1591 = vunpack.c.l.b16 %v1543
        %v1592 = vunpack.c.l.b16 %v1544
        %v1593 = vunpack.c.l.b16 %v1545
        %v1594 = vunpack.c.l.b16 %v1546
        %v1595 = vunpack.c.l.b16 %v1547
        %v1596 = vunpack.c.l.b16 %v1548
        %v1597 = vunpack.c.l.b16 %v1549
        %v1598 = vunpack.c.l.b16 %v1550
        %v1599 = vunpack.c.l.b16 %v1551
        %v1600 = vunpack.c.l.b16 %v1552
        %v1601 = vunpack.c.l.b16 %v1553
        %v1602 = vunpack.c.l.b16 %v1554
        %v1603 = vunpack.c.l.b16 %v1555
        %v1604 = vunpack.c.l.b16 %v1556
        %v1605 = vunpack.c.l.b16 %v1557
        %v1606 = vpack.c.b16 %v1591, %v1590
        %v1607 = vpack.c.b16 %v1593, %v1592
        %v1608 = vpack.c.b16 %v1595, %v1594
        %v1609 = vpack.c.b16 %v1597, %v1596
        %v1610 = vpack.c.b16 %v1599, %v1598
        %v1611 = vpack.c.b16 %v1601, %v1600
        %v1612 = vpack.c.b16 %v1603, %v1602
        %v1613 = vpack.c.b16 %v1605, %v1604
        %1622 = vmatpush.bf16.msra.mxu0 %v1613
        %1623 = vmatpush.bf16.msra.mxu0 %v1612
        %1624 = vmatpush.bf16.msra.mxu0 %v1611
        %1625 = vmatpush.bf16.msra.mxu0 %v1610
        %1626 = vmatpush.bf16.msra.mxu0 %v1609
        %1627 = vmatpush.bf16.msra.mxu0 %v1608
        %1628 = vmatpush.bf16.msra.mxu0 %v1607
        %1629 = vmatpush.bf16.msra.mxu0 %v1606
        %1630 = vmatmul.bf16.gmra.mxu0 %v1566
        %v1631 = vpop.f32.mrf.mxu0
        %v1632 = vadd.f32 0.0, %v1631
        %v1633 = vpop.f32.mrf.mxu0
        %v1634 = vadd.f32 0.0, %v1633
        %1635 = vmatmul.bf16.gmra.mxu0 %v1567
        %v1636 = vpop.f32.mrf.mxu0
        %v1637 = vadd.f32 0.0, %v1636
        %v1638 = vpop.f32.mrf.mxu0
        %v1639 = vadd.f32 0.0, %v1638
        %1640 = vmatmul.bf16.gmra.mxu0 %v1568
        %v1641 = vpop.f32.mrf.mxu0
        %v1642 = vadd.f32 0.0, %v1641
        %v1643 = vpop.f32.mrf.mxu0
        %v1644 = vadd.f32 0.0, %v1643
        %1645 = vmatmul.bf16.gmra.mxu0 %v1569
        %v1646 = vpop.f32.mrf.mxu0
        %v1647 = vadd.f32 0.0, %v1646
        %v1648 = vpop.f32.mrf.mxu0
        %v1649 = vadd.f32 0.0, %v1648
        %1650 = vdwg.mxu0
        %v1651 = vadd.f32 %v1405, %v1632
        %v1652 = vadd.f32 %v1406, %v1634
        %v1653 = vadd.f32 %v1407, %v1637
        %v1654 = vadd.f32 %v1408, %v1639
        %v1655 = vadd.f32 %v1409, %v1642
        %v1656 = vadd.f32 %v1410, %v1644
        %v1657 = vadd.f32 %v1411, %v1647
        %v1658 = vadd.f32 %v1412, %v1649
        %v1659 = vld [vmem:[%s1278] sm:$0xe]
        %v1660 = vld [vmem:[%s1278 + $0x8] sm:$0xe]
        %v1661 = vld [vmem:[%s1278 + $0x10] sm:$0xe]
        %v1662 = vld [vmem:[%s1278 + $0x18] sm:$0xe]
        %v1663 = vld [vmem:[%s1278 + $0x20] sm:$0xe]
        %v1664 = vld [vmem:[%s1278 + $0x28] sm:$0xe]
        %v1665 = vld [vmem:[%s1278 + $0x30] sm:$0xe]
        %v1666 = vld [vmem:[%s1278 + $0x38] sm:$0xe]
        %v1683 = vrot.slane %v1659, 5
        %v1684 = vrot.slane %v1683, 4
        %v1685 = vrot.slane %v1414, 5
        %v1686 = vsel %vm572, %v1684, %v1685
        %v1687 = vrot.slane %v1660, 5
        %v1688 = vrot.slane %v1687, 4
        %v1689 = vrot.slane %v1416, 5
        %v1690 = vsel %vm572, %v1688, %v1689
        %v1691 = vrot.slane %v1661, 5
        %v1692 = vrot.slane %v1691, 4
        %v1693 = vrot.slane %v1418, 5
        %v1694 = vsel %vm572, %v1692, %v1693
        %v1695 = vrot.slane %v1662, 5
        %v1696 = vrot.slane %v1695, 4
        %v1697 = vrot.slane %v1420, 5
        %v1698 = vsel %vm572, %v1696, %v1697
        %v1699 = vrot.slane %v1663, 5
        %v1700 = vrot.slane %v1699, 4
        %v1701 = vrot.slane %v1422, 5
        %v1702 = vsel %vm572, %v1700, %v1701
        %v1703 = vrot.slane %v1664, 5
        %v1704 = vrot.slane %v1703, 4
        %v1705 = vrot.slane %v1424, 5
        %v1706 = vsel %vm572, %v1704, %v1705
        %v1707 = vrot.slane %v1665, 5
        %v1708 = vrot.slane %v1707, 4
        %v1709 = vrot.slane %v1426, 5
        %v1710 = vsel %vm572, %v1708, %v1709
        %v1711 = vrot.slane %v1666, 5
        %v1712 = vrot.slane %v1711, 4
        %v1713 = vrot.slane %v1428, 5
        %v1714 = vsel %vm572, %v1712, %v1713
        %s1715 = scalar_lea.vmem [#allocation2], 512
        %v1716 = vld [vmem:[%s1715] sm:$0xf]
        %v1717 = vld [vmem:[%s1715 + $0x4] sm:$0xf]
        %v1718 = vld [vmem:[%s1715 + $0x8] sm:$0xf]
        %v1719 = vld [vmem:[%s1715 + $0xc] sm:$0xf]
        %v1720 = vld [vmem:[%s1715 + $0x10] sm:$0xf]
        %v1721 = vld [vmem:[%s1715 + $0x14] sm:$0xf]
        %v1722 = vld [vmem:[%s1715 + $0x18] sm:$0xf]
        %v1723 = vld [vmem:[%s1715 + $0x1c] sm:$0xf]
        %v1724 = vld [vmem:[%s1715 + $0x20] sm:$0xf]
        %v1725 = vld [vmem:[%s1715 + $0x24] sm:$0xf]
        %v1726 = vld [vmem:[%s1715 + $0x28] sm:$0xf]
        %v1727 = vld [vmem:[%s1715 + $0x2c] sm:$0xf]
        %v1728 = vld [vmem:[%s1715 + $0x30] sm:$0xf]
        %v1729 = vld [vmem:[%s1715 + $0x34] sm:$0xf]
        %v1730 = vld [vmem:[%s1715 + $0x38] sm:$0xf]
        %v1731 = vld [vmem:[%s1715 + $0x3c] sm:$0xf]
        %v1732 = vunpack.c.l.b16 %v1686
        %v1733 = vunpack.c.l.b16 %v1690
        %v1734 = vunpack.c.l.b16 %v1694
        %v1735 = vunpack.c.l.b16 %v1698
        %v1736 = vunpack.c.l.b16 %v1702
        %v1737 = vunpack.c.l.b16 %v1706
        %v1738 = vunpack.c.l.b16 %v1710
        %v1739 = vunpack.c.l.b16 %v1714
        %v1740 = vpack.c.b16 %v1733, %v1732
        %v1741 = vpack.c.b16 %v1735, %v1734
        %v1742 = vpack.c.b16 %v1737, %v1736
        %v1743 = vpack.c.b16 %v1739, %v1738
        %v1764 = vunpack.c.l.b16 %v1716
        %v1765 = vunpack.c.l.b16 %v1717
        %v1766 = vunpack.c.l.b16 %v1718
        %v1767 = vunpack.c.l.b16 %v1719
        %v1768 = vunpack.c.l.b16 %v1720
        %v1769 = vunpack.c.l.b16 %v1721
        %v1770 = vunpack.c.l.b16 %v1722
        %v1771 = vunpack.c.l.b16 %v1723
        %v1772 = vunpack.c.l.b16 %v1724
        %v1773 = vunpack.c.l.b16 %v1725
        %v1774 = vunpack.c.l.b16 %v1726
        %v1775 = vunpack.c.l.b16 %v1727
        %v1776 = vunpack.c.l.b16 %v1728
        %v1777 = vunpack.c.l.b16 %v1729
        %v1778 = vunpack.c.l.b16 %v1730
        %v1779 = vunpack.c.l.b16 %v1731
        %v1780 = vpack.c.b16 %v1765, %v1764
        %v1781 = vpack.c.b16 %v1767, %v1766
        %v1782 = vpack.c.b16 %v1769, %v1768
        %v1783 = vpack.c.b16 %v1771, %v1770
        %v1784 = vpack.c.b16 %v1773, %v1772
        %v1785 = vpack.c.b16 %v1775, %v1774
        %v1786 = vpack.c.b16 %v1777, %v1776
        %v1787 = vpack.c.b16 %v1779, %v1778
        %1796 = vmatpush.bf16.msra.mxu0 %v1787
        %1797 = vmatpush.bf16.msra.mxu0 %v1786
        %1798 = vmatpush.bf16.msra.mxu0 %v1785
        %1799 = vmatpush.bf16.msra.mxu0 %v1784
        %1800 = vmatpush.bf16.msra.mxu0 %v1783
        %1801 = vmatpush.bf16.msra.mxu0 %v1782
        %1802 = vmatpush.bf16.msra.mxu0 %v1781
        %1803 = vmatpush.bf16.msra.mxu0 %v1780
        %1804 = vmatmul.bf16.gmra.mxu0 %v1740
        %v1805 = vpop.f32.mrf.mxu0
        %v1806 = vadd.f32 0.0, %v1805
        %v1807 = vpop.f32.mrf.mxu0
        %v1808 = vadd.f32 0.0, %v1807
        %1809 = vmatmul.bf16.gmra.mxu0 %v1741
        %v1810 = vpop.f32.mrf.mxu0
        %v1811 = vadd.f32 0.0, %v1810
        %v1812 = vpop.f32.mrf.mxu0
        %v1813 = vadd.f32 0.0, %v1812
        %1814 = vmatmul.bf16.gmra.mxu0 %v1742
        %v1815 = vpop.f32.mrf.mxu0
        %v1816 = vadd.f32 0.0, %v1815
        %v1817 = vpop.f32.mrf.mxu0
        %v1818 = vadd.f32 0.0, %v1817
        %1819 = vmatmul.bf16.gmra.mxu0 %v1743
        %v1820 = vpop.f32.mrf.mxu0
        %v1821 = vadd.f32 0.0, %v1820
        %v1822 = vpop.f32.mrf.mxu0
        %v1823 = vadd.f32 0.0, %v1822
        %1824 = vdwg.mxu0
        %v1825 = vadd.f32 %v1651, %v1806
        %v1826 = vadd.f32 %v1652, %v1808
        %v1827 = vadd.f32 %v1653, %v1811
        %v1828 = vadd.f32 %v1654, %v1813
        %v1829 = vadd.f32 %v1655, %v1816
        %v1830 = vadd.f32 %v1656, %v1818
        %v1831 = vadd.f32 %v1657, %v1821
        %v1832 = vadd.f32 %v1658, %v1823
        %v1833 = vld [vmem:[%s2] sm:$0x1]
        %v1835 = vperm.slane %v1833, 0
        %v1837 = vadd.f32 %v1825, %v1835
        %v1838 = vadd.f32 %v1826, %v1835
        %v1839 = vadd.f32 %v1827, %v1835
        %v1840 = vadd.f32 %v1828, %v1835
        %v1841 = vadd.f32 %v1829, %v1835
        %v1842 = vadd.f32 %v1830, %v1835
        %v1843 = vadd.f32 %v1831, %v1835
        %v1844 = vadd.f32 %v1832, %v1835
        %v1845 = vmax.f32 %v1837, 0.0
        %v1846 = vmax.f32 %v1838, 0.0
        %v1847 = vmax.f32 %v1839, 0.0
        %v1848 = vmax.f32 %v1840, 0.0
        %v1849 = vmax.f32 %v1841, 0.0
        %v1850 = vmax.f32 %v1842, 0.0
        %v1851 = vmax.f32 %v1843, 0.0
        %v1852 = vmax.f32 %v1844, 0.0
        %v1853 = vmax.f32 %v1845, %v1846
        %v1854 = vmax.f32 %v1847, %v1848
        %v1855 = vmax.f32 %v1849, %v1850
        %v1856 = vmax.f32 %v1851, %v1852
        %v1861 = vrot.slane %v1853, 2
        %v1862 = vrot.slane %v1853, 4
        %v1863 = vrot.slane %v1853, 6
        %v1864 = vrot.slane %v1854, 2
        %v1865 = vrot.slane %v1854, 4
        %v1866 = vrot.slane %v1854, 6
        %v1867 = vrot.slane %v1855, 2
        %v1868 = vrot.slane %v1855, 4
        %v1869 = vrot.slane %v1855, 6
        %v1870 = vrot.slane %v1856, 2
        %v1871 = vrot.slane %v1856, 4
        %v1872 = vrot.slane %v1856, 6
        %vm1885 = vcmask 1041408
        %v1886 = vsel %vm1885, %v1853, -inf
        %v1887 = vrot.slane %v1886, 4
        %v1888 = vmax.f32 %v1886, %v1887
        %v1889 = vrot.slane %v1888, 2
        %v1890 = vmax.f32 %v1888, %v1889
        %v1891 = vrot.slane %v1890, 1
        %v1892 = vmax.f32 %v1890, %v1891
        %v1893 = vsel %vm1885, %v1861, -inf
        %v1894 = vrot.slane %v1893, 4
        %v1895 = vmax.f32 %v1893, %v1894
        %v1896 = vrot.slane %v1895, 2
        %v1897 = vmax.f32 %v1895, %v1896
        %v1898 = vrot.slane %v1897, 1
        %v1899 = vmax.f32 %v1897, %v1898
        %v1900 = vsel %vm1885, %v1862, -inf
        %v1901 = vrot.slane %v1900, 4
        %v1902 = vmax.f32 %v1900, %v1901
        %v1903 = vrot.slane %v1902, 2
        %v1904 = vmax.f32 %v1902, %v1903
        %v1905 = vrot.slane %v1904, 1
        %v1906 = vmax.f32 %v1904, %v1905
        %v1907 = vsel %vm1885, %v1863, -inf
        %v1908 = vrot.slane %v1907, 4
        %v1909 = vmax.f32 %v1907, %v1908
        %v1910 = vrot.slane %v1909, 2
        %v1911 = vmax.f32 %v1909, %v1910
        %v1912 = vrot.slane %v1911, 1
        %v1913 = vmax.f32 %v1911, %v1912
        %v1914 = vsel %vm1885, %v1854, -inf
        %v1915 = vrot.slane %v1914, 4
        %v1916 = vmax.f32 %v1914, %v1915
        %v1917 = vrot.slane %v1916, 2
        %v1918 = vmax.f32 %v1916, %v1917
        %v1919 = vrot.slane %v1918, 1
        %v1920 = vmax.f32 %v1918, %v1919
        %v1921 = vsel %vm1885, %v1864, -inf
        %v1922 = vrot.slane %v1921, 4
        %v1923 = vmax.f32 %v1921, %v1922
        %v1924 = vrot.slane %v1923, 2
        %v1925 = vmax.f32 %v1923, %v1924
        %v1926 = vrot.slane %v1925, 1
        %v1927 = vmax.f32 %v1925, %v1926
        %v1928 = vsel %vm1885, %v1865, -inf
        %v1929 = vrot.slane %v1928, 4
        %v1930 = vmax.f32 %v1928, %v1929
        %v1931 = vrot.slane %v1930, 2
        %v1932 = vmax.f32 %v1930, %v1931
        %v1933 = vrot.slane %v1932, 1
        %v1934 = vmax.f32 %v1932, %v1933
        %v1935 = vsel %vm1885, %v1866, -inf
        %v1936 = vrot.slane %v1935, 4
        %v1937 = vmax.f32 %v1935, %v1936
        %v1938 = vrot.slane %v1937, 2
        %v1939 = vmax.f32 %v1937, %v1938
        %v1940 = vrot.slane %v1939, 1
        %v1941 = vmax.f32 %v1939, %v1940
        %v1942 = vsel %vm1885, %v1855, -inf
        %v1943 = vrot.slane %v1942, 4
        %v1944 = vmax.f32 %v1942, %v1943
        %v1945 = vrot.slane %v1944, 2
        %v1946 = vmax.f32 %v1944, %v1945
        %v1947 = vrot.slane %v1946, 1
        %v1948 = vmax.f32 %v1946, %v1947
        %v1949 = vsel %vm1885, %v1867, -inf
        %v1950 = vrot.slane %v1949, 4
        %v1951 = vmax.f32 %v1949, %v1950
        %v1952 = vrot.slane %v1951, 2
        %v1953 = vmax.f32 %v1951, %v1952
        %v1954 = vrot.slane %v1953, 1
        %v1955 = vmax.f32 %v1953, %v1954
        %v1956 = vsel %vm1885, %v1868, -inf
        %v1957 = vrot.slane %v1956, 4
        %v1958 = vmax.f32 %v1956, %v1957
        %v1959 = vrot.slane %v1958, 2
        %v1960 = vmax.f32 %v1958, %v1959
        %v1961 = vrot.slane %v1960, 1
        %v1962 = vmax.f32 %v1960, %v1961
        %v1963 = vsel %vm1885, %v1869, -inf
        %v1964 = vrot.slane %v1963, 4
        %v1965 = vmax.f32 %v1963, %v1964
        %v1966 = vrot.slane %v1965, 2
        %v1967 = vmax.f32 %v1965, %v1966
        %v1968 = vrot.slane %v1967, 1
        %v1969 = vmax.f32 %v1967, %v1968
        %v1970 = vsel %vm1885, %v1856, -inf
        %v1971 = vrot.slane %v1970, 4
        %v1972 = vmax.f32 %v1970, %v1971
        %v1973 = vrot.slane %v1972, 2
        %v1974 = vmax.f32 %v1972, %v1973
        %v1975 = vrot.slane %v1974, 1
        %v1976 = vmax.f32 %v1974, %v1975
        %v1977 = vsel %vm1885, %v1870, -inf
        %v1978 = vrot.slane %v1977, 4
        %v1979 = vmax.f32 %v1977, %v1978
        %v1980 = vrot.slane %v1979, 2
        %v1981 = vmax.f32 %v1979, %v1980
        %v1982 = vrot.slane %v1981, 1
        %v1983 = vmax.f32 %v1981, %v1982
        %v1984 = vsel %vm1885, %v1871, -inf
        %v1985 = vrot.slane %v1984, 4
        %v1986 = vmax.f32 %v1984, %v1985
        %v1987 = vrot.slane %v1986, 2
        %v1988 = vmax.f32 %v1986, %v1987
        %v1989 = vrot.slane %v1988, 1
        %v1990 = vmax.f32 %v1988, %v1989
        %v1991 = vsel %vm1885, %v1872, -inf
        %v1992 = vrot.slane %v1991, 4
        %v1993 = vmax.f32 %v1991, %v1992
        %v1994 = vrot.slane %v1993, 2
        %v1995 = vmax.f32 %v1993, %v1994
        %v1996 = vrot.slane %v1995, 1
        %v1997 = vmax.f32 %v1995, %v1996
        %v1998 = vpack.c.bf16 %v1892, %v1892
        %v1999 = vpack.c.bf16 %v1899, %v1899
        %v2000 = vpack.c.bf16 %v1906, %v1906
        %v2001 = vpack.c.bf16 %v1913, %v1913
        %v2002 = vpack.c.bf16 %v1920, %v1920
        %v2003 = vpack.c.bf16 %v1927, %v1927
        %v2004 = vpack.c.bf16 %v1934, %v1934
        %v2005 = vpack.c.bf16 %v1941, %v1941
        %v2006 = vpack.c.bf16 %v1948, %v1948
        %v2007 = vpack.c.bf16 %v1955, %v1955
        %v2008 = vpack.c.bf16 %v1962, %v1962
        %v2009 = vpack.c.bf16 %v1969, %v1969
        %v2010 = vpack.c.bf16 %v1976, %v1976
        %v2011 = vpack.c.bf16 %v1983, %v1983
        %v2012 = vpack.c.bf16 %v1990, %v1990
        %v2013 = vpack.c.bf16 %v1997, %v1997
        %v2030 = vrot.slane %v1998, 2
        %v2031 = vrot.slane %v1999, 2
        %v2032 = vrot.slane %v2000, 2
        %v2033 = vrot.slane %v2001, 2
        %v2034 = vrot.slane %v2002, 2
        %v2035 = vrot.slane %v2003, 2
        %v2036 = vrot.slane %v2004, 2
        %v2037 = vrot.slane %v2005, 2
        %v2038 = vrot.slane %v2006, 2
        %v2039 = vrot.slane %v2007, 2
        %v2040 = vrot.slane %v2008, 2
        %v2041 = vrot.slane %v2009, 2
        %v2042 = vrot.slane %v2010, 2
        %v2043 = vrot.slane %v2011, 2
        %v2044 = vrot.slane %v2012, 2
        %v2045 = vrot.slane %v2013, 2
        %v2048 = vsel %vm1885, %v1998, %v2030
        %v2051 = vsel %vm1885, %v1999, %v2031
        %v2054 = vsel %vm1885, %v2000, %v2032
        %v2057 = vsel %vm1885, %v2001, %v2033
        %v2060 = vsel %vm1885, %v2002, %v2034
        %v2063 = vsel %vm1885, %v2003, %v2035
        %v2066 = vsel %vm1885, %v2004, %v2036
        %v2069 = vsel %vm1885, %v2005, %v2037
        %v2072 = vsel %vm1885, %v2006, %v2038
        %v2075 = vsel %vm1885, %v2007, %v2039
        %v2078 = vsel %vm1885, %v2008, %v2040
        %v2081 = vsel %vm1885, %v2009, %v2041
        %v2084 = vsel %vm1885, %v2010, %v2042
        %v2087 = vsel %vm1885, %v2011, %v2043
        %v2090 = vsel %vm1885, %v2012, %v2044
        %v2093 = vsel %vm1885, %v2013, %v2045
        %2094 = vst [vmem:[#allocation1] ss:$2 sm:$0xff] %v2048
        %v2095 = vld.sshfl [vmem:[#allocation1] sm:$0xff pattern:$0x75643120]
        %s2097 = scalar_lea.vmem [#allocation1], 16
        %2098 = vst [vmem:[%s2097] ss:$2 sm:$0xff] %v2051
        %v2099 = vld.sshfl [vmem:[#allocation1 + $0x10] sm:$0xff pattern:$0x75643120]
        %s2101 = scalar_lea.vmem [#allocation1], 32
        %2102 = vst [vmem:[%s2101] ss:$2 sm:$0xff] %v2054
        %v2103 = vld.sshfl [vmem:[#allocation1 + $0x20] sm:$0xff pattern:$0x75643120]
        %s2105 = scalar_lea.vmem [#allocation1], 48
        %2106 = vst [vmem:[%s2105] ss:$2 sm:$0xff] %v2057
        %v2107 = vld.sshfl [vmem:[#allocation1 + $0x30] sm:$0xff pattern:$0x75643120]
        %2109 = vst [vmem:[#allocation1] ss:$2 sm:$0xff] %v2060
        %v2110 = vld.sshfl [vmem:[#allocation1] sm:$0xff pattern:$0x75643120]
        %2112 = vst [vmem:[%s2097] ss:$2 sm:$0xff] %v2063
        %v2113 = vld.sshfl [vmem:[#allocation1 + $0x10] sm:$0xff pattern:$0x75643120]
        %2115 = vst [vmem:[%s2101] ss:$2 sm:$0xff] %v2066
        %v2116 = vld.sshfl [vmem:[#allocation1 + $0x20] sm:$0xff pattern:$0x75643120]
        %2118 = vst [vmem:[%s2105] ss:$2 sm:$0xff] %v2069
        %v2119 = vld.sshfl [vmem:[#allocation1 + $0x30] sm:$0xff pattern:$0x75643120]
        %2121 = vst [vmem:[#allocation1] ss:$2 sm:$0xff] %v2072
        %v2122 = vld.sshfl [vmem:[#allocation1] sm:$0xff pattern:$0x75643120]
        %2124 = vst [vmem:[%s2097] ss:$2 sm:$0xff] %v2075
        %v2125 = vld.sshfl [vmem:[#allocation1 + $0x10] sm:$0xff pattern:$0x75643120]
        %2127 = vst [vmem:[%s2101] ss:$2 sm:$0xff] %v2078
        %v2128 = vld.sshfl [vmem:[#allocation1 + $0x20] sm:$0xff pattern:$0x75643120]
        %2130 = vst [vmem:[%s2105] ss:$2 sm:$0xff] %v2081
        %v2131 = vld.sshfl [vmem:[#allocation1 + $0x30] sm:$0xff pattern:$0x75643120]
        %2133 = vst [vmem:[#allocation1] ss:$2 sm:$0xff] %v2084
        %v2134 = vld.sshfl [vmem:[#allocation1] sm:$0xff pattern:$0x75643120]
        %2136 = vst [vmem:[%s2097] ss:$2 sm:$0xff] %v2087
        %v2137 = vld.sshfl [vmem:[#allocation1 + $0x10] sm:$0xff pattern:$0x75643120]
        %2139 = vst [vmem:[%s2101] ss:$2 sm:$0xff] %v2090
        %v2140 = vld.sshfl [vmem:[#allocation1 + $0x20] sm:$0xff pattern:$0x75643120]
        %2142 = vst [vmem:[%s2105] ss:$2 sm:$0xff] %v2093
        %v2143 = vld.sshfl [vmem:[#allocation1 + $0x30] sm:$0xff pattern:$0x75643120]
        %v2145 = vunpack.c.l.b16 %v2095
        %v2146 = vunpack.c.l.b16 %v2099
        %v2147 = vunpack.c.l.b16 %v2103
        %v2148 = vunpack.c.l.b16 %v2107
        %v2149 = vunpack.c.l.b16 %v2110
        %v2150 = vunpack.c.l.b16 %v2113
        %v2151 = vunpack.c.l.b16 %v2116
        %v2152 = vunpack.c.l.b16 %v2119
        %v2153 = vunpack.c.l.b16 %v2122
        %v2154 = vunpack.c.l.b16 %v2125
        %v2155 = vunpack.c.l.b16 %v2128
        %v2156 = vunpack.c.l.b16 %v2131
        %v2157 = vunpack.c.l.b16 %v2134
        %v2158 = vunpack.c.l.b16 %v2137
        %v2159 = vunpack.c.l.b16 %v2140
        %v2160 = vunpack.c.l.b16 %v2143
        %v2161 = vrot.slane %v2146, 7
        %vm2162 = vcmask 1041409
        %v2163 = vsel %vm2162, %v2161, %v2145
        %v2164 = vrot.slane %v2147, 6
        %vm2165 = vcmask 1042434
        %v2166 = vsel %vm2165, %v2164, %v2163
        %v2167 = vrot.slane %v2148, 5
        %vm2168 = vcmask 1043459
        %v2169 = vsel %vm2168, %v2167, %v2166
        %v2170 = vrot.slane %v2150, 7
        %v2171 = vsel %vm2162, %v2170, %v2149
        %v2172 = vrot.slane %v2151, 6
        %v2173 = vsel %vm2165, %v2172, %v2171
        %v2174 = vrot.slane %v2152, 5
        %v2175 = vsel %vm2168, %v2174, %v2173
        %v2176 = vrot.slane %v2154, 7
        %v2177 = vsel %vm2162, %v2176, %v2153
        %v2178 = vrot.slane %v2155, 6
        %v2179 = vsel %vm2165, %v2178, %v2177
        %v2180 = vrot.slane %v2156, 5
        %v2181 = vsel %vm2168, %v2180, %v2179
        %v2182 = vrot.slane %v2158, 7
        %v2183 = vsel %vm2162, %v2182, %v2157
        %v2184 = vrot.slane %v2159, 6
        %v2185 = vsel %vm2165, %v2184, %v2183
        %v2186 = vrot.slane %v2160, 5
        %v2187 = vsel %vm2168, %v2186, %v2185
        %v2188 = vpack.c.b16 %v2169, %v2169
        %v2189 = vpack.c.b16 %v2175, %v2175
        %v2190 = vpack.c.b16 %v2181, %v2181
        %v2191 = vpack.c.b16 %v2187, %v2187
        %v2192 = vrot.slane %v2188, 2
        %v2193 = vrot.slane %v2189, 2
        %v2194 = vrot.slane %v2190, 2
        %v2195 = vrot.slane %v2191, 2
        %v2198 = vsel %vm1885, %v2188, %v2192
        %v2201 = vsel %vm1885, %v2189, %v2193
        %v2204 = vsel %vm1885, %v2190, %v2194
        %v2207 = vsel %vm1885, %v2191, %v2195
        %2212 = vst [vmem:[%s187] sm:$0x3] %v2198
        %2213 = vst [vmem:[%s187 + $0x2] sm:$0x3] %v2201
        %2214 = vst [vmem:[%s187 + $0x4] sm:$0x3] %v2204
        %2215 = vst [vmem:[%s187 + $0x6] sm:$0x3] %v2207
        %p2216 = scmp.lt.s32.totalorder %s15, 1
        %s2217 = scalar_select %p2216, %s15, 1
        %s2218 = smul.addr %s2217, 4
        %s2219 = smul.addr %s2218, 2
        %s2220 = scalar_lea.vmem %s3, %s2219
        // Predicated region
        $region37: #{forward.4} parent=31 // pred_check
          %p2221 = pneg %p101
        $region38: #{forward.4} parent=31 // pred_check_branch
          %2223 = sbr.rel (%p2221) target = $region40
        $region39: #{forward.4} parent=31 // pred_region
          _
        $region40: #{forward.4} parent=31 // pred_fallthru
          _
      $region32: #{forward.4} parent=5 // pred_fallthru
        _
      %p2224 = scmp.le.s32.totalorder 2, %s10
      // Predicated region
      $region41: #{forward.4} parent=5 // pred_check
        %p2225 = pneg %p2224
      $region42: #{forward.4} parent=5 // pred_check_branch
        %2227 = sbr.rel (%p2225) target = $region44
      $region43: #{forward.4} parent=5 // pred_region
        %s2228 = ssub.s32 %s10, 2
        // Predicated region
        $region45: #{forward.4} parent=43 // pred_check
          %p2229 = pneg %p107
        $region46: #{forward.4} parent=43 // pred_check_branch
          %2231 = sbr.rel (%p2229) target = $region48
        $region47: #{forward.4} parent=43 // pred_region
          %p2232 = scmp.lt.s32.totalorder %s16, 1
          %s2233 = scalar_select %p2232, %s16, 1
          %s2234 = smul.addr %s2233, 4
          %s2235 = smul.addr %s2234, 2
          %s2236 = scalar_lea.vmem %s3, %s2235
        $region48: #{forward.4} parent=43 // pred_fallthru
          _
      $region44: #{forward.4} parent=5 // pred_fallthru
        _
    $region6: #{forward.4} parent=1 // loop_footer
      %s14 = sadd.s32 1, %s10
    $region7: #{forward.4} parent=1 // loop_footer_branch
      %9 = sbr.rel target = $region3
    $region8: #{forward.4} parent=1 // loop_exit
      _
    %2237 = vsyncpa [#allocation3], 1
    %s2238 = scalar_lea.sflag [#allocation3], 1
    %2239 = vsyncpa %s2238, 1

// kernel: forward.5
$region0: #{forward.5}
  #allocation0 [shape = 'u32[]', space=smem, size = 0x4, offset = 0x4, fixed_abs, tag = 'smem constant byte address 0x4 - core index']
  #allocation1 [shape = 'u32[72,128]{1,0:T(1,128)}', space=vmem, size = 0x9000, scoped, tag = 'internal scratch']
  %s0 = inlined_call_operand.vmem [shape: bf16[2,256], index: 0, kind: input, shape index: {}]
  %s1 = inlined_call_operand.vmem [shape: bf16[256,512], index: 1, kind: input, shape index: {}]
  %s2 = inlined_call_operand.vmem [shape: f32[1,512], index: 2, kind: input, shape index: {}]
  %s3 = inlined_call_operand.vmem [shape: bf16[512,512], index: 3, kind: input, shape index: {}]
  %s4 = inlined_call_operand.vmem [shape: f32[1,512], index: 4, kind: input, shape index: {}]
  %s5 = inlined_call_operand.hbm [shape: bf16[512,128], index: 5, kind: input, shape index: {}]
  %s6 = inlined_call_operand.vmem [shape: f32[1,128], index: 6, kind: input, shape index: {}]
  %s7 = inlined_call_operand.hbm [shape: f32[2,128], index: 7, kind: output, shape index: {}]
  %s8 = sld [smem:[#allocation0]]
  $region42: #{forward.5} parent=0
    _
  %s10 = ssub.s32 1, %s8
  %s11 = scalar_select 0, %s10, %s8
  $region1: #{forward.5} parent=0
    #allocation2 [shape = 'u8[131072]{0}', space=vmem, size = 0x20000, scoped, tag = 'input window, operand 5, single buffered']
    #allocation3 [shape = 's32[1]{0}', space=sflag, size = 0x4, scoped, tag = 'scoped memory for forward.5']
    #allocation4 [shape = 's32[1]{0}', space=sflag, size = 0x4, scoped, tag = 'scoped memory for forward.5']
    #allocation5 [shape = 'u8[1024]{0}', space=vmem, size = 0x400, scoped, tag = 'output window, operand 0, single buffered']
    %12 = vsyncpa [#allocation3], 0
    %13 = vsyncpa [#allocation4], 0
    // Predicated region
    $region2: #{forward.5} parent=1 // pred_check
      _
    $region3: #{forward.5} parent=1 // pred_check_branch
      %15 = sbr.rel (0) target = $region5
    $region4: #{forward.5} parent=1 // pred_region
      _
    $region5: #{forward.5} parent=1 // pred_fallthru
      _
    // Predicated region
    $region6: #{forward.5} parent=1 // pred_check
      _
    $region7: #{forward.5} parent=1 // pred_check_branch
      %17 = sbr.rel (0) target = $region9
    $region8: #{forward.5} parent=1 // pred_region
      _
    $region9: #{forward.5} parent=1 // pred_fallthru
      _
    // Predicated region
    $region10: #{forward.5} parent=1 // pred_check
      _
    $region11: #{forward.5} parent=1 // pred_check_branch
      %19 = sbr.rel (0) target = $region13
    $region12: #{forward.5} parent=1 // pred_region
      _
    $region13: #{forward.5} parent=1 // pred_fallthru
      _
    // Predicated region
    $region14: #{forward.5} parent=1 // pred_check
      _
    $region15: #{forward.5} parent=1 // pred_check_branch
      %21 = sbr.rel (0) target = $region17
    $region16: #{forward.5} parent=1 // pred_region
      _
    $region17: #{forward.5} parent=1 // pred_fallthru
      _
    // Predicated region
    $region18: #{forward.5} parent=1 // pred_check
      _
    $region19: #{forward.5} parent=1 // pred_check_branch
      %23 = sbr.rel (0) target = $region21
    $region20: #{forward.5} parent=1 // pred_region
      _
    $region21: #{forward.5} parent=1 // pred_fallthru
      _
    // Predicated region
    $region22: #{forward.5} parent=1 // pred_check
      _
    $region23: #{forward.5} parent=1 // pred_check_branch
      %25 = sbr.rel (0) target = $region25
    $region24: #{forward.5} parent=1 // pred_region
      %27 = vsyncadd [#allocation3], 0
      %s28 = sshll.u32 %s5, 4
      %s29 = int_to_ptr.hbm [resolvable:$true] %s28
      %s30 = sshll.u32 [#allocation2], 4
      %s31 = int_to_ptr.vmem [resolvable:$true] %s30
      %36 = dma.hbm_to_vmem [thread:$0]  %s29, 4096, %s31, [#allocation3], 64, 64, 4
    $region25: #{forward.5} parent=1 // pred_fallthru
      _
    // Predicated region
    $region26: #{forward.5} parent=1 // pred_check
      _
    $region27: #{forward.5} parent=1 // pred_check_branch
      %38 = sbr.rel (0) target = $region29
    $region28: #{forward.5} parent=1 // pred_region
      _
    $region29: #{forward.5} parent=1 // pred_fallthru
      _
    // Predicated region
    $region30: #{forward.5} parent=1 // pred_check
      _
    $region31: #{forward.5} parent=1 // pred_check_branch
      %40 = sbr.rel (0) target = $region33
    $region32: #{forward.5} parent=1 // pred_region
      %42 = dma.done [#allocation3], 4096
    $region33: #{forward.5} parent=1 // pred_fallthru
      _
    %v43 = vld [vmem:[%s0] sm:$0x3]
    %v44 = vld [vmem:[%s1] sm:$0xff]
    %v45 = vld [vmem:[%s1 + $0x8] sm:$0xff]
    %v46 = vld [vmem:[%s1 + $0x10] sm:$0xff]
    %v47 = vld [vmem:[%s1 + $0x18] sm:$0xff]
    %v48 = vld [vmem:[%s1 + $0x20] sm:$0xff]
    %v49 = vld [vmem:[%s1 + $0x28] sm:$0xff]
    %v50 = vld [vmem:[%s1 + $0x30] sm:$0xff]
    %v51 = vld [vmem:[%s1 + $0x38] sm:$0xff]
    %v52 = vld [vmem:[%s1 + $0x40] sm:$0xff]
    %v53 = vld [vmem:[%s1 + $0x48] sm:$0xff]
    %v54 = vld [vmem:[%s1 + $0x50] sm:$0xff]
    %v55 = vld [vmem:[%s1 + $0x58] sm:$0xff]
    %v56 = vld [vmem:[%s1 + $0x60] sm:$0xff]
    %v57 = vld [vmem:[%s1 + $0x68] sm:$0xff]
    %v58 = vld [vmem:[%s1 + $0x70] sm:$0xff]
    %v59 = vld [vmem:[%s1 + $0x78] sm:$0xff]
    %v60 = vld [vmem:[%s1 + $0x80] sm:$0xff]
    %v61 = vld [vmem:[%s1 + $0x88] sm:$0xff]
    %v62 = vld [vmem:[%s1 + $0x90] sm:$0xff]
    %v63 = vld [vmem:[%s1 + $0x98] sm:$0xff]
    %v64 = vld [vmem:[%s1 + $0xa0] sm:$0xff]
    %v65 = vld [vmem:[%s1 + $0xa8] sm:$0xff]
    %v66 = vld [vmem:[%s1 + $0xb0] sm:$0xff]
    %v67 = vld [vmem:[%s1 + $0xb8] sm:$0xff]
    %v68 = vld [vmem:[%s1 + $0xc0] sm:$0xff]
    %v69 = vld [vmem:[%s1 + $0xc8] sm:$0xff]
    %v70 = vld [vmem:[%s1 + $0xd0] sm:$0xff]
    %v71 = vld [vmem:[%s1 + $0xd8] sm:$0xff]
    %v72 = vld [vmem:[%s1 + $0xe0] sm:$0xff]
    %v73 = vld [vmem:[%s1 + $0xe8] sm:$0xff]
    %v74 = vld [vmem:[%s1 + $0xf0] sm:$0xff]
    %v75 = vld [vmem:[%s1 + $0xf8] sm:$0xff]
    %v76 = vld [vmem:[%s1 + $0x100] sm:$0xff]
    %v77 = vld [vmem:[%s1 + $0x108] sm:$0xff]
    %v78 = vld [vmem:[%s1 + $0x110] sm:$0xff]
    %v79 = vld [vmem:[%s1 + $0x118] sm:$0xff]
    %v80 = vld [vmem:[%s1 + $0x120] sm:$0xff]
    %v81 = vld [vmem:[%s1 + $0x128] sm:$0xff]
    %v82 = vld [vmem:[%s1 + $0x130] sm:$0xff]
    %v83 = vld [vmem:[%s1 + $0x138] sm:$0xff]
    %v84 = vld [vmem:[%s1 + $0x140] sm:$0xff]
    %v85 = vld [vmem:[%s1 + $0x148] sm:$0xff]
    %v86 = vld [vmem:[%s1 + $0x150] sm:$0xff]
    %v87 = vld [vmem:[%s1 + $0x158] sm:$0xff]
    %v88 = vld [vmem:[%s1 + $0x160] sm:$0xff]
    %v89 = vld [vmem:[%s1 + $0x168] sm:$0xff]
    %v90 = vld [vmem:[%s1 + $0x170] sm:$0xff]
    %v91 = vld [vmem:[%s1 + $0x178] sm:$0xff]
    %v92 = vld [vmem:[%s1 + $0x180] sm:$0xff]
    %v93 = vld [vmem:[%s1 + $0x188] sm:$0xff]
    %v94 = vld [vmem:[%s1 + $0x190] sm:$0xff]
    %v95 = vld [vmem:[%s1 + $0x198] sm:$0xff]
    %v96 = vld [vmem:[%s1 + $0x1a0] sm:$0xff]
    %v97 = vld [vmem:[%s1 + $0x1a8] sm:$0xff]
    %v98 = vld [vmem:[%s1 + $0x1b0] sm:$0xff]
    %v99 = vld [vmem:[%s1 + $0x1b8] sm:$0xff]
    %v100 = vld [vmem:[%s1 + $0x1c0] sm:$0xff]
    %v101 = vld [vmem:[%s1 + $0x1c8] sm:$0xff]
    %v102 = vld [vmem:[%s1 + $0x1d0] sm:$0xff]
    %v103 = vld [vmem:[%s1 + $0x1d8] sm:$0xff]
    %v104 = vld [vmem:[%s1 + $0x1e0] sm:$0xff]
    %v105 = vld [vmem:[%s1 + $0x1e8] sm:$0xff]
    %v106 = vld [vmem:[%s1 + $0x1f0] sm:$0xff]
    %v107 = vld [vmem:[%s1 + $0x1f8] sm:$0xff]
    %v108 = vld [vmem:[%s2] sm:$0xf]
    %v110 = vperm.slane %v108, 0
    %v111 = vperm.slane %v108, 1
    %v112 = vperm.slane %v108, 2
    %v113 = vperm.slane %v108, 3
    %119 = vst [vmem:[#allocation1] ss:$9 sm:$0xff] %v43
    %v120 = vld [vmem:[#allocation1] sm:$0xff]
    %v121 = vld [vmem:[#allocation1 + $0x9] sm:$0xff]
    %v188 = vunpack.c.l.b16 %v44
    %v189 = vunpack.c.h.b16 %v44
    %v190 = vunpack.c.l.b16 %v45
    %v191 = vunpack.c.h.b16 %v45
    %v192 = vunpack.c.l.b16 %v46
    %v193 = vunpack.c.h.b16 %v46
    %v194 = vunpack.c.l.b16 %v47
    %v195 = vunpack.c.h.b16 %v47
    %v196 = vunpack.c.l.b16 %v48
    %v197 = vunpack.c.h.b16 %v48
    %v198 = vunpack.c.l.b16 %v49
    %v199 = vunpack.c.h.b16 %v49
    %v200 = vunpack.c.l.b16 %v50
    %v201 = vunpack.c.h.b16 %v50
    %v202 = vunpack.c.l.b16 %v51
    %v203 = vunpack.c.h.b16 %v51
    %v204 = vunpack.c.l.b16 %v52
    %v205 = vunpack.c.h.b16 %v52
    %v206 = vunpack.c.l.b16 %v53
    %v207 = vunpack.c.h.b16 %v53
    %v208 = vunpack.c.l.b16 %v54
    %v209 = vunpack.c.h.b16 %v54
    %v210 = vunpack.c.l.b16 %v55
    %v211 = vunpack.c.h.b16 %v55
    %v212 = vunpack.c.l.b16 %v56
    %v213 = vunpack.c.h.b16 %v56
    %v214 = vunpack.c.l.b16 %v57
    %v215 = vunpack.c.h.b16 %v57
    %v216 = vunpack.c.l.b16 %v58
    %v217 = vunpack.c.h.b16 %v58
    %v218 = vunpack.c.l.b16 %v59
    %v219 = vunpack.c.h.b16 %v59
    %v220 = vunpack.c.l.b16 %v60
    %v221 = vunpack.c.h.b16 %v60
    %v222 = vunpack.c.l.b16 %v61
    %v223 = vunpack.c.h.b16 %v61
    %v224 = vunpack.c.l.b16 %v62
    %v225 = vunpack.c.h.b16 %v62
    %v226 = vunpack.c.l.b16 %v63
    %v227 = vunpack.c.h.b16 %v63
    %v228 = vunpack.c.l.b16 %v64
    %v229 = vunpack.c.h.b16 %v64
    %v230 = vunpack.c.l.b16 %v65
    %v231 = vunpack.c.h.b16 %v65
    %v232 = vunpack.c.l.b16 %v66
    %v233 = vunpack.c.h.b16 %v66
    %v234 = vunpack.c.l.b16 %v67
    %v235 = vunpack.c.h.b16 %v67
    %v236 = vunpack.c.l.b16 %v68
    %v237 = vunpack.c.h.b16 %v68
    %v238 = vunpack.c.l.b16 %v69
    %v239 = vunpack.c.h.b16 %v69
    %v240 = vunpack.c.l.b16 %v70
    %v241 = vunpack.c.h.b16 %v70
    %v242 = vunpack.c.l.b16 %v71
    %v243 = vunpack.c.h.b16 %v71
    %v244 = vunpack.c.l.b16 %v72
    %v245 = vunpack.c.h.b16 %v72
    %v246 = vunpack.c.l.b16 %v73
    %v247 = vunpack.c.h.b16 %v73
    %v248 = vunpack.c.l.b16 %v74
    %v249 = vunpack.c.h.b16 %v74
    %v250 = vunpack.c.l.b16 %v75
    %v251 = vunpack.c.h.b16 %v75
    %v252 = vunpack.c.l.b16 %v76
    %v253 = vunpack.c.h.b16 %v76
    %v254 = vunpack.c.l.b16 %v77
    %v255 = vunpack.c.h.b16 %v77
    %v256 = vunpack.c.l.b16 %v78
    %v257 = vunpack.c.h.b16 %v78
    %v258 = vunpack.c.l.b16 %v79
    %v259 = vunpack.c.h.b16 %v79
    %v260 = vunpack.c.l.b16 %v80
    %v261 = vunpack.c.h.b16 %v80
    %v262 = vunpack.c.l.b16 %v81
    %v263 = vunpack.c.h.b16 %v81
    %v264 = vunpack.c.l.b16 %v82
    %v265 = vunpack.c.h.b16 %v82
    %v266 = vunpack.c.l.b16 %v83
    %v267 = vunpack.c.h.b16 %v83
    %v268 = vunpack.c.l.b16 %v84
    %v269 = vunpack.c.h.b16 %v84
    %v270 = vunpack.c.l.b16 %v85
    %v271 = vunpack.c.h.b16 %v85
    %v272 = vunpack.c.l.b16 %v86
    %v273 = vunpack.c.h.b16 %v86
    %v274 = vunpack.c.l.b16 %v87
    %v275 = vunpack.c.h.b16 %v87
    %v276 = vunpack.c.l.b16 %v88
    %v277 = vunpack.c.h.b16 %v88
    %v278 = vunpack.c.l.b16 %v89
    %v279 = vunpack.c.h.b16 %v89
    %v280 = vunpack.c.l.b16 %v90
    %v281 = vunpack.c.h.b16 %v90
    %v282 = vunpack.c.l.b16 %v91
    %v283 = vunpack.c.h.b16 %v91
    %v284 = vunpack.c.l.b16 %v92
    %v285 = vunpack.c.h.b16 %v92
    %v286 = vunpack.c.l.b16 %v93
    %v287 = vunpack.c.h.b16 %v93
    %v288 = vunpack.c.l.b16 %v94
    %v289 = vunpack.c.h.b16 %v94
    %v290 = vunpack.c.l.b16 %v95
    %v291 = vunpack.c.h.b16 %v95
    %v292 = vunpack.c.l.b16 %v96
    %v293 = vunpack.c.h.b16 %v96
    %v294 = vunpack.c.l.b16 %v97
    %v295 = vunpack.c.h.b16 %v97
    %v296 = vunpack.c.l.b16 %v98
    %v297 = vunpack.c.h.b16 %v98
    %v298 = vunpack.c.l.b16 %v99
    %v299 = vunpack.c.h.b16 %v99
    %v300 = vunpack.c.l.b16 %v100
    %v301 = vunpack.c.h.b16 %v100
    %v302 = vunpack.c.l.b16 %v101
    %v303 = vunpack.c.h.b16 %v101
    %v304 = vunpack.c.l.b16 %v102
    %v305 = vunpack.c.h.b16 %v102
    %v306 = vunpack.c.l.b16 %v103
    %v307 = vunpack.c.h.b16 %v103
    %v308 = vunpack.c.l.b16 %v104
    %v309 = vunpack.c.h.b16 %v104
    %v310 = vunpack.c.l.b16 %v105
    %v311 = vunpack.c.h.b16 %v105
    %v312 = vunpack.c.l.b16 %v106
    %v313 = vunpack.c.h.b16 %v106
    %v314 = vunpack.c.l.b16 %v107
    %v315 = vunpack.c.h.b16 %v107
    %v316 = vpack.c.b16 %v192, %v188
    %v317 = vpack.c.b16 %v193, %v189
    %v318 = vpack.c.b16 %v194, %v190
    %v319 = vpack.c.b16 %v195, %v191
    %v320 = vpack.c.b16 %v200, %v196
    %v321 = vpack.c.b16 %v201, %v197
    %v322 = vpack.c.b16 %v202, %v198
    %v323 = vpack.c.b16 %v203, %v199
    %v324 = vpack.c.b16 %v208, %v204
    %v325 = vpack.c.b16 %v209, %v205
    %v326 = vpack.c.b16 %v210, %v206
    %v327 = vpack.c.b16 %v211, %v207
    %v328 = vpack.c.b16 %v216, %v212
    %v329 = vpack.c.b16 %v217, %v213
    %v330 = vpack.c.b16 %v218, %v214
    %v331 = vpack.c.b16 %v219, %v215
    %v332 = vpack.c.b16 %v224, %v220
    %v333 = vpack.c.b16 %v225, %v221
    %v334 = vpack.c.b16 %v226, %v222
    %v335 = vpack.c.b16 %v227, %v223
    %v336 = vpack.c.b16 %v232, %v228
    %v337 = vpack.c.b16 %v233, %v229
    %v338 = vpack.c.b16 %v234, %v230
    %v339 = vpack.c.b16 %v235, %v231
    %v340 = vpack.c.b16 %v240, %v236
    %v341 = vpack.c.b16 %v241, %v237
    %v342 = vpack.c.b16 %v242, %v238
    %v343 = vpack.c.b16 %v243, %v239
    %v344 = vpack.c.b16 %v248, %v244
    %v345 = vpack.c.b16 %v249, %v245
    %v346 = vpack.c.b16 %v250, %v246
    %v347 = vpack.c.b16 %v251, %v247
    %v348 = vpack.c.b16 %v256, %v252
    %v349 = vpack.c.b16 %v257, %v253
    %v350 = vpack.c.b16 %v258, %v254
    %v351 = vpack.c.b16 %v259, %v255
    %v352 = vpack.c.b16 %v264, %v260
    %v353 = vpack.c.b16 %v265, %v261
    %v354 = vpack.c.b16 %v266, %v262
    %v355 = vpack.c.b16 %v267, %v263
    %v356 = vpack.c.b16 %v272, %v268
    %v357 = vpack.c.b16 %v273, %v269
    %v358 = vpack.c.b16 %v274, %v270
    %v359 = vpack.c.b16 %v275, %v271
    %v360 = vpack.c.b16 %v280, %v276
    %v361 = vpack.c.b16 %v281, %v277
    %v362 = vpack.c.b16 %v282, %v278
    %v363 = vpack.c.b16 %v283, %v279
    %v364 = vpack.c.b16 %v288, %v284
    %v365 = vpack.c.b16 %v289, %v285
    %v366 = vpack.c.b16 %v290, %v286
    %v367 = vpack.c.b16 %v291, %v287
    %v368 = vpack.c.b16 %v296, %v292
    %v369 = vpack.c.b16 %v297, %v293
    %v370 = vpack.c.b16 %v298, %v294
    %v371 = vpack.c.b16 %v299, %v295
    %v372 = vpack.c.b16 %v304, %v300
    %v373 = vpack.c.b16 %v305, %v301
    %v374 = vpack.c.b16 %v306, %v302
    %v375 = vpack.c.b16 %v307, %v303
    %v376 = vpack.c.b16 %v312, %v308
    %v377 = vpack.c.b16 %v313, %v309
    %v378 = vpack.c.b16 %v314, %v310
    %v379 = vpack.c.b16 %v315, %v311
    %444 = vmatpush.bf16.msra.mxu0 %v344
    %445 = vmatpush.bf16.msra.mxu0 %v340
    %446 = vmatpush.bf16.msra.mxu0 %v336
    %447 = vmatpush.bf16.msra.mxu0 %v332
    %448 = vmatpush.bf16.msra.mxu0 %v328
    %449 = vmatpush.bf16.msra.mxu0 %v324
    %450 = vmatpush.bf16.msra.mxu0 %v320
    %451 = vmatpush.bf16.msra.mxu0 %v316
    %452 = vmatmul.bf16.gmra.mxu0 %v120
    %v453 = vpop.f32.mrf.mxu0
    %v454 = vadd.f32 %v110, %v453
    %v455 = vpop.f32.mrf.mxu0
    %456 = vdwg.mxu0
    %457 = vmatpush.bf16.msra.mxu0 %v376
    %458 = vmatpush.bf16.msra.mxu0 %v372
    %459 = vmatpush.bf16.msra.mxu0 %v368
    %460 = vmatpush.bf16.msra.mxu0 %v364
    %461 = vmatpush.bf16.msra.mxu0 %v360
    %462 = vmatpush.bf16.msra.mxu0 %v356
    %463 = vmatpush.bf16.msra.mxu0 %v352
    %464 = vmatpush.bf16.msra.mxu0 %v348
    %465 = vmatmul.bf16.gmra.mxu0 %v121
    %v466 = vpop.f32.mrf.mxu0
    %v467 = vadd.f32 %v454, %v466
    %v468 = vpop.f32.mrf.mxu0
    %469 = vdwg.mxu0
    %470 = vmatpush.bf16.msra.mxu0 %v345
    %471 = vmatpush.bf16.msra.mxu0 %v341
    %472 = vmatpush.bf16.msra.mxu0 %v337
    %473 = vmatpush.bf16.msra.mxu0 %v333
    %474 = vmatpush.bf16.msra.mxu0 %v329
    %475 = vmatpush.bf16.msra.mxu0 %v325
    %476 = vmatpush.bf16.msra.mxu0 %v321
    %477 = vmatpush.bf16.msra.mxu0 %v317
    %478 = vmatmul.bf16.gmra.mxu0 %v120
    %v479 = vpop.f32.mrf.mxu0
    %v480 = vadd.f32 %v111, %v479
    %v481 = vpop.f32.mrf.mxu0
    %482 = vdwg.mxu0
    %483 = vmatpush.bf16.msra.mxu0 %v377
    %484 = vmatpush.bf16.msra.mxu0 %v373
    %485 = vmatpush.bf16.msra.mxu0 %v369
    %486 = vmatpush.bf16.msra.mxu0 %v365
    %487 = vmatpush.bf16.msra.mxu0 %v361
    %488 = vmatpush.bf16.msra.mxu0 %v357
    %489 = vmatpush.bf16.msra.mxu0 %v353
    %490 = vmatpush.bf16.msra.mxu0 %v349
    %491 = vmatmul.bf16.gmra.mxu0 %v121
    %v492 = vpop.f32.mrf.mxu0
    %v493 = vadd.f32 %v480, %v492
    %v494 = vpop.f32.mrf.mxu0
    %495 = vdwg.mxu0
    %496 = vmatpush.bf16.msra.mxu0 %v346
    %497 = vmatpush.bf16.msra.mxu0 %v342
    %498 = vmatpush.bf16.msra.mxu0 %v338
    %499 = vmatpush.bf16.msra.mxu0 %v334
    %500 = vmatpush.bf16.msra.mxu0 %v330
    %501 = vmatpush.bf16.msra.mxu0 %v326
    %502 = vmatpush.bf16.msra.mxu0 %v322
    %503 = vmatpush.bf16.msra.mxu0 %v318
    %504 = vmatmul.bf16.gmra.mxu0 %v120
    %v505 = vpop.f32.mrf.mxu0
    %v506 = vadd.f32 %v112, %v505
    %v507 = vpop.f32.mrf.mxu0
    %508 = vdwg.mxu0
    %509 = vmatpush.bf16.msra.mxu0 %v378
    %510 = vmatpush.bf16.msra.mxu0 %v374
    %511 = vmatpush.bf16.msra.mxu0 %v370
    %512 = vmatpush.bf16.msra.mxu0 %v366
    %513 = vmatpush.bf16.msra.mxu0 %v362
    %514 = vmatpush.bf16.msra.mxu0 %v358
    %515 = vmatpush.bf16.msra.mxu0 %v354
    %516 = vmatpush.bf16.msra.mxu0 %v350
    %517 = vmatmul.bf16.gmra.mxu0 %v121
    %v518 = vpop.f32.mrf.mxu0
    %v519 = vadd.f32 %v506, %v518
    %v520 = vpop.f32.mrf.mxu0
    %521 = vdwg.mxu0
    %522 = vmatpush.bf16.msra.mxu0 %v347
    %523 = vmatpush.bf16.msra.mxu0 %v343
    %524 = vmatpush.bf16.msra.mxu0 %v339
    %525 = vmatpush.bf16.msra.mxu0 %v335
    %526 = vmatpush.bf16.msra.mxu0 %v331
    %527 = vmatpush.bf16.msra.mxu0 %v327
    %528 = vmatpush.bf16.msra.mxu0 %v323
    %529 = vmatpush.bf16.msra.mxu0 %v319
    %530 = vmatmul.bf16.gmra.mxu0 %v120
    %v531 = vpop.f32.mrf.mxu0
    %v532 = vadd.f32 %v113, %v531
    %v533 = vpop.f32.mrf.mxu0
    %534 = vdwg.mxu0
    %535 = vmatpush.bf16.msra.mxu0 %v379
    %536 = vmatpush.bf16.msra.mxu0 %v375
    %537 = vmatpush.bf16.msra.mxu0 %v371
    %538 = vmatpush.bf16.msra.mxu0 %v367
    %539 = vmatpush.bf16.msra.mxu0 %v363
    %540 = vmatpush.bf16.msra.mxu0 %v359
    %541 = vmatpush.bf16.msra.mxu0 %v355
    %542 = vmatpush.bf16.msra.mxu0 %v351
    %543 = vmatmul.bf16.gmra.mxu0 %v121
    %v544 = vpop.f32.mrf.mxu0
    %v545 = vadd.f32 %v532, %v544
    %v546 = vpop.f32.mrf.mxu0
    %547 = vdwg.mxu0
    %v548 = vmax.f32 %v467, 0.0
    %v549 = vmax.f32 %v493, 0.0
    %v550 = vmax.f32 %v519, 0.0
    %v551 = vmax.f32 %v545, 0.0
    %v552 = vpack.c.bf16 %v548, %v548
    %v553 = vpack.c.bf16 %v549, %v549
    %v554 = vpack.c.bf16 %v550, %v550
    %v555 = vpack.c.bf16 %v551, %v551
    %v556 = vld [vmem:[%s3] sm:$0xff]
    %v557 = vld [vmem:[%s3 + $0x8] sm:$0xff]
    %v558 = vld [vmem:[%s3 + $0x10] sm:$0xff]
    %v559 = vld [vmem:[%s3 + $0x18] sm:$0xff]
    %v560 = vld [vmem:[%s3 + $0x20] sm:$0xff]
    %v561 = vld [vmem:[%s3 + $0x28] sm:$0xff]
    %v562 = vld [vmem:[%s3 + $0x30] sm:$0xff]
    %v563 = vld [vmem:[%s3 + $0x38] sm:$0xff]
    %v564 = vld [vmem:[%s3 + $0x40] sm:$0xff]
    %v565 = vld [vmem:[%s3 + $0x48] sm:$0xff]
    %v566 = vld [vmem:[%s3 + $0x50] sm:$0xff]
    %v567 = vld [vmem:[%s3 + $0x58] sm:$0xff]
    %v568 = vld [vmem:[%s3 + $0x60] sm:$0xff]
    %v569 = vld [vmem:[%s3 + $0x68] sm:$0xff]
    %v570 = vld [vmem:[%s3 + $0x70] sm:$0xff]
    %v571 = vld [vmem:[%s3 + $0x78] sm:$0xff]
    %v572 = vld [vmem:[%s3 + $0x80] sm:$0xff]
    %v573 = vld [vmem:[%s3 + $0x88] sm:$0xff]
    %v574 = vld [vmem:[%s3 + $0x90] sm:$0xff]
    %v575 = vld [vmem:[%s3 + $0x98] sm:$0xff]
    %v576 = vld [vmem:[%s3 + $0xa0] sm:$0xff]
    %v577 = vld [vmem:[%s3 + $0xa8] sm:$0xff]
    %v578 = vld [vmem:[%s3 + $0xb0] sm:$0xff]
    %v579 = vld [vmem:[%s3 + $0xb8] sm:$0xff]
    %v580 = vld [vmem:[%s3 + $0xc0] sm:$0xff]
    %v581 = vld [vmem:[%s3 + $0xc8] sm:$0xff]
    %v582 = vld [vmem:[%s3 + $0xd0] sm:$0xff]
    %v583 = vld [vmem:[%s3 + $0xd8] sm:$0xff]
    %v584 = vld [vmem:[%s3 + $0xe0] sm:$0xff]
    %v585 = vld [vmem:[%s3 + $0xe8] sm:$0xff]
    %v586 = vld [vmem:[%s3 + $0xf0] sm:$0xff]
    %v587 = vld [vmem:[%s3 + $0xf8] sm:$0xff]
    %v588 = vld [vmem:[%s3 + $0x100] sm:$0xff]
    %v589 = vld [vmem:[%s3 + $0x108] sm:$0xff]
    %v590 = vld [vmem:[%s3 + $0x110] sm:$0xff]
    %v591 = vld [vmem:[%s3 + $0x118] sm:$0xff]
    %v592 = vld [vmem:[%s3 + $0x120] sm:$0xff]
    %v593 = vld [vmem:[%s3 + $0x128] sm:$0xff]
    %v594 = vld [vmem:[%s3 + $0x130] sm:$0xff]
    %v595 = vld [vmem:[%s3 + $0x138] sm:$0xff]
    %v596 = vld [vmem:[%s3 + $0x140] sm:$0xff]
    %v597 = vld [vmem:[%s3 + $0x148] sm:$0xff]
    %v598 = vld [vmem:[%s3 + $0x150] sm:$0xff]
    %v599 = vld [vmem:[%s3 + $0x158] sm:$0xff]
    %v600 = vld [vmem:[%s3 + $0x160] sm:$0xff]
    %v601 = vld [vmem:[%s3 + $0x168] sm:$0xff]
    %v602 = vld [vmem:[%s3 + $0x170] sm:$0xff]
    %v603 = vld [vmem:[%s3 + $0x178] sm:$0xff]
    %v604 = vld [vmem:[%s3 + $0x180] sm:$0xff]
    %v605 = vld [vmem:[%s3 + $0x188] sm:$0xff]
    %v606 = vld [vmem:[%s3 + $0x190] sm:$0xff]
    %v607 = vld [vmem:[%s3 + $0x198] sm:$0xff]
    %v608 = vld [vmem:[%s3 + $0x1a0] sm:$0xff]
    %v609 = vld [vmem:[%s3 + $0x1a8] sm:$0xff]
    %v610 = vld [vmem:[%s3 + $0x1b0] sm:$0xff]
    %v611 = vld [vmem:[%s3 + $0x1b8] sm:$0xff]
    %v612 = vld [vmem:[%s3 + $0x1c0] sm:$0xff]
    %v613 = vld [vmem:[%s3 + $0x1c8] sm:$0xff]
    %v614 = vld [vmem:[%s3 + $0x1d0] sm:$0xff]
    %v615 = vld [vmem:[%s3 + $0x1d8] sm:$0xff]
    %v616 = vld [vmem:[%s3 + $0x1e0] sm:$0xff]
    %v617 = vld [vmem:[%s3 + $0x1e8] sm:$0xff]
    %v618 = vld [vmem:[%s3 + $0x1f0] sm:$0xff]
    %v619 = vld [vmem:[%s3 + $0x1f8] sm:$0xff]
    %v620 = vld [vmem:[%s3 + $0x200] sm:$0xff]
    %v621 = vld [vmem:[%s3 + $0x208] sm:$0xff]
    %v622 = vld [vmem:[%s3 + $0x210] sm:$0xff]
    %v623 = vld [vmem:[%s3 + $0x218] sm:$0xff]
    %v624 = vld [vmem:[%s3 + $0x220] sm:$0xff]
    %v625 = vld [vmem:[%s3 + $0x228] sm:$0xff]
    %v626 = vld [vmem:[%s3 + $0x230] sm:$0xff]
    %v627 = vld [vmem:[%s3 + $0x238] sm:$0xff]
    %v628 = vld [vmem:[%s3 + $0x240] sm:$0xff]
    %v629 = vld [vmem:[%s3 + $0x248] sm:$0xff]
    %v630 = vld [vmem:[%s3 + $0x250] sm:$0xff]
    %v631 = vld [vmem:[%s3 + $0x258] sm:$0xff]
    %v632 = vld [vmem:[%s3 + $0x260] sm:$0xff]
    %v633 = vld [vmem:[%s3 + $0x268] sm:$0xff]
    %v634 = vld [vmem:[%s3 + $0x270] sm:$0xff]
    %v635 = vld [vmem:[%s3 + $0x278] sm:$0xff]
    %v636 = vld [vmem:[%s3 + $0x280] sm:$0xff]
    %v637 = vld [vmem:[%s3 + $0x288] sm:$0xff]
    %v638 = vld [vmem:[%s3 + $0x290] sm:$0xff]
    %v639 = vld [vmem:[%s3 + $0x298] sm:$0xff]
    %v640 = vld [vmem:[%s3 + $0x2a0] sm:$0xff]
    %v641 = vld [vmem:[%s3 + $0x2a8] sm:$0xff]
    %v642 = vld [vmem:[%s3 + $0x2b0] sm:$0xff]
    %v643 = vld [vmem:[%s3 + $0x2b8] sm:$0xff]
    %v644 = vld [vmem:[%s3 + $0x2c0] sm:$0xff]
    %v645 = vld [vmem:[%s3 + $0x2c8] sm:$0xff]
    %v646 = vld [vmem:[%s3 + $0x2d0] sm:$0xff]
    %v647 = vld [vmem:[%s3 + $0x2d8] sm:$0xff]
    %v648 = vld [vmem:[%s3 + $0x2e0] sm:$0xff]
    %v649 = vld [vmem:[%s3 + $0x2e8] sm:$0xff]
    %v650 = vld [vmem:[%s3 + $0x2f0] sm:$0xff]
    %v651 = vld [vmem:[%s3 + $0x2f8] sm:$0xff]
    %v652 = vld [vmem:[%s3 + $0x300] sm:$0xff]
    %v653 = vld [vmem:[%s3 + $0x308] sm:$0xff]
    %v654 = vld [vmem:[%s3 + $0x310] sm:$0xff]
    %v655 = vld [vmem:[%s3 + $0x318] sm:$0xff]
    %v656 = vld [vmem:[%s3 + $0x320] sm:$0xff]
    %v657 = vld [vmem:[%s3 + $0x328] sm:$0xff]
    %v658 = vld [vmem:[%s3 + $0x330] sm:$0xff]
    %v659 = vld [vmem:[%s3 + $0x338] sm:$0xff]
    %v660 = vld [vmem:[%s3 + $0x340] sm:$0xff]
    %v661 = vld [vmem:[%s3 + $0x348] sm:$0xff]
    %v662 = vld [vmem:[%s3 + $0x350] sm:$0xff]
    %v663 = vld [vmem:[%s3 + $0x358] sm:$0xff]
    %v664 = vld [vmem:[%s3 + $0x360] sm:$0xff]
    %v665 = vld [vmem:[%s3 + $0x368] sm:$0xff]
    %v666 = vld [vmem:[%s3 + $0x370] sm:$0xff]
    %v667 = vld [vmem:[%s3 + $0x378] sm:$0xff]
    %v668 = vld [vmem:[%s3 + $0x380] sm:$0xff]
    %v669 = vld [vmem:[%s3 + $0x388] sm:$0xff]
    %v670 = vld [vmem:[%s3 + $0x390] sm:$0xff]
    %v671 = vld [vmem:[%s3 + $0x398] sm:$0xff]
    %v672 = vld [vmem:[%s3 + $0x3a0] sm:$0xff]
    %v673 = vld [vmem:[%s3 + $0x3a8] sm:$0xff]
    %v674 = vld [vmem:[%s3 + $0x3b0] sm:$0xff]
    %v675 = vld [vmem:[%s3 + $0x3b8] sm:$0xff]
    %v676 = vld [vmem:[%s3 + $0x3c0] sm:$0xff]
    %v677 = vld [vmem:[%s3 + $0x3c8] sm:$0xff]
    %v678 = vld [vmem:[%s3 + $0x3d0] sm:$0xff]
    %v679 = vld [vmem:[%s3 + $0x3d8] sm:$0xff]
    %v680 = vld [vmem:[%s3 + $0x3e0] sm:$0xff]
    %v681 = vld [vmem:[%s3 + $0x3e8] sm:$0xff]
    %v682 = vld [vmem:[%s3 + $0x3f0] sm:$0xff]
    %v683 = vld [vmem:[%s3 + $0x3f8] sm:$0xff]
    %v684 = vld [vmem:[%s4] sm:$0xf]
    %v686 = vperm.slane %v684, 0
    %v687 = vperm.slane %v684, 1
    %v688 = vperm.slane %v684, 2
    %v689 = vperm.slane %v684, 3
    %v822 = vunpack.c.l.b16 %v556
    %v823 = vunpack.c.h.b16 %v556
    %v824 = vunpack.c.l.b16 %v557
    %v825 = vunpack.c.h.b16 %v557
    %v826 = vunpack.c.l.b16 %v558
    %v827 = vunpack.c.h.b16 %v558
    %v828 = vunpack.c.l.b16 %v559
    %v829 = vunpack.c.h.b16 %v559
    %v830 = vunpack.c.l.b16 %v560
    %v831 = vunpack.c.h.b16 %v560
    %v832 = vunpack.c.l.b16 %v561
    %v833 = vunpack.c.h.b16 %v561
    %v834 = vunpack.c.l.b16 %v562
    %v835 = vunpack.c.h.b16 %v562
    %v836 = vunpack.c.l.b16 %v563
    %v837 = vunpack.c.h.b16 %v563
    %v838 = vunpack.c.l.b16 %v564
    %v839 = vunpack.c.h.b16 %v564
    %v840 = vunpack.c.l.b16 %v565
    %v841 = vunpack.c.h.b16 %v565
    %v842 = vunpack.c.l.b16 %v566
    %v843 = vunpack.c.h.b16 %v566
    %v844 = vunpack.c.l.b16 %v567
    %v845 = vunpack.c.h.b16 %v567
    %v846 = vunpack.c.l.b16 %v568
    %v847 = vunpack.c.h.b16 %v568
    %v848 = vunpack.c.l.b16 %v569
    %v849 = vunpack.c.h.b16 %v569
    %v850 = vunpack.c.l.b16 %v570
    %v851 = vunpack.c.h.b16 %v570
    %v852 = vunpack.c.l.b16 %v571
    %v853 = vunpack.c.h.b16 %v571
    %v854 = vunpack.c.l.b16 %v572
    %v855 = vunpack.c.h.b16 %v572
    %v856 = vunpack.c.l.b16 %v573
    %v857 = vunpack.c.h.b16 %v573
    %v858 = vunpack.c.l.b16 %v574
    %v859 = vunpack.c.h.b16 %v574
    %v860 = vunpack.c.l.b16 %v575
    %v861 = vunpack.c.h.b16 %v575
    %v862 = vunpack.c.l.b16 %v576
    %v863 = vunpack.c.h.b16 %v576
    %v864 = vunpack.c.l.b16 %v577
    %v865 = vunpack.c.h.b16 %v577
    %v866 = vunpack.c.l.b16 %v578
    %v867 = vunpack.c.h.b16 %v578
    %v868 = vunpack.c.l.b16 %v579
    %v869 = vunpack.c.h.b16 %v579
    %v870 = vunpack.c.l.b16 %v580
    %v871 = vunpack.c.h.b16 %v580
    %v872 = vunpack.c.l.b16 %v581
    %v873 = vunpack.c.h.b16 %v581
    %v874 = vunpack.c.l.b16 %v582
    %v875 = vunpack.c.h.b16 %v582
    %v876 = vunpack.c.l.b16 %v583
    %v877 = vunpack.c.h.b16 %v583
    %v878 = vunpack.c.l.b16 %v584
    %v879 = vunpack.c.h.b16 %v584
    %v880 = vunpack.c.l.b16 %v585
    %v881 = vunpack.c.h.b16 %v585
    %v882 = vunpack.c.l.b16 %v586
    %v883 = vunpack.c.h.b16 %v586
    %v884 = vunpack.c.l.b16 %v587
    %v885 = vunpack.c.h.b16 %v587
    %v886 = vunpack.c.l.b16 %v588
    %v887 = vunpack.c.h.b16 %v588
    %v888 = vunpack.c.l.b16 %v589
    %v889 = vunpack.c.h.b16 %v589
    %v890 = vunpack.c.l.b16 %v590
    %v891 = vunpack.c.h.b16 %v590
    %v892 = vunpack.c.l.b16 %v591
    %v893 = vunpack.c.h.b16 %v591
    %v894 = vunpack.c.l.b16 %v592
    %v895 = vunpack.c.h.b16 %v592
    %v896 = vunpack.c.l.b16 %v593
    %v897 = vunpack.c.h.b16 %v593
    %v898 = vunpack.c.l.b16 %v594
    %v899 = vunpack.c.h.b16 %v594
    %v900 = vunpack.c.l.b16 %v595
    %v901 = vunpack.c.h.b16 %v595
    %v902 = vunpack.c.l.b16 %v596
    %v903 = vunpack.c.h.b16 %v596
    %v904 = vunpack.c.l.b16 %v597
    %v905 = vunpack.c.h.b16 %v597
    %v906 = vunpack.c.l.b16 %v598
    %v907 = vunpack.c.h.b16 %v598
    %v908 = vunpack.c.l.b16 %v599
    %v909 = vunpack.c.h.b16 %v599
    %v910 = vunpack.c.l.b16 %v600
    %v911 = vunpack.c.h.b16 %v600
    %v912 = vunpack.c.l.b16 %v601
    %v913 = vunpack.c.h.b16 %v601
    %v914 = vunpack.c.l.b16 %v602
    %v915 = vunpack.c.h.b16 %v602
    %v916 = vunpack.c.l.b16 %v603
    %v917 = vunpack.c.h.b16 %v603
    %v918 = vunpack.c.l.b16 %v604
    %v919 = vunpack.c.h.b16 %v604
    %v920 = vunpack.c.l.b16 %v605
    %v921 = vunpack.c.h.b16 %v605
    %v922 = vunpack.c.l.b16 %v606
    %v923 = vunpack.c.h.b16 %v606
    %v924 = vunpack.c.l.b16 %v607
    %v925 = vunpack.c.h.b16 %v607
    %v926 = vunpack.c.l.b16 %v608
    %v927 = vunpack.c.h.b16 %v608
    %v928 = vunpack.c.l.b16 %v609
    %v929 = vunpack.c.h.b16 %v609
    %v930 = vunpack.c.l.b16 %v610
    %v931 = vunpack.c.h.b16 %v610
    %v932 = vunpack.c.l.b16 %v611
    %v933 = vunpack.c.h.b16 %v611
    %v934 = vunpack.c.l.b16 %v612
    %v935 = vunpack.c.h.b16 %v612
    %v936 = vunpack.c.l.b16 %v613
    %v937 = vunpack.c.h.b16 %v613
    %v938 = vunpack.c.l.b16 %v614
    %v939 = vunpack.c.h.b16 %v614
    %v940 = vunpack.c.l.b16 %v615
    %v941 = vunpack.c.h.b16 %v615
    %v942 = vunpack.c.l.b16 %v616
    %v943 = vunpack.c.h.b16 %v616
    %v944 = vunpack.c.l.b16 %v617
    %v945 = vunpack.c.h.b16 %v617
    %v946 = vunpack.c.l.b16 %v618
    %v947 = vunpack.c.h.b16 %v618
    %v948 = vunpack.c.l.b16 %v619
    %v949 = vunpack.c.h.b16 %v619
    %v950 = vunpack.c.l.b16 %v620
    %v951 = vunpack.c.h.b16 %v620
    %v952 = vunpack.c.l.b16 %v621
    %v953 = vunpack.c.h.b16 %v621
    %v954 = vunpack.c.l.b16 %v622
    %v955 = vunpack.c.h.b16 %v622
    %v956 = vunpack.c.l.b16 %v623
    %v957 = vunpack.c.h.b16 %v623
    %v958 = vunpack.c.l.b16 %v624
    %v959 = vunpack.c.h.b16 %v624
    %v960 = vunpack.c.l.b16 %v625
    %v961 = vunpack.c.h.b16 %v625
    %v962 = vunpack.c.l.b16 %v626
    %v963 = vunpack.c.h.b16 %v626
    %v964 = vunpack.c.l.b16 %v627
    %v965 = vunpack.c.h.b16 %v627
    %v966 = vunpack.c.l.b16 %v628
    %v967 = vunpack.c.h.b16 %v628
    %v968 = vunpack.c.l.b16 %v629
    %v969 = vunpack.c.h.b16 %v629
    %v970 = vunpack.c.l.b16 %v630
    %v971 = vunpack.c.h.b16 %v630
    %v972 = vunpack.c.l.b16 %v631
    %v973 = vunpack.c.h.b16 %v631
    %v974 = vunpack.c.l.b16 %v632
    %v975 = vunpack.c.h.b16 %v632
    %v976 = vunpack.c.l.b16 %v633
    %v977 = vunpack.c.h.b16 %v633
    %v978 = vunpack.c.l.b16 %v634
    %v979 = vunpack.c.h.b16 %v634
    %v980 = vunpack.c.l.b16 %v635
    %v981 = vunpack.c.h.b16 %v635
    %v982 = vunpack.c.l.b16 %v636
    %v983 = vunpack.c.h.b16 %v636
    %v984 = vunpack.c.l.b16 %v637
    %v985 = vunpack.c.h.b16 %v637
    %v986 = vunpack.c.l.b16 %v638
    %v987 = vunpack.c.h.b16 %v638
    %v988 = vunpack.c.l.b16 %v639
    %v989 = vunpack.c.h.b16 %v639
    %v990 = vunpack.c.l.b16 %v640
    %v991 = vunpack.c.h.b16 %v640
    %v992 = vunpack.c.l.b16 %v641
    %v993 = vunpack.c.h.b16 %v641
    %v994 = vunpack.c.l.b16 %v642
    %v995 = vunpack.c.h.b16 %v642
    %v996 = vunpack.c.l.b16 %v643
    %v997 = vunpack.c.h.b16 %v643
    %v998 = vunpack.c.l.b16 %v644
    %v999 = vunpack.c.h.b16 %v644
    %v1000 = vunpack.c.l.b16 %v645
    %v1001 = vunpack.c.h.b16 %v645
    %v1002 = vunpack.c.l.b16 %v646
    %v1003 = vunpack.c.h.b16 %v646
    %v1004 = vunpack.c.l.b16 %v647
    %v1005 = vunpack.c.h.b16 %v647
    %v1006 = vunpack.c.l.b16 %v648
    %v1007 = vunpack.c.h.b16 %v648
    %v1008 = vunpack.c.l.b16 %v649
    %v1009 = vunpack.c.h.b16 %v649
    %v1010 = vunpack.c.l.b16 %v650
    %v1011 = vunpack.c.h.b16 %v650
    %v1012 = vunpack.c.l.b16 %v651
    %v1013 = vunpack.c.h.b16 %v651
    %v1014 = vunpack.c.l.b16 %v652
    %v1015 = vunpack.c.h.b16 %v652
    %v1016 = vunpack.c.l.b16 %v653
    %v1017 = vunpack.c.h.b16 %v653
    %v1018 = vunpack.c.l.b16 %v654
    %v1019 = vunpack.c.h.b16 %v654
    %v1020 = vunpack.c.l.b16 %v655
    %v1021 = vunpack.c.h.b16 %v655
    %v1022 = vunpack.c.l.b16 %v656
    %v1023 = vunpack.c.h.b16 %v656
    %v1024 = vunpack.c.l.b16 %v657
    %v1025 = vunpack.c.h.b16 %v657
    %v1026 = vunpack.c.l.b16 %v658
    %v1027 = vunpack.c.h.b16 %v658
    %v1028 = vunpack.c.l.b16 %v659
    %v1029 = vunpack.c.h.b16 %v659
    %v1030 = vunpack.c.l.b16 %v660
    %v1031 = vunpack.c.h.b16 %v660
    %v1032 = vunpack.c.l.b16 %v661
    %v1033 = vunpack.c.h.b16 %v661
    %v1034 = vunpack.c.l.b16 %v662
    %v1035 = vunpack.c.h.b16 %v662
    %v1036 = vunpack.c.l.b16 %v663
    %v1037 = vunpack.c.h.b16 %v663
    %v1038 = vunpack.c.l.b16 %v664
    %v1039 = vunpack.c.h.b16 %v664
    %v1040 = vunpack.c.l.b16 %v665
    %v1041 = vunpack.c.h.b16 %v665
    %v1042 = vunpack.c.l.b16 %v666
    %v1043 = vunpack.c.h.b16 %v666
    %v1044 = vunpack.c.l.b16 %v667
    %v1045 = vunpack.c.h.b16 %v667
    %v1046 = vunpack.c.l.b16 %v668
    %v1047 = vunpack.c.h.b16 %v668
    %v1048 = vunpack.c.l.b16 %v669
    %v1049 = vunpack.c.h.b16 %v669
    %v1050 = vunpack.c.l.b16 %v670
    %v1051 = vunpack.c.h.b16 %v670
    %v1052 = vunpack.c.l.b16 %v671
    %v1053 = vunpack.c.h.b16 %v671
    %v1054 = vunpack.c.l.b16 %v672
    %v1055 = vunpack.c.h.b16 %v672
    %v1056 = vunpack.c.l.b16 %v673
    %v1057 = vunpack.c.h.b16 %v673
    %v1058 = vunpack.c.l.b16 %v674
    %v1059 = vunpack.c.h.b16 %v674
    %v1060 = vunpack.c.l.b16 %v675
    %v1061 = vunpack.c.h.b16 %v675
    %v1062 = vunpack.c.l.b16 %v676
    %v1063 = vunpack.c.h.b16 %v676
    %v1064 = vunpack.c.l.b16 %v677
    %v1065 = vunpack.c.h.b16 %v677
    %v1066 = vunpack.c.l.b16 %v678
    %v1067 = vunpack.c.h.b16 %v678
    %v1068 = vunpack.c.l.b16 %v679
    %v1069 = vunpack.c.h.b16 %v679
    %v1070 = vunpack.c.l.b16 %v680
    %v1071 = vunpack.c.h.b16 %v680
    %v1072 = vunpack.c.l.b16 %v681
    %v1073 = vunpack.c.h.b16 %v681
    %v1074 = vunpack.c.l.b16 %v682
    %v1075 = vunpack.c.h.b16 %v682
    %v1076 = vunpack.c.l.b16 %v683
    %v1077 = vunpack.c.h.b16 %v683
    %v1078 = vpack.c.b16 %v826, %v822
    %v1079 = vpack.c.b16 %v827, %v823
    %v1080 = vpack.c.b16 %v828, %v824
    %v1081 = vpack.c.b16 %v829, %v825
    %v1082 = vpack.c.b16 %v834, %v830
    %v1083 = vpack.c.b16 %v835, %v831
    %v1084 = vpack.c.b16 %v836, %v832
    %v1085 = vpack.c.b16 %v837, %v833
    %v1086 = vpack.c.b16 %v842, %v838
    %v1087 = vpack.c.b16 %v843, %v839
    %v1088 = vpack.c.b16 %v844, %v840
    %v1089 = vpack.c.b16 %v845, %v841
    %v1090 = vpack.c.b16 %v850, %v846
    %v1091 = vpack.c.b16 %v851, %v847
    %v1092 = vpack.c.b16 %v852, %v848
    %v1093 = vpack.c.b16 %v853, %v849
    %v1094 = vpack.c.b16 %v858, %v854
    %v1095 = vpack.c.b16 %v859, %v855
    %v1096 = vpack.c.b16 %v860, %v856
    %v1097 = vpack.c.b16 %v861, %v857
    %v1098 = vpack.c.b16 %v866, %v862
    %v1099 = vpack.c.b16 %v867, %v863
    %v1100 = vpack.c.b16 %v868, %v864
    %v1101 = vpack.c.b16 %v869, %v865
    %v1102 = vpack.c.b16 %v874, %v870
    %v1103 = vpack.c.b16 %v875, %v871
    %v1104 = vpack.c.b16 %v876, %v872
    %v1105 = vpack.c.b16 %v877, %v873
    %v1106 = vpack.c.b16 %v882, %v878
    %v1107 = vpack.c.b16 %v883, %v879
    %v1108 = vpack.c.b16 %v884, %v880
    %v1109 = vpack.c.b16 %v885, %v881
    %v1110 = vpack.c.b16 %v890, %v886
    %v1111 = vpack.c.b16 %v891, %v887
    %v1112 = vpack.c.b16 %v892, %v888
    %v1113 = vpack.c.b16 %v893, %v889
    %v1114 = vpack.c.b16 %v898, %v894
    %v1115 = vpack.c.b16 %v899, %v895
    %v1116 = vpack.c.b16 %v900, %v896
    %v1117 = vpack.c.b16 %v901, %v897
    %v1118 = vpack.c.b16 %v906, %v902
    %v1119 = vpack.c.b16 %v907, %v903
    %v1120 = vpack.c.b16 %v908, %v904
    %v1121 = vpack.c.b16 %v909, %v905
    %v1122 = vpack.c.b16 %v914, %v910
    %v1123 = vpack.c.b16 %v915, %v911
    %v1124 = vpack.c.b16 %v916, %v912
    %v1125 = vpack.c.b16 %v917, %v913
    %v1126 = vpack.c.b16 %v922, %v918
    %v1127 = vpack.c.b16 %v923, %v919
    %v1128 = vpack.c.b16 %v924, %v920
    %v1129 = vpack.c.b16 %v925, %v921
    %v1130 = vpack.c.b16 %v930, %v926
    %v1131 = vpack.c.b16 %v931, %v927
    %v1132 = vpack.c.b16 %v932, %v928
    %v1133 = vpack.c.b16 %v933, %v929
    %v1134 = vpack.c.b16 %v938, %v934
    %v1135 = vpack.c.b16 %v939, %v935
    %v1136 = vpack.c.b16 %v940, %v936
    %v1137 = vpack.c.b16 %v941, %v937
    %v1138 = vpack.c.b16 %v946, %v942
    %v1139 = vpack.c.b16 %v947, %v943
    %v1140 = vpack.c.b16 %v948, %v944
    %v1141 = vpack.c.b16 %v949, %v945
    %v1142 = vpack.c.b16 %v954, %v950
    %v1143 = vpack.c.b16 %v955, %v951
    %v1144 = vpack.c.b16 %v956, %v952
    %v1145 = vpack.c.b16 %v957, %v953
    %v1146 = vpack.c.b16 %v962, %v958
    %v1147 = vpack.c.b16 %v963, %v959
    %v1148 = vpack.c.b16 %v964, %v960
    %v1149 = vpack.c.b16 %v965, %v961
    %v1150 = vpack.c.b16 %v970, %v966
    %v1151 = vpack.c.b16 %v971, %v967
    %v1152 = vpack.c.b16 %v972, %v968
    %v1153 = vpack.c.b16 %v973, %v969
    %v1154 = vpack.c.b16 %v978, %v974
    %v1155 = vpack.c.b16 %v979, %v975
    %v1156 = vpack.c.b16 %v980, %v976
    %v1157 = vpack.c.b16 %v981, %v977
    %v1158 = vpack.c.b16 %v986, %v982
    %v1159 = vpack.c.b16 %v987, %v983
    %v1160 = vpack.c.b16 %v988, %v984
    %v1161 = vpack.c.b16 %v989, %v985
    %v1162 = vpack.c.b16 %v994, %v990
    %v1163 = vpack.c.b16 %v995, %v991
    %v1164 = vpack.c.b16 %v996, %v992
    %v1165 = vpack.c.b16 %v997, %v993
    %v1166 = vpack.c.b16 %v1002, %v998
    %v1167 = vpack.c.b16 %v1003, %v999
    %v1168 = vpack.c.b16 %v1004, %v1000
    %v1169 = vpack.c.b16 %v1005, %v1001
    %v1170 = vpack.c.b16 %v1010, %v1006
    %v1171 = vpack.c.b16 %v1011, %v1007
    %v1172 = vpack.c.b16 %v1012, %v1008
    %v1173 = vpack.c.b16 %v1013, %v1009
    %v1174 = vpack.c.b16 %v1018, %v1014
    %v1175 = vpack.c.b16 %v1019, %v1015
    %v1176 = vpack.c.b16 %v1020, %v1016
    %v1177 = vpack.c.b16 %v1021, %v1017
    %v1178 = vpack.c.b16 %v1026, %v1022
    %v1179 = vpack.c.b16 %v1027, %v1023
    %v1180 = vpack.c.b16 %v1028, %v1024
    %v1181 = vpack.c.b16 %v1029, %v1025
    %v1182 = vpack.c.b16 %v1034, %v1030
    %v1183 = vpack.c.b16 %v1035, %v1031
    %v1184 = vpack.c.b16 %v1036, %v1032
    %v1185 = vpack.c.b16 %v1037, %v1033
    %v1186 = vpack.c.b16 %v1042, %v1038
    %v1187 = vpack.c.b16 %v1043, %v1039
    %v1188 = vpack.c.b16 %v1044, %v1040
    %v1189 = vpack.c.b16 %v1045, %v1041
    %v1190 = vpack.c.b16 %v1050, %v1046
    %v1191 = vpack.c.b16 %v1051, %v1047
    %v1192 = vpack.c.b16 %v1052, %v1048
    %v1193 = vpack.c.b16 %v1053, %v1049
    %v1194 = vpack.c.b16 %v1058, %v1054
    %v1195 = vpack.c.b16 %v1059, %v1055
    %v1196 = vpack.c.b16 %v1060, %v1056
    %v1197 = vpack.c.b16 %v1061, %v1057
    %v1198 = vpack.c.b16 %v1066, %v1062
    %v1199 = vpack.c.b16 %v1067, %v1063
    %v1200 = vpack.c.b16 %v1068, %v1064
    %v1201 = vpack.c.b16 %v1069, %v1065
    %v1202 = vpack.c.b16 %v1074, %v1070
    %v1203 = vpack.c.b16 %v1075, %v1071
    %v1204 = vpack.c.b16 %v1076, %v1072
    %v1205 = vpack.c.b16 %v1077, %v1073
    %1334 = vmatpush.bf16.msra.mxu0 %v1106
    %1335 = vmatpush.bf16.msra.mxu0 %v1102
    %1336 = vmatpush.bf16.msra.mxu0 %v1098
    %1337 = vmatpush.bf16.msra.mxu0 %v1094
    %1338 = vmatpush.bf16.msra.mxu0 %v1090
    %1339 = vmatpush.bf16.msra.mxu0 %v1086
    %1340 = vmatpush.bf16.msra.mxu0 %v1082
    %1341 = vmatpush.bf16.msra.mxu0 %v1078
    %1342 = vmatmul.bf16.gmra.mxu0 %v552
    %v1343 = vpop.f32.mrf.mxu0
    %v1344 = vadd.f32 %v686, %v1343
    %v1345 = vpop.f32.mrf.mxu0
    %1346 = vdwg.mxu0
    %1347 = vmatpush.bf16.msra.mxu0 %v1138
    %1348 = vmatpush.bf16.msra.mxu0 %v1134
    %1349 = vmatpush.bf16.msra.mxu0 %v1130
    %1350 = vmatpush.bf16.msra.mxu0 %v1126
    %1351 = vmatpush.bf16.msra.mxu0 %v1122
    %1352 = vmatpush.bf16.msra.mxu0 %v1118
    %1353 = vmatpush.bf16.msra.mxu0 %v1114
    %1354 = vmatpush.bf16.msra.mxu0 %v1110
    %1355 = vmatmul.bf16.gmra.mxu0 %v553
    %v1356 = vpop.f32.mrf.mxu0
    %v1357 = vadd.f32 %v1344, %v1356
    %v1358 = vpop.f32.mrf.mxu0
    %1359 = vdwg.mxu0
    %1360 = vmatpush.bf16.msra.mxu0 %v1170
    %1361 = vmatpush.bf16.msra.mxu0 %v1166
    %1362 = vmatpush.bf16.msra.mxu0 %v1162
    %1363 = vmatpush.bf16.msra.mxu0 %v1158
    %1364 = vmatpush.bf16.msra.mxu0 %v1154
    %1365 = vmatpush.bf16.msra.mxu0 %v1150
    %1366 = vmatpush.bf16.msra.mxu0 %v1146
    %1367 = vmatpush.bf16.msra.mxu0 %v1142
    %1368 = vmatmul.bf16.gmra.mxu0 %v554
    %v1369 = vpop.f32.mrf.mxu0
    %v1370 = vadd.f32 %v1357, %v1369
    %v1371 = vpop.f32.mrf.mxu0
    %1372 = vdwg.mxu0
    %1373 = vmatpush.bf16.msra.mxu0 %v1202
    %1374 = vmatpush.bf16.msra.mxu0 %v1198
    %1375 = vmatpush.bf16.msra.mxu0 %v1194
    %1376 = vmatpush.bf16.msra.mxu0 %v1190
    %1377 = vmatpush.bf16.msra.mxu0 %v1186
    %1378 = vmatpush.bf16.msra.mxu0 %v1182
    %1379 = vmatpush.bf16.msra.mxu0 %v1178
    %1380 = vmatpush.bf16.msra.mxu0 %v1174
    %1381 = vmatmul.bf16.gmra.mxu0 %v555
    %v1382 = vpop.f32.mrf.mxu0
    %v1383 = vadd.f32 %v1370, %v1382
    %v1384 = vpop.f32.mrf.mxu0
    %1385 = vdwg.mxu0
    %1386 = vmatpush.bf16.msra.mxu0 %v1107
    %1387 = vmatpush.bf16.msra.mxu0 %v1103
    %1388 = vmatpush.bf16.msra.mxu0 %v1099
    %1389 = vmatpush.bf16.msra.mxu0 %v1095
    %1390 = vmatpush.bf16.msra.mxu0 %v1091
    %1391 = vmatpush.bf16.msra.mxu0 %v1087
    %1392 = vmatpush.bf16.msra.mxu0 %v1083
    %1393 = vmatpush.bf16.msra.mxu0 %v1079
    %1394 = vmatmul.bf16.gmra.mxu0 %v552
    %v1395 = vpop.f32.mrf.mxu0
    %v1396 = vadd.f32 %v687, %v1395
    %v1397 = vpop.f32.mrf.mxu0
    %1398 = vdwg.mxu0
    %1399 = vmatpush.bf16.msra.mxu0 %v1139
    %1400 = vmatpush.bf16.msra.mxu0 %v1135
    %1401 = vmatpush.bf16.msra.mxu0 %v1131
    %1402 = vmatpush.bf16.msra.mxu0 %v1127
    %1403 = vmatpush.bf16.msra.mxu0 %v1123
    %1404 = vmatpush.bf16.msra.mxu0 %v1119
    %1405 = vmatpush.bf16.msra.mxu0 %v1115
    %1406 = vmatpush.bf16.msra.mxu0 %v1111
    %1407 = vmatmul.bf16.gmra.mxu0 %v553
    %v1408 = vpop.f32.mrf.mxu0
    %v1409 = vadd.f32 %v1396, %v1408
    %v1410 = vpop.f32.mrf.mxu0
    %1411 = vdwg.mxu0
    %1412 = vmatpush.bf16.msra.mxu0 %v1171
    %1413 = vmatpush.bf16.msra.mxu0 %v1167
    %1414 = vmatpush.bf16.msra.mxu0 %v1163
    %1415 = vmatpush.bf16.msra.mxu0 %v1159
    %1416 = vmatpush.bf16.msra.mxu0 %v1155
    %1417 = vmatpush.bf16.msra.mxu0 %v1151
    %1418 = vmatpush.bf16.msra.mxu0 %v1147
    %1419 = vmatpush.bf16.msra.mxu0 %v1143
    %1420 = vmatmul.bf16.gmra.mxu0 %v554
    %v1421 = vpop.f32.mrf.mxu0
    %v1422 = vadd.f32 %v1409, %v1421
    %v1423 = vpop.f32.mrf.mxu0
    %1424 = vdwg.mxu0
    %1425 = vmatpush.bf16.msra.mxu0 %v1203
    %1426 = vmatpush.bf16.msra.mxu0 %v1199
    %1427 = vmatpush.bf16.msra.mxu0 %v1195
    %1428 = vmatpush.bf16.msra.mxu0 %v1191
    %1429 = vmatpush.bf16.msra.mxu0 %v1187
    %1430 = vmatpush.bf16.msra.mxu0 %v1183
    %1431 = vmatpush.bf16.msra.mxu0 %v1179
    %1432 = vmatpush.bf16.msra.mxu0 %v1175
    %1433 = vmatmul.bf16.gmra.mxu0 %v555
    %v1434 = vpop.f32.mrf.mxu0
    %v1435 = vadd.f32 %v1422, %v1434
    %v1436 = vpop.f32.mrf.mxu0
    %1437 = vdwg.mxu0
    %1438 = vmatpush.bf16.msra.mxu0 %v1108
    %1439 = vmatpush.bf16.msra.mxu0 %v1104
    %1440 = vmatpush.bf16.msra.mxu0 %v1100
    %1441 = vmatpush.bf16.msra.mxu0 %v1096
    %1442 = vmatpush.bf16.msra.mxu0 %v1092
    %1443 = vmatpush.bf16.msra.mxu0 %v1088
    %1444 = vmatpush.bf16.msra.mxu0 %v1084
    %1445 = vmatpush.bf16.msra.mxu0 %v1080
    %1446 = vmatmul.bf16.gmra.mxu0 %v552
    %v1447 = vpop.f32.mrf.mxu0
    %v1448 = vadd.f32 %v688, %v1447
    %v1449 = vpop.f32.mrf.mxu0
    %1450 = vdwg.mxu0
    %1451 = vmatpush.bf16.msra.mxu0 %v1140
    %1452 = vmatpush.bf16.msra.mxu0 %v1136
    %1453 = vmatpush.bf16.msra.mxu0 %v1132
    %1454 = vmatpush.bf16.msra.mxu0 %v1128
    %1455 = vmatpush.bf16.msra.mxu0 %v1124
    %1456 = vmatpush.bf16.msra.mxu0 %v1120
    %1457 = vmatpush.bf16.msra.mxu0 %v1116
    %1458 = vmatpush.bf16.msra.mxu0 %v1112
    %1459 = vmatmul.bf16.gmra.mxu0 %v553
    %v1460 = vpop.f32.mrf.mxu0
    %v1461 = vadd.f32 %v1448, %v1460
    %v1462 = vpop.f32.mrf.mxu0
    %1463 = vdwg.mxu0
    %1464 = vmatpush.bf16.msra.mxu0 %v1172
    %1465 = vmatpush.bf16.msra.mxu0 %v1168
    %1466 = vmatpush.bf16.msra.mxu0 %v1164
    %1467 = vmatpush.bf16.msra.mxu0 %v1160
    %1468 = vmatpush.bf16.msra.mxu0 %v1156
    %1469 = vmatpush.bf16.msra.mxu0 %v1152
    %1470 = vmatpush.bf16.msra.mxu0 %v1148
    %1471 = vmatpush.bf16.msra.mxu0 %v1144
    %1472 = vmatmul.bf16.gmra.mxu0 %v554
    %v1473 = vpop.f32.mrf.mxu0
    %v1474 = vadd.f32 %v1461, %v1473
    %v1475 = vpop.f32.mrf.mxu0
    %1476 = vdwg.mxu0
    %1477 = vmatpush.bf16.msra.mxu0 %v1204
    %1478 = vmatpush.bf16.msra.mxu0 %v1200
    %1479 = vmatpush.bf16.msra.mxu0 %v1196
    %1480 = vmatpush.bf16.msra.mxu0 %v1192
    %1481 = vmatpush.bf16.msra.mxu0 %v1188
    %1482 = vmatpush.bf16.msra.mxu0 %v1184
    %1483 = vmatpush.bf16.msra.mxu0 %v1180
    %1484 = vmatpush.bf16.msra.mxu0 %v1176
    %1485 = vmatmul.bf16.gmra.mxu0 %v555
    %v1486 = vpop.f32.mrf.mxu0
    %v1487 = vadd.f32 %v1474, %v1486
    %v1488 = vpop.f32.mrf.mxu0
    %1489 = vdwg.mxu0
    %1490 = vmatpush.bf16.msra.mxu0 %v1109
    %1491 = vmatpush.bf16.msra.mxu0 %v1105
    %1492 = vmatpush.bf16.msra.mxu0 %v1101
    %1493 = vmatpush.bf16.msra.mxu0 %v1097
    %1494 = vmatpush.bf16.msra.mxu0 %v1093
    %1495 = vmatpush.bf16.msra.mxu0 %v1089
    %1496 = vmatpush.bf16.msra.mxu0 %v1085
    %1497 = vmatpush.bf16.msra.mxu0 %v1081
    %1498 = vmatmul.bf16.gmra.mxu0 %v552
    %v1499 = vpop.f32.mrf.mxu0
    %v1500 = vadd.f32 %v689, %v1499
    %v1501 = vpop.f32.mrf.mxu0
    %1502 = vdwg.mxu0
    %1503 = vmatpush.bf16.msra.mxu0 %v1141
    %1504 = vmatpush.bf16.msra.mxu0 %v1137
    %1505 = vmatpush.bf16.msra.mxu0 %v1133
    %1506 = vmatpush.bf16.msra.mxu0 %v1129
    %1507 = vmatpush.bf16.msra.mxu0 %v1125
    %1508 = vmatpush.bf16.msra.mxu0 %v1121
    %1509 = vmatpush.bf16.msra.mxu0 %v1117
    %1510 = vmatpush.bf16.msra.mxu0 %v1113
    %1511 = vmatmul.bf16.gmra.mxu0 %v553
    %v1512 = vpop.f32.mrf.mxu0
    %v1513 = vadd.f32 %v1500, %v1512
    %v1514 = vpop.f32.mrf.mxu0
    %1515 = vdwg.mxu0
    %1516 = vmatpush.bf16.msra.mxu0 %v1173
    %1517 = vmatpush.bf16.msra.mxu0 %v1169
    %1518 = vmatpush.bf16.msra.mxu0 %v1165
    %1519 = vmatpush.bf16.msra.mxu0 %v1161
    %1520 = vmatpush.bf16.msra.mxu0 %v1157
    %1521 = vmatpush.bf16.msra.mxu0 %v1153
    %1522 = vmatpush.bf16.msra.mxu0 %v1149
    %1523 = vmatpush.bf16.msra.mxu0 %v1145
    %1524 = vmatmul.bf16.gmra.mxu0 %v554
    %v1525 = vpop.f32.mrf.mxu0
    %v1526 = vadd.f32 %v1513, %v1525
    %v1527 = vpop.f32.mrf.mxu0
    %1528 = vdwg.mxu0
    %1529 = vmatpush.bf16.msra.mxu0 %v1205
    %1530 = vmatpush.bf16.msra.mxu0 %v1201
    %1531 = vmatpush.bf16.msra.mxu0 %v1197
    %1532 = vmatpush.bf16.msra.mxu0 %v1193
    %1533 = vmatpush.bf16.msra.mxu0 %v1189
    %1534 = vmatpush.bf16.msra.mxu0 %v1185
    %1535 = vmatpush.bf16.msra.mxu0 %v1181
    %1536 = vmatpush.bf16.msra.mxu0 %v1177
    %1537 = vmatmul.bf16.gmra.mxu0 %v555
    %v1538 = vpop.f32.mrf.mxu0
    %v1539 = vadd.f32 %v1526, %v1538
    %v1540 = vpop.f32.mrf.mxu0
    %1541 = vdwg.mxu0
    %v1542 = vmax.f32 %v1383, 0.0
    %v1543 = vmax.f32 %v1435, 0.0
    %v1544 = vmax.f32 %v1487, 0.0
    %v1545 = vmax.f32 %v1539, 0.0
    %v1546 = vpack.c.bf16 %v1542, %v1542
    %v1547 = vpack.c.bf16 %v1543, %v1543
    %v1548 = vpack.c.bf16 %v1544, %v1544
    %v1549 = vpack.c.bf16 %v1545, %v1545
    %v1550 = vld [vmem:[#allocation2] sm:$0xf]
    %v1551 = vld [vmem:[#allocation2 + $0x4] sm:$0xf]
    %v1552 = vld [vmem:[#allocation2 + $0x8] sm:$0xf]
    %v1553 = vld [vmem:[#allocation2 + $0xc] sm:$0xf]
    %v1554 = vld [vmem:[#allocation2 + $0x10] sm:$0xf]
    %v1555 = vld [vmem:[#allocation2 + $0x14] sm:$0xf]
    %v1556 = vld [vmem:[#allocation2 + $0x18] sm:$0xf]
    %v1557 = vld [vmem:[#allocation2 + $0x1c] sm:$0xf]
    %v1558 = vld [vmem:[#allocation2 + $0x20] sm:$0xf]
    %v1559 = vld [vmem:[#allocation2 + $0x24] sm:$0xf]
    %v1560 = vld [vmem:[#allocation2 + $0x28] sm:$0xf]
    %v1561 = vld [vmem:[#allocation2 + $0x2c] sm:$0xf]
    %v1562 = vld [vmem:[#allocation2 + $0x30] sm:$0xf]
    %v1563 = vld [vmem:[#allocation2 + $0x34] sm:$0xf]
    %v1564 = vld [vmem:[#allocation2 + $0x38] sm:$0xf]
    %v1565 = vld [vmem:[#allocation2 + $0x3c] sm:$0xf]
    %v1566 = vld [vmem:[#allocation2 + $0x40] sm:$0xf]
    %v1567 = vld [vmem:[#allocation2 + $0x44] sm:$0xf]
    %v1568 = vld [vmem:[#allocation2 + $0x48] sm:$0xf]
    %v1569 = vld [vmem:[#allocation2 + $0x4c] sm:$0xf]
    %v1570 = vld [vmem:[#allocation2 + $0x50] sm:$0xf]
    %v1571 = vld [vmem:[#allocation2 + $0x54] sm:$0xf]
    %v1572 = vld [vmem:[#allocation2 + $0x58] sm:$0xf]
    %v1573 = vld [vmem:[#allocation2 + $0x5c] sm:$0xf]
    %v1574 = vld [vmem:[#allocation2 + $0x60] sm:$0xf]
    %v1575 = vld [vmem:[#allocation2 + $0x64] sm:$0xf]
    %v1576 = vld [vmem:[#allocation2 + $0x68] sm:$0xf]
    %v1577 = vld [vmem:[#allocation2 + $0x6c] sm:$0xf]
    %v1578 = vld [vmem:[#allocation2 + $0x70] sm:$0xf]
    %v1579 = vld [vmem:[#allocation2 + $0x74] sm:$0xf]
    %v1580 = vld [vmem:[#allocation2 + $0x78] sm:$0xf]
    %v1581 = vld [vmem:[#allocation2 + $0x7c] sm:$0xf]
    %v1582 = vld [vmem:[#allocation2 + $0x80] sm:$0xf]
    %v1583 = vld [vmem:[#allocation2 + $0x84] sm:$0xf]
    %v1584 = vld [vmem:[#allocation2 + $0x88] sm:$0xf]
    %v1585 = vld [vmem:[#allocation2 + $0x8c] sm:$0xf]
    %v1586 = vld [vmem:[#allocation2 + $0x90] sm:$0xf]
    %v1587 = vld [vmem:[#allocation2 + $0x94] sm:$0xf]
    %v1588 = vld [vmem:[#allocation2 + $0x98] sm:$0xf]
    %v1589 = vld [vmem:[#allocation2 + $0x9c] sm:$0xf]
    %v1590 = vld [vmem:[#allocation2 + $0xa0] sm:$0xf]
    %v1591 = vld [vmem:[#allocation2 + $0xa4] sm:$0xf]
    %v1592 = vld [vmem:[#allocation2 + $0xa8] sm:$0xf]
    %v1593 = vld [vmem:[#allocation2 + $0xac] sm:$0xf]
    %v1594 = vld [vmem:[#allocation2 + $0xb0] sm:$0xf]
    %v1595 = vld [vmem:[#allocation2 + $0xb4] sm:$0xf]
    %v1596 = vld [vmem:[#allocation2 + $0xb8] sm:$0xf]
    %v1597 = vld [vmem:[#allocation2 + $0xbc] sm:$0xf]
    %v1598 = vld [vmem:[#allocation2 + $0xc0] sm:$0xf]
    %v1599 = vld [vmem:[#allocation2 + $0xc4] sm:$0xf]
    %v1600 = vld [vmem:[#allocation2 + $0xc8] sm:$0xf]
    %v1601 = vld [vmem:[#allocation2 + $0xcc] sm:$0xf]
    %v1602 = vld [vmem:[#allocation2 + $0xd0] sm:$0xf]
    %v1603 = vld [vmem:[#allocation2 + $0xd4] sm:$0xf]
    %v1604 = vld [vmem:[#allocation2 + $0xd8] sm:$0xf]
    %v1605 = vld [vmem:[#allocation2 + $0xdc] sm:$0xf]
    %v1606 = vld [vmem:[#allocation2 + $0xe0] sm:$0xf]
    %v1607 = vld [vmem:[#allocation2 + $0xe4] sm:$0xf]
    %v1608 = vld [vmem:[#allocation2 + $0xe8] sm:$0xf]
    %v1609 = vld [vmem:[#allocation2 + $0xec] sm:$0xf]
    %v1610 = vld [vmem:[#allocation2 + $0xf0] sm:$0xf]
    %v1611 = vld [vmem:[#allocation2 + $0xf4] sm:$0xf]
    %v1612 = vld [vmem:[#allocation2 + $0xf8] sm:$0xf]
    %v1613 = vld [vmem:[#allocation2 + $0xfc] sm:$0xf]
    %v1614 = vld [vmem:[%s6] sm:$0x1]
    %v1616 = vperm.slane %v1614, 0
    %v1682 = vunpack.c.l.b16 %v1550
    %v1683 = vunpack.c.l.b16 %v1551
    %v1684 = vunpack.c.l.b16 %v1552
    %v1685 = vunpack.c.l.b16 %v1553
    %v1686 = vunpack.c.l.b16 %v1554
    %v1687 = vunpack.c.l.b16 %v1555
    %v1688 = vunpack.c.l.b16 %v1556
    %v1689 = vunpack.c.l.b16 %v1557
    %v1690 = vunpack.c.l.b16 %v1558
    %v1691 = vunpack.c.l.b16 %v1559
    %v1692 = vunpack.c.l.b16 %v1560
    %v1693 = vunpack.c.l.b16 %v1561
    %v1694 = vunpack.c.l.b16 %v1562
    %v1695 = vunpack.c.l.b16 %v1563
    %v1696 = vunpack.c.l.b16 %v1564
    %v1697 = vunpack.c.l.b16 %v1565
    %v1698 = vunpack.c.l.b16 %v1566
    %v1699 = vunpack.c.l.b16 %v1567
    %v1700 = vunpack.c.l.b16 %v1568
    %v1701 = vunpack.c.l.b16 %v1569
    %v1702 = vunpack.c.l.b16 %v1570
    %v1703 = vunpack.c.l.b16 %v1571
    %v1704 = vunpack.c.l.b16 %v1572
    %v1705 = vunpack.c.l.b16 %v1573
    %v1706 = vunpack.c.l.b16 %v1574
    %v1707 = vunpack.c.l.b16 %v1575
    %v1708 = vunpack.c.l.b16 %v1576
    %v1709 = vunpack.c.l.b16 %v1577
    %v1710 = vunpack.c.l.b16 %v1578
    %v1711 = vunpack.c.l.b16 %v1579
    %v1712 = vunpack.c.l.b16 %v1580
    %v1713 = vunpack.c.l.b16 %v1581
    %v1714 = vunpack.c.l.b16 %v1582
    %v1715 = vunpack.c.l.b16 %v1583
    %v1716 = vunpack.c.l.b16 %v1584
    %v1717 = vunpack.c.l.b16 %v1585
    %v1718 = vunpack.c.l.b16 %v1586
    %v1719 = vunpack.c.l.b16 %v1587
    %v1720 = vunpack.c.l.b16 %v1588
    %v1721 = vunpack.c.l.b16 %v1589
    %v1722 = vunpack.c.l.b16 %v1590
    %v1723 = vunpack.c.l.b16 %v1591
    %v1724 = vunpack.c.l.b16 %v1592
    %v1725 = vunpack.c.l.b16 %v1593
    %v1726 = vunpack.c.l.b16 %v1594
    %v1727 = vunpack.c.l.b16 %v1595
    %v1728 = vunpack.c.l.b16 %v1596
    %v1729 = vunpack.c.l.b16 %v1597
    %v1730 = vunpack.c.l.b16 %v1598
    %v1731 = vunpack.c.l.b16 %v1599
    %v1732 = vunpack.c.l.b16 %v1600
    %v1733 = vunpack.c.l.b16 %v1601
    %v1734 = vunpack.c.l.b16 %v1602
    %v1735 = vunpack.c.l.b16 %v1603
    %v1736 = vunpack.c.l.b16 %v1604
    %v1737 = vunpack.c.l.b16 %v1605
    %v1738 = vunpack.c.l.b16 %v1606
    %v1739 = vunpack.c.l.b16 %v1607
    %v1740 = vunpack.c.l.b16 %v1608
    %v1741 = vunpack.c.l.b16 %v1609
    %v1742 = vunpack.c.l.b16 %v1610
    %v1743 = vunpack.c.l.b16 %v1611
    %v1744 = vunpack.c.l.b16 %v1612
    %v1745 = vunpack.c.l.b16 %v1613
    %v1746 = vpack.c.b16 %v1683, %v1682
    %v1747 = vpack.c.b16 %v1685, %v1684
    %v1748 = vpack.c.b16 %v1687, %v1686
    %v1749 = vpack.c.b16 %v1689, %v1688
    %v1750 = vpack.c.b16 %v1691, %v1690
    %v1751 = vpack.c.b16 %v1693, %v1692
    %v1752 = vpack.c.b16 %v1695, %v1694
    %v1753 = vpack.c.b16 %v1697, %v1696
    %v1754 = vpack.c.b16 %v1699, %v1698
    %v1755 = vpack.c.b16 %v1701, %v1700
    %v1756 = vpack.c.b16 %v1703, %v1702
    %v1757 = vpack.c.b16 %v1705, %v1704
    %v1758 = vpack.c.b16 %v1707, %v1706
    %v1759 = vpack.c.b16 %v1709, %v1708
    %v1760 = vpack.c.b16 %v1711, %v1710
    %v1761 = vpack.c.b16 %v1713, %v1712
    %v1762 = vpack.c.b16 %v1715, %v1714
    %v1763 = vpack.c.b16 %v1717, %v1716
    %v1764 = vpack.c.b16 %v1719, %v1718
    %v1765 = vpack.c.b16 %v1721, %v1720
    %v1766 = vpack.c.b16 %v1723, %v1722
    %v1767 = vpack.c.b16 %v1725, %v1724
    %v1768 = vpack.c.b16 %v1727, %v1726
    %v1769 = vpack.c.b16 %v1729, %v1728
    %v1770 = vpack.c.b16 %v1731, %v1730
    %v1771 = vpack.c.b16 %v1733, %v1732
    %v1772 = vpack.c.b16 %v1735, %v1734
    %v1773 = vpack.c.b16 %v1737, %v1736
    %v1774 = vpack.c.b16 %v1739, %v1738
    %v1775 = vpack.c.b16 %v1741, %v1740
    %v1776 = vpack.c.b16 %v1743, %v1742
    %v1777 = vpack.c.b16 %v1745, %v1744
    %1810 = vmatpush.bf16.msra.mxu0 %v1753
    %1811 = vmatpush.bf16.msra.mxu0 %v1752
    %1812 = vmatpush.bf16.msra.mxu0 %v1751
    %1813 = vmatpush.bf16.msra.mxu0 %v1750
    %1814 = vmatpush.bf16.msra.mxu0 %v1749
    %1815 = vmatpush.bf16.msra.mxu0 %v1748
    %1816 = vmatpush.bf16.msra.mxu0 %v1747
    %1817 = vmatpush.bf16.msra.mxu0 %v1746
    %1818 = vmatmul.bf16.gmra.mxu0 %v1546
    %v1819 = vpop.f32.mrf.mxu0
    %v1820 = vadd.f32 %v1616, %v1819
    %v1821 = vpop.f32.mrf.mxu0
    %1822 = vdwg.mxu0
    %1823 = vmatpush.bf16.msra.mxu0 %v1761
    %1824 = vmatpush.bf16.msra.mxu0 %v1760
    %1825 = vmatpush.bf16.msra.mxu0 %v1759
    %1826 = vmatpush.bf16.msra.mxu0 %v1758
    %1827 = vmatpush.bf16.msra.mxu0 %v1757
    %1828 = vmatpush.bf16.msra.mxu0 %v1756
    %1829 = vmatpush.bf16.msra.mxu0 %v1755
    %1830 = vmatpush.bf16.msra.mxu0 %v1754
    %1831 = vmatmul.bf16.gmra.mxu0 %v1547
    %v1832 = vpop.f32.mrf.mxu0
    %v1833 = vadd.f32 %v1820, %v1832
    %v1834 = vpop.f32.mrf.mxu0
    %1835 = vdwg.mxu0
    %1836 = vmatpush.bf16.msra.mxu0 %v1769
    %1837 = vmatpush.bf16.msra.mxu0 %v1768
    %1838 = vmatpush.bf16.msra.mxu0 %v1767
    %1839 = vmatpush.bf16.msra.mxu0 %v1766
    %1840 = vmatpush.bf16.msra.mxu0 %v1765
    %1841 = vmatpush.bf16.msra.mxu0 %v1764
    %1842 = vmatpush.bf16.msra.mxu0 %v1763
    %1843 = vmatpush.bf16.msra.mxu0 %v1762
    %1844 = vmatmul.bf16.gmra.mxu0 %v1548
    %v1845 = vpop.f32.mrf.mxu0
    %v1846 = vadd.f32 %v1833, %v1845
    %v1847 = vpop.f32.mrf.mxu0
    %1848 = vdwg.mxu0
    %1849 = vmatpush.bf16.msra.mxu0 %v1777
    %1850 = vmatpush.bf16.msra.mxu0 %v1776
    %1851 = vmatpush.bf16.msra.mxu0 %v1775
    %1852 = vmatpush.bf16.msra.mxu0 %v1774
    %1853 = vmatpush.bf16.msra.mxu0 %v1773
    %1854 = vmatpush.bf16.msra.mxu0 %v1772
    %1855 = vmatpush.bf16.msra.mxu0 %v1771
    %1856 = vmatpush.bf16.msra.mxu0 %v1770
    %1857 = vmatmul.bf16.gmra.mxu0 %v1549
    %v1858 = vpop.f32.mrf.mxu0
    %v1859 = vadd.f32 %v1846, %v1858
    %v1860 = vpop.f32.mrf.mxu0
    %1861 = vdwg.mxu0
    %1862 = vst [vmem:[#allocation5] sm:$0x3] %v1859
    // Predicated region
    $region34: #{forward.5} parent=1 // pred_check
      _
    $region35: #{forward.5} parent=1 // pred_check_branch
      %1864 = sbr.rel (0) target = $region37
    $region36: #{forward.5} parent=1 // pred_region
      %1866 = vsyncadd [#allocation4], 0
      %s1868 = sshll.u32 [#allocation5], 4
      %s1869 = int_to_ptr.vmem [resolvable:$true] %s1868
      %s1870 = sshll.u32 %s7, 4
      %s1871 = int_to_ptr.hbm [resolvable:$true] %s1870
      %1873 = dma.vmem_to_hbm [thread:$0]  %s1869, 32, %s1871, [#allocation4]
    $region37: #{forward.5} parent=1 // pred_fallthru
      _
    // Predicated region
    $region38: #{forward.5} parent=1 // pred_check
      _
    $region39: #{forward.5} parent=1 // pred_check_branch
      %1875 = sbr.rel (0) target = $region41
    $region40: #{forward.5} parent=1 // pred_region
      %1877 = dma.done [#allocation4], 32
    $region41: #{forward.5} parent=1 // pred_fallthru
      _
    %1878 = vsyncpa [#allocation3], 1
    %1879 = vsyncpa [#allocation4], 1

// kernel: forward.3
$region0: #{forward.3}
  #allocation0 [shape = 'u32[]', space=smem, size = 0x4, offset = 0x4, fixed_abs, tag = 'smem constant byte address 0x4 - core index']
  #allocation1 [shape = 'u32[72,128]{1,0:T(1,128)}', space=vmem, size = 0x9000, scoped, tag = 'internal scratch']
  %s0 = inlined_call_operand.vmem [shape: bf16[2,18,18,8], index: 0, kind: input, shape index: {}]
  %s1 = inlined_call_operand.vmem [shape: bf16[9,8,128], index: 1, kind: input, shape index: {}]
  %s2 = inlined_call_operand.vmem [shape: f32[1,128], index: 2, kind: input, shape index: {}]
  %s3 = inlined_call_operand.vmem [shape: bf16[2,8,8,128], index: 3, kind: output, shape index: {}]
  %s4 = sld [smem:[#allocation0]]
  $region45: #{forward.3} parent=0
    _
  %s6 = ssub.s32 1, %s4
  %s7 = scalar_select 0, %s6, %s4
  loop: start=0, step=1, limit=4
  $region2: #{forward.3} parent=0 // loop_pre_header
    _
  $region3: #{forward.3} parent=0 // loop_header
    %s9 = sphi 0, %s13
    %p10 = scmp.ge.s32.totalorder %s9, 4
    %s19 = sphi 0, %s21
    %s22 = sphi 0, %s19
    %s23 = sphi 0, %s22
    %s39 = sphi 0, %s23
    %s43 = sphi 0, %s43
    %s45 = sphi 0, %s43
    %s46 = sphi 0, %s45
    %s60 = sphi 0, %s46
    %s64 = sphi 0, %s64
    %s66 = sphi 0, %s64
    %s67 = sphi 0, %s66
    %s81 = sphi 0, %s67
    %s87 = sphi 0, %s89
    %s90 = sphi 0, %s87
    %s91 = sphi 0, %s90
    %s107 = sphi 0, %s91
  $region4: #{forward.3} parent=0 // loop_header_branch
    %12 = sbr.rel (%p10) target = $region8
  $region5: #{forward.3} parent=0 // loop_body
    %s14 = ssub.s32 %s9, 1
    %s15 = ssub.s32 %s9, 2
    %s16 = sadd.s32 %s9, 1
    %s17 = ssub.s32 %s9, %s16
    %p18 = scmp.eq.s32.totalorder %s17, 0
    %s20 = sadd.s32 %s19, 1
    %s21 = scalar_select %p18, %s19, %s20
    %p24 = pneg %p18
    %p25 = scmp.eq.s32.totalorder %s9, 1
    %p26 = por %p24, %p25
    %p27 = scmp.ne.s32.totalorder %s19, %s22
    %p28 = scmp.eq.s32.totalorder %s9, 0
    %p29 = por %p27, %p28
    %p30 = scmp.ne.s32.totalorder %s19, %s22
    %p31 = scmp.eq.s32.totalorder %s14, 1
    %p32 = por %p30, %p31
    %p33 = scmp.ne.s32.totalorder %s22, %s23
    %p34 = scmp.eq.s32.totalorder %s14, 0
    %p35 = por %p33, %p34
    %p36 = scmp.ne.s32.totalorder %s22, %s23
    %p37 = scmp.eq.s32.totalorder %s15, 1
    %p38 = por %p36, %p37
    %p40 = scmp.ne.s32.totalorder %s23, %s39
    %p41 = scmp.eq.s32.totalorder %s15, 0
    %p42 = por %p40, %p41
    %s44 = sadd.s32 %s43, 1
    %p47 = scmp.eq.s32.totalorder %s9, 1
    %p48 = scmp.ne.s32.totalorder %s43, %s45
    %p49 = scmp.eq.s32.totalorder %s9, 0
    %p50 = por %p48, %p49
    %p51 = scmp.ne.s32.totalorder %s43, %s45
    %p52 = scmp.eq.s32.totalorder %s14, 1
    %p53 = por %p51, %p52
    %p54 = scmp.ne.s32.totalorder %s45, %s46
    %p55 = scmp.eq.s32.totalorder %s14, 0
    %p56 = por %p54, %p55
    %p57 = scmp.ne.s32.totalorder %s45, %s46
    %p58 = scmp.eq.s32.totalorder %s15, 1
    %p59 = por %p57, %p58
    %p61 = scmp.ne.s32.totalorder %s46, %s60
    %p62 = scmp.eq.s32.totalorder %s15, 0
    %p63 = por %p61, %p62
    %s65 = sadd.s32 %s64, 1
    %p68 = scmp.eq.s32.totalorder %s9, 1
    %p69 = scmp.ne.s32.totalorder %s64, %s66
    %p70 = scmp.eq.s32.totalorder %s9, 0
    %p71 = por %p69, %p70
    %p72 = scmp.ne.s32.totalorder %s64, %s66
    %p73 = scmp.eq.s32.totalorder %s14, 1
    %p74 = por %p72, %p73
    %p75 = scmp.ne.s32.totalorder %s66, %s67
    %p76 = scmp.eq.s32.totalorder %s14, 0
    %p77 = por %p75, %p76
    %p78 = scmp.ne.s32.totalorder %s66, %s67
    %p79 = scmp.eq.s32.totalorder %s15, 1
    %p80 = por %p78, %p79
    %p82 = scmp.ne.s32.totalorder %s67, %s81
    %p83 = scmp.eq.s32.totalorder %s15, 0
    %p84 = por %p82, %p83
    %s85 = ssub.s32 %s9, %s16
    %p86 = scmp.eq.s32.totalorder %s85, 0
    %s88 = sadd.s32 %s87, 1
    %s89 = scalar_select %p86, %s87, %s88
    %p92 = pneg %p86
    %p93 = scmp.eq.s32.totalorder %s9, 1
    %p94 = por %p92, %p93
    %p95 = scmp.ne.s32.totalorder %s87, %s90
    %p96 = scmp.eq.s32.totalorder %s9, 0
    %p97 = por %p95, %p96
    %p98 = scmp.ne.s32.totalorder %s87, %s90
    %p99 = scmp.eq.s32.totalorder %s14, 1
    %p100 = por %p98, %p99
    %p101 = scmp.ne.s32.totalorder %s90, %s91
    %p102 = scmp.eq.s32.totalorder %s14, 0
    %p103 = por %p101, %p102
    %p104 = scmp.ne.s32.totalorder %s90, %s91
    %p105 = scmp.eq.s32.totalorder %s15, 1
    %p106 = por %p104, %p105
    %p108 = scmp.ne.s32.totalorder %s91, %s107
    %p109 = scmp.eq.s32.totalorder %s15, 0
    %p110 = por %p108, %p109
    %p111 = scmp.le.s32.totalorder 1, %s9
    %p112 = scmp.lt.s32.totalorder %s9, 3
    %p113 = pnand %p111, %p112
    %p114 = pneg %p113
    // Predicated region
    $region9: #{forward.3} parent=5 // pred_check
      _
    $region10: #{forward.3} parent=5 // pred_check_branch
      %116 = sbr.rel (%p113) target = $region12
    $region11: #{forward.3} parent=5 // pred_region
      %s117 = ssub.s32 %s9, 1
      // Predicated region
      $region13: #{forward.3} parent=11 // pred_check
        %p118 = pneg %p56
      $region14: #{forward.3} parent=11 // pred_check_branch
        %120 = sbr.rel (%p118) target = $region16
      $region15: #{forward.3} parent=11 // pred_region
        _
      $region16: #{forward.3} parent=11 // pred_fallthru
        _
      // Predicated region
      $region17: #{forward.3} parent=11 // pred_check
        %p121 = pneg %p77
      $region18: #{forward.3} parent=11 // pred_check_branch
        %123 = sbr.rel (%p121) target = $region20
      $region19: #{forward.3} parent=11 // pred_region
        _
      $region20: #{forward.3} parent=11 // pred_fallthru
        _
    $region12: #{forward.3} parent=5 // pred_fallthru
      _
    %p124 = scmp.lt.s32.totalorder %s9, 2
    // Predicated region
    $region21: #{forward.3} parent=5 // pred_check
      %p125 = pneg %p124
    $region22: #{forward.3} parent=5 // pred_check_branch
      %127 = sbr.rel (%p125) target = $region24
    $region23: #{forward.3} parent=5 // pred_region
      // Predicated region
      $region25: #{forward.3} parent=23 // pred_check
        %p128 = pneg %p29
      $region26: #{forward.3} parent=23 // pred_check_branch
        %130 = sbr.rel (%p128) target = $region28
      $region27: #{forward.3} parent=23 // pred_region
        %p131 = scmp.lt.s32.totalorder %s9, 1
        %s132 = scalar_select %p131, %s9, 1
        %s133 = smul.addr %s132, 54
        %s134 = smul.addr %s133, 4
        %s135 = scalar_lea.vmem %s0, %s134
      $region28: #{forward.3} parent=23 // pred_fallthru
        _
    $region24: #{forward.3} parent=5 // pred_fallthru
      _
    %p136 = scmp.le.s32.totalorder 1, %s9
    %p137 = scmp.lt.s32.totalorder %s9, 3
    %p138 = pnand %p136, %p137
    %p139 = pneg %p138
    // Predicated region
    $region29: #{forward.3} parent=5 // pred_check
      _
    $region30: #{forward.3} parent=5 // pred_check_branch
      %141 = sbr.rel (%p138) target = $region32
    $region31: #{forward.3} parent=5 // pred_region
      %s142 = ssub.s32 %s9, 1
      %p143 = scmp.lt.s32.totalorder %s14, 1
      %s144 = scalar_select %p143, %s14, 1
      %s145 = smul.addr %s144, 54
      %s146 = smul.addr %s145, 4
      %s147 = scalar_lea.vmem %s0, %s146
      %p148 = pneg %p35
      %p149 = pneg %p32
      %p150 = pneg %p56
      %p151 = pneg %p53
      %p152 = pneg %p77
      %p153 = pneg %p74
      %p154 = pneg %p103
      %p155 = pneg %p100
      %p156 = scmp.lt.s32.totalorder %s14, 1
      %s157 = scalar_select %p156, %s14, 1
      %s158 = smul.addr %s157, 8
      %s159 = smul.addr %s158, 4
      %s160 = scalar_lea.vmem %s3, %s159
      %p161 = scmp.lt.s32.totalorder %s14, 1
      %s162 = scalar_select %p161, %s14, 1
      %s163 = smul.addr %s162, 54
      %s164 = smul.addr %s163, 4
      %s165 = scalar_lea.vmem %s0, %s164
      %p166 = scmp.lt.s32.totalorder %s14, 1
      %s167 = scalar_select %p166, %s14, 1
      %s168 = smul.addr %s167, 8
      %s169 = smul.addr %s168, 4
      %s170 = scalar_lea.vmem %s3, %s169
      %v172 = vld [vmem:[%s165] sm:$0xf]
      %v173 = vld [vmem:[%s165 + $0x4] sm:$0xf]
      %v174 = vld [vmem:[%s165 + $0xc] sm:$0xf]
      %v175 = vld [vmem:[%s165 + $0x10] sm:$0xf]
      %v176 = vld [vmem:[%s165 + $0x18] sm:$0xf]
      %v177 = vld [vmem:[%s165 + $0x1c] sm:$0xf]
      %v178 = vld [vmem:[%s165 + $0x24] sm:$0xf]
      %v179 = vld [vmem:[%s165 + $0x28] sm:$0xf]
      %v180 = vld [vmem:[%s165 + $0x30] sm:$0xf]
      %v181 = vld [vmem:[%s165 + $0x34] sm:$0xf]
      %v182 = vld [vmem:[%s165 + $0x3c] sm:$0xf]
      %v183 = vld [vmem:[%s165 + $0x40] sm:$0xf]
      %v184 = vld [vmem:[%s165 + $0x48] sm:$0xf]
      %v185 = vld [vmem:[%s165 + $0x4c] sm:$0xf]
      %v186 = vld [vmem:[%s165 + $0x54] sm:$0xf]
      %v187 = vld [vmem:[%s165 + $0x58] sm:$0xf]
      %v188 = vld [vmem:[%s165 + $0x60] sm:$0xf]
      %v189 = vld [vmem:[%s165 + $0x64] sm:$0xf]
      %v190 = vld [vmem:[%s165 + $0x6c] sm:$0xf]
      %v191 = vld [vmem:[%s165 + $0x70] sm:$0xf]
      %v192 = vld [vmem:[%s165 + $0x78] sm:$0xf]
      %v193 = vld [vmem:[%s165 + $0x7c] sm:$0xf]
      %v194 = vld [vmem:[%s165 + $0x84] sm:$0xf]
      %v195 = vld [vmem:[%s165 + $0x88] sm:$0xf]
      %v196 = vld [vmem:[%s165 + $0x90] sm:$0xf]
      %v197 = vld [vmem:[%s165 + $0x94] sm:$0xf]
      %v198 = vld [vmem:[%s165 + $0x9c] sm:$0xf]
      %v199 = vld [vmem:[%s165 + $0xa0] sm:$0xf]
      %v200 = vld [vmem:[%s165 + $0xa8] sm:$0xf]
      %v201 = vld [vmem:[%s165 + $0xac] sm:$0xf]
      %v202 = vld [vmem:[%s165 + $0xb4] sm:$0xf]
      %v203 = vld [vmem:[%s165 + $0xb8] sm:$0xf]
      %v204 = vld [vmem:[%s1] sm:$0xf]
      %v205 = vld [vmem:[%s165 + $0x8] sm:$0x1]
      %v206 = vld [vmem:[%s165 + $0x14] sm:$0x1]
      %v207 = vld [vmem:[%s165 + $0x20] sm:$0x1]
      %v208 = vld [vmem:[%s165 + $0x2c] sm:$0x1]
      %v209 = vld [vmem:[%s165 + $0x38] sm:$0x1]
      %v210 = vld [vmem:[%s165 + $0x44] sm:$0x1]
      %v211 = vld [vmem:[%s165 + $0x50] sm:$0x1]
      %v212 = vld [vmem:[%s165 + $0x5c] sm:$0x1]
      %v213 = vld [vmem:[%s165 + $0x68] sm:$0x1]
      %v214 = vld [vmem:[%s165 + $0x74] sm:$0x1]
      %v215 = vld [vmem:[%s165 + $0x80] sm:$0x1]
      %v216 = vld [vmem:[%s165 + $0x8c] sm:$0x1]
      %v217 = vld [vmem:[%s165 + $0x98] sm:$0x1]
      %v218 = vld [vmem:[%s165 + $0xa4] sm:$0x1]
      %v219 = vld [vmem:[%s165 + $0xb0] sm:$0x1]
      %v220 = vld [vmem:[%s165 + $0xbc] sm:$0x1]
      %vm221 = vsmask.f32 3328
      %vm222 = vsmask.f32 7440
      %vm223 = vmor %vm221, %vm222
      %v225 = vshrl.u32 %v172, 16
      %v227 = vrot.slane %v225, 4
      %v228 = vshll.u32 %v172, 16
      %v230 = vrot.slane %v228, 5
      %v231 = vor.u32 %v227, %v230
      %v232 = vrot.slane %v231, 4
      %v234 = vshll.u32 %v173, 16
      %v236 = vrot.slane %v234, 5
      %v237 = vsel %vm223, %v232, %v236
      %v238 = vshrl.u32 %v173, 16
      %v240 = vrot.slane %v238, 4
      %v241 = vor.u32 %v240, %v236
      %v242 = vrot.slane %v241, 4
      %v244 = vshll.u32 %v205, 16
      %v246 = vrot.slane %v244, 5
      %v247 = vsel %vm223, %v242, %v246
      %v249 = vshrl.u32 %v174, 16
      %v251 = vrot.slane %v249, 4
      %v252 = vshll.u32 %v174, 16
      %v254 = vrot.slane %v252, 5
      %v255 = vor.u32 %v251, %v254
      %v256 = vrot.slane %v255, 4
      %v258 = vshll.u32 %v175, 16
      %v260 = vrot.slane %v258, 5
      %v261 = vsel %vm223, %v256, %v260
      %v262 = vshrl.u32 %v175, 16
      %v264 = vrot.slane %v262, 4
      %v265 = vor.u32 %v264, %v260
      %v266 = vrot.slane %v265, 4
      %v268 = vshll.u32 %v206, 16
      %v270 = vrot.slane %v268, 5
      %v271 = vsel %vm223, %v266, %v270
      %v273 = vshrl.u32 %v176, 16
      %v275 = vrot.slane %v273, 4
      %v276 = vshll.u32 %v176, 16
      %v278 = vrot.slane %v276, 5
      %v279 = vor.u32 %v275, %v278
      %v280 = vrot.slane %v279, 4
      %v282 = vshll.u32 %v177, 16
      %v284 = vrot.slane %v282, 5
      %v285 = vsel %vm223, %v280, %v284
      %v286 = vshrl.u32 %v177, 16
      %v288 = vrot.slane %v286, 4
      %v289 = vor.u32 %v288, %v284
      %v290 = vrot.slane %v289, 4
      %v292 = vshll.u32 %v207, 16
      %v294 = vrot.slane %v292, 5
      %v295 = vsel %vm223, %v290, %v294
      %v297 = vshrl.u32 %v178, 16
      %v299 = vrot.slane %v297, 4
      %v300 = vshll.u32 %v178, 16
      %v302 = vrot.slane %v300, 5
      %v303 = vor.u32 %v299, %v302
      %v304 = vrot.slane %v303, 4
      %v306 = vshll.u32 %v179, 16
      %v308 = vrot.slane %v306, 5
      %v309 = vsel %vm223, %v304, %v308
      %v310 = vshrl.u32 %v179, 16
      %v312 = vrot.slane %v310, 4
      %v313 = vor.u32 %v312, %v308
      %v314 = vrot.slane %v313, 4
      %v316 = vshll.u32 %v208, 16
      %v318 = vrot.slane %v316, 5
      %v319 = vsel %vm223, %v314, %v318
      %v321 = vshrl.u32 %v180, 16
      %v323 = vrot.slane %v321, 4
      %v324 = vshll.u32 %v180, 16
      %v326 = vrot.slane %v324, 5
      %v327 = vor.u32 %v323, %v326
      %v328 = vrot.slane %v327, 4
      %v330 = vshll.u32 %v181, 16
      %v332 = vrot.slane %v330, 5
      %v333 = vsel %vm223, %v328, %v332
      %v334 = vshrl.u32 %v181, 16
      %v336 = vrot.slane %v334, 4
      %v337 = vor.u32 %v336, %v332
      %v338 = vrot.slane %v337, 4
      %v340 = vshll.u32 %v209, 16
      %v342 = vrot.slane %v340, 5
      %v343 = vsel %vm223, %v338, %v342
      %v345 = vshrl.u32 %v182, 16
      %v347 = vrot.slane %v345, 4
      %v348 = vshll.u32 %v182, 16
      %v350 = vrot.slane %v348, 5
      %v351 = vor.u32 %v347, %v350
      %v352 = vrot.slane %v351, 4
      %v354 = vshll.u32 %v183, 16
      %v356 = vrot.slane %v354, 5
      %v357 = vsel %vm223, %v352, %v356
      %v358 = vshrl.u32 %v183, 16
      %v360 = vrot.slane %v358, 4
      %v361 = vor.u32 %v360, %v356
      %v362 = vrot.slane %v361, 4
      %v364 = vshll.u32 %v210, 16
      %v366 = vrot.slane %v364, 5
      %v367 = vsel %vm223, %v362, %v366
      %v369 = vshrl.u32 %v184, 16
      %v371 = vrot.slane %v369, 4
      %v372 = vshll.u32 %v184, 16
      %v374 = vrot.slane %v372, 5
      %v375 = vor.u32 %v371, %v374
      %v376 = vrot.slane %v375, 4
      %v378 = vshll.u32 %v185, 16
      %v380 = vrot.slane %v378, 5
      %v381 = vsel %vm223, %v376, %v380
      %v382 = vshrl.u32 %v185, 16
      %v384 = vrot.slane %v382, 4
      %v385 = vor.u32 %v384, %v380
      %v386 = vrot.slane %v385, 4
      %v388 = vshll.u32 %v211, 16
      %v390 = vrot.slane %v388, 5
      %v391 = vsel %vm223, %v386, %v390
      %v393 = vshrl.u32 %v186, 16
      %v395 = vrot.slane %v393, 4
      %v396 = vshll.u32 %v186, 16
      %v398 = vrot.slane %v396, 5
      %v399 = vor.u32 %v395, %v398
      %v400 = vrot.slane %v399, 4
      %v402 = vshll.u32 %v187, 16
      %v404 = vrot.slane %v402, 5
      %v405 = vsel %vm223, %v400, %v404
      %v406 = vshrl.u32 %v187, 16
      %v408 = vrot.slane %v406, 4
      %v409 = vor.u32 %v408, %v404
      %v410 = vrot.slane %v409, 4
      %v412 = vshll.u32 %v212, 16
      %v414 = vrot.slane %v412, 5
      %v415 = vsel %vm223, %v410, %v414
      %v417 = vshrl.u32 %v188, 16
      %v419 = vrot.slane %v417, 4
      %v420 = vshll.u32 %v188, 16
      %v422 = vrot.slane %v420, 5
      %v423 = vor.u32 %v419, %v422
      %v424 = vrot.slane %v423, 4
      %v426 = vshll.u32 %v189, 16
      %v428 = vrot.slane %v426, 5
      %v429 = vsel %vm223, %v424, %v428
      %v430 = vshrl.u32 %v189, 16
      %v432 = vrot.slane %v430, 4
      %v433 = vor.u32 %v432, %v428
      %v434 = vrot.slane %v433, 4
      %v436 = vshll.u32 %v213, 16
      %v438 = vrot.slane %v436, 5
      %v439 = vsel %vm223, %v434, %v438
      %v441 = vshrl.u32 %v190, 16
      %v443 = vrot.slane %v441, 4
      %v444 = vshll.u32 %v190, 16
      %v446 = vrot.slane %v444, 5
      %v447 = vor.u32 %v443, %v446
      %v448 = vrot.slane %v447, 4
      %v450 = vshll.u32 %v191, 16
      %v452 = vrot.slane %v450, 5
      %v453 = vsel %vm223, %v448, %v452
      %v454 = vshrl.u32 %v191, 16
      %v456 = vrot.slane %v454, 4
      %v457 = vor.u32 %v456, %v452
      %v458 = vrot.slane %v457, 4
      %v460 = vshll.u32 %v214, 16
      %v462 = vrot.slane %v460, 5
      %v463 = vsel %vm223, %v458, %v462
      %v465 = vshrl.u32 %v192, 16
      %v467 = vrot.slane %v465, 4
      %v468 = vshll.u32 %v192, 16
      %v470 = vrot.slane %v468, 5
      %v471 = vor.u32 %v467, %v470
      %v472 = vrot.slane %v471, 4
      %v474 = vshll.u32 %v193, 16
      %v476 = vrot.slane %v474, 5
      %v477 = vsel %vm223, %v472, %v476
      %v478 = vshrl.u32 %v193, 16
      %v480 = vrot.slane %v478, 4
      %v481 = vor.u32 %v480, %v476
      %v482 = vrot.slane %v481, 4
      %v484 = vshll.u32 %v215, 16
      %v486 = vrot.slane %v484, 5
      %v487 = vsel %vm223, %v482, %v486
      %v489 = vshrl.u32 %v194, 16
      %v491 = vrot.slane %v489, 4
      %v492 = vshll.u32 %v194, 16
      %v494 = vrot.slane %v492, 5
      %v495 = vor.u32 %v491, %v494
      %v496 = vrot.slane %v495, 4
      %v498 = vshll.u32 %v195, 16
      %v500 = vrot.slane %v498, 5
      %v501 = vsel %vm223, %v496, %v500
      %v502 = vshrl.u32 %v195, 16
      %v504 = vrot.slane %v502, 4
      %v505 = vor.u32 %v504, %v500
      %v506 = vrot.slane %v505, 4
      %v508 = vshll.u32 %v216, 16
      %v510 = vrot.slane %v508, 5
      %v511 = vsel %vm223, %v506, %v510
      %v513 = vshrl.u32 %v196, 16
      %v515 = vrot.slane %v513, 4
      %v516 = vshll.u32 %v196, 16
      %v518 = vrot.slane %v516, 5
      %v519 = vor.u32 %v515, %v518
      %v520 = vrot.slane %v519, 4
      %v522 = vshll.u32 %v197, 16
      %v524 = vrot.slane %v522, 5
      %v525 = vsel %vm223, %v520, %v524
      %v526 = vshrl.u32 %v197, 16
      %v528 = vrot.slane %v526, 4
      %v529 = vor.u32 %v528, %v524
      %v530 = vrot.slane %v529, 4
      %v532 = vshll.u32 %v217, 16
      %v534 = vrot.slane %v532, 5
      %v535 = vsel %vm223, %v530, %v534
      %v537 = vshrl.u32 %v198, 16
      %v539 = vrot.slane %v537, 4
      %v540 = vshll.u32 %v198, 16
      %v542 = vrot.slane %v540, 5
      %v543 = vor.u32 %v539, %v542
      %v544 = vrot.slane %v543, 4
      %v546 = vshll.u32 %v199, 16
      %v548 = vrot.slane %v546, 5
      %v549 = vsel %vm223, %v544, %v548
      %v550 = vshrl.u32 %v199, 16
      %v552 = vrot.slane %v550, 4
      %v553 = vor.u32 %v552, %v548
      %v554 = vrot.slane %v553, 4
      %v556 = vshll.u32 %v218, 16
      %v558 = vrot.slane %v556, 5
      %v559 = vsel %vm223, %v554, %v558
      %v561 = vshrl.u32 %v200, 16
      %v563 = vrot.slane %v561, 4
      %v564 = vshll.u32 %v200, 16
      %v566 = vrot.slane %v564, 5
      %v567 = vor.u32 %v563, %v566
      %v568 = vrot.slane %v567, 4
      %v570 = vshll.u32 %v201, 16
      %v572 = vrot.slane %v570, 5
      %v573 = vsel %vm223, %v568, %v572
      %v574 = vshrl.u32 %v201, 16
      %v576 = vrot.slane %v574, 4
      %v577 = vor.u32 %v576, %v572
      %v578 = vrot.slane %v577, 4
      %v580 = vshll.u32 %v219, 16
      %v582 = vrot.slane %v580, 5
      %v583 = vsel %vm223, %v578, %v582
      %v585 = vshrl.u32 %v202, 16
      %v587 = vrot.slane %v585, 4
      %v588 = vshll.u32 %v202, 16
      %v590 = vrot.slane %v588, 5
      %v591 = vor.u32 %v587, %v590
      %v592 = vrot.slane %v591, 4
      %v594 = vshll.u32 %v203, 16
      %v596 = vrot.slane %v594, 5
      %v597 = vsel %vm223, %v592, %v596
      %v598 = vshrl.u32 %v203, 16
      %v600 = vrot.slane %v598, 4
      %v601 = vor.u32 %v600, %v596
      %v602 = vrot.slane %v601, 4
      %v604 = vshll.u32 %v220, 16
      %v606 = vrot.slane %v604, 5
      %v607 = vsel %vm223, %v602, %v606
      %s608 = scalar_lea.vmem %s1, 4
      %v609 = vld [vmem:[%s608] sm:$0xf]
      %v610 = vunpack.c.l.b16 %v237
      %v611 = vunpack.c.l.b16 %v247
      %v612 = vunpack.c.l.b16 %v261
      %v613 = vunpack.c.l.b16 %v271
      %v614 = vunpack.c.l.b16 %v285
      %v615 = vunpack.c.l.b16 %v295
      %v616 = vunpack.c.l.b16 %v309
      %v617 = vunpack.c.l.b16 %v319
      %v618 = vunpack.c.l.b16 %v333
      %v619 = vunpack.c.l.b16 %v343
      %v620 = vunpack.c.l.b16 %v357
      %v621 = vunpack.c.l.b16 %v367
      %v622 = vunpack.c.l.b16 %v381
      %v623 = vunpack.c.l.b16 %v391
      %v624 = vunpack.c.l.b16 %v405
      %v625 = vunpack.c.l.b16 %v415
      %v626 = vunpack.c.l.b16 %v429
      %v627 = vunpack.c.l.b16 %v439
      %v628 = vunpack.c.l.b16 %v453
      %v629 = vunpack.c.l.b16 %v463
      %v630 = vunpack.c.l.b16 %v477
      %v631 = vunpack.c.l.b16 %v487
      %v632 = vunpack.c.l.b16 %v501
      %v633 = vunpack.c.l.b16 %v511
      %v634 = vunpack.c.l.b16 %v525
      %v635 = vunpack.c.l.b16 %v535
      %v636 = vunpack.c.l.b16 %v549
      %v637 = vunpack.c.l.b16 %v559
      %v638 = vunpack.c.l.b16 %v573
      %v639 = vunpack.c.l.b16 %v583
      %v640 = vunpack.c.l.b16 %v597
      %v641 = vunpack.c.l.b16 %v607
      %v642 = vpack.c.b16 %v611, %v610
      %v643 = vpack.c.b16 %v613, %v612
      %v644 = vpack.c.b16 %v615, %v614
      %v645 = vpack.c.b16 %v617, %v616
      %v646 = vpack.c.b16 %v619, %v618
      %v647 = vpack.c.b16 %v621, %v620
      %v648 = vpack.c.b16 %v623, %v622
      %v649 = vpack.c.b16 %v625, %v624
      %v650 = vpack.c.b16 %v627, %v626
      %v651 = vpack.c.b16 %v629, %v628
      %v652 = vpack.c.b16 %v631, %v630
      %v653 = vpack.c.b16 %v633, %v632
      %v654 = vpack.c.b16 %v635, %v634
      %v655 = vpack.c.b16 %v637, %v636
      %v656 = vpack.c.b16 %v639, %v638
      %v657 = vpack.c.b16 %v641, %v640
      %vm658 = vcmask 64512
      %v660 = vsel %vm658, %v642, 0
      %v663 = vsel %vm658, %v643, 0
      %v666 = vsel %vm658, %v644, 0
      %v669 = vsel %vm658, %v645, 0
      %v672 = vsel %vm658, %v646, 0
      %v675 = vsel %vm658, %v647, 0
      %v678 = vsel %vm658, %v648, 0
      %v681 = vsel %vm658, %v649, 0
      %v684 = vsel %vm658, %v650, 0
      %v687 = vsel %vm658, %v651, 0
      %v690 = vsel %vm658, %v652, 0
      %v693 = vsel %vm658, %v653, 0
      %v696 = vsel %vm658, %v654, 0
      %v699 = vsel %vm658, %v655, 0
      %v702 = vsel %vm658, %v656, 0
      %v705 = vsel %vm658, %v657, 0
      %vm707 = vcmask 1043456
      %v709 = vsel %vm707, %v609, 0
      %711 = vmatpush.bf16.msra.mxu0 0
      %712 = vmatpush.bf16.msra.mxu0 0
      %713 = vmatpush.bf16.msra.mxu0 0
      %714 = vmatpush.bf16.msra.mxu0 0
      %715 = vmatpush.bf16.msra.mxu0 0
      %716 = vmatpush.bf16.msra.mxu0 0
      %717 = vmatpush.bf16.msra.mxu0 0
      %718 = vmatpush.bf16.msra.mxu0 %v709
      %719 = vmatmul.bf16.gmra.mxu0 %v660
      %v720 = vpop.f32.mrf.mxu0
      %v721 = vadd.f32 0.0, %v720
      %v722 = vpop.f32.mrf.mxu0
      %v723 = vadd.f32 0.0, %v722
      %724 = vmatmul.bf16.gmra.mxu0 %v663
      %v725 = vpop.f32.mrf.mxu0
      %v726 = vadd.f32 0.0, %v725
      %v727 = vpop.f32.mrf.mxu0
      %v728 = vadd.f32 0.0, %v727
      %729 = vmatmul.bf16.gmra.mxu0 %v666
      %v730 = vpop.f32.mrf.mxu0
      %v731 = vadd.f32 0.0, %v730
      %v732 = vpop.f32.mrf.mxu0
      %v733 = vadd.f32 0.0, %v732
      %734 = vmatmul.bf16.gmra.mxu0 %v669
      %v735 = vpop.f32.mrf.mxu0
      %v736 = vadd.f32 0.0, %v735
      %v737 = vpop.f32.mrf.mxu0
      %v738 = vadd.f32 0.0, %v737
      %739 = vmatmul.bf16.gmra.mxu0 %v672
      %v740 = vpop.f32.mrf.mxu0
      %v741 = vadd.f32 0.0, %v740
      %v742 = vpop.f32.mrf.mxu0
      %v743 = vadd.f32 0.0, %v742
      %744 = vmatmul.bf16.gmra.mxu0 %v675
      %v745 = vpop.f32.mrf.mxu0
      %v746 = vadd.f32 0.0, %v745
      %v747 = vpop.f32.mrf.mxu0
      %v748 = vadd.f32 0.0, %v747
      %749 = vmatmul.bf16.gmra.mxu0 %v678
      %v750 = vpop.f32.mrf.mxu0
      %v751 = vadd.f32 0.0, %v750
      %v752 = vpop.f32.mrf.mxu0
      %v753 = vadd.f32 0.0, %v752
      %754 = vmatmul.bf16.gmra.mxu0 %v681
      %v755 = vpop.f32.mrf.mxu0
      %v756 = vadd.f32 0.0, %v755
      %v757 = vpop.f32.mrf.mxu0
      %v758 = vadd.f32 0.0, %v757
      %759 = vmatmul.bf16.gmra.mxu0 %v684
      %v760 = vpop.f32.mrf.mxu0
      %v761 = vadd.f32 0.0, %v760
      %v762 = vpop.f32.mrf.mxu0
      %v763 = vadd.f32 0.0, %v762
      %764 = vmatmul.bf16.gmra.mxu0 %v687
      %v765 = vpop.f32.mrf.mxu0
      %v766 = vadd.f32 0.0, %v765
      %v767 = vpop.f32.mrf.mxu0
      %v768 = vadd.f32 0.0, %v767
      %769 = vmatmul.bf16.gmra.mxu0 %v690
      %v770 = vpop.f32.mrf.mxu0
      %v771 = vadd.f32 0.0, %v770
      %v772 = vpop.f32.mrf.mxu0
      %v773 = vadd.f32 0.0, %v772
      %774 = vmatmul.bf16.gmra.mxu0 %v693
      %v775 = vpop.f32.mrf.mxu0
      %v776 = vadd.f32 0.0, %v775
      %v777 = vpop.f32.mrf.mxu0
      %v778 = vadd.f32 0.0, %v777
      %779 = vmatmul.bf16.gmra.mxu0 %v696
      %v780 = vpop.f32.mrf.mxu0
      %v781 = vadd.f32 0.0, %v780
      %v782 = vpop.f32.mrf.mxu0
      %v783 = vadd.f32 0.0, %v782
      %784 = vmatmul.bf16.gmra.mxu0 %v699
      %v785 = vpop.f32.mrf.mxu0
      %v786 = vadd.f32 0.0, %v785
      %v787 = vpop.f32.mrf.mxu0
      %v788 = vadd.f32 0.0, %v787
      %789 = vmatmul.bf16.gmra.mxu0 %v702
      %v790 = vpop.f32.mrf.mxu0
      %v791 = vadd.f32 0.0, %v790
      %v792 = vpop.f32.mrf.mxu0
      %v793 = vadd.f32 0.0, %v792
      %794 = vmatmul.bf16.gmra.mxu0 %v705
      %v795 = vpop.f32.mrf.mxu0
      %v796 = vadd.f32 0.0, %v795
      %v797 = vpop.f32.mrf.mxu0
      %v798 = vadd.f32 0.0, %v797
      %799 = vdwg.mxu0
      %v832 = vunpack.c.l.b16 %v172
      %v833 = vunpack.c.l.b16 %v173
      %v834 = vunpack.c.l.b16 %v174
      %v835 = vunpack.c.l.b16 %v175
      %v836 = vunpack.c.l.b16 %v176
      %v837 = vunpack.c.l.b16 %v177
      %v838 = vunpack.c.l.b16 %v178
      %v839 = vunpack.c.l.b16 %v179
      %v840 = vunpack.c.l.b16 %v180
      %v841 = vunpack.c.l.b16 %v181
      %v842 = vunpack.c.l.b16 %v182
      %v843 = vunpack.c.l.b16 %v183
      %v844 = vunpack.c.l.b16 %v184
      %v845 = vunpack.c.l.b16 %v185
      %v846 = vunpack.c.l.b16 %v186
      %v847 = vunpack.c.l.b16 %v187
      %v848 = vunpack.c.l.b16 %v188
      %v849 = vunpack.c.l.b16 %v189
      %v850 = vunpack.c.l.b16 %v190
      %v851 = vunpack.c.l.b16 %v191
      %v852 = vunpack.c.l.b16 %v192
      %v853 = vunpack.c.l.b16 %v193
      %v854 = vunpack.c.l.b16 %v194
      %v855 = vunpack.c.l.b16 %v195
      %v856 = vunpack.c.l.b16 %v196
      %v857 = vunpack.c.l.b16 %v197
      %v858 = vunpack.c.l.b16 %v198
      %v859 = vunpack.c.l.b16 %v199
      %v860 = vunpack.c.l.b16 %v200
      %v861 = vunpack.c.l.b16 %v201
      %v862 = vunpack.c.l.b16 %v202
      %v863 = vunpack.c.l.b16 %v203
      %v864 = vpack.c.b16 %v833, %v832
      %v865 = vpack.c.b16 %v835, %v834
      %v866 = vpack.c.b16 %v837, %v836
      %v867 = vpack.c.b16 %v839, %v838
      %v868 = vpack.c.b16 %v841, %v840
      %v869 = vpack.c.b16 %v843, %v842
      %v870 = vpack.c.b16 %v845, %v844
      %v871 = vpack.c.b16 %v847, %v846
      %v872 = vpack.c.b16 %v849, %v848
      %v873 = vpack.c.b16 %v851, %v850
      %v874 = vpack.c.b16 %v853, %v852
      %v875 = vpack.c.b16 %v855, %v854
      %v876 = vpack.c.b16 %v857, %v856
      %v877 = vpack.c.b16 %v859, %v858
      %v878 = vpack.c.b16 %v861, %v860
      %v879 = vpack.c.b16 %v863, %v862
      %v881 = vsel %vm658, %v864, 0
      %v884 = vsel %vm658, %v865, 0
      %v887 = vsel %vm658, %v866, 0
      %v890 = vsel %vm658, %v867, 0
      %v893 = vsel %vm658, %v868, 0
      %v896 = vsel %vm658, %v869, 0
      %v899 = vsel %vm658, %v870, 0
      %v902 = vsel %vm658, %v871, 0
      %v905 = vsel %vm658, %v872, 0
      %v908 = vsel %vm658, %v873, 0
      %v911 = vsel %vm658, %v874, 0
      %v914 = vsel %vm658, %v875, 0
      %v917 = vsel %vm658, %v876, 0
      %v920 = vsel %vm658, %v877, 0
      %v923 = vsel %vm658, %v878, 0
      %v926 = vsel %vm658, %v879, 0
      %v929 = vsel %vm707, %v204, 0
      %931 = vmatpush.bf16.msra.mxu0 0
      %932 = vmatpush.bf16.msra.mxu0 0
      %933 = vmatpush.bf16.msra.mxu0 0
      %934 = vmatpush.bf16.msra.mxu0 0
      %935 = vmatpush.bf16.msra.mxu0 0
      %936 = vmatpush.bf16.msra.mxu0 0
      %937 = vmatpush.bf16.msra.mxu0 0
      %938 = vmatpush.bf16.msra.mxu0 %v929
      %939 = vmatmul.bf16.gmra.mxu0 %v881
      %v940 = vpop.f32.mrf.mxu0
      %v941 = vadd.f32 %v721, %v940
      %v942 = vpop.f32.mrf.mxu0
      %v943 = vadd.f32 %v723, %v942
      %944 = vmatmul.bf16.gmra.mxu0 %v884
      %v945 = vpop.f32.mrf.mxu0
      %v946 = vadd.f32 %v726, %v945
      %v947 = vpop.f32.mrf.mxu0
      %v948 = vadd.f32 %v728, %v947
      %949 = vmatmul.bf16.gmra.mxu0 %v887
      %v950 = vpop.f32.mrf.mxu0
      %v951 = vadd.f32 %v731, %v950
      %v952 = vpop.f32.mrf.mxu0
      %v953 = vadd.f32 %v733, %v952
      %954 = vmatmul.bf16.gmra.mxu0 %v890
      %v955 = vpop.f32.mrf.mxu0
      %v956 = vadd.f32 %v736, %v955
      %v957 = vpop.f32.mrf.mxu0
      %v958 = vadd.f32 %v738, %v957
      %959 = vmatmul.bf16.gmra.mxu0 %v893
      %v960 = vpop.f32.mrf.mxu0
      %v961 = vadd.f32 %v741, %v960
      %v962 = vpop.f32.mrf.mxu0
      %v963 = vadd.f32 %v743, %v962
      %964 = vmatmul.bf16.gmra.mxu0 %v896
      %v965 = vpop.f32.mrf.mxu0
      %v966 = vadd.f32 %v746, %v965
      %v967 = vpop.f32.mrf.mxu0
      %v968 = vadd.f32 %v748, %v967
      %969 = vmatmul.bf16.gmra.mxu0 %v899
      %v970 = vpop.f32.mrf.mxu0
      %v971 = vadd.f32 %v751, %v970
      %v972 = vpop.f32.mrf.mxu0
      %v973 = vadd.f32 %v753, %v972
      %974 = vmatmul.bf16.gmra.mxu0 %v902
      %v975 = vpop.f32.mrf.mxu0
      %v976 = vadd.f32 %v756, %v975
      %v977 = vpop.f32.mrf.mxu0
      %v978 = vadd.f32 %v758, %v977
      %979 = vmatmul.bf16.gmra.mxu0 %v905
      %v980 = vpop.f32.mrf.mxu0
      %v981 = vadd.f32 %v761, %v980
      %v982 = vpop.f32.mrf.mxu0
      %v983 = vadd.f32 %v763, %v982
      %984 = vmatmul.bf16.gmra.mxu0 %v908
      %v985 = vpop.f32.mrf.mxu0
      %v986 = vadd.f32 %v766, %v985
      %v987 = vpop.f32.mrf.mxu0
      %v988 = vadd.f32 %v768, %v987
      %989 = vmatmul.bf16.gmra.mxu0 %v911
      %v990 = vpop.f32.mrf.mxu0
      %v991 = vadd.f32 %v771, %v990
      %v992 = vpop.f32.mrf.mxu0
      %v993 = vadd.f32 %v773, %v992
      %994 = vmatmul.bf16.gmra.mxu0 %v914
      %v995 = vpop.f32.mrf.mxu0
      %v996 = vadd.f32 %v776, %v995
      %v997 = vpop.f32.mrf.mxu0
      %v998 = vadd.f32 %v778, %v997
      %999 = vmatmul.bf16.gmra.mxu0 %v917
      %v1000 = vpop.f32.mrf.mxu0
      %v1001 = vadd.f32 %v781, %v1000
      %v1002 = vpop.f32.mrf.mxu0
      %v1003 = vadd.f32 %v783, %v1002
      %1004 = vmatmul.bf16.gmra.mxu0 %v920
      %v1005 = vpop.f32.mrf.mxu0
      %v1006 = vadd.f32 %v786, %v1005
      %v1007 = vpop.f32.mrf.mxu0
      %v1008 = vadd.f32 %v788, %v1007
      %1009 = vmatmul.bf16.gmra.mxu0 %v923
      %v1010 = vpop.f32.mrf.mxu0
      %v1011 = vadd.f32 %v791, %v1010
      %v1012 = vpop.f32.mrf.mxu0
      %v1013 = vadd.f32 %v793, %v1012
      %1014 = vmatmul.bf16.gmra.mxu0 %v926
      %v1015 = vpop.f32.mrf.mxu0
      %v1016 = vadd.f32 %v796, %v1015
      %v1017 = vpop.f32.mrf.mxu0
      %v1018 = vadd.f32 %v798, %v1017
      %1019 = vdwg.mxu0
      %v1020 = vld [vmem:[%s165] sm:$0xe]
      %v1021 = vld [vmem:[%s165 + $0xc] sm:$0xe]
      %v1022 = vld [vmem:[%s165 + $0x18] sm:$0xe]
      %v1023 = vld [vmem:[%s165 + $0x24] sm:$0xe]
      %v1024 = vld [vmem:[%s165 + $0x30] sm:$0xe]
      %v1025 = vld [vmem:[%s165 + $0x3c] sm:$0xe]
      %v1026 = vld [vmem:[%s165 + $0x48] sm:$0xe]
      %v1027 = vld [vmem:[%s165 + $0x54] sm:$0xe]
      %v1028 = vld [vmem:[%s165 + $0x60] sm:$0xe]
      %v1029 = vld [vmem:[%s165 + $0x6c] sm:$0xe]
      %v1030 = vld [vmem:[%s165 + $0x78] sm:$0xe]
      %v1031 = vld [vmem:[%s165 + $0x84] sm:$0xe]
      %v1032 = vld [vmem:[%s165 + $0x90] sm:$0xe]
      %v1033 = vld [vmem:[%s165 + $0x9c] sm:$0xe]
      %v1034 = vld [vmem:[%s165 + $0xa8] sm:$0xe]
      %v1035 = vld [vmem:[%s165 + $0xb4] sm:$0xe]
      %vm1068 = vcmask 1042432
      %vm1069 = vcmask 1046532
      %vm1070 = vmor %vm1068, %vm1069
      %v1071 = vrot.slane %v1020, 5
      %v1072 = vrot.slane %v1071, 4
      %v1073 = vrot.slane %v173, 5
      %v1074 = vsel %vm1070, %v1072, %v1073
      %v1075 = vrot.slane %v1073, 4
      %v1076 = vrot.slane %v205, 5
      %v1077 = vsel %vm1070, %v1075, %v1076
      %v1078 = vrot.slane %v1021, 5
      %v1079 = vrot.slane %v1078, 4
      %v1080 = vrot.slane %v175, 5
      %v1081 = vsel %vm1070, %v1079, %v1080
      %v1082 = vrot.slane %v1080, 4
      %v1083 = vrot.slane %v206, 5
      %v1084 = vsel %vm1070, %v1082, %v1083
      %v1085 = vrot.slane %v1022, 5
      %v1086 = vrot.slane %v1085, 4
      %v1087 = vrot.slane %v177, 5
      %v1088 = vsel %vm1070, %v1086, %v1087
      %v1089 = vrot.slane %v1087, 4
      %v1090 = vrot.slane %v207, 5
      %v1091 = vsel %vm1070, %v1089, %v1090
      %v1092 = vrot.slane %v1023, 5
      %v1093 = vrot.slane %v1092, 4
      %v1094 = vrot.slane %v179, 5
      %v1095 = vsel %vm1070, %v1093, %v1094
      %v1096 = vrot.slane %v1094, 4
      %v1097 = vrot.slane %v208, 5
      %v1098 = vsel %vm1070, %v1096, %v1097
      %v1099 = vrot.slane %v1024, 5
      %v1100 = vrot.slane %v1099, 4
      %v1101 = vrot.slane %v181, 5
      %v1102 = vsel %vm1070, %v1100, %v1101
      %v1103 = vrot.slane %v1101, 4
      %v1104 = vrot.slane %v209, 5
      %v1105 = vsel %vm1070, %v1103, %v1104
      %v1106 = vrot.slane %v1025, 5
      %v1107 = vrot.slane %v1106, 4
      %v1108 = vrot.slane %v183, 5
      %v1109 = vsel %vm1070, %v1107, %v1108
      %v1110 = vrot.slane %v1108, 4
      %v1111 = vrot.slane %v210, 5
      %v1112 = vsel %vm1070, %v1110, %v1111
      %v1113 = vrot.slane %v1026, 5
      %v1114 = vrot.slane %v1113, 4
      %v1115 = vrot.slane %v185, 5
      %v1116 = vsel %vm1070, %v1114, %v1115
      %v1117 = vrot.slane %v1115, 4
      %v1118 = vrot.slane %v211, 5
      %v1119 = vsel %vm1070, %v1117, %v1118
      %v1120 = vrot.slane %v1027, 5
      %v1121 = vrot.slane %v1120, 4
      %v1122 = vrot.slane %v187, 5
      %v1123 = vsel %vm1070, %v1121, %v1122
      %v1124 = vrot.slane %v1122, 4
      %v1125 = vrot.slane %v212, 5
      %v1126 = vsel %vm1070, %v1124, %v1125
      %v1127 = vrot.slane %v1028, 5
      %v1128 = vrot.slane %v1127, 4
      %v1129 = vrot.slane %v189, 5
      %v1130 = vsel %vm1070, %v1128, %v1129
      %v1131 = vrot.slane %v1129, 4
      %v1132 = vrot.slane %v213, 5
      %v1133 = vsel %vm1070, %v1131, %v1132
      %v1134 = vrot.slane %v1029, 5
      %v1135 = vrot.slane %v1134, 4
      %v1136 = vrot.slane %v191, 5
      %v1137 = vsel %vm1070, %v1135, %v1136
      %v1138 = vrot.slane %v1136, 4
      %v1139 = vrot.slane %v214, 5
      %v1140 = vsel %vm1070, %v1138, %v1139
      %v1141 = vrot.slane %v1030, 5
      %v1142 = vrot.slane %v1141, 4
      %v1143 = vrot.slane %v193, 5
      %v1144 = vsel %vm1070, %v1142, %v1143
      %v1145 = vrot.slane %v1143, 4
      %v1146 = vrot.slane %v215, 5
      %v1147 = vsel %vm1070, %v1145, %v1146
      %v1148 = vrot.slane %v1031, 5
      %v1149 = vrot.slane %v1148, 4
      %v1150 = vrot.slane %v195, 5
      %v1151 = vsel %vm1070, %v1149, %v1150
      %v1152 = vrot.slane %v1150, 4
      %v1153 = vrot.slane %v216, 5
      %v1154 = vsel %vm1070, %v1152, %v1153
      %v1155 = vrot.slane %v1032, 5
      %v1156 = vrot.slane %v1155, 4
      %v1157 = vrot.slane %v197, 5
      %v1158 = vsel %vm1070, %v1156, %v1157
      %v1159 = vrot.slane %v1157, 4
      %v1160 = vrot.slane %v217, 5
      %v1161 = vsel %vm1070, %v1159, %v1160
      %v1162 = vrot.slane %v1033, 5
      %v1163 = vrot.slane %v1162, 4
      %v1164 = vrot.slane %v199, 5
      %v1165 = vsel %vm1070, %v1163, %v1164
      %v1166 = vrot.slane %v1164, 4
      %v1167 = vrot.slane %v218, 5
      %v1168 = vsel %vm1070, %v1166, %v1167
      %v1169 = vrot.slane %v1034, 5
      %v1170 = vrot.slane %v1169, 4
      %v1171 = vrot.slane %v201, 5
      %v1172 = vsel %vm1070, %v1170, %v1171
      %v1173 = vrot.slane %v1171, 4
      %v1174 = vrot.slane %v219, 5
      %v1175 = vsel %vm1070, %v1173, %v1174
      %v1176 = vrot.slane %v1035, 5
      %v1177 = vrot.slane %v1176, 4
      %v1178 = vrot.slane %v203, 5
      %v1179 = vsel %vm1070, %v1177, %v1178
      %v1180 = vrot.slane %v1178, 4
      %v1181 = vrot.slane %v220, 5
      %v1182 = vsel %vm1070, %v1180, %v1181
      %s1183 = scalar_lea.vmem %s1, 8
      %v1184 = vld [vmem:[%s1183] sm:$0xf]
      %v1185 = vunpack.c.l.b16 %v1074
      %v1186 = vunpack.c.l.b16 %v1077
      %v1187 = vunpack.c.l.b16 %v1081
      %v1188 = vunpack.c.l.b16 %v1084
      %v1189 = vunpack.c.l.b16 %v1088
      %v1190 = vunpack.c.l.b16 %v1091
      %v1191 = vunpack.c.l.b16 %v1095
      %v1192 = vunpack.c.l.b16 %v1098
      %v1193 = vunpack.c.l.b16 %v1102
      %v1194 = vunpack.c.l.b16 %v1105
      %v1195 = vunpack.c.l.b16 %v1109
      %v1196 = vunpack.c.l.b16 %v1112
      %v1197 = vunpack.c.l.b16 %v1116
      %v1198 = vunpack.c.l.b16 %v1119
      %v1199 = vunpack.c.l.b16 %v1123
      %v1200 = vunpack.c.l.b16 %v1126
      %v1201 = vunpack.c.l.b16 %v1130
      %v1202 = vunpack.c.l.b16 %v1133
      %v1203 = vunpack.c.l.b16 %v1137
      %v1204 = vunpack.c.l.b16 %v1140
      %v1205 = vunpack.c.l.b16 %v1144
      %v1206 = vunpack.c.l.b16 %v1147
      %v1207 = vunpack.c.l.b16 %v1151
      %v1208 = vunpack.c.l.b16 %v1154
      %v1209 = vunpack.c.l.b16 %v1158
      %v1210 = vunpack.c.l.b16 %v1161
      %v1211 = vunpack.c.l.b16 %v1165
      %v1212 = vunpack.c.l.b16 %v1168
      %v1213 = vunpack.c.l.b16 %v1172
      %v1214 = vunpack.c.l.b16 %v1175
      %v1215 = vunpack.c.l.b16 %v1179
      %v1216 = vunpack.c.l.b16 %v1182
      %v1217 = vpack.c.b16 %v1186, %v1185
      %v1218 = vpack.c.b16 %v1188, %v1187
      %v1219 = vpack.c.b16 %v1190, %v1189
      %v1220 = vpack.c.b16 %v1192, %v1191
      %v1221 = vpack.c.b16 %v1194, %v1193
      %v1222 = vpack.c.b16 %v1196, %v1195
      %v1223 = vpack.c.b16 %v1198, %v1197
      %v1224 = vpack.c.b16 %v1200, %v1199
      %v1225 = vpack.c.b16 %v1202, %v1201
      %v1226 = vpack.c.b16 %v1204, %v1203
      %v1227 = vpack.c.b16 %v1206, %v1205
      %v1228 = vpack.c.b16 %v1208, %v1207
      %v1229 = vpack.c.b16 %v1210, %v1209
      %v1230 = vpack.c.b16 %v1212, %v1211
      %v1231 = vpack.c.b16 %v1214, %v1213
      %v1232 = vpack.c.b16 %v1216, %v1215
      %v1234 = vsel %vm658, %v1217, 0
      %v1237 = vsel %vm658, %v1218, 0
      %v1240 = vsel %vm658, %v1219, 0
      %v1243 = vsel %vm658, %v1220, 0
      %v1246 = vsel %vm658, %v1221, 0
      %v1249 = vsel %vm658, %v1222, 0
      %v1252 = vsel %vm658, %v1223, 0
      %v1255 = vsel %vm658, %v1224, 0
      %v1258 = vsel %vm658, %v1225, 0
      %v1261 = vsel %vm658, %v1226, 0
      %v1264 = vsel %vm658, %v1227, 0
      %v1267 = vsel %vm658, %v1228, 0
      %v1270 = vsel %vm658, %v1229, 0
      %v1273 = vsel %vm658, %v1230, 0
      %v1276 = vsel %vm658, %v1231, 0
      %v1279 = vsel %vm658, %v1232, 0
      %v1282 = vsel %vm707, %v1184, 0
      %1284 = vmatpush.bf16.msra.mxu0 0
      %1285 = vmatpush.bf16.msra.mxu0 0
      %1286 = vmatpush.bf16.msra.mxu0 0
      %1287 = vmatpush.bf16.msra.mxu0 0
      %1288 = vmatpush.bf16.msra.mxu0 0
      %1289 = vmatpush.bf16.msra.mxu0 0
      %1290 = vmatpush.bf16.msra.mxu0 0
      %1291 = vmatpush.bf16.msra.mxu0 %v1282
      %1292 = vmatmul.bf16.gmra.mxu0 %v1234
      %v1293 = vpop.f32.mrf.mxu0
      %v1294 = vadd.f32 0.0, %v1293
      %v1295 = vpop.f32.mrf.mxu0
      %v1296 = vadd.f32 0.0, %v1295
      %1297 = vmatmul.bf16.gmra.mxu0 %v1237
      %v1298 = vpop.f32.mrf.mxu0
      %v1299 = vadd.f32 0.0, %v1298
      %v1300 = vpop.f32.mrf.mxu0
      %v1301 = vadd.f32 0.0, %v1300
      %1302 = vmatmul.bf16.gmra.mxu0 %v1240
      %v1303 = vpop.f32.mrf.mxu0
      %v1304 = vadd.f32 0.0, %v1303
      %v1305 = vpop.f32.mrf.mxu0
      %v1306 = vadd.f32 0.0, %v1305
      %1307 = vmatmul.bf16.gmra.mxu0 %v1243
      %v1308 = vpop.f32.mrf.mxu0
      %v1309 = vadd.f32 0.0, %v1308
      %v1310 = vpop.f32.mrf.mxu0
      %v1311 = vadd.f32 0.0, %v1310
      %1312 = vmatmul.bf16.gmra.mxu0 %v1246
      %v1313 = vpop.f32.mrf.mxu0
      %v1314 = vadd.f32 0.0, %v1313
      %v1315 = vpop.f32.mrf.mxu0
      %v1316 = vadd.f32 0.0, %v1315
      %1317 = vmatmul.bf16.gmra.mxu0 %v1249
      %v1318 = vpop.f32.mrf.mxu0
      %v1319 = vadd.f32 0.0, %v1318
      %v1320 = vpop.f32.mrf.mxu0
      %v1321 = vadd.f32 0.0, %v1320
      %1322 = vmatmul.bf16.gmra.mxu0 %v1252
      %v1323 = vpop.f32.mrf.mxu0
      %v1324 = vadd.f32 0.0, %v1323
      %v1325 = vpop.f32.mrf.mxu0
      %v1326 = vadd.f32 0.0, %v1325
      %1327 = vmatmul.bf16.gmra.mxu0 %v1255
      %v1328 = vpop.f32.mrf.mxu0
      %v1329 = vadd.f32 0.0, %v1328
      %v1330 = vpop.f32.mrf.mxu0
      %v1331 = vadd.f32 0.0, %v1330
      %1332 = vmatmul.bf16.gmra.mxu0 %v1258
      %v1333 = vpop.f32.mrf.mxu0
      %v1334 = vadd.f32 0.0, %v1333
      %v1335 = vpop.f32.mrf.mxu0
      %v1336 = vadd.f32 0.0, %v1335
      %1337 = vmatmul.bf16.gmra.mxu0 %v1261
      %v1338 = vpop.f32.mrf.mxu0
      %v1339 = vadd.f32 0.0, %v1338
      %v1340 = vpop.f32.mrf.mxu0
      %v1341 = vadd.f32 0.0, %v1340
      %1342 = vmatmul.bf16.gmra.mxu0 %v1264
      %v1343 = vpop.f32.mrf.mxu0
      %v1344 = vadd.f32 0.0, %v1343
      %v1345 = vpop.f32.mrf.mxu0
      %v1346 = vadd.f32 0.0, %v1345
      %1347 = vmatmul.bf16.gmra.mxu0 %v1267
      %v1348 = vpop.f32.mrf.mxu0
      %v1349 = vadd.f32 0.0, %v1348
      %v1350 = vpop.f32.mrf.mxu0
      %v1351 = vadd.f32 0.0, %v1350
      %1352 = vmatmul.bf16.gmra.mxu0 %v1270
      %v1353 = vpop.f32.mrf.mxu0
      %v1354 = vadd.f32 0.0, %v1353
      %v1355 = vpop.f32.mrf.mxu0
      %v1356 = vadd.f32 0.0, %v1355
      %1357 = vmatmul.bf16.gmra.mxu0 %v1273
      %v1358 = vpop.f32.mrf.mxu0
      %v1359 = vadd.f32 0.0, %v1358
      %v1360 = vpop.f32.mrf.mxu0
      %v1361 = vadd.f32 0.0, %v1360
      %1362 = vmatmul.bf16.gmra.mxu0 %v1276
      %v1363 = vpop.f32.mrf.mxu0
      %v1364 = vadd.f32 0.0, %v1363
      %v1365 = vpop.f32.mrf.mxu0
      %v1366 = vadd.f32 0.0, %v1365
      %1367 = vmatmul.bf16.gmra.mxu0 %v1279
      %v1368 = vpop.f32.mrf.mxu0
      %v1369 = vadd.f32 0.0, %v1368
      %v1370 = vpop.f32.mrf.mxu0
      %v1371 = vadd.f32 0.0, %v1370
      %1372 = vdwg.mxu0
      %v1373 = vadd.f32 %v941, %v1294
      %v1374 = vadd.f32 %v943, %v1296
      %v1375 = vadd.f32 %v946, %v1299
      %v1376 = vadd.f32 %v948, %v1301
      %v1377 = vadd.f32 %v951, %v1304
      %v1378 = vadd.f32 %v953, %v1306
      %v1379 = vadd.f32 %v956, %v1309
      %v1380 = vadd.f32 %v958, %v1311
      %v1381 = vadd.f32 %v961, %v1314
      %v1382 = vadd.f32 %v963, %v1316
      %v1383 = vadd.f32 %v966, %v1319
      %v1384 = vadd.f32 %v968, %v1321
      %v1385 = vadd.f32 %v971, %v1324
      %v1386 = vadd.f32 %v973, %v1326
      %v1387 = vadd.f32 %v976, %v1329
      %v1388 = vadd.f32 %v978, %v1331
      %v1389 = vadd.f32 %v981, %v1334
      %v1390 = vadd.f32 %v983, %v1336
      %v1391 = vadd.f32 %v986, %v1339
      %v1392 = vadd.f32 %v988, %v1341
      %v1393 = vadd.f32 %v991, %v1344
      %v1394 = vadd.f32 %v993, %v1346
      %v1395 = vadd.f32 %v996, %v1349
      %v1396 = vadd.f32 %v998, %v1351
      %v1397 = vadd.f32 %v1001, %v1354
      %v1398 = vadd.f32 %v1003, %v1356
      %v1399 = vadd.f32 %v1006, %v1359
      %v1400 = vadd.f32 %v1008, %v1361
      %v1401 = vadd.f32 %v1011, %v1364
      %v1402 = vadd.f32 %v1013, %v1366
      %v1403 = vadd.f32 %v1016, %v1369
      %v1404 = vadd.f32 %v1018, %v1371
      %s1405 = scalar_lea.vmem %s165, 12
      %v1406 = vld [vmem:[%s1405] sm:$0xf]
      %v1407 = vld [vmem:[%s1405 + $0x4] sm:$0xf]
      %v1408 = vld [vmem:[%s1405 + $0xc] sm:$0xf]
      %v1409 = vld [vmem:[%s1405 + $0x10] sm:$0xf]
      %v1410 = vld [vmem:[%s1405 + $0x18] sm:$0xf]
      %v1411 = vld [vmem:[%s1405 + $0x1c] sm:$0xf]
      %v1412 = vld [vmem:[%s1405 + $0x24] sm:$0xf]
      %v1413 = vld [vmem:[%s1405 + $0x28] sm:$0xf]
      %v1414 = vld [vmem:[%s1405 + $0x30] sm:$0xf]
      %v1415 = vld [vmem:[%s1405 + $0x34] sm:$0xf]
      %v1416 = vld [vmem:[%s1405 + $0x3c] sm:$0xf]
      %v1417 = vld [vmem:[%s1405 + $0x40] sm:$0xf]
      %v1418 = vld [vmem:[%s1405 + $0x48] sm:$0xf]
      %v1419 = vld [vmem:[%s1405 + $0x4c] sm:$0xf]
      %v1420 = vld [vmem:[%s1405 + $0x54] sm:$0xf]
      %v1421 = vld [vmem:[%s1405 + $0x58] sm:$0xf]
      %v1422 = vld [vmem:[%s1405 + $0x60] sm:$0xf]
      %v1423 = vld [vmem:[%s1405 + $0x64] sm:$0xf]
      %v1424 = vld [vmem:[%s1405 + $0x6c] sm:$0xf]
      %v1425 = vld [vmem:[%s1405 + $0x70] sm:$0xf]
      %v1426 = vld [vmem:[%s1405 + $0x78] sm:$0xf]
      %v1427 = vld [vmem:[%s1405 + $0x7c] sm:$0xf]
      %v1428 = vld [vmem:[%s1405 + $0x84] sm:$0xf]
      %v1429 = vld [vmem:[%s1405 + $0x88] sm:$0xf]
      %v1430 = vld [vmem:[%s1405 + $0x90] sm:$0xf]
      %v1431 = vld [vmem:[%s1405 + $0x94] sm:$0xf]
      %v1432 = vld [vmem:[%s1405 + $0x9c] sm:$0xf]
      %v1433 = vld [vmem:[%s1405 + $0xa0] sm:$0xf]
      %v1434 = vld [vmem:[%s1405 + $0xa8] sm:$0xf]
      %v1435 = vld [vmem:[%s1405 + $0xac] sm:$0xf]
      %v1436 = vld [vmem:[%s1405 + $0xb4] sm:$0xf]
      %v1437 = vld [vmem:[%s1405 + $0xb8] sm:$0xf]
      %s1438 = scalar_lea.vmem %s1, 12
      %v1439 = vld [vmem:[%s1438] sm:$0xf]
      %v1472 = vunpack.c.l.b16 %v1406
      %v1473 = vunpack.c.l.b16 %v1407
      %v1474 = vunpack.c.l.b16 %v1408
      %v1475 = vunpack.c.l.b16 %v1409
      %v1476 = vunpack.c.l.b16 %v1410
      %v1477 = vunpack.c.l.b16 %v1411
      %v1478 = vunpack.c.l.b16 %v1412
      %v1479 = vunpack.c.l.b16 %v1413
      %v1480 = vunpack.c.l.b16 %v1414
      %v1481 = vunpack.c.l.b16 %v1415
      %v1482 = vunpack.c.l.b16 %v1416
      %v1483 = vunpack.c.l.b16 %v1417
      %v1484 = vunpack.c.l.b16 %v1418
      %v1485 = vunpack.c.l.b16 %v1419
      %v1486 = vunpack.c.l.b16 %v1420
      %v1487 = vunpack.c.l.b16 %v1421
      %v1488 = vunpack.c.l.b16 %v1422
      %v1489 = vunpack.c.l.b16 %v1423
      %v1490 = vunpack.c.l.b16 %v1424
      %v1491 = vunpack.c.l.b16 %v1425
      %v1492 = vunpack.c.l.b16 %v1426
      %v1493 = vunpack.c.l.b16 %v1427
      %v1494 = vunpack.c.l.b16 %v1428
      %v1495 = vunpack.c.l.b16 %v1429
      %v1496 = vunpack.c.l.b16 %v1430
      %v1497 = vunpack.c.l.b16 %v1431
      %v1498 = vunpack.c.l.b16 %v1432
      %v1499 = vunpack.c.l.b16 %v1433
      %v1500 = vunpack.c.l.b16 %v1434
      %v1501 = vunpack.c.l.b16 %v1435
      %v1502 = vunpack.c.l.b16 %v1436
      %v1503 = vunpack.c.l.b16 %v1437
      %v1504 = vpack.c.b16 %v1473, %v1472
      %v1505 = vpack.c.b16 %v1475, %v1474
      %v1506 = vpack.c.b16 %v1477, %v1476
      %v1507 = vpack.c.b16 %v1479, %v1478
      %v1508 = vpack.c.b16 %v1481, %v1480
      %v1509 = vpack.c.b16 %v1483, %v1482
      %v1510 = vpack.c.b16 %v1485, %v1484
      %v1511 = vpack.c.b16 %v1487, %v1486
      %v1512 = vpack.c.b16 %v1489, %v1488
      %v1513 = vpack.c.b16 %v1491, %v1490
      %v1514 = vpack.c.b16 %v1493, %v1492
      %v1515 = vpack.c.b16 %v1495, %v1494
      %v1516 = vpack.c.b16 %v1497, %v1496
      %v1517 = vpack.c.b16 %v1499, %v1498
      %v1518 = vpack.c.b16 %v1501, %v1500
      %v1519 = vpack.c.b16 %v1503, %v1502
      %v1521 = vsel %vm658, %v1504, 0
      %v1524 = vsel %vm658, %v1505, 0
      %v1527 = vsel %vm658, %v1506, 0
      %v1530 = vsel %vm658, %v1507, 0
      %v1533 = vsel %vm658, %v1508, 0
      %v1536 = vsel %vm658, %v1509, 0
      %v1539 = vsel %vm658, %v1510, 0
      %v1542 = vsel %vm658, %v1511, 0
      %v1545 = vsel %vm658, %v1512, 0
      %v1548 = vsel %vm658, %v1513, 0
      %v1551 = vsel %vm658, %v1514, 0
      %v1554 = vsel %vm658, %v1515, 0
      %v1557 = vsel %vm658, %v1516, 0
      %v1560 = vsel %vm658, %v1517, 0
      %v1563 = vsel %vm658, %v1518, 0
      %v1566 = vsel %vm658, %v1519, 0
      %v1569 = vsel %vm707, %v1439, 0
      %1571 = vmatpush.bf16.msra.mxu0 0
      %1572 = vmatpush.bf16.msra.mxu0 0
      %1573 = vmatpush.bf16.msra.mxu0 0
      %1574 = vmatpush.bf16.msra.mxu0 0
      %1575 = vmatpush.bf16.msra.mxu0 0
      %1576 = vmatpush.bf16.msra.mxu0 0
      %1577 = vmatpush.bf16.msra.mxu0 0
      %1578 = vmatpush.bf16.msra.mxu0 %v1569
      %1579 = vmatmul.bf16.gmra.mxu0 %v1521
      %v1580 = vpop.f32.mrf.mxu0
      %v1581 = vadd.f32 0.0, %v1580
      %v1582 = vpop.f32.mrf.mxu0
      %v1583 = vadd.f32 0.0, %v1582
      %1584 = vmatmul.bf16.gmra.mxu0 %v1524
      %v1585 = vpop.f32.mrf.mxu0
      %v1586 = vadd.f32 0.0, %v1585
      %v1587 = vpop.f32.mrf.mxu0
      %v1588 = vadd.f32 0.0, %v1587
      %1589 = vmatmul.bf16.gmra.mxu0 %v1527
      %v1590 = vpop.f32.mrf.mxu0
      %v1591 = vadd.f32 0.0, %v1590
      %v1592 = vpop.f32.mrf.mxu0
      %v1593 = vadd.f32 0.0, %v1592
      %1594 = vmatmul.bf16.gmra.mxu0 %v1530
      %v1595 = vpop.f32.mrf.mxu0
      %v1596 = vadd.f32 0.0, %v1595
      %v1597 = vpop.f32.mrf.mxu0
      %v1598 = vadd.f32 0.0, %v1597
      %1599 = vmatmul.bf16.gmra.mxu0 %v1533
      %v1600 = vpop.f32.mrf.mxu0
      %v1601 = vadd.f32 0.0, %v1600
      %v1602 = vpop.f32.mrf.mxu0
      %v1603 = vadd.f32 0.0, %v1602
      %1604 = vmatmul.bf16.gmra.mxu0 %v1536
      %v1605 = vpop.f32.mrf.mxu0
      %v1606 = vadd.f32 0.0, %v1605
      %v1607 = vpop.f32.mrf.mxu0
      %v1608 = vadd.f32 0.0, %v1607
      %1609 = vmatmul.bf16.gmra.mxu0 %v1539
      %v1610 = vpop.f32.mrf.mxu0
      %v1611 = vadd.f32 0.0, %v1610
      %v1612 = vpop.f32.mrf.mxu0
      %v1613 = vadd.f32 0.0, %v1612
      %1614 = vmatmul.bf16.gmra.mxu0 %v1542
      %v1615 = vpop.f32.mrf.mxu0
      %v1616 = vadd.f32 0.0, %v1615
      %v1617 = vpop.f32.mrf.mxu0
      %v1618 = vadd.f32 0.0, %v1617
      %1619 = vmatmul.bf16.gmra.mxu0 %v1545
      %v1620 = vpop.f32.mrf.mxu0
      %v1621 = vadd.f32 0.0, %v1620
      %v1622 = vpop.f32.mrf.mxu0
      %v1623 = vadd.f32 0.0, %v1622
      %1624 = vmatmul.bf16.gmra.mxu0 %v1548
      %v1625 = vpop.f32.mrf.mxu0
      %v1626 = vadd.f32 0.0, %v1625
      %v1627 = vpop.f32.mrf.mxu0
      %v1628 = vadd.f32 0.0, %v1627
      %1629 = vmatmul.bf16.gmra.mxu0 %v1551
      %v1630 = vpop.f32.mrf.mxu0
      %v1631 = vadd.f32 0.0, %v1630
      %v1632 = vpop.f32.mrf.mxu0
      %v1633 = vadd.f32 0.0, %v1632
      %1634 = vmatmul.bf16.gmra.mxu0 %v1554
      %v1635 = vpop.f32.mrf.mxu0
      %v1636 = vadd.f32 0.0, %v1635
      %v1637 = vpop.f32.mrf.mxu0
      %v1638 = vadd.f32 0.0, %v1637
      %1639 = vmatmul.bf16.gmra.mxu0 %v1557
      %v1640 = vpop.f32.mrf.mxu0
      %v1641 = vadd.f32 0.0, %v1640
      %v1642 = vpop.f32.mrf.mxu0
      %v1643 = vadd.f32 0.0, %v1642
      %1644 = vmatmul.bf16.gmra.mxu0 %v1560
      %v1645 = vpop.f32.mrf.mxu0
      %v1646 = vadd.f32 0.0, %v1645
      %v1647 = vpop.f32.mrf.mxu0
      %v1648 = vadd.f32 0.0, %v1647
      %1649 = vmatmul.bf16.gmra.mxu0 %v1563
      %v1650 = vpop.f32.mrf.mxu0
      %v1651 = vadd.f32 0.0, %v1650
      %v1652 = vpop.f32.mrf.mxu0
      %v1653 = vadd.f32 0.0, %v1652
      %1654 = vmatmul.bf16.gmra.mxu0 %v1566
      %v1655 = vpop.f32.mrf.mxu0
      %v1656 = vadd.f32 0.0, %v1655
      %v1657 = vpop.f32.mrf.mxu0
      %v1658 = vadd.f32 0.0, %v1657
      %1659 = vdwg.mxu0
      %v1660 = vadd.f32 %v1373, %v1581
      %v1661 = vadd.f32 %v1374, %v1583
      %v1662 = vadd.f32 %v1375, %v1586
      %v1663 = vadd.f32 %v1376, %v1588
      %v1664 = vadd.f32 %v1377, %v1591
      %v1665 = vadd.f32 %v1378, %v1593
      %v1666 = vadd.f32 %v1379, %v1596
      %v1667 = vadd.f32 %v1380, %v1598
      %v1668 = vadd.f32 %v1381, %v1601
      %v1669 = vadd.f32 %v1382, %v1603
      %v1670 = vadd.f32 %v1383, %v1606
      %v1671 = vadd.f32 %v1384, %v1608
      %v1672 = vadd.f32 %v1385, %v1611
      %v1673 = vadd.f32 %v1386, %v1613
      %v1674 = vadd.f32 %v1387, %v1616
      %v1675 = vadd.f32 %v1388, %v1618
      %v1676 = vadd.f32 %v1389, %v1621
      %v1677 = vadd.f32 %v1390, %v1623
      %v1678 = vadd.f32 %v1391, %v1626
      %v1679 = vadd.f32 %v1392, %v1628
      %v1680 = vadd.f32 %v1393, %v1631
      %v1681 = vadd.f32 %v1394, %v1633
      %v1682 = vadd.f32 %v1395, %v1636
      %v1683 = vadd.f32 %v1396, %v1638
      %v1684 = vadd.f32 %v1397, %v1641
      %v1685 = vadd.f32 %v1398, %v1643
      %v1686 = vadd.f32 %v1399, %v1646
      %v1687 = vadd.f32 %v1400, %v1648
      %v1688 = vadd.f32 %v1401, %v1651
      %v1689 = vadd.f32 %v1402, %v1653
      %v1690 = vadd.f32 %v1403, %v1656
      %v1691 = vadd.f32 %v1404, %v1658
      %v1692 = vld [vmem:[%s1405] sm:$0xf]
      %v1693 = vld [vmem:[%s1405 + $0x4] sm:$0xf]
      %v1694 = vld [vmem:[%s1405 + $0x8] sm:$0x1]
      %v1695 = vld [vmem:[%s1405 + $0xc] sm:$0xf]
      %v1696 = vld [vmem:[%s1405 + $0x10] sm:$0xf]
      %v1697 = vld [vmem:[%s1405 + $0x14] sm:$0x1]
      %v1698 = vld [vmem:[%s1405 + $0x18] sm:$0xf]
      %v1699 = vld [vmem:[%s1405 + $0x1c] sm:$0xf]
      %v1700 = vld [vmem:[%s1405 + $0x20] sm:$0x1]
      %v1701 = vld [vmem:[%s1405 + $0x24] sm:$0xf]
      %v1702 = vld [vmem:[%s1405 + $0x28] sm:$0xf]
      %v1703 = vld [vmem:[%s1405 + $0x2c] sm:$0x1]
      %v1704 = vld [vmem:[%s1405 + $0x30] sm:$0xf]
      %v1705 = vld [vmem:[%s1405 + $0x34] sm:$0xf]
      %v1706 = vld [vmem:[%s1405 + $0x38] sm:$0x1]
      %v1707 = vld [vmem:[%s1405 + $0x3c] sm:$0xf]
      %v1708 = vld [vmem:[%s1405 + $0x40] sm:$0xf]
      %v1709 = vld [vmem:[%s1405 + $0x44] sm:$0x1]
      %v1710 = vld [vmem:[%s1405 + $0x48] sm:$0xf]
      %v1711 = vld [vmem:[%s1405 + $0x4c] sm:$0xf]
      %v1712 = vld [vmem:[%s1405 + $0x50] sm:$0x1]
      %v1713 = vld [vmem:[%s1405 + $0x54] sm:$0xf]
      %v1714 = vld [vmem:[%s1405 + $0x58] sm:$0xf]
      %v1715 = vld [vmem:[%s1405 + $0x5c] sm:$0x1]
      %v1716 = vld [vmem:[%s1405 + $0x60] sm:$0xf]
      %v1717 = vld [vmem:[%s1405 + $0x64] sm:$0xf]
      %v1718 = vld [vmem:[%s1405 + $0x68] sm:$0x1]
      %v1719 = vld [vmem:[%s1405 + $0x6c] sm:$0xf]
      %v1720 = vld [vmem:[%s1405 + $0x70] sm:$0xf]
      %v1721 = vld [vmem:[%s1405 + $0x74] sm:$0x1]
      %v1722 = vld [vmem:[%s1405 + $0x78] sm:$0xf]
      %v1723 = vld [vmem:[%s1405 + $0x7c] sm:$0xf]
      %v1724 = vld [vmem:[%s1405 + $0x80] sm:$0x1]
      %v1725 = vld [vmem:[%s1405 + $0x84] sm:$0xf]
      %v1726 = vld [vmem:[%s1405 + $0x88] sm:$0xf]
      %v1727 = vld [vmem:[%s1405 + $0x8c] sm:$0x1]
      %v1728 = vld [vmem:[%s1405 + $0x90] sm:$0xf]
      %v1729 = vld [vmem:[%s1405 + $0x94] sm:$0xf]
      %v1730 = vld [vmem:[%s1405 + $0x98] sm:$0x1]
      %v1731 = vld [vmem:[%s1405 + $0x9c] sm:$0xf]
      %v1732 = vld [vmem:[%s1405 + $0xa0] sm:$0xf]
      %v1733 = vld [vmem:[%s1405 + $0xa4] sm:$0x1]
      %v1734 = vld [vmem:[%s1405 + $0xa8] sm:$0xf]
      %v1735 = vld [vmem:[%s1405 + $0xac] sm:$0xf]
      %v1736 = vld [vmem:[%s1405 + $0xb0] sm:$0x1]
      %v1737 = vld [vmem:[%s1405 + $0xb4] sm:$0xf]
      %v1738 = vld [vmem:[%s1405 + $0xb8] sm:$0xf]
      %v1739 = vld [vmem:[%s1405 + $0xbc] sm:$0x1]
      %v1741 = vshrl.u32 %v1692, 16
      %v1743 = vrot.slane %v1741, 4
      %v1744 = vshll.u32 %v1692, 16
      %v1746 = vrot.slane %v1744, 5
      %v1747 = vor.u32 %v1743, %v1746
      %v1748 = vrot.slane %v1747, 4
      %v1750 = vshll.u32 %v1693, 16
      %v1752 = vrot.slane %v1750, 5
      %v1753 = vsel %vm223, %v1748, %v1752
      %v1754 = vshrl.u32 %v1693, 16
      %v1756 = vrot.slane %v1754, 4
      %v1757 = vor.u32 %v1756, %v1752
      %v1758 = vrot.slane %v1757, 4
      %v1760 = vshll.u32 %v1694, 16
      %v1762 = vrot.slane %v1760, 5
      %v1763 = vsel %vm223, %v1758, %v1762
      %v1765 = vshrl.u32 %v1695, 16
      %v1767 = vrot.slane %v1765, 4
      %v1768 = vshll.u32 %v1695, 16
      %v1770 = vrot.slane %v1768, 5
      %v1771 = vor.u32 %v1767, %v1770
      %v1772 = vrot.slane %v1771, 4
      %v1774 = vshll.u32 %v1696, 16
      %v1776 = vrot.slane %v1774, 5
      %v1777 = vsel %vm223, %v1772, %v1776
      %v1778 = vshrl.u32 %v1696, 16
      %v1780 = vrot.slane %v1778, 4
      %v1781 = vor.u32 %v1780, %v1776
      %v1782 = vrot.slane %v1781, 4
      %v1784 = vshll.u32 %v1697, 16
      %v1786 = vrot.slane %v1784, 5
      %v1787 = vsel %vm223, %v1782, %v1786
      %v1789 = vshrl.u32 %v1698, 16
      %v1791 = vrot.slane %v1789, 4
      %v1792 = vshll.u32 %v1698, 16
      %v1794 = vrot.slane %v1792, 5
      %v1795 = vor.u32 %v1791, %v1794
      %v1796 = vrot.slane %v1795, 4
      %v1798 = vshll.u32 %v1699, 16
      %v1800 = vrot.slane %v1798, 5
      %v1801 = vsel %vm223, %v1796, %v1800
      %v1802 = vshrl.u32 %v1699, 16
      %v1804 = vrot.slane %v1802, 4
      %v1805 = vor.u32 %v1804, %v1800
      %v1806 = vrot.slane %v1805, 4
      %v1808 = vshll.u32 %v1700, 16
      %v1810 = vrot.slane %v1808, 5
      %v1811 = vsel %vm223, %v1806, %v1810
      %v1813 = vshrl.u32 %v1701, 16
      %v1815 = vrot.slane %v1813, 4
      %v1816 = vshll.u32 %v1701, 16
      %v1818 = vrot.slane %v1816, 5
      %v1819 = vor.u32 %v1815, %v1818
      %v1820 = vrot.slane %v1819, 4
      %v1822 = vshll.u32 %v1702, 16
      %v1824 = vrot.slane %v1822, 5
      %v1825 = vsel %vm223, %v1820, %v1824
      %v1826 = vshrl.u32 %v1702, 16
      %v1828 = vrot.slane %v1826, 4
      %v1829 = vor.u32 %v1828, %v1824
      %v1830 = vrot.slane %v1829, 4
      %v1832 = vshll.u32 %v1703, 16
      %v1834 = vrot.slane %v1832, 5
      %v1835 = vsel %vm223, %v1830, %v1834
      %v1837 = vshrl.u32 %v1704, 16
      %v1839 = vrot.slane %v1837, 4
      %v1840 = vshll.u32 %v1704, 16
      %v1842 = vrot.slane %v1840, 5
      %v1843 = vor.u32 %v1839, %v1842
      %v1844 = vrot.slane %v1843, 4
      %v1846 = vshll.u32 %v1705, 16
      %v1848 = vrot.slane %v1846, 5
      %v1849 = vsel %vm223, %v1844, %v1848
      %v1850 = vshrl.u32 %v1705, 16
      %v1852 = vrot.slane %v1850, 4
      %v1853 = vor.u32 %v1852, %v1848
      %v1854 = vrot.slane %v1853, 4
      %v1856 = vshll.u32 %v1706, 16
      %v1858 = vrot.slane %v1856, 5
      %v1859 = vsel %vm223, %v1854, %v1858
      %v1861 = vshrl.u32 %v1707, 16
      %v1863 = vrot.slane %v1861, 4
      %v1864 = vshll.u32 %v1707, 16
      %v1866 = vrot.slane %v1864, 5
      %v1867 = vor.u32 %v1863, %v1866
      %v1868 = vrot.slane %v1867, 4
      %v1870 = vshll.u32 %v1708, 16
      %v1872 = vrot.slane %v1870, 5
      %v1873 = vsel %vm223, %v1868, %v1872
      %v1874 = vshrl.u32 %v1708, 16
      %v1876 = vrot.slane %v1874, 4
      %v1877 = vor.u32 %v1876, %v1872
      %v1878 = vrot.slane %v1877, 4
      %v1880 = vshll.u32 %v1709, 16
      %v1882 = vrot.slane %v1880, 5
      %v1883 = vsel %vm223, %v1878, %v1882
      %v1885 = vshrl.u32 %v1710, 16
      %v1887 = vrot.slane %v1885, 4
      %v1888 = vshll.u32 %v1710, 16
      %v1890 = vrot.slane %v1888, 5
      %v1891 = vor.u32 %v1887, %v1890
      %v1892 = vrot.slane %v1891, 4
      %v1894 = vshll.u32 %v1711, 16
      %v1896 = vrot.slane %v1894, 5
      %v1897 = vsel %vm223, %v1892, %v1896
      %v1898 = vshrl.u32 %v1711, 16
      %v1900 = vrot.slane %v1898, 4
      %v1901 = vor.u32 %v1900, %v1896
      %v1902 = vrot.slane %v1901, 4
      %v1904 = vshll.u32 %v1712, 16
      %v1906 = vrot.slane %v1904, 5
      %v1907 = vsel %vm223, %v1902, %v1906
      %v1909 = vshrl.u32 %v1713, 16
      %v1911 = vrot.slane %v1909, 4
      %v1912 = vshll.u32 %v1713, 16
      %v1914 = vrot.slane %v1912, 5
      %v1915 = vor.u32 %v1911, %v1914
      %v1916 = vrot.slane %v1915, 4
      %v1918 = vshll.u32 %v1714, 16
      %v1920 = vrot.slane %v1918, 5
      %v1921 = vsel %vm223, %v1916, %v1920
      %v1922 = vshrl.u32 %v1714, 16
      %v1924 = vrot.slane %v1922, 4
      %v1925 = vor.u32 %v1924, %v1920
      %v1926 = vrot.slane %v1925, 4
      %v1928 = vshll.u32 %v1715, 16
      %v1930 = vrot.slane %v1928, 5
      %v1931 = vsel %vm223, %v1926, %v1930
      %v1933 = vshrl.u32 %v1716, 16
      %v1935 = vrot.slane %v1933, 4
      %v1936 = vshll.u32 %v1716, 16
      %v1938 = vrot.slane %v1936, 5
      %v1939 = vor.u32 %v1935, %v1938
      %v1940 = vrot.slane %v1939, 4
      %v1942 = vshll.u32 %v1717, 16
      %v1944 = vrot.slane %v1942, 5
      %v1945 = vsel %vm223, %v1940, %v1944
      %v1946 = vshrl.u32 %v1717, 16
      %v1948 = vrot.slane %v1946, 4
      %v1949 = vor.u32 %v1948, %v1944
      %v1950 = vrot.slane %v1949, 4
      %v1952 = vshll.u32 %v1718, 16
      %v1954 = vrot.slane %v1952, 5
      %v1955 = vsel %vm223, %v1950, %v1954
      %v1957 = vshrl.u32 %v1719, 16
      %v1959 = vrot.slane %v1957, 4
      %v1960 = vshll.u32 %v1719, 16
      %v1962 = vrot.slane %v1960, 5
      %v1963 = vor.u32 %v1959, %v1962
      %v1964 = vrot.slane %v1963, 4
      %v1966 = vshll.u32 %v1720, 16
      %v1968 = vrot.slane %v1966, 5
      %v1969 = vsel %vm223, %v1964, %v1968
      %v1970 = vshrl.u32 %v1720, 16
      %v1972 = vrot.slane %v1970, 4
      %v1973 = vor.u32 %v1972, %v1968
      %v1974 = vrot.slane %v1973, 4
      %v1976 = vshll.u32 %v1721, 16
      %v1978 = vrot.slane %v1976, 5
      %v1979 = vsel %vm223, %v1974, %v1978
      %v1981 = vshrl.u32 %v1722, 16
      %v1983 = vrot.slane %v1981, 4
      %v1984 = vshll.u32 %v1722, 16
      %v1986 = vrot.slane %v1984, 5
      %v1987 = vor.u32 %v1983, %v1986
      %v1988 = vrot.slane %v1987, 4
      %v1990 = vshll.u32 %v1723, 16
      %v1992 = vrot.slane %v1990, 5
      %v1993 = vsel %vm223, %v1988, %v1992
      %v1994 = vshrl.u32 %v1723, 16
      %v1996 = vrot.slane %v1994, 4
      %v1997 = vor.u32 %v1996, %v1992
      %v1998 = vrot.slane %v1997, 4
      %v2000 = vshll.u32 %v1724, 16
      %v2002 = vrot.slane %v2000, 5
      %v2003 = vsel %vm223, %v1998, %v2002
      %v2005 = vshrl.u32 %v1725, 16
      %v2007 = vrot.slane %v2005, 4
      %v2008 = vshll.u32 %v1725, 16
      %v2010 = vrot.slane %v2008, 5
      %v2011 = vor.u32 %v2007, %v2010
      %v2012 = vrot.slane %v2011, 4
      %v2014 = vshll.u32 %v1726, 16
      %v2016 = vrot.slane %v2014, 5
      %v2017 = vsel %vm223, %v2012, %v2016
      %v2018 = vshrl.u32 %v1726, 16
      %v2020 = vrot.slane %v2018, 4
      %v2021 = vor.u32 %v2020, %v2016
      %v2022 = vrot.slane %v2021, 4
      %v2024 = vshll.u32 %v1727, 16
      %v2026 = vrot.slane %v2024, 5
      %v2027 = vsel %vm223, %v2022, %v2026
      %v2029 = vshrl.u32 %v1728, 16
      %v2031 = vrot.slane %v2029, 4
      %v2032 = vshll.u32 %v1728, 16
      %v2034 = vrot.slane %v2032, 5
      %v2035 = vor.u32 %v2031, %v2034
      %v2036 = vrot.slane %v2035, 4
      %v2038 = vshll.u32 %v1729, 16
      %v2040 = vrot.slane %v2038, 5
      %v2041 = vsel %vm223, %v2036, %v2040
      %v2042 = vshrl.u32 %v1729, 16
      %v2044 = vrot.slane %v2042, 4
      %v2045 = vor.u32 %v2044, %v2040
      %v2046 = vrot.slane %v2045, 4
      %v2048 = vshll.u32 %v1730, 16
      %v2050 = vrot.slane %v2048, 5
      %v2051 = vsel %vm223, %v2046, %v2050
      %v2053 = vshrl.u32 %v1731, 16
      %v2055 = vrot.slane %v2053, 4
      %v2056 = vshll.u32 %v1731, 16
      %v2058 = vrot.slane %v2056, 5
      %v2059 = vor.u32 %v2055, %v2058
      %v2060 = vrot.slane %v2059, 4
      %v2062 = vshll.u32 %v1732, 16
      %v2064 = vrot.slane %v2062, 5
      %v2065 = vsel %vm223, %v2060, %v2064
      %v2066 = vshrl.u32 %v1732, 16
      %v2068 = vrot.slane %v2066, 4
      %v2069 = vor.u32 %v2068, %v2064
      %v2070 = vrot.slane %v2069, 4
      %v2072 = vshll.u32 %v1733, 16
      %v2074 = vrot.slane %v2072, 5
      %v2075 = vsel %vm223, %v2070, %v2074
      %v2077 = vshrl.u32 %v1734, 16
      %v2079 = vrot.slane %v2077, 4
      %v2080 = vshll.u32 %v1734, 16
      %v2082 = vrot.slane %v2080, 5
      %v2083 = vor.u32 %v2079, %v2082
      %v2084 = vrot.slane %v2083, 4
      %v2086 = vshll.u32 %v1735, 16
      %v2088 = vrot.slane %v2086, 5
      %v2089 = vsel %vm223, %v2084, %v2088
      %v2090 = vshrl.u32 %v1735, 16
      %v2092 = vrot.slane %v2090, 4
      %v2093 = vor.u32 %v2092, %v2088
      %v2094 = vrot.slane %v2093, 4
      %v2096 = vshll.u32 %v1736, 16
      %v2098 = vrot.slane %v2096, 5
      %v2099 = vsel %vm223, %v2094, %v2098
      %v2101 = vshrl.u32 %v1737, 16
      %v2103 = vrot.slane %v2101, 4
      %v2104 = vshll.u32 %v1737, 16
      %v2106 = vrot.slane %v2104, 5
      %v2107 = vor.u32 %v2103, %v2106
      %v2108 = vrot.slane %v2107, 4
      %v2110 = vshll.u32 %v1738, 16
      %v2112 = vrot.slane %v2110, 5
      %v2113 = vsel %vm223, %v2108, %v2112
      %v2114 = vshrl.u32 %v1738, 16
      %v2116 = vrot.slane %v2114, 4
      %v2117 = vor.u32 %v2116, %v2112
      %v2118 = vrot.slane %v2117, 4
      %v2120 = vshll.u32 %v1739, 16
      %v2122 = vrot.slane %v2120, 5
      %v2123 = vsel %vm223, %v2118, %v2122
      %s2124 = scalar_lea.vmem %s1, 16
      %v2125 = vld [vmem:[%s2124] sm:$0xf]
      %v2126 = vunpack.c.l.b16 %v1753
      %v2127 = vunpack.c.l.b16 %v1763
      %v2128 = vunpack.c.l.b16 %v1777
      %v2129 = vunpack.c.l.b16 %v1787
      %v2130 = vunpack.c.l.b16 %v1801
      %v2131 = vunpack.c.l.b16 %v1811
      %v2132 = vunpack.c.l.b16 %v1825
      %v2133 = vunpack.c.l.b16 %v1835
      %v2134 = vunpack.c.l.b16 %v1849
      %v2135 = vunpack.c.l.b16 %v1859
      %v2136 = vunpack.c.l.b16 %v1873
      %v2137 = vunpack.c.l.b16 %v1883
      %v2138 = vunpack.c.l.b16 %v1897
      %v2139 = vunpack.c.l.b16 %v1907
      %v2140 = vunpack.c.l.b16 %v1921
      %v2141 = vunpack.c.l.b16 %v1931
      %v2142 = vunpack.c.l.b16 %v1945
      %v2143 = vunpack.c.l.b16 %v1955
      %v2144 = vunpack.c.l.b16 %v1969
      %v2145 = vunpack.c.l.b16 %v1979
      %v2146 = vunpack.c.l.b16 %v1993
      %v2147 = vunpack.c.l.b16 %v2003
      %v2148 = vunpack.c.l.b16 %v2017
      %v2149 = vunpack.c.l.b16 %v2027
      %v2150 = vunpack.c.l.b16 %v2041
      %v2151 = vunpack.c.l.b16 %v2051
      %v2152 = vunpack.c.l.b16 %v2065
      %v2153 = vunpack.c.l.b16 %v2075
      %v2154 = vunpack.c.l.b16 %v2089
      %v2155 = vunpack.c.l.b16 %v2099
      %v2156 = vunpack.c.l.b16 %v2113
      %v2157 = vunpack.c.l.b16 %v2123
      %v2158 = vpack.c.b16 %v2127, %v2126
      %v2159 = vpack.c.b16 %v2129, %v2128
      %v2160 = vpack.c.b16 %v2131, %v2130
      %v2161 = vpack.c.b16 %v2133, %v2132
      %v2162 = vpack.c.b16 %v2135, %v2134
      %v2163 = vpack.c.b16 %v2137, %v2136
      %v2164 = vpack.c.b16 %v2139, %v2138
      %v2165 = vpack.c.b16 %v2141, %v2140
      %v2166 = vpack.c.b16 %v2143, %v2142
      %v2167 = vpack.c.b16 %v2145, %v2144
      %v2168 = vpack.c.b16 %v2147, %v2146
      %v2169 = vpack.c.b16 %v2149, %v2148
      %v2170 = vpack.c.b16 %v2151, %v2150
      %v2171 = vpack.c.b16 %v2153, %v2152
      %v2172 = vpack.c.b16 %v2155, %v2154
      %v2173 = vpack.c.b16 %v2157, %v2156
      %v2175 = vsel %vm658, %v2158, 0
      %v2178 = vsel %vm658, %v2159, 0
      %v2181 = vsel %vm658, %v2160, 0
      %v2184 = vsel %vm658, %v2161, 0
      %v2187 = vsel %vm658, %v2162, 0
      %v2190 = vsel %vm658, %v2163, 0
      %v2193 = vsel %vm658, %v2164, 0
      %v2196 = vsel %vm658, %v2165, 0
      %v2199 = vsel %vm658, %v2166, 0
      %v2202 = vsel %vm658, %v2167, 0
      %v2205 = vsel %vm658, %v2168, 0
      %v2208 = vsel %vm658, %v2169, 0
      %v2211 = vsel %vm658, %v2170, 0
      %v2214 = vsel %vm658, %v2171, 0
      %v2217 = vsel %vm658, %v2172, 0
      %v2220 = vsel %vm658, %v2173, 0
      %v2223 = vsel %vm707, %v2125, 0
      %2225 = vmatpush.bf16.msra.mxu0 0
      %2226 = vmatpush.bf16.msra.mxu0 0
      %2227 = vmatpush.bf16.msra.mxu0 0
      %2228 = vmatpush.bf16.msra.mxu0 0
      %2229 = vmatpush.bf16.msra.mxu0 0
      %2230 = vmatpush.bf16.msra.mxu0 0
      %2231 = vmatpush.bf16.msra.mxu0 0
      %2232 = vmatpush.bf16.msra.mxu0 %v2223
      %2233 = vmatmul.bf16.gmra.mxu0 %v2175
      %v2234 = vpop.f32.mrf.mxu0
      %v2235 = vadd.f32 0.0, %v2234
      %v2236 = vpop.f32.mrf.mxu0
      %v2237 = vadd.f32 0.0, %v2236
      %2238 = vmatmul.bf16.gmra.mxu0 %v2178
      %v2239 = vpop.f32.mrf.mxu0
      %v2240 = vadd.f32 0.0, %v2239
      %v2241 = vpop.f32.mrf.mxu0
      %v2242 = vadd.f32 0.0, %v2241
      %2243 = vmatmul.bf16.gmra.mxu0 %v2181
      %v2244 = vpop.f32.mrf.mxu0
      %v2245 = vadd.f32 0.0, %v2244
      %v2246 = vpop.f32.mrf.mxu0
      %v2247 = vadd.f32 0.0, %v2246
      %2248 = vmatmul.bf16.gmra.mxu0 %v2184
      %v2249 = vpop.f32.mrf.mxu0
      %v2250 = vadd.f32 0.0, %v2249
      %v2251 = vpop.f32.mrf.mxu0
      %v2252 = vadd.f32 0.0, %v2251
      %2253 = vmatmul.bf16.gmra.mxu0 %v2187
      %v2254 = vpop.f32.mrf.mxu0
      %v2255 = vadd.f32 0.0, %v2254
      %v2256 = vpop.f32.mrf.mxu0
      %v2257 = vadd.f32 0.0, %v2256
      %2258 = vmatmul.bf16.gmra.mxu0 %v2190
      %v2259 = vpop.f32.mrf.mxu0
      %v2260 = vadd.f32 0.0, %v2259
      %v2261 = vpop.f32.mrf.mxu0
      %v2262 = vadd.f32 0.0, %v2261
      %2263 = vmatmul.bf16.gmra.mxu0 %v2193
      %v2264 = vpop.f32.mrf.mxu0
      %v2265 = vadd.f32 0.0, %v2264
      %v2266 = vpop.f32.mrf.mxu0
      %v2267 = vadd.f32 0.0, %v2266
      %2268 = vmatmul.bf16.gmra.mxu0 %v2196
      %v2269 = vpop.f32.mrf.mxu0
      %v2270 = vadd.f32 0.0, %v2269
      %v2271 = vpop.f32.mrf.mxu0
      %v2272 = vadd.f32 0.0, %v2271
      %2273 = vmatmul.bf16.gmra.mxu0 %v2199
      %v2274 = vpop.f32.mrf.mxu0
      %v2275 = vadd.f32 0.0, %v2274
      %v2276 = vpop.f32.mrf.mxu0
      %v2277 = vadd.f32 0.0, %v2276
      %2278 = vmatmul.bf16.gmra.mxu0 %v2202
      %v2279 = vpop.f32.mrf.mxu0
      %v2280 = vadd.f32 0.0, %v2279
      %v2281 = vpop.f32.mrf.mxu0
      %v2282 = vadd.f32 0.0, %v2281
      %2283 = vmatmul.bf16.gmra.mxu0 %v2205
      %v2284 = vpop.f32.mrf.mxu0
      %v2285 = vadd.f32 0.0, %v2284
      %v2286 = vpop.f32.mrf.mxu0
      %v2287 = vadd.f32 0.0, %v2286
      %2288 = vmatmul.bf16.gmra.mxu0 %v2208
      %v2289 = vpop.f32.mrf.mxu0
      %v2290 = vadd.f32 0.0, %v2289
      %v2291 = vpop.f32.mrf.mxu0
      %v2292 = vadd.f32 0.0, %v2291
      %2293 = vmatmul.bf16.gmra.mxu0 %v2211
      %v2294 = vpop.f32.mrf.mxu0
      %v2295 = vadd.f32 0.0, %v2294
      %v2296 = vpop.f32.mrf.mxu0
      %v2297 = vadd.f32 0.0, %v2296
      %2298 = vmatmul.bf16.gmra.mxu0 %v2214
      %v2299 = vpop.f32.mrf.mxu0
      %v2300 = vadd.f32 0.0, %v2299
      %v2301 = vpop.f32.mrf.mxu0
      %v2302 = vadd.f32 0.0, %v2301
      %2303 = vmatmul.bf16.gmra.mxu0 %v2217
      %v2304 = vpop.f32.mrf.mxu0
      %v2305 = vadd.f32 0.0, %v2304
      %v2306 = vpop.f32.mrf.mxu0
      %v2307 = vadd.f32 0.0, %v2306
      %2308 = vmatmul.bf16.gmra.mxu0 %v2220
      %v2309 = vpop.f32.mrf.mxu0
      %v2310 = vadd.f32 0.0, %v2309
      %v2311 = vpop.f32.mrf.mxu0
      %v2312 = vadd.f32 0.0, %v2311
      %2313 = vdwg.mxu0
      %v2314 = vadd.f32 %v1660, %v2235
      %v2315 = vadd.f32 %v1661, %v2237
      %v2316 = vadd.f32 %v1662, %v2240
      %v2317 = vadd.f32 %v1663, %v2242
      %v2318 = vadd.f32 %v1664, %v2245
      %v2319 = vadd.f32 %v1665, %v2247
      %v2320 = vadd.f32 %v1666, %v2250
      %v2321 = vadd.f32 %v1667, %v2252
      %v2322 = vadd.f32 %v1668, %v2255
      %v2323 = vadd.f32 %v1669, %v2257
      %v2324 = vadd.f32 %v1670, %v2260
      %v2325 = vadd.f32 %v1671, %v2262
      %v2326 = vadd.f32 %v1672, %v2265
      %v2327 = vadd.f32 %v1673, %v2267
      %v2328 = vadd.f32 %v1674, %v2270
      %v2329 = vadd.f32 %v1675, %v2272
      %v2330 = vadd.f32 %v1676, %v2275
      %v2331 = vadd.f32 %v1677, %v2277
      %v2332 = vadd.f32 %v1678, %v2280
      %v2333 = vadd.f32 %v1679, %v2282
      %v2334 = vadd.f32 %v1680, %v2285
      %v2335 = vadd.f32 %v1681, %v2287
      %v2336 = vadd.f32 %v1682, %v2290
      %v2337 = vadd.f32 %v1683, %v2292
      %v2338 = vadd.f32 %v1684, %v2295
      %v2339 = vadd.f32 %v1685, %v2297
      %v2340 = vadd.f32 %v1686, %v2300
      %v2341 = vadd.f32 %v1687, %v2302
      %v2342 = vadd.f32 %v1688, %v2305
      %v2343 = vadd.f32 %v1689, %v2307
      %v2344 = vadd.f32 %v1690, %v2310
      %v2345 = vadd.f32 %v1691, %v2312
      %v2346 = vld [vmem:[%s1405] sm:$0xe]
      %v2347 = vld [vmem:[%s1405 + $0xc] sm:$0xe]
      %v2348 = vld [vmem:[%s1405 + $0x18] sm:$0xe]
      %v2349 = vld [vmem:[%s1405 + $0x24] sm:$0xe]
      %v2350 = vld [vmem:[%s1405 + $0x30] sm:$0xe]
      %v2351 = vld [vmem:[%s1405 + $0x3c] sm:$0xe]
      %v2352 = vld [vmem:[%s1405 + $0x48] sm:$0xe]
      %v2353 = vld [vmem:[%s1405 + $0x54] sm:$0xe]
      %v2354 = vld [vmem:[%s1405 + $0x60] sm:$0xe]
      %v2355 = vld [vmem:[%s1405 + $0x6c] sm:$0xe]
      %v2356 = vld [vmem:[%s1405 + $0x78] sm:$0xe]
      %v2357 = vld [vmem:[%s1405 + $0x84] sm:$0xe]
      %v2358 = vld [vmem:[%s1405 + $0x90] sm:$0xe]
      %v2359 = vld [vmem:[%s1405 + $0x9c] sm:$0xe]
      %v2360 = vld [vmem:[%s1405 + $0xa8] sm:$0xe]
      %v2361 = vld [vmem:[%s1405 + $0xb4] sm:$0xe]
      %v2410 = vrot.slane %v2346, 5
      %v2411 = vrot.slane %v2410, 4
      %v2412 = vrot.slane %v1693, 5
      %v2413 = vsel %vm1070, %v2411, %v2412
      %v2414 = vrot.slane %v2412, 4
      %v2415 = vrot.slane %v1694, 5
      %v2416 = vsel %vm1070, %v2414, %v2415
      %v2417 = vrot.slane %v2347, 5
      %v2418 = vrot.slane %v2417, 4
      %v2419 = vrot.slane %v1696, 5
      %v2420 = vsel %vm1070, %v2418, %v2419
      %v2421 = vrot.slane %v2419, 4
      %v2422 = vrot.slane %v1697, 5
      %v2423 = vsel %vm1070, %v2421, %v2422
      %v2424 = vrot.slane %v2348, 5
      %v2425 = vrot.slane %v2424, 4
      %v2426 = vrot.slane %v1699, 5
      %v2427 = vsel %vm1070, %v2425, %v2426
      %v2428 = vrot.slane %v2426, 4
      %v2429 = vrot.slane %v1700, 5
      %v2430 = vsel %vm1070, %v2428, %v2429
      %v2431 = vrot.slane %v2349, 5
      %v2432 = vrot.slane %v2431, 4
      %v2433 = vrot.slane %v1702, 5
      %v2434 = vsel %vm1070, %v2432, %v2433
      %v2435 = vrot.slane %v2433, 4
      %v2436 = vrot.slane %v1703, 5
      %v2437 = vsel %vm1070, %v2435, %v2436
      %v2438 = vrot.slane %v2350, 5
      %v2439 = vrot.slane %v2438, 4
      %v2440 = vrot.slane %v1705, 5
      %v2441 = vsel %vm1070, %v2439, %v2440
      %v2442 = vrot.slane %v2440, 4
      %v2443 = vrot.slane %v1706, 5
      %v2444 = vsel %vm1070, %v2442, %v2443
      %v2445 = vrot.slane %v2351, 5
      %v2446 = vrot.slane %v2445, 4
      %v2447 = vrot.slane %v1708, 5
      %v2448 = vsel %vm1070, %v2446, %v2447
      %v2449 = vrot.slane %v2447, 4
      %v2450 = vrot.slane %v1709, 5
      %v2451 = vsel %vm1070, %v2449, %v2450
      %v2452 = vrot.slane %v2352, 5
      %v2453 = vrot.slane %v2452, 4
      %v2454 = vrot.slane %v1711, 5
      %v2455 = vsel %vm1070, %v2453, %v2454
      %v2456 = vrot.slane %v2454, 4
      %v2457 = vrot.slane %v1712, 5
      %v2458 = vsel %vm1070, %v2456, %v2457
      %v2459 = vrot.slane %v2353, 5
      %v2460 = vrot.slane %v2459, 4
      %v2461 = vrot.slane %v1714, 5
      %v2462 = vsel %vm1070, %v2460, %v2461
      %v2463 = vrot.slane %v2461, 4
      %v2464 = vrot.slane %v1715, 5
      %v2465 = vsel %vm1070, %v2463, %v2464
      %v2466 = vrot.slane %v2354, 5
      %v2467 = vrot.slane %v2466, 4
      %v2468 = vrot.slane %v1717, 5
      %v2469 = vsel %vm1070, %v2467, %v2468
      %v2470 = vrot.slane %v2468, 4
      %v2471 = vrot.slane %v1718, 5
      %v2472 = vsel %vm1070, %v2470, %v2471
      %v2473 = vrot.slane %v2355, 5
      %v2474 = vrot.slane %v2473, 4
      %v2475 = vrot.slane %v1720, 5
      %v2476 = vsel %vm1070, %v2474, %v2475
      %v2477 = vrot.slane %v2475, 4
      %v2478 = vrot.slane %v1721, 5
      %v2479 = vsel %vm1070, %v2477, %v2478
      %v2480 = vrot.slane %v2356, 5
      %v2481 = vrot.slane %v2480, 4
      %v2482 = vrot.slane %v1723, 5
      %v2483 = vsel %vm1070, %v2481, %v2482
      %v2484 = vrot.slane %v2482, 4
      %v2485 = vrot.slane %v1724, 5
      %v2486 = vsel %vm1070, %v2484, %v2485
      %v2487 = vrot.slane %v2357, 5
      %v2488 = vrot.slane %v2487, 4
      %v2489 = vrot.slane %v1726, 5
      %v2490 = vsel %vm1070, %v2488, %v2489
      %v2491 = vrot.slane %v2489, 4
      %v2492 = vrot.slane %v1727, 5
      %v2493 = vsel %vm1070, %v2491, %v2492
      %v2494 = vrot.slane %v2358, 5
      %v2495 = vrot.slane %v2494, 4
      %v2496 = vrot.slane %v1729, 5
      %v2497 = vsel %vm1070, %v2495, %v2496
      %v2498 = vrot.slane %v2496, 4
      %v2499 = vrot.slane %v1730, 5
      %v2500 = vsel %vm1070, %v2498, %v2499
      %v2501 = vrot.slane %v2359, 5
      %v2502 = vrot.slane %v2501, 4
      %v2503 = vrot.slane %v1732, 5
      %v2504 = vsel %vm1070, %v2502, %v2503
      %v2505 = vrot.slane %v2503, 4
      %v2506 = vrot.slane %v1733, 5
      %v2507 = vsel %vm1070, %v2505, %v2506
      %v2508 = vrot.slane %v2360, 5
      %v2509 = vrot.slane %v2508, 4
      %v2510 = vrot.slane %v1735, 5
      %v2511 = vsel %vm1070, %v2509, %v2510
      %v2512 = vrot.slane %v2510, 4
      %v2513 = vrot.slane %v1736, 5
      %v2514 = vsel %vm1070, %v2512, %v2513
      %v2515 = vrot.slane %v2361, 5
      %v2516 = vrot.slane %v2515, 4
      %v2517 = vrot.slane %v1738, 5
      %v2518 = vsel %vm1070, %v2516, %v2517
      %v2519 = vrot.slane %v2517, 4
      %v2520 = vrot.slane %v1739, 5
      %v2521 = vsel %vm1070, %v2519, %v2520
      %s2522 = scalar_lea.vmem %s1, 20
      %v2523 = vld [vmem:[%s2522] sm:$0xf]
      %v2524 = vunpack.c.l.b16 %v2413
      %v2525 = vunpack.c.l.b16 %v2416
      %v2526 = vunpack.c.l.b16 %v2420
      %v2527 = vunpack.c.l.b16 %v2423
      %v2528 = vunpack.c.l.b16 %v2427
      %v2529 = vunpack.c.l.b16 %v2430
      %v2530 = vunpack.c.l.b16 %v2434
      %v2531 = vunpack.c.l.b16 %v2437
      %v2532 = vunpack.c.l.b16 %v2441
      %v2533 = vunpack.c.l.b16 %v2444
      %v2534 = vunpack.c.l.b16 %v2448
      %v2535 = vunpack.c.l.b16 %v2451
      %v2536 = vunpack.c.l.b16 %v2455
      %v2537 = vunpack.c.l.b16 %v2458
      %v2538 = vunpack.c.l.b16 %v2462
      %v2539 = vunpack.c.l.b16 %v2465
      %v2540 = vunpack.c.l.b16 %v2469
      %v2541 = vunpack.c.l.b16 %v2472
      %v2542 = vunpack.c.l.b16 %v2476
      %v2543 = vunpack.c.l.b16 %v2479
      %v2544 = vunpack.c.l.b16 %v2483
      %v2545 = vunpack.c.l.b16 %v2486
      %v2546 = vunpack.c.l.b16 %v2490
      %v2547 = vunpack.c.l.b16 %v2493
      %v2548 = vunpack.c.l.b16 %v2497
      %v2549 = vunpack.c.l.b16 %v2500
      %v2550 = vunpack.c.l.b16 %v2504
      %v2551 = vunpack.c.l.b16 %v2507
      %v2552 = vunpack.c.l.b16 %v2511
      %v2553 = vunpack.c.l.b16 %v2514
      %v2554 = vunpack.c.l.b16 %v2518
      %v2555 = vunpack.c.l.b16 %v2521
      %v2556 = vpack.c.b16 %v2525, %v2524
      %v2557 = vpack.c.b16 %v2527, %v2526
      %v2558 = vpack.c.b16 %v2529, %v2528
      %v2559 = vpack.c.b16 %v2531, %v2530
      %v2560 = vpack.c.b16 %v2533, %v2532
      %v2561 = vpack.c.b16 %v2535, %v2534
      %v2562 = vpack.c.b16 %v2537, %v2536
      %v2563 = vpack.c.b16 %v2539, %v2538
      %v2564 = vpack.c.b16 %v2541, %v2540
      %v2565 = vpack.c.b16 %v2543, %v2542
      %v2566 = vpack.c.b16 %v2545, %v2544
      %v2567 = vpack.c.b16 %v2547, %v2546
      %v2568 = vpack.c.b16 %v2549, %v2548
      %v2569 = vpack.c.b16 %v2551, %v2550
      %v2570 = vpack.c.b16 %v2553, %v2552
      %v2571 = vpack.c.b16 %v2555, %v2554
      %v2573 = vsel %vm658, %v2556, 0
      %v2576 = vsel %vm658, %v2557, 0
      %v2579 = vsel %vm658, %v2558, 0
      %v2582 = vsel %vm658, %v2559, 0
      %v2585 = vsel %vm658, %v2560, 0
      %v2588 = vsel %vm658, %v2561, 0
      %v2591 = vsel %vm658, %v2562, 0
      %v2594 = vsel %vm658, %v2563, 0
      %v2597 = vsel %vm658, %v2564, 0
      %v2600 = vsel %vm658, %v2565, 0
      %v2603 = vsel %vm658, %v2566, 0
      %v2606 = vsel %vm658, %v2567, 0
      %v2609 = vsel %vm658, %v2568, 0
      %v2612 = vsel %vm658, %v2569, 0
      %v2615 = vsel %vm658, %v2570, 0
      %v2618 = vsel %vm658, %v2571, 0
      %v2621 = vsel %vm707, %v2523, 0
      %2623 = vmatpush.bf16.msra.mxu0 0
      %2624 = vmatpush.bf16.msra.mxu0 0
      %2625 = vmatpush.bf16.msra.mxu0 0
      %2626 = vmatpush.bf16.msra.mxu0 0
      %2627 = vmatpush.bf16.msra.mxu0 0
      %2628 = vmatpush.bf16.msra.mxu0 0
      %2629 = vmatpush.bf16.msra.mxu0 0
      %2630 = vmatpush.bf16.msra.mxu0 %v2621
      %2631 = vmatmul.bf16.gmra.mxu0 %v2573
      %v2632 = vpop.f32.mrf.mxu0
      %v2633 = vadd.f32 0.0, %v2632
      %v2634 = vpop.f32.mrf.mxu0
      %v2635 = vadd.f32 0.0, %v2634
      %2636 = vmatmul.bf16.gmra.mxu0 %v2576
      %v2637 = vpop.f32.mrf.mxu0
      %v2638 = vadd.f32 0.0, %v2637
      %v2639 = vpop.f32.mrf.mxu0
      %v2640 = vadd.f32 0.0, %v2639
      %2641 = vmatmul.bf16.gmra.mxu0 %v2579
      %v2642 = vpop.f32.mrf.mxu0
      %v2643 = vadd.f32 0.0, %v2642
      %v2644 = vpop.f32.mrf.mxu0
      %v2645 = vadd.f32 0.0, %v2644
      %2646 = vmatmul.bf16.gmra.mxu0 %v2582
      %v2647 = vpop.f32.mrf.mxu0
      %v2648 = vadd.f32 0.0, %v2647
      %v2649 = vpop.f32.mrf.mxu0
      %v2650 = vadd.f32 0.0, %v2649
      %2651 = vmatmul.bf16.gmra.mxu0 %v2585
      %v2652 = vpop.f32.mrf.mxu0
      %v2653 = vadd.f32 0.0, %v2652
      %v2654 = vpop.f32.mrf.mxu0
      %v2655 = vadd.f32 0.0, %v2654
      %2656 = vmatmul.bf16.gmra.mxu0 %v2588
      %v2657 = vpop.f32.mrf.mxu0
      %v2658 = vadd.f32 0.0, %v2657
      %v2659 = vpop.f32.mrf.mxu0
      %v2660 = vadd.f32 0.0, %v2659
      %2661 = vmatmul.bf16.gmra.mxu0 %v2591
      %v2662 = vpop.f32.mrf.mxu0
      %v2663 = vadd.f32 0.0, %v2662
      %v2664 = vpop.f32.mrf.mxu0
      %v2665 = vadd.f32 0.0, %v2664
      %2666 = vmatmul.bf16.gmra.mxu0 %v2594
      %v2667 = vpop.f32.mrf.mxu0
      %v2668 = vadd.f32 0.0, %v2667
      %v2669 = vpop.f32.mrf.mxu0
      %v2670 = vadd.f32 0.0, %v2669
      %2671 = vmatmul.bf16.gmra.mxu0 %v2597
      %v2672 = vpop.f32.mrf.mxu0
      %v2673 = vadd.f32 0.0, %v2672
      %v2674 = vpop.f32.mrf.mxu0
      %v2675 = vadd.f32 0.0, %v2674
      %2676 = vmatmul.bf16.gmra.mxu0 %v2600
      %v2677 = vpop.f32.mrf.mxu0
      %v2678 = vadd.f32 0.0, %v2677
      %v2679 = vpop.f32.mrf.mxu0
      %v2680 = vadd.f32 0.0, %v2679
      %2681 = vmatmul.bf16.gmra.mxu0 %v2603
      %v2682 = vpop.f32.mrf.mxu0
      %v2683 = vadd.f32 0.0, %v2682
      %v2684 = vpop.f32.mrf.mxu0
      %v2685 = vadd.f32 0.0, %v2684
      %2686 = vmatmul.bf16.gmra.mxu0 %v2606
      %v2687 = vpop.f32.mrf.mxu0
      %v2688 = vadd.f32 0.0, %v2687
      %v2689 = vpop.f32.mrf.mxu0
      %v2690 = vadd.f32 0.0, %v2689
      %2691 = vmatmul.bf16.gmra.mxu0 %v2609
      %v2692 = vpop.f32.mrf.mxu0
      %v2693 = vadd.f32 0.0, %v2692
      %v2694 = vpop.f32.mrf.mxu0
      %v2695 = vadd.f32 0.0, %v2694
      %2696 = vmatmul.bf16.gmra.mxu0 %v2612
      %v2697 = vpop.f32.mrf.mxu0
      %v2698 = vadd.f32 0.0, %v2697
      %v2699 = vpop.f32.mrf.mxu0
      %v2700 = vadd.f32 0.0, %v2699
      %2701 = vmatmul.bf16.gmra.mxu0 %v2615
      %v2702 = vpop.f32.mrf.mxu0
      %v2703 = vadd.f32 0.0, %v2702
      %v2704 = vpop.f32.mrf.mxu0
      %v2705 = vadd.f32 0.0, %v2704
      %2706 = vmatmul.bf16.gmra.mxu0 %v2618
      %v2707 = vpop.f32.mrf.mxu0
      %v2708 = vadd.f32 0.0, %v2707
      %v2709 = vpop.f32.mrf.mxu0
      %v2710 = vadd.f32 0.0, %v2709
      %2711 = vdwg.mxu0
      %v2712 = vadd.f32 %v2314, %v2633
      %v2713 = vadd.f32 %v2315, %v2635
      %v2714 = vadd.f32 %v2316, %v2638
      %v2715 = vadd.f32 %v2317, %v2640
      %v2716 = vadd.f32 %v2318, %v2643
      %v2717 = vadd.f32 %v2319, %v2645
      %v2718 = vadd.f32 %v2320, %v2648
      %v2719 = vadd.f32 %v2321, %v2650
      %v2720 = vadd.f32 %v2322, %v2653
      %v2721 = vadd.f32 %v2323, %v2655
      %v2722 = vadd.f32 %v2324, %v2658
      %v2723 = vadd.f32 %v2325, %v2660
      %v2724 = vadd.f32 %v2326, %v2663
      %v2725 = vadd.f32 %v2327, %v2665
      %v2726 = vadd.f32 %v2328, %v2668
      %v2727 = vadd.f32 %v2329, %v2670
      %v2728 = vadd.f32 %v2330, %v2673
      %v2729 = vadd.f32 %v2331, %v2675
      %v2730 = vadd.f32 %v2332, %v2678
      %v2731 = vadd.f32 %v2333, %v2680
      %v2732 = vadd.f32 %v2334, %v2683
      %v2733 = vadd.f32 %v2335, %v2685
      %v2734 = vadd.f32 %v2336, %v2688
      %v2735 = vadd.f32 %v2337, %v2690
      %v2736 = vadd.f32 %v2338, %v2693
      %v2737 = vadd.f32 %v2339, %v2695
      %v2738 = vadd.f32 %v2340, %v2698
      %v2739 = vadd.f32 %v2341, %v2700
      %v2740 = vadd.f32 %v2342, %v2703
      %v2741 = vadd.f32 %v2343, %v2705
      %v2742 = vadd.f32 %v2344, %v2708
      %v2743 = vadd.f32 %v2345, %v2710
      %s2744 = scalar_lea.vmem %s165, 24
      %v2745 = vld [vmem:[%s2744] sm:$0xf]
      %v2746 = vld [vmem:[%s2744 + $0x4] sm:$0xf]
      %v2747 = vld [vmem:[%s2744 + $0xc] sm:$0xf]
      %v2748 = vld [vmem:[%s2744 + $0x10] sm:$0xf]
      %v2749 = vld [vmem:[%s2744 + $0x18] sm:$0xf]
      %v2750 = vld [vmem:[%s2744 + $0x1c] sm:$0xf]
      %v2751 = vld [vmem:[%s2744 + $0x24] sm:$0xf]
      %v2752 = vld [vmem:[%s2744 + $0x28] sm:$0xf]
      %v2753 = vld [vmem:[%s2744 + $0x30] sm:$0xf]
      %v2754 = vld [vmem:[%s2744 + $0x34] sm:$0xf]
      %v2755 = vld [vmem:[%s2744 + $0x3c] sm:$0xf]
      %v2756 = vld [vmem:[%s2744 + $0x40] sm:$0xf]
      %v2757 = vld [vmem:[%s2744 + $0x48] sm:$0xf]
      %v2758 = vld [vmem:[%s2744 + $0x4c] sm:$0xf]
      %v2759 = vld [vmem:[%s2744 + $0x54] sm:$0xf]
      %v2760 = vld [vmem:[%s2744 + $0x58] sm:$0xf]
      %v2761 = vld [vmem:[%s2744 + $0x60] sm:$0xf]
      %v2762 = vld [vmem:[%s2744 + $0x64] sm:$0xf]
      %v2763 = vld [vmem:[%s2744 + $0x6c] sm:$0xf]
      %v2764 = vld [vmem:[%s2744 + $0x70] sm:$0xf]
      %v2765 = vld [vmem:[%s2744 + $0x78] sm:$0xf]
      %v2766 = vld [vmem:[%s2744 + $0x7c] sm:$0xf]
      %v2767 = vld [vmem:[%s2744 + $0x84] sm:$0xf]
      %v2768 = vld [vmem:[%s2744 + $0x88] sm:$0xf]
      %v2769 = vld [vmem:[%s2744 + $0x90] sm:$0xf]
      %v2770 = vld [vmem:[%s2744 + $0x94] sm:$0xf]
      %v2771 = vld [vmem:[%s2744 + $0x9c] sm:$0xf]
      %v2772 = vld [vmem:[%s2744 + $0xa0] sm:$0xf]
      %v2773 = vld [vmem:[%s2744 + $0xa8] sm:$0xf]
      %v2774 = vld [vmem:[%s2744 + $0xac] sm:$0xf]
      %v2775 = vld [vmem:[%s2744 + $0xb4] sm:$0xf]
      %v2776 = vld [vmem:[%s2744 + $0xb8] sm:$0xf]
      %s2777 = scalar_lea.vmem %s1, 24
      %v2778 = vld [vmem:[%s2777] sm:$0xf]
      %v2811 = vunpack.c.l.b16 %v2745
      %v2812 = vunpack.c.l.b16 %v2746
      %v2813 = vunpack.c.l.b16 %v2747
      %v2814 = vunpack.c.l.b16 %v2748
      %v2815 = vunpack.c.l.b16 %v2749
      %v2816 = vunpack.c.l.b16 %v2750
      %v2817 = vunpack.c.l.b16 %v2751
      %v2818 = vunpack.c.l.b16 %v2752
      %v2819 = vunpack.c.l.b16 %v2753
      %v2820 = vunpack.c.l.b16 %v2754
      %v2821 = vunpack.c.l.b16 %v2755
      %v2822 = vunpack.c.l.b16 %v2756
      %v2823 = vunpack.c.l.b16 %v2757
      %v2824 = vunpack.c.l.b16 %v2758
      %v2825 = vunpack.c.l.b16 %v2759
      %v2826 = vunpack.c.l.b16 %v2760
      %v2827 = vunpack.c.l.b16 %v2761
      %v2828 = vunpack.c.l.b16 %v2762
      %v2829 = vunpack.c.l.b16 %v2763
      %v2830 = vunpack.c.l.b16 %v2764
      %v2831 = vunpack.c.l.b16 %v2765
      %v2832 = vunpack.c.l.b16 %v2766
      %v2833 = vunpack.c.l.b16 %v2767
      %v2834 = vunpack.c.l.b16 %v2768
      %v2835 = vunpack.c.l.b16 %v2769
      %v2836 = vunpack.c.l.b16 %v2770
      %v2837 = vunpack.c.l.b16 %v2771
      %v2838 = vunpack.c.l.b16 %v2772
      %v2839 = vunpack.c.l.b16 %v2773
      %v2840 = vunpack.c.l.b16 %v2774
      %v2841 = vunpack.c.l.b16 %v2775
      %v2842 = vunpack.c.l.b16 %v2776
      %v2843 = vpack.c.b16 %v2812, %v2811
      %v2844 = vpack.c.b16 %v2814, %v2813
      %v2845 = vpack.c.b16 %v2816, %v2815
      %v2846 = vpack.c.b16 %v2818, %v2817
      %v2847 = vpack.c.b16 %v2820, %v2819
      %v2848 = vpack.c.b16 %v2822, %v2821
      %v2849 = vpack.c.b16 %v2824, %v2823
      %v2850 = vpack.c.b16 %v2826, %v2825
      %v2851 = vpack.c.b16 %v2828, %v2827
      %v2852 = vpack.c.b16 %v2830, %v2829
      %v2853 = vpack.c.b16 %v2832, %v2831
      %v2854 = vpack.c.b16 %v2834, %v2833
      %v2855 = vpack.c.b16 %v2836, %v2835
      %v2856 = vpack.c.b16 %v2838, %v2837
      %v2857 = vpack.c.b16 %v2840, %v2839
      %v2858 = vpack.c.b16 %v2842, %v2841
      %v2860 = vsel %vm658, %v2843, 0
      %v2863 = vsel %vm658, %v2844, 0
      %v2866 = vsel %vm658, %v2845, 0
      %v2869 = vsel %vm658, %v2846, 0
      %v2872 = vsel %vm658, %v2847, 0
      %v2875 = vsel %vm658, %v2848, 0
      %v2878 = vsel %vm658, %v2849, 0
      %v2881 = vsel %vm658, %v2850, 0
      %v2884 = vsel %vm658, %v2851, 0
      %v2887 = vsel %vm658, %v2852, 0
      %v2890 = vsel %vm658, %v2853, 0
      %v2893 = vsel %vm658, %v2854, 0
      %v2896 = vsel %vm658, %v2855, 0
      %v2899 = vsel %vm658, %v2856, 0
      %v2902 = vsel %vm658, %v2857, 0
      %v2905 = vsel %vm658, %v2858, 0
      %v2908 = vsel %vm707, %v2778, 0
      %2910 = vmatpush.bf16.msra.mxu0 0
      %2911 = vmatpush.bf16.msra.mxu0 0
      %2912 = vmatpush.bf16.msra.mxu0 0
      %2913 = vmatpush.bf16.msra.mxu0 0
      %2914 = vmatpush.bf16.msra.mxu0 0
      %2915 = vmatpush.bf16.msra.mxu0 0
      %2916 = vmatpush.bf16.msra.mxu0 0
      %2917 = vmatpush.bf16.msra.mxu0 %v2908
      %2918 = vmatmul.bf16.gmra.mxu0 %v2860
      %v2919 = vpop.f32.mrf.mxu0
      %v2920 = vadd.f32 0.0, %v2919
      %v2921 = vpop.f32.mrf.mxu0
      %v2922 = vadd.f32 0.0, %v2921
      %2923 = vmatmul.bf16.gmra.mxu0 %v2863
      %v2924 = vpop.f32.mrf.mxu0
      %v2925 = vadd.f32 0.0, %v2924
      %v2926 = vpop.f32.mrf.mxu0
      %v2927 = vadd.f32 0.0, %v2926
      %2928 = vmatmul.bf16.gmra.mxu0 %v2866
      %v2929 = vpop.f32.mrf.mxu0
      %v2930 = vadd.f32 0.0, %v2929
      %v2931 = vpop.f32.mrf.mxu0
      %v2932 = vadd.f32 0.0, %v2931
      %2933 = vmatmul.bf16.gmra.mxu0 %v2869
      %v2934 = vpop.f32.mrf.mxu0
      %v2935 = vadd.f32 0.0, %v2934
      %v2936 = vpop.f32.mrf.mxu0
      %v2937 = vadd.f32 0.0, %v2936
      %2938 = vmatmul.bf16.gmra.mxu0 %v2872
      %v2939 = vpop.f32.mrf.mxu0
      %v2940 = vadd.f32 0.0, %v2939
      %v2941 = vpop.f32.mrf.mxu0
      %v2942 = vadd.f32 0.0, %v2941
      %2943 = vmatmul.bf16.gmra.mxu0 %v2875
      %v2944 = vpop.f32.mrf.mxu0
      %v2945 = vadd.f32 0.0, %v2944
      %v2946 = vpop.f32.mrf.mxu0
      %v2947 = vadd.f32 0.0, %v2946
      %2948 = vmatmul.bf16.gmra.mxu0 %v2878
      %v2949 = vpop.f32.mrf.mxu0
      %v2950 = vadd.f32 0.0, %v2949
      %v2951 = vpop.f32.mrf.mxu0
      %v2952 = vadd.f32 0.0, %v2951
      %2953 = vmatmul.bf16.gmra.mxu0 %v2881
      %v2954 = vpop.f32.mrf.mxu0
      %v2955 = vadd.f32 0.0, %v2954
      %v2956 = vpop.f32.mrf.mxu0
      %v2957 = vadd.f32 0.0, %v2956
      %2958 = vmatmul.bf16.gmra.mxu0 %v2884
      %v2959 = vpop.f32.mrf.mxu0
      %v2960 = vadd.f32 0.0, %v2959
      %v2961 = vpop.f32.mrf.mxu0
      %v2962 = vadd.f32 0.0, %v2961
      %2963 = vmatmul.bf16.gmra.mxu0 %v2887
      %v2964 = vpop.f32.mrf.mxu0
      %v2965 = vadd.f32 0.0, %v2964
      %v2966 = vpop.f32.mrf.mxu0
      %v2967 = vadd.f32 0.0, %v2966
      %2968 = vmatmul.bf16.gmra.mxu0 %v2890
      %v2969 = vpop.f32.mrf.mxu0
      %v2970 = vadd.f32 0.0, %v2969
      %v2971 = vpop.f32.mrf.mxu0
      %v2972 = vadd.f32 0.0, %v2971
      %2973 = vmatmul.bf16.gmra.mxu0 %v2893
      %v2974 = vpop.f32.mrf.mxu0
      %v2975 = vadd.f32 0.0, %v2974
      %v2976 = vpop.f32.mrf.mxu0
      %v2977 = vadd.f32 0.0, %v2976
      %2978 = vmatmul.bf16.gmra.mxu0 %v2896
      %v2979 = vpop.f32.mrf.mxu0
      %v2980 = vadd.f32 0.0, %v2979
      %v2981 = vpop.f32.mrf.mxu0
      %v2982 = vadd.f32 0.0, %v2981
      %2983 = vmatmul.bf16.gmra.mxu0 %v2899
      %v2984 = vpop.f32.mrf.mxu0
      %v2985 = vadd.f32 0.0, %v2984
      %v2986 = vpop.f32.mrf.mxu0
      %v2987 = vadd.f32 0.0, %v2986
      %2988 = vmatmul.bf16.gmra.mxu0 %v2902
      %v2989 = vpop.f32.mrf.mxu0
      %v2990 = vadd.f32 0.0, %v2989
      %v2991 = vpop.f32.mrf.mxu0
      %v2992 = vadd.f32 0.0, %v2991
      %2993 = vmatmul.bf16.gmra.mxu0 %v2905
      %v2994 = vpop.f32.mrf.mxu0
      %v2995 = vadd.f32 0.0, %v2994
      %v2996 = vpop.f32.mrf.mxu0
      %v2997 = vadd.f32 0.0, %v2996
      %2998 = vdwg.mxu0
      %v2999 = vadd.f32 %v2712, %v2920
      %v3000 = vadd.f32 %v2713, %v2922
      %v3001 = vadd.f32 %v2714, %v2925
      %v3002 = vadd.f32 %v2715, %v2927
      %v3003 = vadd.f32 %v2716, %v2930
      %v3004 = vadd.f32 %v2717, %v2932
      %v3005 = vadd.f32 %v2718, %v2935
      %v3006 = vadd.f32 %v2719, %v2937
      %v3007 = vadd.f32 %v2720, %v2940
      %v3008 = vadd.f32 %v2721, %v2942
      %v3009 = vadd.f32 %v2722, %v2945
      %v3010 = vadd.f32 %v2723, %v2947
      %v3011 = vadd.f32 %v2724, %v2950
      %v3012 = vadd.f32 %v2725, %v2952
      %v3013 = vadd.f32 %v2726, %v2955
      %v3014 = vadd.f32 %v2727, %v2957
      %v3015 = vadd.f32 %v2728, %v2960
      %v3016 = vadd.f32 %v2729, %v2962
      %v3017 = vadd.f32 %v2730, %v2965
      %v3018 = vadd.f32 %v2731, %v2967
      %v3019 = vadd.f32 %v2732, %v2970
      %v3020 = vadd.f32 %v2733, %v2972
      %v3021 = vadd.f32 %v2734, %v2975
      %v3022 = vadd.f32 %v2735, %v2977
      %v3023 = vadd.f32 %v2736, %v2980
      %v3024 = vadd.f32 %v2737, %v2982
      %v3025 = vadd.f32 %v2738, %v2985
      %v3026 = vadd.f32 %v2739, %v2987
      %v3027 = vadd.f32 %v2740, %v2990
      %v3028 = vadd.f32 %v2741, %v2992
      %v3029 = vadd.f32 %v2742, %v2995
      %v3030 = vadd.f32 %v2743, %v2997
      %v3031 = vld [vmem:[%s2744] sm:$0xf]
      %v3032 = vld [vmem:[%s2744 + $0x4] sm:$0xf]
      %v3033 = vld [vmem:[%s2744 + $0x8] sm:$0x1]
      %v3034 = vld [vmem:[%s2744 + $0xc] sm:$0xf]
      %v3035 = vld [vmem:[%s2744 + $0x10] sm:$0xf]
      %v3036 = vld [vmem:[%s2744 + $0x14] sm:$0x1]
      %v3037 = vld [vmem:[%s2744 + $0x18] sm:$0xf]
      %v3038 = vld [vmem:[%s2744 + $0x1c] sm:$0xf]
      %v3039 = vld [vmem:[%s2744 + $0x20] sm:$0x1]
      %v3040 = vld [vmem:[%s2744 + $0x24] sm:$0xf]
      %v3041 = vld [vmem:[%s2744 + $0x28] sm:$0xf]
      %v3042 = vld [vmem:[%s2744 + $0x2c] sm:$0x1]
      %v3043 = vld [vmem:[%s2744 + $0x30] sm:$0xf]
      %v3044 = vld [vmem:[%s2744 + $0x34] sm:$0xf]
      %v3045 = vld [vmem:[%s2744 + $0x38] sm:$0x1]
      %v3046 = vld [vmem:[%s2744 + $0x3c] sm:$0xf]
      %v3047 = vld [vmem:[%s2744 + $0x40] sm:$0xf]
      %v3048 = vld [vmem:[%s2744 + $0x44] sm:$0x1]
      %v3049 = vld [vmem:[%s2744 + $0x48] sm:$0xf]
      %v3050 = vld [vmem:[%s2744 + $0x4c] sm:$0xf]
      %v3051 = vld [vmem:[%s2744 + $0x50] sm:$0x1]
      %v3052 = vld [vmem:[%s2744 + $0x54] sm:$0xf]
      %v3053 = vld [vmem:[%s2744 + $0x58] sm:$0xf]
      %v3054 = vld [vmem:[%s2744 + $0x5c] sm:$0x1]
      %v3055 = vld [vmem:[%s2744 + $0x60] sm:$0xf]
      %v3056 = vld [vmem:[%s2744 + $0x64] sm:$0xf]
      %v3057 = vld [vmem:[%s2744 + $0x68] sm:$0x1]
      %v3058 = vld [vmem:[%s2744 + $0x6c] sm:$0xf]
      %v3059 = vld [vmem:[%s2744 + $0x70] sm:$0xf]
      %v3060 = vld [vmem:[%s2744 + $0x74] sm:$0x1]
      %v3061 = vld [vmem:[%s2744 + $0x78] sm:$0xf]
      %v3062 = vld [vmem:[%s2744 + $0x7c] sm:$0xf]
      %v3063 = vld [vmem:[%s2744 + $0x80] sm:$0x1]
      %v3064 = vld [vmem:[%s2744 + $0x84] sm:$0xf]
      %v3065 = vld [vmem:[%s2744 + $0x88] sm:$0xf]
      %v3066 = vld [vmem:[%s2744 + $0x8c] sm:$0x1]
      %v3067 = vld [vmem:[%s2744 + $0x90] sm:$0xf]
      %v3068 = vld [vmem:[%s2744 + $0x94] sm:$0xf]
      %v3069 = vld [vmem:[%s2744 + $0x98] sm:$0x1]
      %v3070 = vld [vmem:[%s2744 + $0x9c] sm:$0xf]
      %v3071 = vld [vmem:[%s2744 + $0xa0] sm:$0xf]
      %v3072 = vld [vmem:[%s2744 + $0xa4] sm:$0x1]
      %v3073 = vld [vmem:[%s2744 + $0xa8] sm:$0xf]
      %v3074 = vld [vmem:[%s2744 + $0xac] sm:$0xf]
      %v3075 = vld [vmem:[%s2744 + $0xb0] sm:$0x1]
      %v3076 = vld [vmem:[%s2744 + $0xb4] sm:$0xf]
      %v3077 = vld [vmem:[%s2744 + $0xb8] sm:$0xf]
      %v3078 = vld [vmem:[%s2744 + $0xbc] sm:$0x1]
      %v3080 = vshrl.u32 %v3031, 16
      %v3082 = vrot.slane %v3080, 4
      %v3083 = vshll.u32 %v3031, 16
      %v3085 = vrot.slane %v3083, 5
      %v3086 = vor.u32 %v3082, %v3085
      %v3087 = vrot.slane %v3086, 4
      %v3089 = vshll.u32 %v3032, 16
      %v3091 = vrot.slane %v3089, 5
      %v3092 = vsel %vm223, %v3087, %v3091
      %v3093 = vshrl.u32 %v3032, 16
      %v3095 = vrot.slane %v3093, 4
      %v3096 = vor.u32 %v3095, %v3091
      %v3097 = vrot.slane %v3096, 4
      %v3099 = vshll.u32 %v3033, 16
      %v3101 = vrot.slane %v3099, 5
      %v3102 = vsel %vm223, %v3097, %v3101
      %v3104 = vshrl.u32 %v3034, 16
      %v3106 = vrot.slane %v3104, 4
      %v3107 = vshll.u32 %v3034, 16
      %v3109 = vrot.slane %v3107, 5
      %v3110 = vor.u32 %v3106, %v3109
      %v3111 = vrot.slane %v3110, 4
      %v3113 = vshll.u32 %v3035, 16
      %v3115 = vrot.slane %v3113, 5
      %v3116 = vsel %vm223, %v3111, %v3115
      %v3117 = vshrl.u32 %v3035, 16
      %v3119 = vrot.slane %v3117, 4
      %v3120 = vor.u32 %v3119, %v3115
      %v3121 = vrot.slane %v3120, 4
      %v3123 = vshll.u32 %v3036, 16
      %v3125 = vrot.slane %v3123, 5
      %v3126 = vsel %vm223, %v3121, %v3125
      %v3128 = vshrl.u32 %v3037, 16
      %v3130 = vrot.slane %v3128, 4
      %v3131 = vshll.u32 %v3037, 16
      %v3133 = vrot.slane %v3131, 5
      %v3134 = vor.u32 %v3130, %v3133
      %v3135 = vrot.slane %v3134, 4
      %v3137 = vshll.u32 %v3038, 16
      %v3139 = vrot.slane %v3137, 5
      %v3140 = vsel %vm223, %v3135, %v3139
      %v3141 = vshrl.u32 %v3038, 16
      %v3143 = vrot.slane %v3141, 4
      %v3144 = vor.u32 %v3143, %v3139
      %v3145 = vrot.slane %v3144, 4
      %v3147 = vshll.u32 %v3039, 16
      %v3149 = vrot.slane %v3147, 5
      %v3150 = vsel %vm223, %v3145, %v3149
      %v3152 = vshrl.u32 %v3040, 16
      %v3154 = vrot.slane %v3152, 4
      %v3155 = vshll.u32 %v3040, 16
      %v3157 = vrot.slane %v3155, 5
      %v3158 = vor.u32 %v3154, %v3157
      %v3159 = vrot.slane %v3158, 4
      %v3161 = vshll.u32 %v3041, 16
      %v3163 = vrot.slane %v3161, 5
      %v3164 = vsel %vm223, %v3159, %v3163
      %v3165 = vshrl.u32 %v3041, 16
      %v3167 = vrot.slane %v3165, 4
      %v3168 = vor.u32 %v3167, %v3163
      %v3169 = vrot.slane %v3168, 4
      %v3171 = vshll.u32 %v3042, 16
      %v3173 = vrot.slane %v3171, 5
      %v3174 = vsel %vm223, %v3169, %v3173
      %v3176 = vshrl.u32 %v3043, 16
      %v3178 = vrot.slane %v3176, 4
      %v3179 = vshll.u32 %v3043, 16
      %v3181 = vrot.slane %v3179, 5
      %v3182 = vor.u32 %v3178, %v3181
      %v3183 = vrot.slane %v3182, 4
      %v3185 = vshll.u32 %v3044, 16
      %v3187 = vrot.slane %v3185, 5
      %v3188 = vsel %vm223, %v3183, %v3187
      %v3189 = vshrl.u32 %v3044, 16
      %v3191 = vrot.slane %v3189, 4
      %v3192 = vor.u32 %v3191, %v3187
      %v3193 = vrot.slane %v3192, 4
      %v3195 = vshll.u32 %v3045, 16
      %v3197 = vrot.slane %v3195, 5
      %v3198 = vsel %vm223, %v3193, %v3197
      %v3200 = vshrl.u32 %v3046, 16
      %v3202 = vrot.slane %v3200, 4
      %v3203 = vshll.u32 %v3046, 16
      %v3205 = vrot.slane %v3203, 5
      %v3206 = vor.u32 %v3202, %v3205
      %v3207 = vrot.slane %v3206, 4
      %v3209 = vshll.u32 %v3047, 16
      %v3211 = vrot.slane %v3209, 5
      %v3212 = vsel %vm223, %v3207, %v3211
      %v3213 = vshrl.u32 %v3047, 16
      %v3215 = vrot.slane %v3213, 4
      %v3216 = vor.u32 %v3215, %v3211
      %v3217 = vrot.slane %v3216, 4
      %v3219 = vshll.u32 %v3048, 16
      %v3221 = vrot.slane %v3219, 5
      %v3222 = vsel %vm223, %v3217, %v3221
      %v3224 = vshrl.u32 %v3049, 16
      %v3226 = vrot.slane %v3224, 4
      %v3227 = vshll.u32 %v3049, 16
      %v3229 = vrot.slane %v3227, 5
      %v3230 = vor.u32 %v3226, %v3229
      %v3231 = vrot.slane %v3230, 4
      %v3233 = vshll.u32 %v3050, 16
      %v3235 = vrot.slane %v3233, 5
      %v3236 = vsel %vm223, %v3231, %v3235
      %v3237 = vshrl.u32 %v3050, 16
      %v3239 = vrot.slane %v3237, 4
      %v3240 = vor.u32 %v3239, %v3235
      %v3241 = vrot.slane %v3240, 4
      %v3243 = vshll.u32 %v3051, 16
      %v3245 = vrot.slane %v3243, 5
      %v3246 = vsel %vm223, %v3241, %v3245
      %v3248 = vshrl.u32 %v3052, 16
      %v3250 = vrot.slane %v3248, 4
      %v3251 = vshll.u32 %v3052, 16
      %v3253 = vrot.slane %v3251, 5
      %v3254 = vor.u32 %v3250, %v3253
      %v3255 = vrot.slane %v3254, 4
      %v3257 = vshll.u32 %v3053, 16
      %v3259 = vrot.slane %v3257, 5
      %v3260 = vsel %vm223, %v3255, %v3259
      %v3261 = vshrl.u32 %v3053, 16
      %v3263 = vrot.slane %v3261, 4
      %v3264 = vor.u32 %v3263, %v3259
      %v3265 = vrot.slane %v3264, 4
      %v3267 = vshll.u32 %v3054, 16
      %v3269 = vrot.slane %v3267, 5
      %v3270 = vsel %vm223, %v3265, %v3269
      %v3272 = vshrl.u32 %v3055, 16
      %v3274 = vrot.slane %v3272, 4
      %v3275 = vshll.u32 %v3055, 16
      %v3277 = vrot.slane %v3275, 5
      %v3278 = vor.u32 %v3274, %v3277
      %v3279 = vrot.slane %v3278, 4
      %v3281 = vshll.u32 %v3056, 16
      %v3283 = vrot.slane %v3281, 5
      %v3284 = vsel %vm223, %v3279, %v3283
      %v3285 = vshrl.u32 %v3056, 16
      %v3287 = vrot.slane %v3285, 4
      %v3288 = vor.u32 %v3287, %v3283
      %v3289 = vrot.slane %v3288, 4
      %v3291 = vshll.u32 %v3057, 16
      %v3293 = vrot.slane %v3291, 5
      %v3294 = vsel %vm223, %v3289, %v3293
      %v3296 = vshrl.u32 %v3058, 16
      %v3298 = vrot.slane %v3296, 4
      %v3299 = vshll.u32 %v3058, 16
      %v3301 = vrot.slane %v3299, 5
      %v3302 = vor.u32 %v3298, %v3301
      %v3303 = vrot.slane %v3302, 4
      %v3305 = vshll.u32 %v3059, 16
      %v3307 = vrot.slane %v3305, 5
      %v3308 = vsel %vm223, %v3303, %v3307
      %v3309 = vshrl.u32 %v3059, 16
      %v3311 = vrot.slane %v3309, 4
      %v3312 = vor.u32 %v3311, %v3307
      %v3313 = vrot.slane %v3312, 4
      %v3315 = vshll.u32 %v3060, 16
      %v3317 = vrot.slane %v3315, 5
      %v3318 = vsel %vm223, %v3313, %v3317
      %v3320 = vshrl.u32 %v3061, 16
      %v3322 = vrot.slane %v3320, 4
      %v3323 = vshll.u32 %v3061, 16
      %v3325 = vrot.slane %v3323, 5
      %v3326 = vor.u32 %v3322, %v3325
      %v3327 = vrot.slane %v3326, 4
      %v3329 = vshll.u32 %v3062, 16
      %v3331 = vrot.slane %v3329, 5
      %v3332 = vsel %vm223, %v3327, %v3331
      %v3333 = vshrl.u32 %v3062, 16
      %v3335 = vrot.slane %v3333, 4
      %v3336 = vor.u32 %v3335, %v3331
      %v3337 = vrot.slane %v3336, 4
      %v3339 = vshll.u32 %v3063, 16
      %v3341 = vrot.slane %v3339, 5
      %v3342 = vsel %vm223, %v3337, %v3341
      %v3344 = vshrl.u32 %v3064, 16
      %v3346 = vrot.slane %v3344, 4
      %v3347 = vshll.u32 %v3064, 16
      %v3349 = vrot.slane %v3347, 5
      %v3350 = vor.u32 %v3346, %v3349
      %v3351 = vrot.slane %v3350, 4
      %v3353 = vshll.u32 %v3065, 16
      %v3355 = vrot.slane %v3353, 5
      %v3356 = vsel %vm223, %v3351, %v3355
      %v3357 = vshrl.u32 %v3065, 16
      %v3359 = vrot.slane %v3357, 4
      %v3360 = vor.u32 %v3359, %v3355
      %v3361 = vrot.slane %v3360, 4
      %v3363 = vshll.u32 %v3066, 16
      %v3365 = vrot.slane %v3363, 5
      %v3366 = vsel %vm223, %v3361, %v3365
      %v3368 = vshrl.u32 %v3067, 16
      %v3370 = vrot.slane %v3368, 4
      %v3371 = vshll.u32 %v3067, 16
      %v3373 = vrot.slane %v3371, 5
      %v3374 = vor.u32 %v3370, %v3373
      %v3375 = vrot.slane %v3374, 4
      %v3377 = vshll.u32 %v3068, 16
      %v3379 = vrot.slane %v3377, 5
      %v3380 = vsel %vm223, %v3375, %v3379
      %v3381 = vshrl.u32 %v3068, 16
      %v3383 = vrot.slane %v3381, 4
      %v3384 = vor.u32 %v3383, %v3379
      %v3385 = vrot.slane %v3384, 4
      %v3387 = vshll.u32 %v3069, 16
      %v3389 = vrot.slane %v3387, 5
      %v3390 = vsel %vm223, %v3385, %v3389
      %v3392 = vshrl.u32 %v3070, 16
      %v3394 = vrot.slane %v3392, 4
      %v3395 = vshll.u32 %v3070, 16
      %v3397 = vrot.slane %v3395, 5
      %v3398 = vor.u32 %v3394, %v3397
      %v3399 = vrot.slane %v3398, 4
      %v3401 = vshll.u32 %v3071, 16
      %v3403 = vrot.slane %v3401, 5
      %v3404 = vsel %vm223, %v3399, %v3403
      %v3405 = vshrl.u32 %v3071, 16
      %v3407 = vrot.slane %v3405, 4
      %v3408 = vor.u32 %v3407, %v3403
      %v3409 = vrot.slane %v3408, 4
      %v3411 = vshll.u32 %v3072, 16
      %v3413 = vrot.slane %v3411, 5
      %v3414 = vsel %vm223, %v3409, %v3413
      %v3416 = vshrl.u32 %v3073, 16
      %v3418 = vrot.slane %v3416, 4
      %v3419 = vshll.u32 %v3073, 16
      %v3421 = vrot.slane %v3419, 5
      %v3422 = vor.u32 %v3418, %v3421
      %v3423 = vrot.slane %v3422, 4
      %v3425 = vshll.u32 %v3074, 16
      %v3427 = vrot.slane %v3425, 5
      %v3428 = vsel %vm223, %v3423, %v3427
      %v3429 = vshrl.u32 %v3074, 16
      %v3431 = vrot.slane %v3429, 4
      %v3432 = vor.u32 %v3431, %v3427
      %v3433 = vrot.slane %v3432, 4
      %v3435 = vshll.u32 %v3075, 16
      %v3437 = vrot.slane %v3435, 5
      %v3438 = vsel %vm223, %v3433, %v3437
      %v3440 = vshrl.u32 %v3076, 16
      %v3442 = vrot.slane %v3440, 4
      %v3443 = vshll.u32 %v3076, 16
      %v3445 = vrot.slane %v3443, 5
      %v3446 = vor.u32 %v3442, %v3445
      %v3447 = vrot.slane %v3446, 4
      %v3449 = vshll.u32 %v3077, 16
      %v3451 = vrot.slane %v3449, 5
      %v3452 = vsel %vm223, %v3447, %v3451
      %v3453 = vshrl.u32 %v3077, 16
      %v3455 = vrot.slane %v3453, 4
      %v3456 = vor.u32 %v3455, %v3451
      %v3457 = vrot.slane %v3456, 4
      %v3459 = vshll.u32 %v3078, 16
      %v3461 = vrot.slane %v3459, 5
      %v3462 = vsel %vm223, %v3457, %v3461
      %s3463 = scalar_lea.vmem %s1, 28
      %v3464 = vld [vmem:[%s3463] sm:$0xf]
      %v3465 = vunpack.c.l.b16 %v3092
      %v3466 = vunpack.c.l.b16 %v3102
      %v3467 = vunpack.c.l.b16 %v3116
      %v3468 = vunpack.c.l.b16 %v3126
      %v3469 = vunpack.c.l.b16 %v3140
      %v3470 = vunpack.c.l.b16 %v3150
      %v3471 = vunpack.c.l.b16 %v3164
      %v3472 = vunpack.c.l.b16 %v3174
      %v3473 = vunpack.c.l.b16 %v3188
      %v3474 = vunpack.c.l.b16 %v3198
      %v3475 = vunpack.c.l.b16 %v3212
      %v3476 = vunpack.c.l.b16 %v3222
      %v3477 = vunpack.c.l.b16 %v3236
      %v3478 = vunpack.c.l.b16 %v3246
      %v3479 = vunpack.c.l.b16 %v3260
      %v3480 = vunpack.c.l.b16 %v3270
      %v3481 = vunpack.c.l.b16 %v3284
      %v3482 = vunpack.c.l.b16 %v3294
      %v3483 = vunpack.c.l.b16 %v3308
      %v3484 = vunpack.c.l.b16 %v3318
      %v3485 = vunpack.c.l.b16 %v3332
      %v3486 = vunpack.c.l.b16 %v3342
      %v3487 = vunpack.c.l.b16 %v3356
      %v3488 = vunpack.c.l.b16 %v3366
      %v3489 = vunpack.c.l.b16 %v3380
      %v3490 = vunpack.c.l.b16 %v3390
      %v3491 = vunpack.c.l.b16 %v3404
      %v3492 = vunpack.c.l.b16 %v3414
      %v3493 = vunpack.c.l.b16 %v3428
      %v3494 = vunpack.c.l.b16 %v3438
      %v3495 = vunpack.c.l.b16 %v3452
      %v3496 = vunpack.c.l.b16 %v3462
      %v3497 = vpack.c.b16 %v3466, %v3465
      %v3498 = vpack.c.b16 %v3468, %v3467
      %v3499 = vpack.c.b16 %v3470, %v3469
      %v3500 = vpack.c.b16 %v3472, %v3471
      %v3501 = vpack.c.b16 %v3474, %v3473
      %v3502 = vpack.c.b16 %v3476, %v3475
      %v3503 = vpack.c.b16 %v3478, %v3477
      %v3504 = vpack.c.b16 %v3480, %v3479
      %v3505 = vpack.c.b16 %v3482, %v3481
      %v3506 = vpack.c.b16 %v3484, %v3483
      %v3507 = vpack.c.b16 %v3486, %v3485
      %v3508 = vpack.c.b16 %v3488, %v3487
      %v3509 = vpack.c.b16 %v3490, %v3489
      %v3510 = vpack.c.b16 %v3492, %v3491
      %v3511 = vpack.c.b16 %v3494, %v3493
      %v3512 = vpack.c.b16 %v3496, %v3495
      %v3514 = vsel %vm658, %v3497, 0
      %v3517 = vsel %vm658, %v3498, 0
      %v3520 = vsel %vm658, %v3499, 0
      %v3523 = vsel %vm658, %v3500, 0
      %v3526 = vsel %vm658, %v3501, 0
      %v3529 = vsel %vm658, %v3502, 0
      %v3532 = vsel %vm658, %v3503, 0
      %v3535 = vsel %vm658, %v3504, 0
      %v3538 = vsel %vm658, %v3505, 0
      %v3541 = vsel %vm658, %v3506, 0
      %v3544 = vsel %vm658, %v3507, 0
      %v3547 = vsel %vm658, %v3508, 0
      %v3550 = vsel %vm658, %v3509, 0
      %v3553 = vsel %vm658, %v3510, 0
      %v3556 = vsel %vm658, %v3511, 0
      %v3559 = vsel %vm658, %v3512, 0
      %v3562 = vsel %vm707, %v3464, 0
      %3564 = vmatpush.bf16.msra.mxu0 0
      %3565 = vmatpush.bf16.msra.mxu0 0
      %3566 = vmatpush.bf16.msra.mxu0 0
      %3567 = vmatpush.bf16.msra.mxu0 0
      %3568 = vmatpush.bf16.msra.mxu0 0
      %3569 = vmatpush.bf16.msra.mxu0 0
      %3570 = vmatpush.bf16.msra.mxu0 0
      %3571 = vmatpush.bf16.msra.mxu0 %v3562
      %3572 = vmatmul.bf16.gmra.mxu0 %v3514
      %v3573 = vpop.f32.mrf.mxu0
      %v3574 = vadd.f32 0.0, %v3573
      %v3575 = vpop.f32.mrf.mxu0
      %v3576 = vadd.f32 0.0, %v3575
      %3577 = vmatmul.bf16.gmra.mxu0 %v3517
      %v3578 = vpop.f32.mrf.mxu0
      %v3579 = vadd.f32 0.0, %v3578
      %v3580 = vpop.f32.mrf.mxu0
      %v3581 = vadd.f32 0.0, %v3580
      %3582 = vmatmul.bf16.gmra.mxu0 %v3520
      %v3583 = vpop.f32.mrf.mxu0
      %v3584 = vadd.f32 0.0, %v3583
      %v3585 = vpop.f32.mrf.mxu0
      %v3586 = vadd.f32 0.0, %v3585
      %3587 = vmatmul.bf16.gmra.mxu0 %v3523
      %v3588 = vpop.f32.mrf.mxu0
      %v3589 = vadd.f32 0.0, %v3588
      %v3590 = vpop.f32.mrf.mxu0
      %v3591 = vadd.f32 0.0, %v3590
      %3592 = vmatmul.bf16.gmra.mxu0 %v3526
      %v3593 = vpop.f32.mrf.mxu0
      %v3594 = vadd.f32 0.0, %v3593
      %v3595 = vpop.f32.mrf.mxu0
      %v3596 = vadd.f32 0.0, %v3595
      %3597 = vmatmul.bf16.gmra.mxu0 %v3529
      %v3598 = vpop.f32.mrf.mxu0
      %v3599 = vadd.f32 0.0, %v3598
      %v3600 = vpop.f32.mrf.mxu0
      %v3601 = vadd.f32 0.0, %v3600
      %3602 = vmatmul.bf16.gmra.mxu0 %v3532
      %v3603 = vpop.f32.mrf.mxu0
      %v3604 = vadd.f32 0.0, %v3603
      %v3605 = vpop.f32.mrf.mxu0
      %v3606 = vadd.f32 0.0, %v3605
      %3607 = vmatmul.bf16.gmra.mxu0 %v3535
      %v3608 = vpop.f32.mrf.mxu0
      %v3609 = vadd.f32 0.0, %v3608
      %v3610 = vpop.f32.mrf.mxu0
      %v3611 = vadd.f32 0.0, %v3610
      %3612 = vmatmul.bf16.gmra.mxu0 %v3538
      %v3613 = vpop.f32.mrf.mxu0
      %v3614 = vadd.f32 0.0, %v3613
      %v3615 = vpop.f32.mrf.mxu0
      %v3616 = vadd.f32 0.0, %v3615
      %3617 = vmatmul.bf16.gmra.mxu0 %v3541
      %v3618 = vpop.f32.mrf.mxu0
      %v3619 = vadd.f32 0.0, %v3618
      %v3620 = vpop.f32.mrf.mxu0
      %v3621 = vadd.f32 0.0, %v3620
      %3622 = vmatmul.bf16.gmra.mxu0 %v3544
      %v3623 = vpop.f32.mrf.mxu0
      %v3624 = vadd.f32 0.0, %v3623
      %v3625 = vpop.f32.mrf.mxu0
      %v3626 = vadd.f32 0.0, %v3625
      %3627 = vmatmul.bf16.gmra.mxu0 %v3547
      %v3628 = vpop.f32.mrf.mxu0
      %v3629 = vadd.f32 0.0, %v3628
      %v3630 = vpop.f32.mrf.mxu0
      %v3631 = vadd.f32 0.0, %v3630
      %3632 = vmatmul.bf16.gmra.mxu0 %v3550
      %v3633 = vpop.f32.mrf.mxu0
      %v3634 = vadd.f32 0.0, %v3633
      %v3635 = vpop.f32.mrf.mxu0
      %v3636 = vadd.f32 0.0, %v3635
      %3637 = vmatmul.bf16.gmra.mxu0 %v3553
      %v3638 = vpop.f32.mrf.mxu0
      %v3639 = vadd.f32 0.0, %v3638
      %v3640 = vpop.f32.mrf.mxu0
      %v3641 = vadd.f32 0.0, %v3640
      %3642 = vmatmul.bf16.gmra.mxu0 %v3556
      %v3643 = vpop.f32.mrf.mxu0
      %v3644 = vadd.f32 0.0, %v3643
      %v3645 = vpop.f32.mrf.mxu0
      %v3646 = vadd.f32 0.0, %v3645
      %3647 = vmatmul.bf16.gmra.mxu0 %v3559
      %v3648 = vpop.f32.mrf.mxu0
      %v3649 = vadd.f32 0.0, %v3648
      %v3650 = vpop.f32.mrf.mxu0
      %v3651 = vadd.f32 0.0, %v3650
      %3652 = vdwg.mxu0
      %v3653 = vadd.f32 %v2999, %v3574
      %v3654 = vadd.f32 %v3000, %v3576
      %v3655 = vadd.f32 %v3001, %v3579
      %v3656 = vadd.f32 %v3002, %v3581
      %v3657 = vadd.f32 %v3003, %v3584
      %v3658 = vadd.f32 %v3004, %v3586
      %v3659 = vadd.f32 %v3005, %v3589
      %v3660 = vadd.f32 %v3006, %v3591
      %v3661 = vadd.f32 %v3007, %v3594
      %v3662 = vadd.f32 %v3008, %v3596
      %v3663 = vadd.f32 %v3009, %v3599
      %v3664 = vadd.f32 %v3010, %v3601
      %v3665 = vadd.f32 %v3011, %v3604
      %v3666 = vadd.f32 %v3012, %v3606
      %v3667 = vadd.f32 %v3013, %v3609
      %v3668 = vadd.f32 %v3014, %v3611
      %v3669 = vadd.f32 %v3015, %v3614
      %v3670 = vadd.f32 %v3016, %v3616
      %v3671 = vadd.f32 %v3017, %v3619
      %v3672 = vadd.f32 %v3018, %v3621
      %v3673 = vadd.f32 %v3019, %v3624
      %v3674 = vadd.f32 %v3020, %v3626
      %v3675 = vadd.f32 %v3021, %v3629
      %v3676 = vadd.f32 %v3022, %v3631
      %v3677 = vadd.f32 %v3023, %v3634
      %v3678 = vadd.f32 %v3024, %v3636
      %v3679 = vadd.f32 %v3025, %v3639
      %v3680 = vadd.f32 %v3026, %v3641
      %v3681 = vadd.f32 %v3027, %v3644
      %v3682 = vadd.f32 %v3028, %v3646
      %v3683 = vadd.f32 %v3029, %v3649
      %v3684 = vadd.f32 %v3030, %v3651
      %v3685 = vld [vmem:[%s2744] sm:$0xe]
      %v3686 = vld [vmem:[%s2744 + $0xc] sm:$0xe]
      %v3687 = vld [vmem:[%s2744 + $0x18] sm:$0xe]
      %v3688 = vld [vmem:[%s2744 + $0x24] sm:$0xe]
      %v3689 = vld [vmem:[%s2744 + $0x30] sm:$0xe]
      %v3690 = vld [vmem:[%s2744 + $0x3c] sm:$0xe]
      %v3691 = vld [vmem:[%s2744 + $0x48] sm:$0xe]
      %v3692 = vld [vmem:[%s2744 + $0x54] sm:$0xe]
      %v3693 = vld [vmem:[%s2744 + $0x60] sm:$0xe]
      %v3694 = vld [vmem:[%s2744 + $0x6c] sm:$0xe]
      %v3695 = vld [vmem:[%s2744 + $0x78] sm:$0xe]
      %v3696 = vld [vmem:[%s2744 + $0x84] sm:$0xe]
      %v3697 = vld [vmem:[%s2744 + $0x90] sm:$0xe]
      %v3698 = vld [vmem:[%s2744 + $0x9c] sm:$0xe]
      %v3699 = vld [vmem:[%s2744 + $0xa8] sm:$0xe]
      %v3700 = vld [vmem:[%s2744 + $0xb4] sm:$0xe]
      %v3749 = vrot.slane %v3685, 5
      %v3750 = vrot.slane %v3749, 4
      %v3751 = vrot.slane %v3032, 5
      %v3752 = vsel %vm1070, %v3750, %v3751
      %v3753 = vrot.slane %v3751, 4
      %v3754 = vrot.slane %v3033, 5
      %v3755 = vsel %vm1070, %v3753, %v3754
      %v3756 = vrot.slane %v3686, 5
      %v3757 = vrot.slane %v3756, 4
      %v3758 = vrot.slane %v3035, 5
      %v3759 = vsel %vm1070, %v3757, %v3758
      %v3760 = vrot.slane %v3758, 4
      %v3761 = vrot.slane %v3036, 5
      %v3762 = vsel %vm1070, %v3760, %v3761
      %v3763 = vrot.slane %v3687, 5
      %v3764 = vrot.slane %v3763, 4
      %v3765 = vrot.slane %v3038, 5
      %v3766 = vsel %vm1070, %v3764, %v3765
      %v3767 = vrot.slane %v3765, 4
      %v3768 = vrot.slane %v3039, 5
      %v3769 = vsel %vm1070, %v3767, %v3768
      %v3770 = vrot.slane %v3688, 5
      %v3771 = vrot.slane %v3770, 4
      %v3772 = vrot.slane %v3041, 5
      %v3773 = vsel %vm1070, %v3771, %v3772
      %v3774 = vrot.slane %v3772, 4
      %v3775 = vrot.slane %v3042, 5
      %v3776 = vsel %vm1070, %v3774, %v3775
      %v3777 = vrot.slane %v3689, 5
      %v3778 = vrot.slane %v3777, 4
      %v3779 = vrot.slane %v3044, 5
      %v3780 = vsel %vm1070, %v3778, %v3779
      %v3781 = vrot.slane %v3779, 4
      %v3782 = vrot.slane %v3045, 5
      %v3783 = vsel %vm1070, %v3781, %v3782
      %v3784 = vrot.slane %v3690, 5
      %v3785 = vrot.slane %v3784, 4
      %v3786 = vrot.slane %v3047, 5
      %v3787 = vsel %vm1070, %v3785, %v3786
      %v3788 = vrot.slane %v3786, 4
      %v3789 = vrot.slane %v3048, 5
      %v3790 = vsel %vm1070, %v3788, %v3789
      %v3791 = vrot.slane %v3691, 5
      %v3792 = vrot.slane %v3791, 4
      %v3793 = vrot.slane %v3050, 5
      %v3794 = vsel %vm1070, %v3792, %v3793
      %v3795 = vrot.slane %v3793, 4
      %v3796 = vrot.slane %v3051, 5
      %v3797 = vsel %vm1070, %v3795, %v3796
      %v3798 = vrot.slane %v3692, 5
      %v3799 = vrot.slane %v3798, 4
      %v3800 = vrot.slane %v3053, 5
      %v3801 = vsel %vm1070, %v3799, %v3800
      %v3802 = vrot.slane %v3800, 4
      %v3803 = vrot.slane %v3054, 5
      %v3804 = vsel %vm1070, %v3802, %v3803
      %v3805 = vrot.slane %v3693, 5
      %v3806 = vrot.slane %v3805, 4
      %v3807 = vrot.slane %v3056, 5
      %v3808 = vsel %vm1070, %v3806, %v3807
      %v3809 = vrot.slane %v3807, 4
      %v3810 = vrot.slane %v3057, 5
      %v3811 = vsel %vm1070, %v3809, %v3810
      %v3812 = vrot.slane %v3694, 5
      %v3813 = vrot.slane %v3812, 4
      %v3814 = vrot.slane %v3059, 5
      %v3815 = vsel %vm1070, %v3813, %v3814
      %v3816 = vrot.slane %v3814, 4
      %v3817 = vrot.slane %v3060, 5
      %v3818 = vsel %vm1070, %v3816, %v3817
      %v3819 = vrot.slane %v3695, 5
      %v3820 = vrot.slane %v3819, 4
      %v3821 = vrot.slane %v3062, 5
      %v3822 = vsel %vm1070, %v3820, %v3821
      %v3823 = vrot.slane %v3821, 4
      %v3824 = vrot.slane %v3063, 5
      %v3825 = vsel %vm1070, %v3823, %v3824
      %v3826 = vrot.slane %v3696, 5
      %v3827 = vrot.slane %v3826, 4
      %v3828 = vrot.slane %v3065, 5
      %v3829 = vsel %vm1070, %v3827, %v3828
      %v3830 = vrot.slane %v3828, 4
      %v3831 = vrot.slane %v3066, 5
      %v3832 = vsel %vm1070, %v3830, %v3831
      %v3833 = vrot.slane %v3697, 5
      %v3834 = vrot.slane %v3833, 4
      %v3835 = vrot.slane %v3068, 5
      %v3836 = vsel %vm1070, %v3834, %v3835
      %v3837 = vrot.slane %v3835, 4
      %v3838 = vrot.slane %v3069, 5
      %v3839 = vsel %vm1070, %v3837, %v3838
      %v3840 = vrot.slane %v3698, 5
      %v3841 = vrot.slane %v3840, 4
      %v3842 = vrot.slane %v3071, 5
      %v3843 = vsel %vm1070, %v3841, %v3842
      %v3844 = vrot.slane %v3842, 4
      %v3845 = vrot.slane %v3072, 5
      %v3846 = vsel %vm1070, %v3844, %v3845
      %v3847 = vrot.slane %v3699, 5
      %v3848 = vrot.slane %v3847, 4
      %v3849 = vrot.slane %v3074, 5
      %v3850 = vsel %vm1070, %v3848, %v3849
      %v3851 = vrot.slane %v3849, 4
      %v3852 = vrot.slane %v3075, 5
      %v3853 = vsel %vm1070, %v3851, %v3852
      %v3854 = vrot.slane %v3700, 5
      %v3855 = vrot.slane %v3854, 4
      %v3856 = vrot.slane %v3077, 5
      %v3857 = vsel %vm1070, %v3855, %v3856
      %v3858 = vrot.slane %v3856, 4
      %v3859 = vrot.slane %v3078, 5
      %v3860 = vsel %vm1070, %v3858, %v3859
      %s3861 = scalar_lea.vmem %s1, 32
      %v3862 = vld [vmem:[%s3861] sm:$0xf]
      %v3863 = vunpack.c.l.b16 %v3752
      %v3864 = vunpack.c.l.b16 %v3755
      %v3865 = vunpack.c.l.b16 %v3759
      %v3866 = vunpack.c.l.b16 %v3762
      %v3867 = vunpack.c.l.b16 %v3766
      %v3868 = vunpack.c.l.b16 %v3769
      %v3869 = vunpack.c.l.b16 %v3773
      %v3870 = vunpack.c.l.b16 %v3776
      %v3871 = vunpack.c.l.b16 %v3780
      %v3872 = vunpack.c.l.b16 %v3783
      %v3873 = vunpack.c.l.b16 %v3787
      %v3874 = vunpack.c.l.b16 %v3790
      %v3875 = vunpack.c.l.b16 %v3794
      %v3876 = vunpack.c.l.b16 %v3797
      %v3877 = vunpack.c.l.b16 %v3801
      %v3878 = vunpack.c.l.b16 %v3804
      %v3879 = vunpack.c.l.b16 %v3808
      %v3880 = vunpack.c.l.b16 %v3811
      %v3881 = vunpack.c.l.b16 %v3815
      %v3882 = vunpack.c.l.b16 %v3818
      %v3883 = vunpack.c.l.b16 %v3822
      %v3884 = vunpack.c.l.b16 %v3825
      %v3885 = vunpack.c.l.b16 %v3829
      %v3886 = vunpack.c.l.b16 %v3832
      %v3887 = vunpack.c.l.b16 %v3836
      %v3888 = vunpack.c.l.b16 %v3839
      %v3889 = vunpack.c.l.b16 %v3843
      %v3890 = vunpack.c.l.b16 %v3846
      %v3891 = vunpack.c.l.b16 %v3850
      %v3892 = vunpack.c.l.b16 %v3853
      %v3893 = vunpack.c.l.b16 %v3857
      %v3894 = vunpack.c.l.b16 %v3860
      %v3895 = vpack.c.b16 %v3864, %v3863
      %v3896 = vpack.c.b16 %v3866, %v3865
      %v3897 = vpack.c.b16 %v3868, %v3867
      %v3898 = vpack.c.b16 %v3870, %v3869
      %v3899 = vpack.c.b16 %v3872, %v3871
      %v3900 = vpack.c.b16 %v3874, %v3873
      %v3901 = vpack.c.b16 %v3876, %v3875
      %v3902 = vpack.c.b16 %v3878, %v3877
      %v3903 = vpack.c.b16 %v3880, %v3879
      %v3904 = vpack.c.b16 %v3882, %v3881
      %v3905 = vpack.c.b16 %v3884, %v3883
      %v3906 = vpack.c.b16 %v3886, %v3885
      %v3907 = vpack.c.b16 %v3888, %v3887
      %v3908 = vpack.c.b16 %v3890, %v3889
      %v3909 = vpack.c.b16 %v3892, %v3891
      %v3910 = vpack.c.b16 %v3894, %v3893
      %v3912 = vsel %vm658, %v3895, 0
      %v3915 = vsel %vm658, %v3896, 0
      %v3918 = vsel %vm658, %v3897, 0
      %v3921 = vsel %vm658, %v3898, 0
      %v3924 = vsel %vm658, %v3899, 0
      %v3927 = vsel %vm658, %v3900, 0
      %v3930 = vsel %vm658, %v3901, 0
      %v3933 = vsel %vm658, %v3902, 0
      %v3936 = vsel %vm658, %v3903, 0
      %v3939 = vsel %vm658, %v3904, 0
      %v3942 = vsel %vm658, %v3905, 0
      %v3945 = vsel %vm658, %v3906, 0
      %v3948 = vsel %vm658, %v3907, 0
      %v3951 = vsel %vm658, %v3908, 0
      %v3954 = vsel %vm658, %v3909, 0
      %v3957 = vsel %vm658, %v3910, 0
      %v3960 = vsel %vm707, %v3862, 0
      %3962 = vmatpush.bf16.msra.mxu0 0
      %3963 = vmatpush.bf16.msra.mxu0 0
      %3964 = vmatpush.bf16.msra.mxu0 0
      %3965 = vmatpush.bf16.msra.mxu0 0
      %3966 = vmatpush.bf16.msra.mxu0 0
      %3967 = vmatpush.bf16.msra.mxu0 0
      %3968 = vmatpush.bf16.msra.mxu0 0
      %3969 = vmatpush.bf16.msra.mxu0 %v3960
      %3970 = vmatmul.bf16.gmra.mxu0 %v3912
      %v3971 = vpop.f32.mrf.mxu0
      %v3972 = vadd.f32 0.0, %v3971
      %v3973 = vpop.f32.mrf.mxu0
      %v3974 = vadd.f32 0.0, %v3973
      %3975 = vmatmul.bf16.gmra.mxu0 %v3915
      %v3976 = vpop.f32.mrf.mxu0
      %v3977 = vadd.f32 0.0, %v3976
      %v3978 = vpop.f32.mrf.mxu0
      %v3979 = vadd.f32 0.0, %v3978
      %3980 = vmatmul.bf16.gmra.mxu0 %v3918
      %v3981 = vpop.f32.mrf.mxu0
      %v3982 = vadd.f32 0.0, %v3981
      %v3983 = vpop.f32.mrf.mxu0
      %v3984 = vadd.f32 0.0, %v3983
      %3985 = vmatmul.bf16.gmra.mxu0 %v3921
      %v3986 = vpop.f32.mrf.mxu0
      %v3987 = vadd.f32 0.0, %v3986
      %v3988 = vpop.f32.mrf.mxu0
      %v3989 = vadd.f32 0.0, %v3988
      %3990 = vmatmul.bf16.gmra.mxu0 %v3924
      %v3991 = vpop.f32.mrf.mxu0
      %v3992 = vadd.f32 0.0, %v3991
      %v3993 = vpop.f32.mrf.mxu0
      %v3994 = vadd.f32 0.0, %v3993
      %3995 = vmatmul.bf16.gmra.mxu0 %v3927
      %v3996 = vpop.f32.mrf.mxu0
      %v3997 = vadd.f32 0.0, %v3996
      %v3998 = vpop.f32.mrf.mxu0
      %v3999 = vadd.f32 0.0, %v3998
      %4000 = vmatmul.bf16.gmra.mxu0 %v3930
      %v4001 = vpop.f32.mrf.mxu0
      %v4002 = vadd.f32 0.0, %v4001
      %v4003 = vpop.f32.mrf.mxu0
      %v4004 = vadd.f32 0.0, %v4003
      %4005 = vmatmul.bf16.gmra.mxu0 %v3933
      %v4006 = vpop.f32.mrf.mxu0
      %v4007 = vadd.f32 0.0, %v4006
      %v4008 = vpop.f32.mrf.mxu0
      %v4009 = vadd.f32 0.0, %v4008
      %4010 = vmatmul.bf16.gmra.mxu0 %v3936
      %v4011 = vpop.f32.mrf.mxu0
      %v4012 = vadd.f32 0.0, %v4011
      %v4013 = vpop.f32.mrf.mxu0
      %v4014 = vadd.f32 0.0, %v4013
      %4015 = vmatmul.bf16.gmra.mxu0 %v3939
      %v4016 = vpop.f32.mrf.mxu0
      %v4017 = vadd.f32 0.0, %v4016
      %v4018 = vpop.f32.mrf.mxu0
      %v4019 = vadd.f32 0.0, %v4018
      %4020 = vmatmul.bf16.gmra.mxu0 %v3942
      %v4021 = vpop.f32.mrf.mxu0
      %v4022 = vadd.f32 0.0, %v4021
      %v4023 = vpop.f32.mrf.mxu0
      %v4024 = vadd.f32 0.0, %v4023
      %4025 = vmatmul.bf16.gmra.mxu0 %v3945
      %v4026 = vpop.f32.mrf.mxu0
      %v4027 = vadd.f32 0.0, %v4026
      %v4028 = vpop.f32.mrf.mxu0
      %v4029 = vadd.f32 0.0, %v4028
      %4030 = vmatmul.bf16.gmra.mxu0 %v3948
      %v4031 = vpop.f32.mrf.mxu0
      %v4032 = vadd.f32 0.0, %v4031
      %v4033 = vpop.f32.mrf.mxu0
      %v4034 = vadd.f32 0.0, %v4033
      %4035 = vmatmul.bf16.gmra.mxu0 %v3951
      %v4036 = vpop.f32.mrf.mxu0
      %v4037 = vadd.f32 0.0, %v4036
      %v4038 = vpop.f32.mrf.mxu0
      %v4039 = vadd.f32 0.0, %v4038
      %4040 = vmatmul.bf16.gmra.mxu0 %v3954
      %v4041 = vpop.f32.mrf.mxu0
      %v4042 = vadd.f32 0.0, %v4041
      %v4043 = vpop.f32.mrf.mxu0
      %v4044 = vadd.f32 0.0, %v4043
      %4045 = vmatmul.bf16.gmra.mxu0 %v3957
      %v4046 = vpop.f32.mrf.mxu0
      %v4047 = vadd.f32 0.0, %v4046
      %v4048 = vpop.f32.mrf.mxu0
      %v4049 = vadd.f32 0.0, %v4048
      %4050 = vdwg.mxu0
      %v4051 = vadd.f32 %v3653, %v3972
      %v4052 = vadd.f32 %v3654, %v3974
      %v4053 = vadd.f32 %v3655, %v3977
      %v4054 = vadd.f32 %v3656, %v3979
      %v4055 = vadd.f32 %v3657, %v3982
      %v4056 = vadd.f32 %v3658, %v3984
      %v4057 = vadd.f32 %v3659, %v3987
      %v4058 = vadd.f32 %v3660, %v3989
      %v4059 = vadd.f32 %v3661, %v3992
      %v4060 = vadd.f32 %v3662, %v3994
      %v4061 = vadd.f32 %v3663, %v3997
      %v4062 = vadd.f32 %v3664, %v3999
      %v4063 = vadd.f32 %v3665, %v4002
      %v4064 = vadd.f32 %v3666, %v4004
      %v4065 = vadd.f32 %v3667, %v4007
      %v4066 = vadd.f32 %v3668, %v4009
      %v4067 = vadd.f32 %v3669, %v4012
      %v4068 = vadd.f32 %v3670, %v4014
      %v4069 = vadd.f32 %v3671, %v4017
      %v4070 = vadd.f32 %v3672, %v4019
      %v4071 = vadd.f32 %v3673, %v4022
      %v4072 = vadd.f32 %v3674, %v4024
      %v4073 = vadd.f32 %v3675, %v4027
      %v4074 = vadd.f32 %v3676, %v4029
      %v4075 = vadd.f32 %v3677, %v4032
      %v4076 = vadd.f32 %v3678, %v4034
      %v4077 = vadd.f32 %v3679, %v4037
      %v4078 = vadd.f32 %v3680, %v4039
      %v4079 = vadd.f32 %v3681, %v4042
      %v4080 = vadd.f32 %v3682, %v4044
      %v4081 = vadd.f32 %v3683, %v4047
      %v4082 = vadd.f32 %v3684, %v4049
      %v4083 = vld [vmem:[%s2] sm:$0x1]
      %v4085 = vperm.slane %v4083, 0
      %v4087 = vadd.f32 %v4051, %v4085
      %v4088 = vadd.f32 %v4052, %v4085
      %v4089 = vadd.f32 %v4053, %v4085
      %v4090 = vadd.f32 %v4054, %v4085
      %v4091 = vadd.f32 %v4055, %v4085
      %v4092 = vadd.f32 %v4056, %v4085
      %v4093 = vadd.f32 %v4057, %v4085
      %v4094 = vadd.f32 %v4058, %v4085
      %v4095 = vadd.f32 %v4059, %v4085
      %v4096 = vadd.f32 %v4060, %v4085
      %v4097 = vadd.f32 %v4061, %v4085
      %v4098 = vadd.f32 %v4062, %v4085
      %v4099 = vadd.f32 %v4063, %v4085
      %v4100 = vadd.f32 %v4064, %v4085
      %v4101 = vadd.f32 %v4065, %v4085
      %v4102 = vadd.f32 %v4066, %v4085
      %v4103 = vadd.f32 %v4067, %v4085
      %v4104 = vadd.f32 %v4068, %v4085
      %v4105 = vadd.f32 %v4069, %v4085
      %v4106 = vadd.f32 %v4070, %v4085
      %v4107 = vadd.f32 %v4071, %v4085
      %v4108 = vadd.f32 %v4072, %v4085
      %v4109 = vadd.f32 %v4073, %v4085
      %v4110 = vadd.f32 %v4074, %v4085
      %v4111 = vadd.f32 %v4075, %v4085
      %v4112 = vadd.f32 %v4076, %v4085
      %v4113 = vadd.f32 %v4077, %v4085
      %v4114 = vadd.f32 %v4078, %v4085
      %v4115 = vadd.f32 %v4079, %v4085
      %v4116 = vadd.f32 %v4080, %v4085
      %v4117 = vadd.f32 %v4081, %v4085
      %v4118 = vadd.f32 %v4082, %v4085
      %v4119 = vmax.f32 %v4087, 0.0
      %v4120 = vmax.f32 %v4088, 0.0
      %v4121 = vmax.f32 %v4089, 0.0
      %v4122 = vmax.f32 %v4090, 0.0
      %v4123 = vmax.f32 %v4091, 0.0
      %v4124 = vmax.f32 %v4092, 0.0
      %v4125 = vmax.f32 %v4093, 0.0
      %v4126 = vmax.f32 %v4094, 0.0
      %v4127 = vmax.f32 %v4095, 0.0
      %v4128 = vmax.f32 %v4096, 0.0
      %v4129 = vmax.f32 %v4097, 0.0
      %v4130 = vmax.f32 %v4098, 0.0
      %v4131 = vmax.f32 %v4099, 0.0
      %v4132 = vmax.f32 %v4100, 0.0
      %v4133 = vmax.f32 %v4101, 0.0
      %v4134 = vmax.f32 %v4102, 0.0
      %v4135 = vmax.f32 %v4103, 0.0
      %v4136 = vmax.f32 %v4104, 0.0
      %v4137 = vmax.f32 %v4105, 0.0
      %v4138 = vmax.f32 %v4106, 0.0
      %v4139 = vmax.f32 %v4107, 0.0
      %v4140 = vmax.f32 %v4108, 0.0
      %v4141 = vmax.f32 %v4109, 0.0
      %v4142 = vmax.f32 %v4110, 0.0
      %v4143 = vmax.f32 %v4111, 0.0
      %v4144 = vmax.f32 %v4112, 0.0
      %v4145 = vmax.f32 %v4113, 0.0
      %v4146 = vmax.f32 %v4114, 0.0
      %v4147 = vmax.f32 %v4115, 0.0
      %v4148 = vmax.f32 %v4116, 0.0
      %v4149 = vmax.f32 %v4117, 0.0
      %v4150 = vmax.f32 %v4118, 0.0
      %v4151 = vmax.f32 %v4119, %v4121
      %v4152 = vmax.f32 %v4120, %v4122
      %v4153 = vmax.f32 %v4123, %v4125
      %v4154 = vmax.f32 %v4124, %v4126
      %v4155 = vmax.f32 %v4127, %v4129
      %v4156 = vmax.f32 %v4128, %v4130
      %v4157 = vmax.f32 %v4131, %v4133
      %v4158 = vmax.f32 %v4132, %v4134
      %v4159 = vmax.f32 %v4135, %v4137
      %v4160 = vmax.f32 %v4136, %v4138
      %v4161 = vmax.f32 %v4139, %v4141
      %v4162 = vmax.f32 %v4140, %v4142
      %v4163 = vmax.f32 %v4143, %v4145
      %v4164 = vmax.f32 %v4144, %v4146
      %v4165 = vmax.f32 %v4147, %v4149
      %v4166 = vmax.f32 %v4148, %v4150
      %v4183 = vrot.slane %v4151, 2
      %v4184 = vrot.slane %v4151, 4
      %v4185 = vrot.slane %v4151, 6
      %v4186 = vrot.slane %v4152, 2
      %v4187 = vrot.slane %v4152, 4
      %v4188 = vrot.slane %v4152, 6
      %v4189 = vrot.slane %v4153, 2
      %v4190 = vrot.slane %v4153, 4
      %v4191 = vrot.slane %v4153, 6
      %v4192 = vrot.slane %v4154, 2
      %v4193 = vrot.slane %v4154, 4
      %v4194 = vrot.slane %v4154, 6
      %v4195 = vrot.slane %v4155, 2
      %v4196 = vrot.slane %v4155, 4
      %v4197 = vrot.slane %v4155, 6
      %v4198 = vrot.slane %v4156, 2
      %v4199 = vrot.slane %v4156, 4
      %v4200 = vrot.slane %v4156, 6
      %v4201 = vrot.slane %v4157, 2
      %v4202 = vrot.slane %v4157, 4
      %v4203 = vrot.slane %v4157, 6
      %v4204 = vrot.slane %v4158, 2
      %v4205 = vrot.slane %v4158, 4
      %v4206 = vrot.slane %v4158, 6
      %v4207 = vrot.slane %v4159, 2
      %v4208 = vrot.slane %v4159, 4
      %v4209 = vrot.slane %v4159, 6
      %v4210 = vrot.slane %v4160, 2
      %v4211 = vrot.slane %v4160, 4
      %v4212 = vrot.slane %v4160, 6
      %v4213 = vrot.slane %v4161, 2
      %v4214 = vrot.slane %v4161, 4
      %v4215 = vrot.slane %v4161, 6
      %v4216 = vrot.slane %v4162, 2
      %v4217 = vrot.slane %v4162, 4
      %v4218 = vrot.slane %v4162, 6
      %v4219 = vrot.slane %v4163, 2
      %v4220 = vrot.slane %v4163, 4
      %v4221 = vrot.slane %v4163, 6
      %v4222 = vrot.slane %v4164, 2
      %v4223 = vrot.slane %v4164, 4
      %v4224 = vrot.slane %v4164, 6
      %v4225 = vrot.slane %v4165, 2
      %v4226 = vrot.slane %v4165, 4
      %v4227 = vrot.slane %v4165, 6
      %v4228 = vrot.slane %v4166, 2
      %v4229 = vrot.slane %v4166, 4
      %v4230 = vrot.slane %v4166, 6
      %vm4279 = vcmask 1041408
      %v4280 = vsel %vm4279, %v4151, -inf
      %v4281 = vrot.slane %v4280, 4
      %v4282 = vmax.f32 %v4280, %v4281
      %v4283 = vrot.slane %v4282, 2
      %v4284 = vmax.f32 %v4282, %v4283
      %v4285 = vrot.slane %v4284, 1
      %v4286 = vmax.f32 %v4284, %v4285
      %v4287 = vsel %vm4279, %v4183, -inf
      %v4288 = vrot.slane %v4287, 4
      %v4289 = vmax.f32 %v4287, %v4288
      %v4290 = vrot.slane %v4289, 2
      %v4291 = vmax.f32 %v4289, %v4290
      %v4292 = vrot.slane %v4291, 1
      %v4293 = vmax.f32 %v4291, %v4292
      %v4294 = vsel %vm4279, %v4184, -inf
      %v4295 = vrot.slane %v4294, 4
      %v4296 = vmax.f32 %v4294, %v4295
      %v4297 = vrot.slane %v4296, 2
      %v4298 = vmax.f32 %v4296, %v4297
      %v4299 = vrot.slane %v4298, 1
      %v4300 = vmax.f32 %v4298, %v4299
      %v4301 = vsel %vm4279, %v4185, -inf
      %v4302 = vrot.slane %v4301, 4
      %v4303 = vmax.f32 %v4301, %v4302
      %v4304 = vrot.slane %v4303, 2
      %v4305 = vmax.f32 %v4303, %v4304
      %v4306 = vrot.slane %v4305, 1
      %v4307 = vmax.f32 %v4305, %v4306
      %v4308 = vsel %vm4279, %v4152, -inf
      %v4309 = vrot.slane %v4308, 4
      %v4310 = vmax.f32 %v4308, %v4309
      %v4311 = vrot.slane %v4310, 2
      %v4312 = vmax.f32 %v4310, %v4311
      %v4313 = vrot.slane %v4312, 1
      %v4314 = vmax.f32 %v4312, %v4313
      %v4315 = vsel %vm4279, %v4186, -inf
      %v4316 = vrot.slane %v4315, 4
      %v4317 = vmax.f32 %v4315, %v4316
      %v4318 = vrot.slane %v4317, 2
      %v4319 = vmax.f32 %v4317, %v4318
      %v4320 = vrot.slane %v4319, 1
      %v4321 = vmax.f32 %v4319, %v4320
      %v4322 = vsel %vm4279, %v4187, -inf
      %v4323 = vrot.slane %v4322, 4
      %v4324 = vmax.f32 %v4322, %v4323
      %v4325 = vrot.slane %v4324, 2
      %v4326 = vmax.f32 %v4324, %v4325
      %v4327 = vrot.slane %v4326, 1
      %v4328 = vmax.f32 %v4326, %v4327
      %v4329 = vsel %vm4279, %v4188, -inf
      %v4330 = vrot.slane %v4329, 4
      %v4331 = vmax.f32 %v4329, %v4330
      %v4332 = vrot.slane %v4331, 2
      %v4333 = vmax.f32 %v4331, %v4332
      %v4334 = vrot.slane %v4333, 1
      %v4335 = vmax.f32 %v4333, %v4334
      %v4336 = vsel %vm4279, %v4153, -inf
      %v4337 = vrot.slane %v4336, 4
      %v4338 = vmax.f32 %v4336, %v4337
      %v4339 = vrot.slane %v4338, 2
      %v4340 = vmax.f32 %v4338, %v4339
      %v4341 = vrot.slane %v4340, 1
      %v4342 = vmax.f32 %v4340, %v4341
      %v4343 = vsel %vm4279, %v4189, -inf
      %v4344 = vrot.slane %v4343, 4
      %v4345 = vmax.f32 %v4343, %v4344
      %v4346 = vrot.slane %v4345, 2
      %v4347 = vmax.f32 %v4345, %v4346
      %v4348 = vrot.slane %v4347, 1
      %v4349 = vmax.f32 %v4347, %v4348
      %v4350 = vsel %vm4279, %v4190, -inf
      %v4351 = vrot.slane %v4350, 4
      %v4352 = vmax.f32 %v4350, %v4351
      %v4353 = vrot.slane %v4352, 2
      %v4354 = vmax.f32 %v4352, %v4353
      %v4355 = vrot.slane %v4354, 1
      %v4356 = vmax.f32 %v4354, %v4355
      %v4357 = vsel %vm4279, %v4191, -inf
      %v4358 = vrot.slane %v4357, 4
      %v4359 = vmax.f32 %v4357, %v4358
      %v4360 = vrot.slane %v4359, 2
      %v4361 = vmax.f32 %v4359, %v4360
      %v4362 = vrot.slane %v4361, 1
      %v4363 = vmax.f32 %v4361, %v4362
      %v4364 = vsel %vm4279, %v4154, -inf
      %v4365 = vrot.slane %v4364, 4
      %v4366 = vmax.f32 %v4364, %v4365
      %v4367 = vrot.slane %v4366, 2
      %v4368 = vmax.f32 %v4366, %v4367
      %v4369 = vrot.slane %v4368, 1
      %v4370 = vmax.f32 %v4368, %v4369
      %v4371 = vsel %vm4279, %v4192, -inf
      %v4372 = vrot.slane %v4371, 4
      %v4373 = vmax.f32 %v4371, %v4372
      %v4374 = vrot.slane %v4373, 2
      %v4375 = vmax.f32 %v4373, %v4374
      %v4376 = vrot.slane %v4375, 1
      %v4377 = vmax.f32 %v4375, %v4376
      %v4378 = vsel %vm4279, %v4193, -inf
      %v4379 = vrot.slane %v4378, 4
      %v4380 = vmax.f32 %v4378, %v4379
      %v4381 = vrot.slane %v4380, 2
      %v4382 = vmax.f32 %v4380, %v4381
      %v4383 = vrot.slane %v4382, 1
      %v4384 = vmax.f32 %v4382, %v4383
      %v4385 = vsel %vm4279, %v4194, -inf
      %v4386 = vrot.slane %v4385, 4
      %v4387 = vmax.f32 %v4385, %v4386
      %v4388 = vrot.slane %v4387, 2
      %v4389 = vmax.f32 %v4387, %v4388
      %v4390 = vrot.slane %v4389, 1
      %v4391 = vmax.f32 %v4389, %v4390
      %v4392 = vsel %vm4279, %v4155, -inf
      %v4393 = vrot.slane %v4392, 4
      %v4394 = vmax.f32 %v4392, %v4393
      %v4395 = vrot.slane %v4394, 2
      %v4396 = vmax.f32 %v4394, %v4395
      %v4397 = vrot.slane %v4396, 1
      %v4398 = vmax.f32 %v4396, %v4397
      %v4399 = vsel %vm4279, %v4195, -inf
      %v4400 = vrot.slane %v4399, 4
      %v4401 = vmax.f32 %v4399, %v4400
      %v4402 = vrot.slane %v4401, 2
      %v4403 = vmax.f32 %v4401, %v4402
      %v4404 = vrot.slane %v4403, 1
      %v4405 = vmax.f32 %v4403, %v4404
      %v4406 = vsel %vm4279, %v4196, -inf
      %v4407 = vrot.slane %v4406, 4
      %v4408 = vmax.f32 %v4406, %v4407
      %v4409 = vrot.slane %v4408, 2
      %v4410 = vmax.f32 %v4408, %v4409
      %v4411 = vrot.slane %v4410, 1
      %v4412 = vmax.f32 %v4410, %v4411
      %v4413 = vsel %vm4279, %v4197, -inf
      %v4414 = vrot.slane %v4413, 4
      %v4415 = vmax.f32 %v4413, %v4414
      %v4416 = vrot.slane %v4415, 2
      %v4417 = vmax.f32 %v4415, %v4416
      %v4418 = vrot.slane %v4417, 1
      %v4419 = vmax.f32 %v4417, %v4418
      %v4420 = vsel %vm4279, %v4156, -inf
      %v4421 = vrot.slane %v4420, 4
      %v4422 = vmax.f32 %v4420, %v4421
      %v4423 = vrot.slane %v4422, 2
      %v4424 = vmax.f32 %v4422, %v4423
      %v4425 = vrot.slane %v4424, 1
      %v4426 = vmax.f32 %v4424, %v4425
      %v4427 = vsel %vm4279, %v4198, -inf
      %v4428 = vrot.slane %v4427, 4
      %v4429 = vmax.f32 %v4427, %v4428
      %v4430 = vrot.slane %v4429, 2
      %v4431 = vmax.f32 %v4429, %v4430
      %v4432 = vrot.slane %v4431, 1
      %v4433 = vmax.f32 %v4431, %v4432
      %v4434 = vsel %vm4279, %v4199, -inf
      %v4435 = vrot.slane %v4434, 4
      %v4436 = vmax.f32 %v4434, %v4435
      %v4437 = vrot.slane %v4436, 2
      %v4438 = vmax.f32 %v4436, %v4437
      %v4439 = vrot.slane %v4438, 1
      %v4440 = vmax.f32 %v4438, %v4439
      %v4441 = vsel %vm4279, %v4200, -inf
      %v4442 = vrot.slane %v4441, 4
      %v4443 = vmax.f32 %v4441, %v4442
      %v4444 = vrot.slane %v4443, 2
      %v4445 = vmax.f32 %v4443, %v4444
      %v4446 = vrot.slane %v4445, 1
      %v4447 = vmax.f32 %v4445, %v4446
      %v4448 = vsel %vm4279, %v4157, -inf
      %v4449 = vrot.slane %v4448, 4
      %v4450 = vmax.f32 %v4448, %v4449
      %v4451 = vrot.slane %v4450, 2
      %v4452 = vmax.f32 %v4450, %v4451
      %v4453 = vrot.slane %v4452, 1
      %v4454 = vmax.f32 %v4452, %v4453
      %v4455 = vsel %vm4279, %v4201, -inf
      %v4456 = vrot.slane %v4455, 4
      %v4457 = vmax.f32 %v4455, %v4456
      %v4458 = vrot.slane %v4457, 2
      %v4459 = vmax.f32 %v4457, %v4458
      %v4460 = vrot.slane %v4459, 1
      %v4461 = vmax.f32 %v4459, %v4460
      %v4462 = vsel %vm4279, %v4202, -inf
      %v4463 = vrot.slane %v4462, 4
      %v4464 = vmax.f32 %v4462, %v4463
      %v4465 = vrot.slane %v4464, 2
      %v4466 = vmax.f32 %v4464, %v4465
      %v4467 = vrot.slane %v4466, 1
      %v4468 = vmax.f32 %v4466, %v4467
      %v4469 = vsel %vm4279, %v4203, -inf
      %v4470 = vrot.slane %v4469, 4
      %v4471 = vmax.f32 %v4469, %v4470
      %v4472 = vrot.slane %v4471, 2
      %v4473 = vmax.f32 %v4471, %v4472
      %v4474 = vrot.slane %v4473, 1
      %v4475 = vmax.f32 %v4473, %v4474
      %v4476 = vsel %vm4279, %v4158, -inf
      %v4477 = vrot.slane %v4476, 4
      %v4478 = vmax.f32 %v4476, %v4477
      %v4479 = vrot.slane %v4478, 2
      %v4480 = vmax.f32 %v4478, %v4479
      %v4481 = vrot.slane %v4480, 1
      %v4482 = vmax.f32 %v4480, %v4481
      %v4483 = vsel %vm4279, %v4204, -inf
      %v4484 = vrot.slane %v4483, 4
      %v4485 = vmax.f32 %v4483, %v4484
      %v4486 = vrot.slane %v4485, 2
      %v4487 = vmax.f32 %v4485, %v4486
      %v4488 = vrot.slane %v4487, 1
      %v4489 = vmax.f32 %v4487, %v4488
      %v4490 = vsel %vm4279, %v4205, -inf
      %v4491 = vrot.slane %v4490, 4
      %v4492 = vmax.f32 %v4490, %v4491
      %v4493 = vrot.slane %v4492, 2
      %v4494 = vmax.f32 %v4492, %v4493
      %v4495 = vrot.slane %v4494, 1
      %v4496 = vmax.f32 %v4494, %v4495
      %v4497 = vsel %vm4279, %v4206, -inf
      %v4498 = vrot.slane %v4497, 4
      %v4499 = vmax.f32 %v4497, %v4498
      %v4500 = vrot.slane %v4499, 2
      %v4501 = vmax.f32 %v4499, %v4500
      %v4502 = vrot.slane %v4501, 1
      %v4503 = vmax.f32 %v4501, %v4502
      %v4504 = vsel %vm4279, %v4159, -inf
      %v4505 = vrot.slane %v4504, 4
      %v4506 = vmax.f32 %v4504, %v4505
      %v4507 = vrot.slane %v4506, 2
      %v4508 = vmax.f32 %v4506, %v4507
      %v4509 = vrot.slane %v4508, 1
      %v4510 = vmax.f32 %v4508, %v4509
      %v4511 = vsel %vm4279, %v4207, -inf
      %v4512 = vrot.slane %v4511, 4
      %v4513 = vmax.f32 %v4511, %v4512
      %v4514 = vrot.slane %v4513, 2
      %v4515 = vmax.f32 %v4513, %v4514
      %v4516 = vrot.slane %v4515, 1
      %v4517 = vmax.f32 %v4515, %v4516
      %v4518 = vsel %vm4279, %v4208, -inf
      %v4519 = vrot.slane %v4518, 4
      %v4520 = vmax.f32 %v4518, %v4519
      %v4521 = vrot.slane %v4520, 2
      %v4522 = vmax.f32 %v4520, %v4521
      %v4523 = vrot.slane %v4522, 1
      %v4524 = vmax.f32 %v4522, %v4523
      %v4525 = vsel %vm4279, %v4209, -inf
      %v4526 = vrot.slane %v4525, 4
      %v4527 = vmax.f32 %v4525, %v4526
      %v4528 = vrot.slane %v4527, 2
      %v4529 = vmax.f32 %v4527, %v4528
      %v4530 = vrot.slane %v4529, 1
      %v4531 = vmax.f32 %v4529, %v4530
      %v4532 = vsel %vm4279, %v4160, -inf
      %v4533 = vrot.slane %v4532, 4
      %v4534 = vmax.f32 %v4532, %v4533
      %v4535 = vrot.slane %v4534, 2
      %v4536 = vmax.f32 %v4534, %v4535
      %v4537 = vrot.slane %v4536, 1
      %v4538 = vmax.f32 %v4536, %v4537
      %v4539 = vsel %vm4279, %v4210, -inf
      %v4540 = vrot.slane %v4539, 4
      %v4541 = vmax.f32 %v4539, %v4540
      %v4542 = vrot.slane %v4541, 2
      %v4543 = vmax.f32 %v4541, %v4542
      %v4544 = vrot.slane %v4543, 1
      %v4545 = vmax.f32 %v4543, %v4544
      %v4546 = vsel %vm4279, %v4211, -inf
      %v4547 = vrot.slane %v4546, 4
      %v4548 = vmax.f32 %v4546, %v4547
      %v4549 = vrot.slane %v4548, 2
      %v4550 = vmax.f32 %v4548, %v4549
      %v4551 = vrot.slane %v4550, 1
      %v4552 = vmax.f32 %v4550, %v4551
      %v4553 = vsel %vm4279, %v4212, -inf
      %v4554 = vrot.slane %v4553, 4
      %v4555 = vmax.f32 %v4553, %v4554
      %v4556 = vrot.slane %v4555, 2
      %v4557 = vmax.f32 %v4555, %v4556
      %v4558 = vrot.slane %v4557, 1
      %v4559 = vmax.f32 %v4557, %v4558
      %v4560 = vsel %vm4279, %v4161, -inf
      %v4561 = vrot.slane %v4560, 4
      %v4562 = vmax.f32 %v4560, %v4561
      %v4563 = vrot.slane %v4562, 2
      %v4564 = vmax.f32 %v4562, %v4563
      %v4565 = vrot.slane %v4564, 1
      %v4566 = vmax.f32 %v4564, %v4565
      %v4567 = vsel %vm4279, %v4213, -inf
      %v4568 = vrot.slane %v4567, 4
      %v4569 = vmax.f32 %v4567, %v4568
      %v4570 = vrot.slane %v4569, 2
      %v4571 = vmax.f32 %v4569, %v4570
      %v4572 = vrot.slane %v4571, 1
      %v4573 = vmax.f32 %v4571, %v4572
      %v4574 = vsel %vm4279, %v4214, -inf
      %v4575 = vrot.slane %v4574, 4
      %v4576 = vmax.f32 %v4574, %v4575
      %v4577 = vrot.slane %v4576, 2
      %v4578 = vmax.f32 %v4576, %v4577
      %v4579 = vrot.slane %v4578, 1
      %v4580 = vmax.f32 %v4578, %v4579
      %v4581 = vsel %vm4279, %v4215, -inf
      %v4582 = vrot.slane %v4581, 4
      %v4583 = vmax.f32 %v4581, %v4582
      %v4584 = vrot.slane %v4583, 2
      %v4585 = vmax.f32 %v4583, %v4584
      %v4586 = vrot.slane %v4585, 1
      %v4587 = vmax.f32 %v4585, %v4586
      %v4588 = vsel %vm4279, %v4162, -inf
      %v4589 = vrot.slane %v4588, 4
      %v4590 = vmax.f32 %v4588, %v4589
      %v4591 = vrot.slane %v4590, 2
      %v4592 = vmax.f32 %v4590, %v4591
      %v4593 = vrot.slane %v4592, 1
      %v4594 = vmax.f32 %v4592, %v4593
      %v4595 = vsel %vm4279, %v4216, -inf
      %v4596 = vrot.slane %v4595, 4
      %v4597 = vmax.f32 %v4595, %v4596
      %v4598 = vrot.slane %v4597, 2
      %v4599 = vmax.f32 %v4597, %v4598
      %v4600 = vrot.slane %v4599, 1
      %v4601 = vmax.f32 %v4599, %v4600
      %v4602 = vsel %vm4279, %v4217, -inf
      %v4603 = vrot.slane %v4602, 4
      %v4604 = vmax.f32 %v4602, %v4603
      %v4605 = vrot.slane %v4604, 2
      %v4606 = vmax.f32 %v4604, %v4605
      %v4607 = vrot.slane %v4606, 1
      %v4608 = vmax.f32 %v4606, %v4607
      %v4609 = vsel %vm4279, %v4218, -inf
      %v4610 = vrot.slane %v4609, 4
      %v4611 = vmax.f32 %v4609, %v4610
      %v4612 = vrot.slane %v4611, 2
      %v4613 = vmax.f32 %v4611, %v4612
      %v4614 = vrot.slane %v4613, 1
      %v4615 = vmax.f32 %v4613, %v4614
      %v4616 = vsel %vm4279, %v4163, -inf
      %v4617 = vrot.slane %v4616, 4
      %v4618 = vmax.f32 %v4616, %v4617
      %v4619 = vrot.slane %v4618, 2
      %v4620 = vmax.f32 %v4618, %v4619
      %v4621 = vrot.slane %v4620, 1
      %v4622 = vmax.f32 %v4620, %v4621
      %v4623 = vsel %vm4279, %v4219, -inf
      %v4624 = vrot.slane %v4623, 4
      %v4625 = vmax.f32 %v4623, %v4624
      %v4626 = vrot.slane %v4625, 2
      %v4627 = vmax.f32 %v4625, %v4626
      %v4628 = vrot.slane %v4627, 1
      %v4629 = vmax.f32 %v4627, %v4628
      %v4630 = vsel %vm4279, %v4220, -inf
      %v4631 = vrot.slane %v4630, 4
      %v4632 = vmax.f32 %v4630, %v4631
      %v4633 = vrot.slane %v4632, 2
      %v4634 = vmax.f32 %v4632, %v4633
      %v4635 = vrot.slane %v4634, 1
      %v4636 = vmax.f32 %v4634, %v4635
      %v4637 = vsel %vm4279, %v4221, -inf
      %v4638 = vrot.slane %v4637, 4
      %v4639 = vmax.f32 %v4637, %v4638
      %v4640 = vrot.slane %v4639, 2
      %v4641 = vmax.f32 %v4639, %v4640
      %v4642 = vrot.slane %v4641, 1
      %v4643 = vmax.f32 %v4641, %v4642
      %v4644 = vsel %vm4279, %v4164, -inf
      %v4645 = vrot.slane %v4644, 4
      %v4646 = vmax.f32 %v4644, %v4645
      %v4647 = vrot.slane %v4646, 2
      %v4648 = vmax.f32 %v4646, %v4647
      %v4649 = vrot.slane %v4648, 1
      %v4650 = vmax.f32 %v4648, %v4649
      %v4651 = vsel %vm4279, %v4222, -inf
      %v4652 = vrot.slane %v4651, 4
      %v4653 = vmax.f32 %v4651, %v4652
      %v4654 = vrot.slane %v4653, 2
      %v4655 = vmax.f32 %v4653, %v4654
      %v4656 = vrot.slane %v4655, 1
      %v4657 = vmax.f32 %v4655, %v4656
      %v4658 = vsel %vm4279, %v4223, -inf
      %v4659 = vrot.slane %v4658, 4
      %v4660 = vmax.f32 %v4658, %v4659
      %v4661 = vrot.slane %v4660, 2
      %v4662 = vmax.f32 %v4660, %v4661
      %v4663 = vrot.slane %v4662, 1
      %v4664 = vmax.f32 %v4662, %v4663
      %v4665 = vsel %vm4279, %v4224, -inf
      %v4666 = vrot.slane %v4665, 4
      %v4667 = vmax.f32 %v4665, %v4666
      %v4668 = vrot.slane %v4667, 2
      %v4669 = vmax.f32 %v4667, %v4668
      %v4670 = vrot.slane %v4669, 1
      %v4671 = vmax.f32 %v4669, %v4670
      %v4672 = vsel %vm4279, %v4165, -inf
      %v4673 = vrot.slane %v4672, 4
      %v4674 = vmax.f32 %v4672, %v4673
      %v4675 = vrot.slane %v4674, 2
      %v4676 = vmax.f32 %v4674, %v4675
      %v4677 = vrot.slane %v4676, 1
      %v4678 = vmax.f32 %v4676, %v4677
      %v4679 = vsel %vm4279, %v4225, -inf
      %v4680 = vrot.slane %v4679, 4
      %v4681 = vmax.f32 %v4679, %v4680
      %v4682 = vrot.slane %v4681, 2
      %v4683 = vmax.f32 %v4681, %v4682
      %v4684 = vrot.slane %v4683, 1
      %v4685 = vmax.f32 %v4683, %v4684
      %v4686 = vsel %vm4279, %v4226, -inf
      %v4687 = vrot.slane %v4686, 4
      %v4688 = vmax.f32 %v4686, %v4687
      %v4689 = vrot.slane %v4688, 2
      %v4690 = vmax.f32 %v4688, %v4689
      %v4691 = vrot.slane %v4690, 1
      %v4692 = vmax.f32 %v4690, %v4691
      %v4693 = vsel %vm4279, %v4227, -inf
      %v4694 = vrot.slane %v4693, 4
      %v4695 = vmax.f32 %v4693, %v4694
      %v4696 = vrot.slane %v4695, 2
      %v4697 = vmax.f32 %v4695, %v4696
      %v4698 = vrot.slane %v4697, 1
      %v4699 = vmax.f32 %v4697, %v4698
      %v4700 = vsel %vm4279, %v4166, -inf
      %v4701 = vrot.slane %v4700, 4
      %v4702 = vmax.f32 %v4700, %v4701
      %v4703 = vrot.slane %v4702, 2
      %v4704 = vmax.f32 %v4702, %v4703
      %v4705 = vrot.slane %v4704, 1
      %v4706 = vmax.f32 %v4704, %v4705
      %v4707 = vsel %vm4279, %v4228, -inf
      %v4708 = vrot.slane %v4707, 4
      %v4709 = vmax.f32 %v4707, %v4708
      %v4710 = vrot.slane %v4709, 2
      %v4711 = vmax.f32 %v4709, %v4710
      %v4712 = vrot.slane %v4711, 1
      %v4713 = vmax.f32 %v4711, %v4712
      %v4714 = vsel %vm4279, %v4229, -inf
      %v4715 = vrot.slane %v4714, 4
      %v4716 = vmax.f32 %v4714, %v4715
      %v4717 = vrot.slane %v4716, 2
      %v4718 = vmax.f32 %v4716, %v4717
      %v4719 = vrot.slane %v4718, 1
      %v4720 = vmax.f32 %v4718, %v4719
      %v4721 = vsel %vm4279, %v4230, -inf
      %v4722 = vrot.slane %v4721, 4
      %v4723 = vmax.f32 %v4721, %v4722
      %v4724 = vrot.slane %v4723, 2
      %v4725 = vmax.f32 %v4723, %v4724
      %v4726 = vrot.slane %v4725, 1
      %v4727 = vmax.f32 %v4725, %v4726
      %v4728 = vpack.c.bf16 %v4286, %v4286
      %v4729 = vpack.c.bf16 %v4293, %v4293
      %v4730 = vpack.c.bf16 %v4300, %v4300
      %v4731 = vpack.c.bf16 %v4307, %v4307
      %v4732 = vpack.c.bf16 %v4314, %v4314
      %v4733 = vpack.c.bf16 %v4321, %v4321
      %v4734 = vpack.c.bf16 %v4328, %v4328
      %v4735 = vpack.c.bf16 %v4335, %v4335
      %v4736 = vpack.c.bf16 %v4342, %v4342
      %v4737 = vpack.c.bf16 %v4349, %v4349
      %v4738 = vpack.c.bf16 %v4356, %v4356
      %v4739 = vpack.c.bf16 %v4363, %v4363
      %v4740 = vpack.c.bf16 %v4370, %v4370
      %v4741 = vpack.c.bf16 %v4377, %v4377
      %v4742 = vpack.c.bf16 %v4384, %v4384
      %v4743 = vpack.c.bf16 %v4391, %v4391
      %v4744 = vpack.c.bf16 %v4398, %v4398
      %v4745 = vpack.c.bf16 %v4405, %v4405
      %v4746 = vpack.c.bf16 %v4412, %v4412
      %v4747 = vpack.c.bf16 %v4419, %v4419
      %v4748 = vpack.c.bf16 %v4426, %v4426
      %v4749 = vpack.c.bf16 %v4433, %v4433
      %v4750 = vpack.c.bf16 %v4440, %v4440
      %v4751 = vpack.c.bf16 %v4447, %v4447
      %v4752 = vpack.c.bf16 %v4454, %v4454
      %v4753 = vpack.c.bf16 %v4461, %v4461
      %v4754 = vpack.c.bf16 %v4468, %v4468
      %v4755 = vpack.c.bf16 %v4475, %v4475
      %v4756 = vpack.c.bf16 %v4482, %v4482
      %v4757 = vpack.c.bf16 %v4489, %v4489
      %v4758 = vpack.c.bf16 %v4496, %v4496
      %v4759 = vpack.c.bf16 %v4503, %v4503
      %v4760 = vpack.c.bf16 %v4510, %v4510
      %v4761 = vpack.c.bf16 %v4517, %v4517
      %v4762 = vpack.c.bf16 %v4524, %v4524
      %v4763 = vpack.c.bf16 %v4531, %v4531
      %v4764 = vpack.c.bf16 %v4538, %v4538
      %v4765 = vpack.c.bf16 %v4545, %v4545
      %v4766 = vpack.c.bf16 %v4552, %v4552
      %v4767 = vpack.c.bf16 %v4559, %v4559
      %v4768 = vpack.c.bf16 %v4566, %v4566
      %v4769 = vpack.c.bf16 %v4573, %v4573
      %v4770 = vpack.c.bf16 %v4580, %v4580
      %v4771 = vpack.c.bf16 %v4587, %v4587
      %v4772 = vpack.c.bf16 %v4594, %v4594
      %v4773 = vpack.c.bf16 %v4601, %v4601
      %v4774 = vpack.c.bf16 %v4608, %v4608
      %v4775 = vpack.c.bf16 %v4615, %v4615
      %v4776 = vpack.c.bf16 %v4622, %v4622
      %v4777 = vpack.c.bf16 %v4629, %v4629
      %v4778 = vpack.c.bf16 %v4636, %v4636
      %v4779 = vpack.c.bf16 %v4643, %v4643
      %v4780 = vpack.c.bf16 %v4650, %v4650
      %v4781 = vpack.c.bf16 %v4657, %v4657
      %v4782 = vpack.c.bf16 %v4664, %v4664
      %v4783 = vpack.c.bf16 %v4671, %v4671
      %v4784 = vpack.c.bf16 %v4678, %v4678
      %v4785 = vpack.c.bf16 %v4685, %v4685
      %v4786 = vpack.c.bf16 %v4692, %v4692
      %v4787 = vpack.c.bf16 %v4699, %v4699
      %v4788 = vpack.c.bf16 %v4706, %v4706
      %v4789 = vpack.c.bf16 %v4713, %v4713
      %v4790 = vpack.c.bf16 %v4720, %v4720
      %v4791 = vpack.c.bf16 %v4727, %v4727
      %v4856 = vunpack.c.l.b16 %v4728
      %v4857 = vunpack.c.l.b16 %v4729
      %v4858 = vunpack.c.l.b16 %v4730
      %v4859 = vunpack.c.l.b16 %v4731
      %v4860 = vunpack.c.l.b16 %v4732
      %v4861 = vunpack.c.l.b16 %v4733
      %v4862 = vunpack.c.l.b16 %v4734
      %v4863 = vunpack.c.l.b16 %v4735
      %v4864 = vunpack.c.l.b16 %v4736
      %v4865 = vunpack.c.l.b16 %v4737
      %v4866 = vunpack.c.l.b16 %v4738
      %v4867 = vunpack.c.l.b16 %v4739
      %v4868 = vunpack.c.l.b16 %v4740
      %v4869 = vunpack.c.l.b16 %v4741
      %v4870 = vunpack.c.l.b16 %v4742
      %v4871 = vunpack.c.l.b16 %v4743
      %v4872 = vunpack.c.l.b16 %v4744
      %v4873 = vunpack.c.l.b16 %v4745
      %v4874 = vunpack.c.l.b16 %v4746
      %v4875 = vunpack.c.l.b16 %v4747
      %v4876 = vunpack.c.l.b16 %v4748
      %v4877 = vunpack.c.l.b16 %v4749
      %v4878 = vunpack.c.l.b16 %v4750
      %v4879 = vunpack.c.l.b16 %v4751
      %v4880 = vunpack.c.l.b16 %v4752
      %v4881 = vunpack.c.l.b16 %v4753
      %v4882 = vunpack.c.l.b16 %v4754
      %v4883 = vunpack.c.l.b16 %v4755
      %v4884 = vunpack.c.l.b16 %v4756
      %v4885 = vunpack.c.l.b16 %v4757
      %v4886 = vunpack.c.l.b16 %v4758
      %v4887 = vunpack.c.l.b16 %v4759
      %v4888 = vunpack.c.l.b16 %v4760
      %v4889 = vunpack.c.l.b16 %v4761
      %v4890 = vunpack.c.l.b16 %v4762
      %v4891 = vunpack.c.l.b16 %v4763
      %v4892 = vunpack.c.l.b16 %v4764
      %v4893 = vunpack.c.l.b16 %v4765
      %v4894 = vunpack.c.l.b16 %v4766
      %v4895 = vunpack.c.l.b16 %v4767
      %v4896 = vunpack.c.l.b16 %v4768
      %v4897 = vunpack.c.l.b16 %v4769
      %v4898 = vunpack.c.l.b16 %v4770
      %v4899 = vunpack.c.l.b16 %v4771
      %v4900 = vunpack.c.l.b16 %v4772
      %v4901 = vunpack.c.l.b16 %v4773
      %v4902 = vunpack.c.l.b16 %v4774
      %v4903 = vunpack.c.l.b16 %v4775
      %v4904 = vunpack.c.l.b16 %v4776
      %v4905 = vunpack.c.l.b16 %v4777
      %v4906 = vunpack.c.l.b16 %v4778
      %v4907 = vunpack.c.l.b16 %v4779
      %v4908 = vunpack.c.l.b16 %v4780
      %v4909 = vunpack.c.l.b16 %v4781
      %v4910 = vunpack.c.l.b16 %v4782
      %v4911 = vunpack.c.l.b16 %v4783
      %v4912 = vunpack.c.l.b16 %v4784
      %v4913 = vunpack.c.l.b16 %v4785
      %v4914 = vunpack.c.l.b16 %v4786
      %v4915 = vunpack.c.l.b16 %v4787
      %v4916 = vunpack.c.l.b16 %v4788
      %v4917 = vunpack.c.l.b16 %v4789
      %v4918 = vunpack.c.l.b16 %v4790
      %v4919 = vunpack.c.l.b16 %v4791
      %vm4920 = vcmask 1041409
      %v4921 = vsel %vm4920, %v4857, %v4856
      %vm4922 = vcmask 1042434
      %v4923 = vsel %vm4922, %v4858, %v4921
      %vm4924 = vcmask 1043459
      %v4925 = vsel %vm4924, %v4859, %v4923
      %vm4926 = vcmask 1044484
      %v4927 = vsel %vm4926, %v4860, %v4925
      %vm4928 = vcmask 1045509
      %v4929 = vsel %vm4928, %v4861, %v4927
      %vm4930 = vcmask 1046534
      %v4931 = vsel %vm4930, %v4862, %v4929
      %vm4932 = vcmask 1047559
      %v4933 = vsel %vm4932, %v4863, %v4931
      %v4934 = vsel %vm4920, %v4865, %v4864
      %v4935 = vsel %vm4922, %v4866, %v4934
      %v4936 = vsel %vm4924, %v4867, %v4935
      %v4937 = vsel %vm4926, %v4868, %v4936
      %v4938 = vsel %vm4928, %v4869, %v4937
      %v4939 = vsel %vm4930, %v4870, %v4938
      %v4940 = vsel %vm4932, %v4871, %v4939
      %v4941 = vsel %vm4920, %v4873, %v4872
      %v4942 = vsel %vm4922, %v4874, %v4941
      %v4943 = vsel %vm4924, %v4875, %v4942
      %v4944 = vsel %vm4926, %v4876, %v4943
      %v4945 = vsel %vm4928, %v4877, %v4944
      %v4946 = vsel %vm4930, %v4878, %v4945
      %v4947 = vsel %vm4932, %v4879, %v4946
      %v4948 = vsel %vm4920, %v4881, %v4880
      %v4949 = vsel %vm4922, %v4882, %v4948
      %v4950 = vsel %vm4924, %v4883, %v4949
      %v4951 = vsel %vm4926, %v4884, %v4950
      %v4952 = vsel %vm4928, %v4885, %v4951
      %v4953 = vsel %vm4930, %v4886, %v4952
      %v4954 = vsel %vm4932, %v4887, %v4953
      %v4955 = vsel %vm4920, %v4889, %v4888
      %v4956 = vsel %vm4922, %v4890, %v4955
      %v4957 = vsel %vm4924, %v4891, %v4956
      %v4958 = vsel %vm4926, %v4892, %v4957
      %v4959 = vsel %vm4928, %v4893, %v4958
      %v4960 = vsel %vm4930, %v4894, %v4959
      %v4961 = vsel %vm4932, %v4895, %v4960
      %v4962 = vsel %vm4920, %v4897, %v4896
      %v4963 = vsel %vm4922, %v4898, %v4962
      %v4964 = vsel %vm4924, %v4899, %v4963
      %v4965 = vsel %vm4926, %v4900, %v4964
      %v4966 = vsel %vm4928, %v4901, %v4965
      %v4967 = vsel %vm4930, %v4902, %v4966
      %v4968 = vsel %vm4932, %v4903, %v4967
      %v4969 = vsel %vm4920, %v4905, %v4904
      %v4970 = vsel %vm4922, %v4906, %v4969
      %v4971 = vsel %vm4924, %v4907, %v4970
      %v4972 = vsel %vm4926, %v4908, %v4971
      %v4973 = vsel %vm4928, %v4909, %v4972
      %v4974 = vsel %vm4930, %v4910, %v4973
      %v4975 = vsel %vm4932, %v4911, %v4974
      %v4976 = vsel %vm4920, %v4913, %v4912
      %v4977 = vsel %vm4922, %v4914, %v4976
      %v4978 = vsel %vm4924, %v4915, %v4977
      %v4979 = vsel %vm4926, %v4916, %v4978
      %v4980 = vsel %vm4928, %v4917, %v4979
      %v4981 = vsel %vm4930, %v4918, %v4980
      %v4982 = vsel %vm4932, %v4919, %v4981
      %v4983 = vpack.c.b16 %v4933, %v4933
      %v4984 = vpack.c.b16 %v4940, %v4940
      %v4985 = vpack.c.b16 %v4947, %v4947
      %v4986 = vpack.c.b16 %v4954, %v4954
      %v4987 = vpack.c.b16 %v4961, %v4961
      %v4988 = vpack.c.b16 %v4968, %v4968
      %v4989 = vpack.c.b16 %v4975, %v4975
      %v4990 = vpack.c.b16 %v4982, %v4982
      %4999 = vst [vmem:[%s170] sm:$0xf] %v4983
      %5000 = vst [vmem:[%s170 + $0x4] sm:$0xf] %v4984
      %5001 = vst [vmem:[%s170 + $0x8] sm:$0xf] %v4985
      %5002 = vst [vmem:[%s170 + $0xc] sm:$0xf] %v4986
      %5003 = vst [vmem:[%s170 + $0x10] sm:$0xf] %v4987
      %5004 = vst [vmem:[%s170 + $0x14] sm:$0xf] %v4988
      %5005 = vst [vmem:[%s170 + $0x18] sm:$0xf] %v4989
      %5006 = vst [vmem:[%s170 + $0x1c] sm:$0xf] %v4990
      %p5007 = scmp.lt.s32.totalorder %s14, 1
      %s5008 = scalar_select %p5007, %s14, 1
      %s5009 = smul.addr %s5008, 8
      %s5010 = smul.addr %s5009, 4
      %s5011 = scalar_lea.vmem %s3, %s5010
      // Predicated region
      $region33: #{forward.3} parent=31 // pred_check
        %p5012 = pneg %p100
      $region34: #{forward.3} parent=31 // pred_check_branch
        %5014 = sbr.rel (%p5012) target = $region36
      $region35: #{forward.3} parent=31 // pred_region
        _
      $region36: #{forward.3} parent=31 // pred_fallthru
        _
    $region32: #{forward.3} parent=5 // pred_fallthru
      _
    %p5015 = scmp.le.s32.totalorder 2, %s9
    // Predicated region
    $region37: #{forward.3} parent=5 // pred_check
      %p5016 = pneg %p5015
    $region38: #{forward.3} parent=5 // pred_check_branch
      %5018 = sbr.rel (%p5016) target = $region40
    $region39: #{forward.3} parent=5 // pred_region
      %s5019 = ssub.s32 %s9, 2
      // Predicated region
      $region41: #{forward.3} parent=39 // pred_check
        %p5020 = pneg %p106
      $region42: #{forward.3} parent=39 // pred_check_branch
        %5022 = sbr.rel (%p5020) target = $region44
      $region43: #{forward.3} parent=39 // pred_region
        %p5023 = scmp.lt.s32.totalorder %s15, 1
        %s5024 = scalar_select %p5023, %s15, 1
        %s5025 = smul.addr %s5024, 8
        %s5026 = smul.addr %s5025, 4
        %s5027 = scalar_lea.vmem %s3, %s5026
      $region44: #{forward.3} parent=39 // pred_fallthru
        _
    $region40: #{forward.3} parent=5 // pred_fallthru
      _
  $region6: #{forward.3} parent=0 // loop_footer
    %s13 = sadd.s32 1, %s9
  $region7: #{forward.3} parent=0 // loop_footer_branch
    %8 = sbr.rel target = $region3
  $region8: #{forward.3} parent=0 // loop_exit
    _

</llo_original>
